<compile_context>
chip_gen: v7x
topology: tpu7x:2x2x1
jax: 0.10.0
libtpu: 0.0.40
codegen_flags: <defaults>
</compile_context>

<pallas_src>
import functools
import math

import jax
import jax.numpy as jnp
from jax import lax
from jax.experimental import pallas as pl
from jax.experimental.pallas import tpu as pltpu


_NEG = -1e30  # additive mask value; exp() underflows to exactly 0 in f32


# ----------------------------- kernel helpers -----------------------------

def _mm(a, b):
    """MXU matmul with bf16 operands and f32 accumulation."""
    return jnp.dot(a.astype(jnp.bfloat16), b.astype(jnp.bfloat16),
                   preferred_element_type=jnp.float32)


def _layer_norm(x, gamma, beta, eps=1e-5):
    mu = jnp.mean(x, axis=-1, keepdims=True)
    var = jnp.mean(jnp.square(x - mu), axis=-1, keepdims=True)
    return (x - mu) * lax.rsqrt(var + eps) * gamma + beta


def _gelu(x):
    # TODO(synk): PyTorch nn.GELU() defaults to the exact erf form; the tanh
    # approximation is used because lax.erf has no guaranteed Mosaic lowering.
    c = math.sqrt(2.0 / math.pi)
    return 0.5 * x * (1.0 + jnp.tanh(c * (x + 0.044715 * x * x * x)))


def _mha(q_in, kv_in, wq, bq, wk, bk, wv, bv, wo, bo, bias, heads):
    """Multi-head attention on flattened rows.

    `bias` is an additive mask (0 where attending is allowed, -1e30 elsewhere)
    that encodes the block-diagonal per-group structure, so everything is a
    plain 2-D matmul.  Attention-dropout is identity (eval mode).
    """
    d = wo.shape[-1]
    e = d // heads
    scale = e ** (-0.5)

    q = (_mm(q_in, wq) + bq) * scale    # (L, d)  scale folded into Q once
    k = _mm(kv_in, wk) + bk             # (S, d)
    v = _mm(kv_in, wv) + bv             # (S, d)
    kt = k.T                            # one transpose, reused by every head

    out = jnp.zeros((q_in.shape[0], d), jnp.float32) + bo
    for h in range(heads):              # static unroll over heads
        lo, hi = h * e, (h + 1) * e
        s = _mm(q[:, lo:hi], kt[lo:hi, :]) + bias                # (L, S)
        s = s - jnp.max(s, axis=-1, keepdims=True)
        p = jnp.exp(s)
        p = p * pl.reciprocal(jnp.sum(p, axis=-1, keepdims=True), approx=True)
        ctx = _mm(p, v[:, lo:hi])                                # (L, e)
        out = out + _mm(ctx, wo[lo:hi, :])                       # accumulate, no concat
    return out


# ----------------------------- the fused kernel -----------------------------

def _tsa_kernel(x_ref, router_ref, bias_t_ref, bias_s_ref, bias_r_ref, *rest,
                heads):
    *w, o_ref = rest
    it = iter(w)
    take = lambda n: [next(it)[...] for _ in range(n)]

    ta_wq, ta_bq, ta_wk, ta_bk, ta_wv, ta_bv, ta_wo, ta_bo = take(8)
    n1_g, n1_b = take(2)
    m1_w1, m1_b1, m1_w2, m1_b2 = take(4)
    n2_g, n2_b = take(2)
    sd_wq, sd_bq, sd_wk, sd_bk, sd_wv, sd_bv, sd_wo, sd_bo = take(8)
    rc_wq, rc_bq, rc_wk, rc_bk, rc_wv, rc_bv, rc_wo, rc_bo = take(8)
    n3_g, n3_b = take(2)
    m2_w1, m2_b1, m2_w2, m2_b2 = take(4)
    n4_g, n4_b = take(2)

    x = x_ref[0]                 # (dd*seg, d)   rows r = data_dim_idx*seg + s
    router = router_ref[...]     # (seg*factor, d)  rows t = s*factor + f

    # ---- stage 1: cross-time attention (block-diagonal over data_dim groups)
    attn = _mha(x, x, ta_wq, ta_bq, ta_wk, ta_bk, ta_wv, ta_bv, ta_wo, ta_bo,
                bias_t_ref[...], heads)
    h1 = _layer_norm(x + attn, n1_g, n1_b)
    m1 = _mm(_gelu(_mm(h1, m1_w1) + m1_b1), m1_w2) + m1_b2
    h1 = _layer_norm(h1 + m1, n2_g, n2_b)

    # ---- stage 2: router-mediated cross-dimension attention ----------------
    buf = _mha(router, h1, sd_wq, sd_bq, sd_wk, sd_bk, sd_wv, sd_bv, sd_wo,
               sd_bo, bias_s_ref[...], heads)                    # (seg*factor, d)
    rcv = _mha(h1, buf, rc_wq, rc_bq, rc_wk, rc_bk, rc_wv, rc_bv, rc_wo,
               rc_bo, bias_r_ref[...], heads)                    # (dd*seg, d)
    h2 = _layer_norm(h1 + rcv, n3_g, n3_b)
    m2 = _mm(_gelu(_mm(h2, m2_w1) + m2_b1), m2_w2) + m2_b2
    h2 = _layer_norm(h2 + m2, n4_g, n4_b)

    o_ref[0] = h2                # rows r = di*seg + s  -> (b, dd, seg, d) slab


# ----------------------------- host wrapper -----------------------------

def _flatten_params(p):
    def attn(a):
        return [a["wq"], a["bq"], a["wk"], a["bk"],
                a["wv"], a["bv"], a["wo"], a["bo"]]
    def norm(n):
        return [n["gamma"], n["beta"]]
    def mlp(m):
        return [m["w1"], m["b1"], m["w2"], m["b2"]]
    return (attn(p["time_attention"]) + norm(p["norm1"]) + mlp(p["mlp1"])
            + norm(p["norm2"]) + attn(p["dim_sender"]) + attn(p["dim_receiver"])
            + norm(p["norm3"]) + mlp(p["mlp2"]) + norm(p["norm4"]))


def two_stage_attention(x, params, heads):
    """Forward pass of TwoStageAttentionLayer.  x: (b, data_dim, seg_num, d)."""
    b, dd, seg, d = x.shape
    seg_r, factor, _ = params["router"].shape
    assert seg_r == seg
    R = dd * seg
    T = seg * factor

    # Pure-metadata reshapes (no HBM passes, no transposes).
    x_flat = x.reshape(b, R, d)
    router_flat = params["router"].reshape(T, d)

    # Additive masks encoding the per-group attention structure (constants
    # under jit; computed once).
    r_idx = jnp.arange(R, dtype=jnp.int32)
    t_idx = jnp.arange(T, dtype=jnp.int32)
    bias_time = jnp.where((r_idx[:, None] // seg) == (r_idx[None, :] // seg),
                          0.0, _NEG).astype(jnp.float32)
    bias_snd = jnp.where((t_idx[:, None] // factor) == (r_idx[None, :] % seg),
                         0.0, _NEG).astype(jnp.float32)
    bias_rcv = jnp.where((r_idx[:, None] % seg) == (t_idx[None, :] // factor),
                         0.0, _NEG).astype(jnp.float32)

    weights = _flatten_params(params)

    in_specs = ([pl.BlockSpec((1, R, d), lambda i: (i, 0, 0)),
                 pl.BlockSpec((T, d), lambda i: (0, 0)),
                 pl.BlockSpec((R, R), lambda i: (0, 0)),
                 pl.BlockSpec((T, R), lambda i: (0, 0)),
                 pl.BlockSpec((R, T), lambda i: (0, 0))]
                + [pl.BlockSpec(w.shape, lambda i: (0, 0)) for w in weights])

    out = pl.pallas_call(
        functools.partial(_tsa_kernel, heads=heads),
        out_shape=jax.ShapeDtypeStruct((b, R, d), jnp.float32),
        grid=(b,),
        in_specs=in_specs,
        out_specs=pl.BlockSpec((1, R, d), lambda i: (i, 0, 0)),
        compiler_params=pltpu.CompilerParams(
            dimension_semantics=("parallel",)),
    )(x_flat, router_flat, bias_time, bias_snd, bias_rcv, *weights)

    return out.reshape(b, dd, seg, d)


# ----------------------------- parameter init -----------------------------

def _init_linear(key, fan_in, fan_out, scale=0.1):
    kw, kb = jax.random.split(key)
    return (jax.random.normal(kw, (fan_in, fan_out), jnp.float32) * scale,
            jax.random.normal(kb, (1, fan_out), jnp.float32) * scale)


def _init_attention(key, d):
    ks = jax.random.split(key, 4)
    wq, bq = _init_linear(ks[0], d, d)
    wk, bk = _init_linear(ks[1], d, d)
    wv, bv = _init_linear(ks[2], d, d)
    wo, bo = _init_linear(ks[3], d, d)
    return dict(wq=wq, bq=bq, wk=wk, bk=bk, wv=wv, bv=bv, wo=wo, bo=bo)


def _init_norm(d):
    return dict(gamma=jnp.ones((1, d), jnp.float32),
                beta=jnp.zeros((1, d), jnp.float32))


def _init_mlp(key, d, f):
    k1, k2 = jax.random.split(key)
    w1, b1 = _init_linear(k1, d, f)
    w2, b2 = _init_linear(k2, f, d)
    return dict(w1=w1, b1=b1, w2=w2, b2=b2)


def init_two_stage_params(key, seg_num, factor, model_dim, feedforward_dim):
    ks = jax.random.split(key, 6)
    return dict(
        time_attention=_init_attention(ks[0], model_dim),
        dim_sender=_init_attention(ks[1], model_dim),
        dim_receiver=_init_attention(ks[2], model_dim),
        router=jax.random.normal(ks[3], (seg_num, factor, model_dim), jnp.float32),
        mlp1=_init_mlp(ks[4], model_dim, feedforward_dim),
        mlp2=_init_mlp(ks[5], model_dim, feedforward_dim),
        norm1=_init_norm(model_dim),
        norm2=_init_norm(model_dim),
        norm3=_init_norm(model_dim),
        norm4=_init_norm(model_dim),
    )


# ----------------------------- demo -----------------------------

if __name__ == "__main__":
    batch, data_dim, seg_num, model_dim = 2, 4, 8, 32
    heads_num, factor = 4, 2
    feedforward_dim = 4 * model_dim

    key = jax.random.PRNGKey(0)
    kx, kp = jax.random.split(key)
    x = jax.random.normal(kx, (batch, data_dim, seg_num, model_dim), jnp.float32)
    params = init_two_stage_params(kp, seg_num, factor, model_dim, feedforward_dim)

    fwd = jax.jit(functools.partial(two_stage_attention, heads=heads_num))
    out = fwd(x, params)
    jax.block_until_ready(out)
    assert out.shape == (batch, data_dim, seg_num, model_dim)
    assert bool(jnp.all(jnp.isfinite(out)))
    print("KERNEL_OK")
</pallas_src>

<mosaic_0001>
module attributes {stable_mosaic.version = 11 : i64} {
  func.func @_tsa_kernel(%arg0: i32, %arg1: memref<1x32x32xf32, #tpu.memory_space<vmem>>, %arg2: memref<16x32xf32, #tpu.memory_space<vmem>>, %arg3: memref<32x32xf32, #tpu.memory_space<vmem>>, %arg4: memref<16x32xf32, #tpu.memory_space<vmem>>, %arg5: memref<32x16xf32, #tpu.memory_space<vmem>>, %arg6: memref<32x32xf32, #tpu.memory_space<vmem>>, %arg7: memref<1x32xf32, #tpu.memory_space<vmem>>, %arg8: memref<32x32xf32, #tpu.memory_space<vmem>>, %arg9: memref<1x32xf32, #tpu.memory_space<vmem>>, %arg10: memref<32x32xf32, #tpu.memory_space<vmem>>, %arg11: memref<1x32xf32, #tpu.memory_space<vmem>>, %arg12: memref<32x32xf32, #tpu.memory_space<vmem>>, %arg13: memref<1x32xf32, #tpu.memory_space<vmem>>, %arg14: memref<1x32xf32, #tpu.memory_space<vmem>>, %arg15: memref<1x32xf32, #tpu.memory_space<vmem>>, %arg16: memref<32x128xf32, #tpu.memory_space<vmem>>, %arg17: memref<1x128xf32, #tpu.memory_space<vmem>>, %arg18: memref<128x32xf32, #tpu.memory_space<vmem>>, %arg19: memref<1x32xf32, #tpu.memory_space<vmem>>, %arg20: memref<1x32xf32, #tpu.memory_space<vmem>>, %arg21: memref<1x32xf32, #tpu.memory_space<vmem>>, %arg22: memref<32x32xf32, #tpu.memory_space<vmem>>, %arg23: memref<1x32xf32, #tpu.memory_space<vmem>>, %arg24: memref<32x32xf32, #tpu.memory_space<vmem>>, %arg25: memref<1x32xf32, #tpu.memory_space<vmem>>, %arg26: memref<32x32xf32, #tpu.memory_space<vmem>>, %arg27: memref<1x32xf32, #tpu.memory_space<vmem>>, %arg28: memref<32x32xf32, #tpu.memory_space<vmem>>, %arg29: memref<1x32xf32, #tpu.memory_space<vmem>>, %arg30: memref<32x32xf32, #tpu.memory_space<vmem>>, %arg31: memref<1x32xf32, #tpu.memory_space<vmem>>, %arg32: memref<32x32xf32, #tpu.memory_space<vmem>>, %arg33: memref<1x32xf32, #tpu.memory_space<vmem>>, %arg34: memref<32x32xf32, #tpu.memory_space<vmem>>, %arg35: memref<1x32xf32, #tpu.memory_space<vmem>>, %arg36: memref<32x32xf32, #tpu.memory_space<vmem>>, %arg37: memref<1x32xf32, #tpu.memory_space<vmem>>, %arg38: memref<1x32xf32, #tpu.memory_space<vmem>>, %arg39: memref<1x32xf32, #tpu.memory_space<vmem>>, %arg40: memref<32x128xf32, #tpu.memory_space<vmem>>, %arg41: memref<1x128xf32, #tpu.memory_space<vmem>>, %arg42: memref<128x32xf32, #tpu.memory_space<vmem>>, %arg43: memref<1x32xf32, #tpu.memory_space<vmem>>, %arg44: memref<1x32xf32, #tpu.memory_space<vmem>>, %arg45: memref<1x32xf32, #tpu.memory_space<vmem>>, %arg46: memref<1x32x32xf32, #tpu.memory_space<vmem>>) attributes {dimension_semantics = [#tpu.dimension_semantics<parallel>], iteration_bounds = array<i64: 2>, scalar_prefetch = 0 : i64, scratch_operands = 0 : i64, tpu.core_type = #tpu.core_type<tc>, window_params = [{transform_indices = @transform_0, window_bounds = array<i64: 1, 32, 32>}, {pipeline_mode = #tpu.pipeline_mode<synchronous>, transform_indices = @transform_1, window_bounds = array<i64: 16, 32>}, {pipeline_mode = #tpu.pipeline_mode<synchronous>, transform_indices = @transform_2, window_bounds = array<i64: 32, 32>}, {pipeline_mode = #tpu.pipeline_mode<synchronous>, transform_indices = @transform_3, window_bounds = array<i64: 16, 32>}, {pipeline_mode = #tpu.pipeline_mode<synchronous>, transform_indices = @transform_4, window_bounds = array<i64: 32, 16>}, {pipeline_mode = #tpu.pipeline_mode<synchronous>, transform_indices = @transform_5, window_bounds = array<i64: 32, 32>}, {pipeline_mode = #tpu.pipeline_mode<synchronous>, transform_indices = @transform_6, window_bounds = array<i64: 1, 32>}, {pipeline_mode = #tpu.pipeline_mode<synchronous>, transform_indices = @transform_7, window_bounds = array<i64: 32, 32>}, {pipeline_mode = #tpu.pipeline_mode<synchronous>, transform_indices = @transform_8, window_bounds = array<i64: 1, 32>}, {pipeline_mode = #tpu.pipeline_mode<synchronous>, transform_indices = @transform_9, window_bounds = array<i64: 32, 32>}, {pipeline_mode = #tpu.pipeline_mode<synchronous>, transform_indices = @transform_10, window_bounds = array<i64: 1, 32>}, {pipeline_mode = #tpu.pipeline_mode<synchronous>, transform_indices = @transform_11, window_bounds = array<i64: 32, 32>}, {pipeline_mode = #tpu.pipeline_mode<synchronous>, transform_indices = @transform_12, window_bounds = array<i64: 1, 32>}, {pipeline_mode = #tpu.pipeline_mode<synchronous>, transform_indices = @transform_13, window_bounds = array<i64: 1, 32>}, {pipeline_mode = #tpu.pipeline_mode<synchronous>, transform_indices = @transform_14, window_bounds = array<i64: 1, 32>}, {pipeline_mode = #tpu.pipeline_mode<synchronous>, transform_indices = @transform_15, window_bounds = array<i64: 32, 128>}, {pipeline_mode = #tpu.pipeline_mode<synchronous>, transform_indices = @transform_16, window_bounds = array<i64: 1, 128>}, {pipeline_mode = #tpu.pipeline_mode<synchronous>, transform_indices = @transform_17, window_bounds = array<i64: 128, 32>}, {pipeline_mode = #tpu.pipeline_mode<synchronous>, transform_indices = @transform_18, window_bounds = array<i64: 1, 32>}, {pipeline_mode = #tpu.pipeline_mode<synchronous>, transform_indices = @transform_19, window_bounds = array<i64: 1, 32>}, {pipeline_mode = #tpu.pipeline_mode<synchronous>, transform_indices = @transform_20, window_bounds = array<i64: 1, 32>}, {pipeline_mode = #tpu.pipeline_mode<synchronous>, transform_indices = @transform_21, window_bounds = array<i64: 32, 32>}, {pipeline_mode = #tpu.pipeline_mode<synchronous>, transform_indices = @transform_22, window_bounds = array<i64: 1, 32>}, {pipeline_mode = #tpu.pipeline_mode<synchronous>, transform_indices = @transform_23, window_bounds = array<i64: 32, 32>}, {pipeline_mode = #tpu.pipeline_mode<synchronous>, transform_indices = @transform_24, window_bounds = array<i64: 1, 32>}, {pipeline_mode = #tpu.pipeline_mode<synchronous>, transform_indices = @transform_25, window_bounds = array<i64: 32, 32>}, {pipeline_mode = #tpu.pipeline_mode<synchronous>, transform_indices = @transform_26, window_bounds = array<i64: 1, 32>}, {pipeline_mode = #tpu.pipeline_mode<synchronous>, transform_indices = @transform_27, window_bounds = array<i64: 32, 32>}, {pipeline_mode = #tpu.pipeline_mode<synchronous>, transform_indices = @transform_28, window_bounds = array<i64: 1, 32>}, {pipeline_mode = #tpu.pipeline_mode<synchronous>, transform_indices = @transform_29, window_bounds = array<i64: 32, 32>}, {pipeline_mode = #tpu.pipeline_mode<synchronous>, transform_indices = @transform_30, window_bounds = array<i64: 1, 32>}, {pipeline_mode = #tpu.pipeline_mode<synchronous>, transform_indices = @transform_31, window_bounds = array<i64: 32, 32>}, {pipeline_mode = #tpu.pipeline_mode<synchronous>, transform_indices = @transform_32, window_bounds = array<i64: 1, 32>}, {pipeline_mode = #tpu.pipeline_mode<synchronous>, transform_indices = @transform_33, window_bounds = array<i64: 32, 32>}, {pipeline_mode = #tpu.pipeline_mode<synchronous>, transform_indices = @transform_34, window_bounds = array<i64: 1, 32>}, {pipeline_mode = #tpu.pipeline_mode<synchronous>, transform_indices = @transform_35, window_bounds = array<i64: 32, 32>}, {pipeline_mode = #tpu.pipeline_mode<synchronous>, transform_indices = @transform_36, window_bounds = array<i64: 1, 32>}, {pipeline_mode = #tpu.pipeline_mode<synchronous>, transform_indices = @transform_37, window_bounds = array<i64: 1, 32>}, {pipeline_mode = #tpu.pipeline_mode<synchronous>, transform_indices = @transform_38, window_bounds = array<i64: 1, 32>}, {pipeline_mode = #tpu.pipeline_mode<synchronous>, transform_indices = @transform_39, window_bounds = array<i64: 32, 128>}, {pipeline_mode = #tpu.pipeline_mode<synchronous>, transform_indices = @transform_40, window_bounds = array<i64: 1, 128>}, {pipeline_mode = #tpu.pipeline_mode<synchronous>, transform_indices = @transform_41, window_bounds = array<i64: 128, 32>}, {pipeline_mode = #tpu.pipeline_mode<synchronous>, transform_indices = @transform_42, window_bounds = array<i64: 1, 32>}, {pipeline_mode = #tpu.pipeline_mode<synchronous>, transform_indices = @transform_43, window_bounds = array<i64: 1, 32>}, {pipeline_mode = #tpu.pipeline_mode<synchronous>, transform_indices = @transform_44, window_bounds = array<i64: 1, 32>}, {transform_indices = @transform_45, window_bounds = array<i64: 1, 32, 32>}]} {
    %c0 = arith.constant 0 : index
    %c0_0 = arith.constant 0 : index
    %0 = vector.load %arg6[%c0, %c0_0] : memref<32x32xf32, #tpu.memory_space<vmem>>, vector<32x32xf32>
    %c0_1 = arith.constant 0 : index
    %c0_2 = arith.constant 0 : index
    %1 = vector.load %arg7[%c0_1, %c0_2] : memref<1x32xf32, #tpu.memory_space<vmem>>, vector<1x32xf32>
    %c0_3 = arith.constant 0 : index
    %c0_4 = arith.constant 0 : index
    %2 = vector.load %arg8[%c0_3, %c0_4] : memref<32x32xf32, #tpu.memory_space<vmem>>, vector<32x32xf32>
    %c0_5 = arith.constant 0 : index
    %c0_6 = arith.constant 0 : index
    %3 = vector.load %arg9[%c0_5, %c0_6] : memref<1x32xf32, #tpu.memory_space<vmem>>, vector<1x32xf32>
    %c0_7 = arith.constant 0 : index
    %c0_8 = arith.constant 0 : index
    %4 = vector.load %arg10[%c0_7, %c0_8] : memref<32x32xf32, #tpu.memory_space<vmem>>, vector<32x32xf32>
    %c0_9 = arith.constant 0 : index
    %c0_10 = arith.constant 0 : index
    %5 = vector.load %arg11[%c0_9, %c0_10] : memref<1x32xf32, #tpu.memory_space<vmem>>, vector<1x32xf32>
    %c0_11 = arith.constant 0 : index
    %c0_12 = arith.constant 0 : index
    %6 = vector.load %arg12[%c0_11, %c0_12] : memref<32x32xf32, #tpu.memory_space<vmem>>, vector<32x32xf32>
    %c0_13 = arith.constant 0 : index
    %c0_14 = arith.constant 0 : index
    %7 = vector.load %arg13[%c0_13, %c0_14] : memref<1x32xf32, #tpu.memory_space<vmem>>, vector<1x32xf32>
    %c0_15 = arith.constant 0 : index
    %c0_16 = arith.constant 0 : index
    %8 = vector.load %arg14[%c0_15, %c0_16] : memref<1x32xf32, #tpu.memory_space<vmem>>, vector<1x32xf32>
    %c0_17 = arith.constant 0 : index
    %c0_18 = arith.constant 0 : index
    %9 = vector.load %arg15[%c0_17, %c0_18] : memref<1x32xf32, #tpu.memory_space<vmem>>, vector<1x32xf32>
    %c0_19 = arith.constant 0 : index
    %c0_20 = arith.constant 0 : index
    %10 = vector.load %arg16[%c0_19, %c0_20] : memref<32x128xf32, #tpu.memory_space<vmem>>, vector<32x128xf32>
    %c0_21 = arith.constant 0 : index
    %c0_22 = arith.constant 0 : index
    %11 = vector.load %arg17[%c0_21, %c0_22] : memref<1x128xf32, #tpu.memory_space<vmem>>, vector<1x128xf32>
    %c0_23 = arith.constant 0 : index
    %c0_24 = arith.constant 0 : index
    %12 = vector.load %arg18[%c0_23, %c0_24] : memref<128x32xf32, #tpu.memory_space<vmem>>, vector<128x32xf32>
    %c0_25 = arith.constant 0 : index
    %c0_26 = arith.constant 0 : index
    %13 = vector.load %arg19[%c0_25, %c0_26] : memref<1x32xf32, #tpu.memory_space<vmem>>, vector<1x32xf32>
    %c0_27 = arith.constant 0 : index
    %c0_28 = arith.constant 0 : index
    %14 = vector.load %arg20[%c0_27, %c0_28] : memref<1x32xf32, #tpu.memory_space<vmem>>, vector<1x32xf32>
    %c0_29 = arith.constant 0 : index
    %c0_30 = arith.constant 0 : index
    %15 = vector.load %arg21[%c0_29, %c0_30] : memref<1x32xf32, #tpu.memory_space<vmem>>, vector<1x32xf32>
    %c0_31 = arith.constant 0 : index
    %c0_32 = arith.constant 0 : index
    %16 = vector.load %arg22[%c0_31, %c0_32] : memref<32x32xf32, #tpu.memory_space<vmem>>, vector<32x32xf32>
    %c0_33 = arith.constant 0 : index
    %c0_34 = arith.constant 0 : index
    %17 = vector.load %arg23[%c0_33, %c0_34] : memref<1x32xf32, #tpu.memory_space<vmem>>, vector<1x32xf32>
    %c0_35 = arith.constant 0 : index
    %c0_36 = arith.constant 0 : index
    %18 = vector.load %arg24[%c0_35, %c0_36] : memref<32x32xf32, #tpu.memory_space<vmem>>, vector<32x32xf32>
    %c0_37 = arith.constant 0 : index
    %c0_38 = arith.constant 0 : index
    %19 = vector.load %arg25[%c0_37, %c0_38] : memref<1x32xf32, #tpu.memory_space<vmem>>, vector<1x32xf32>
    %c0_39 = arith.constant 0 : index
    %c0_40 = arith.constant 0 : index
    %20 = vector.load %arg26[%c0_39, %c0_40] : memref<32x32xf32, #tpu.memory_space<vmem>>, vector<32x32xf32>
    %c0_41 = arith.constant 0 : index
    %c0_42 = arith.constant 0 : index
    %21 = vector.load %arg27[%c0_41, %c0_42] : memref<1x32xf32, #tpu.memory_space<vmem>>, vector<1x32xf32>
    %c0_43 = arith.constant 0 : index
    %c0_44 = arith.constant 0 : index
    %22 = vector.load %arg28[%c0_43, %c0_44] : memref<32x32xf32, #tpu.memory_space<vmem>>, vector<32x32xf32>
    %c0_45 = arith.constant 0 : index
    %c0_46 = arith.constant 0 : index
    %23 = vector.load %arg29[%c0_45, %c0_46] : memref<1x32xf32, #tpu.memory_space<vmem>>, vector<1x32xf32>
    %c0_47 = arith.constant 0 : index
    %c0_48 = arith.constant 0 : index
    %24 = vector.load %arg30[%c0_47, %c0_48] : memref<32x32xf32, #tpu.memory_space<vmem>>, vector<32x32xf32>
    %c0_49 = arith.constant 0 : index
    %c0_50 = arith.constant 0 : index
    %25 = vector.load %arg31[%c0_49, %c0_50] : memref<1x32xf32, #tpu.memory_space<vmem>>, vector<1x32xf32>
    %c0_51 = arith.constant 0 : index
    %c0_52 = arith.constant 0 : index
    %26 = vector.load %arg32[%c0_51, %c0_52] : memref<32x32xf32, #tpu.memory_space<vmem>>, vector<32x32xf32>
    %c0_53 = arith.constant 0 : index
    %c0_54 = arith.constant 0 : index
    %27 = vector.load %arg33[%c0_53, %c0_54] : memref<1x32xf32, #tpu.memory_space<vmem>>, vector<1x32xf32>
    %c0_55 = arith.constant 0 : index
    %c0_56 = arith.constant 0 : index
    %28 = vector.load %arg34[%c0_55, %c0_56] : memref<32x32xf32, #tpu.memory_space<vmem>>, vector<32x32xf32>
    %c0_57 = arith.constant 0 : index
    %c0_58 = arith.constant 0 : index
    %29 = vector.load %arg35[%c0_57, %c0_58] : memref<1x32xf32, #tpu.memory_space<vmem>>, vector<1x32xf32>
    %c0_59 = arith.constant 0 : index
    %c0_60 = arith.constant 0 : index
    %30 = vector.load %arg36[%c0_59, %c0_60] : memref<32x32xf32, #tpu.memory_space<vmem>>, vector<32x32xf32>
    %c0_61 = arith.constant 0 : index
    %c0_62 = arith.constant 0 : index
    %31 = vector.load %arg37[%c0_61, %c0_62] : memref<1x32xf32, #tpu.memory_space<vmem>>, vector<1x32xf32>
    %c0_63 = arith.constant 0 : index
    %c0_64 = arith.constant 0 : index
    %32 = vector.load %arg38[%c0_63, %c0_64] : memref<1x32xf32, #tpu.memory_space<vmem>>, vector<1x32xf32>
    %c0_65 = arith.constant 0 : index
    %c0_66 = arith.constant 0 : index
    %33 = vector.load %arg39[%c0_65, %c0_66] : memref<1x32xf32, #tpu.memory_space<vmem>>, vector<1x32xf32>
    %c0_67 = arith.constant 0 : index
    %c0_68 = arith.constant 0 : index
    %34 = vector.load %arg40[%c0_67, %c0_68] : memref<32x128xf32, #tpu.memory_space<vmem>>, vector<32x128xf32>
    %c0_69 = arith.constant 0 : index
    %c0_70 = arith.constant 0 : index
    %35 = vector.load %arg41[%c0_69, %c0_70] : memref<1x128xf32, #tpu.memory_space<vmem>>, vector<1x128xf32>
    %c0_71 = arith.constant 0 : index
    %c0_72 = arith.constant 0 : index
    %36 = vector.load %arg42[%c0_71, %c0_72] : memref<128x32xf32, #tpu.memory_space<vmem>>, vector<128x32xf32>
    %c0_73 = arith.constant 0 : index
    %c0_74 = arith.constant 0 : index
    %37 = vector.load %arg43[%c0_73, %c0_74] : memref<1x32xf32, #tpu.memory_space<vmem>>, vector<1x32xf32>
    %c0_75 = arith.constant 0 : index
    %c0_76 = arith.constant 0 : index
    %38 = vector.load %arg44[%c0_75, %c0_76] : memref<1x32xf32, #tpu.memory_space<vmem>>, vector<1x32xf32>
    %c0_77 = arith.constant 0 : index
    %c0_78 = arith.constant 0 : index
    %39 = vector.load %arg45[%c0_77, %c0_78] : memref<1x32xf32, #tpu.memory_space<vmem>>, vector<1x32xf32>
    %c0_79 = arith.constant 0 : index
    %c0_80 = arith.constant 0 : index
    %c0_81 = arith.constant 0 : index
    %40 = vector.load %arg1[%c0_79, %c0_80, %c0_81] : memref<1x32x32xf32, #tpu.memory_space<vmem>>, vector<1x32x32xf32>
    %41 = vector.shape_cast %40 : vector<1x32x32xf32> to vector<32x32xf32>
    %c0_82 = arith.constant 0 : index
    %c0_83 = arith.constant 0 : index
    %42 = vector.load %arg2[%c0_82, %c0_83] : memref<16x32xf32, #tpu.memory_space<vmem>>, vector<16x32xf32>
    %c0_84 = arith.constant 0 : index
    %c0_85 = arith.constant 0 : index
    %43 = vector.load %arg3[%c0_84, %c0_85] : memref<32x32xf32, #tpu.memory_space<vmem>>, vector<32x32xf32>
    %44 = arith.truncf %41 : vector<32x32xf32> to vector<32x32xbf16>
    %45 = arith.truncf %0 : vector<32x32xf32> to vector<32x32xbf16>
    %cst = arith.constant dense<0.000000e+00> : vector<32x32xf32>
    %46 = tpu.matmul %44, %45, %cst {dimension_numbers = #tpu.dot_dimension_numbers<[1], [0], [0], [1], [0, 0, 1, 1], [], []>} : vector<32x32xbf16>, vector<32x32xbf16>, vector<32x32xf32> -> vector<32x32xf32>
    %47 = vector.broadcast %1 : vector<1x32xf32> to vector<32x32xf32>
    %48 = arith.addf %46, %47 : vector<32x32xf32>
    %cst_86 = arith.constant 0.353553385 : f32
    %49 = vector.broadcast %cst_86 : f32 to vector<32x32xf32>
    %50 = arith.mulf %48, %49 : vector<32x32xf32>
    %51 = arith.truncf %41 : vector<32x32xf32> to vector<32x32xbf16>
    %52 = arith.truncf %2 : vector<32x32xf32> to vector<32x32xbf16>
    %cst_87 = arith.constant dense<0.000000e+00> : vector<32x32xf32>
    %53 = tpu.matmul %51, %52, %cst_87 {dimension_numbers = #tpu.dot_dimension_numbers<[1], [0], [0], [1], [0, 0, 1, 1], [], []>} : vector<32x32xbf16>, vector<32x32xbf16>, vector<32x32xf32> -> vector<32x32xf32>
    %54 = vector.broadcast %3 : vector<1x32xf32> to vector<32x32xf32>
    %55 = arith.addf %53, %54 : vector<32x32xf32>
    %56 = arith.truncf %41 : vector<32x32xf32> to vector<32x32xbf16>
    %57 = arith.truncf %4 : vector<32x32xf32> to vector<32x32xbf16>
    %cst_88 = arith.constant dense<0.000000e+00> : vector<32x32xf32>
    %58 = tpu.matmul %56, %57, %cst_88 {dimension_numbers = #tpu.dot_dimension_numbers<[1], [0], [0], [1], [0, 0, 1, 1], [], []>} : vector<32x32xbf16>, vector<32x32xbf16>, vector<32x32xf32> -> vector<32x32xf32>
    %59 = vector.broadcast %5 : vector<1x32xf32> to vector<32x32xf32>
    %60 = arith.addf %58, %59 : vector<32x32xf32>
    %61 = tpu.transpose %55, [1, 0] : vector<32x32xf32> -> vector<32x32xf32>
    %cst_89 = arith.constant 0.000000e+00 : f32
    %62 = vector.broadcast %cst_89 : f32 to vector<32x32xf32>
    %63 = vector.broadcast %7 : vector<1x32xf32> to vector<32x32xf32>
    %64 = arith.addf %62, %63 : vector<32x32xf32>
    %65 = vector.extract_strided_slice %50 {offsets = [0, 0], sizes = [32, 8], strides = [1, 1]} : vector<32x32xf32> to vector<32x8xf32>
    %66 = vector.extract_strided_slice %61 {offsets = [0, 0], sizes = [8, 32], strides = [1, 1]} : vector<32x32xf32> to vector<8x32xf32>
    %67 = arith.truncf %65 : vector<32x8xf32> to vector<32x8xbf16>
    %68 = arith.truncf %66 : vector<8x32xf32> to vector<8x32xbf16>
    %cst_90 = arith.constant dense<0.000000e+00> : vector<32x32xf32>
    %69 = tpu.matmul %67, %68, %cst_90 {dimension_numbers = #tpu.dot_dimension_numbers<[1], [0], [0], [1], [0, 0, 1, 1], [], []>} : vector<32x8xbf16>, vector<8x32xbf16>, vector<32x32xf32> -> vector<32x32xf32>
    %70 = arith.addf %69, %43 : vector<32x32xf32>
    %cst_91 = arith.constant dense<0xFF800000> : vector<32xf32>
    %71 = vector.multi_reduction <maximumf>, %70, %cst_91 [1] : vector<32x32xf32> to vector<32xf32>
    %72 = vector.shape_cast %71 : vector<32xf32> to vector<32x1xf32>
    %73 = vector.broadcast %72 : vector<32x1xf32> to vector<32x32xf32>
    %74 = arith.subf %70, %73 : vector<32x32xf32>
    %75 = math.exp %74 : vector<32x32xf32>
    %cst_92 = arith.constant dense<0.000000e+00> : vector<32xf32>
    %76 = vector.multi_reduction <add>, %75, %cst_92 [1] : vector<32x32xf32> to vector<32xf32>
    %77 = vector.shape_cast %76 : vector<32xf32> to vector<32x1xf32>
    %78 = tpu.reciprocal %77 {approx = true} : vector<32x1xf32> -> vector<32x1xf32>
    %79 = vector.broadcast %78 : vector<32x1xf32> to vector<32x32xf32>
    %80 = arith.mulf %75, %79 : vector<32x32xf32>
    %81 = vector.extract_strided_slice %60 {offsets = [0, 0], sizes = [32, 8], strides = [1, 1]} : vector<32x32xf32> to vector<32x8xf32>
    %82 = arith.truncf %80 : vector<32x32xf32> to vector<32x32xbf16>
    %83 = arith.truncf %81 : vector<32x8xf32> to vector<32x8xbf16>
    %cst_93 = arith.constant dense<0.000000e+00> : vector<32x8xf32>
    %84 = tpu.matmul %82, %83, %cst_93 {dimension_numbers = #tpu.dot_dimension_numbers<[1], [0], [0], [1], [0, 0, 1, 1], [], []>} : vector<32x32xbf16>, vector<32x8xbf16>, vector<32x8xf32> -> vector<32x8xf32>
    %85 = vector.extract_strided_slice %6 {offsets = [0, 0], sizes = [8, 32], strides = [1, 1]} : vector<32x32xf32> to vector<8x32xf32>
    %86 = arith.truncf %84 : vector<32x8xf32> to vector<32x8xbf16>
    %87 = arith.truncf %85 : vector<8x32xf32> to vector<8x32xbf16>
    %cst_94 = arith.constant dense<0.000000e+00> : vector<32x32xf32>
    %88 = tpu.matmul %86, %87, %cst_94 {dimension_numbers = #tpu.dot_dimension_numbers<[1], [0], [0], [1], [0, 0, 1, 1], [], []>} : vector<32x8xbf16>, vector<8x32xbf16>, vector<32x32xf32> -> vector<32x32xf32>
    %89 = arith.addf %64, %88 : vector<32x32xf32>
    %90 = vector.extract_strided_slice %50 {offsets = [0, 8], sizes = [32, 8], strides = [1, 1]} : vector<32x32xf32> to vector<32x8xf32>
    %91 = vector.extract_strided_slice %61 {offsets = [8, 0], sizes = [8, 32], strides = [1, 1]} : vector<32x32xf32> to vector<8x32xf32>
    %92 = arith.truncf %90 : vector<32x8xf32> to vector<32x8xbf16>
    %93 = arith.truncf %91 : vector<8x32xf32> to vector<8x32xbf16>
    %cst_95 = arith.constant dense<0.000000e+00> : vector<32x32xf32>
    %94 = tpu.matmul %92, %93, %cst_95 {dimension_numbers = #tpu.dot_dimension_numbers<[1], [0], [0], [1], [0, 0, 1, 1], [], []>} : vector<32x8xbf16>, vector<8x32xbf16>, vector<32x32xf32> -> vector<32x32xf32>
    %95 = arith.addf %94, %43 : vector<32x32xf32>
    %cst_96 = arith.constant dense<0xFF800000> : vector<32xf32>
    %96 = vector.multi_reduction <maximumf>, %95, %cst_96 [1] : vector<32x32xf32> to vector<32xf32>
    %97 = vector.shape_cast %96 : vector<32xf32> to vector<32x1xf32>
    %98 = vector.broadcast %97 : vector<32x1xf32> to vector<32x32xf32>
    %99 = arith.subf %95, %98 : vector<32x32xf32>
    %100 = math.exp %99 : vector<32x32xf32>
    %cst_97 = arith.constant dense<0.000000e+00> : vector<32xf32>
    %101 = vector.multi_reduction <add>, %100, %cst_97 [1] : vector<32x32xf32> to vector<32xf32>
    %102 = vector.shape_cast %101 : vector<32xf32> to vector<32x1xf32>
    %103 = tpu.reciprocal %102 {approx = true} : vector<32x1xf32> -> vector<32x1xf32>
    %104 = vector.broadcast %103 : vector<32x1xf32> to vector<32x32xf32>
    %105 = arith.mulf %100, %104 : vector<32x32xf32>
    %106 = vector.extract_strided_slice %60 {offsets = [0, 8], sizes = [32, 8], strides = [1, 1]} : vector<32x32xf32> to vector<32x8xf32>
    %107 = arith.truncf %105 : vector<32x32xf32> to vector<32x32xbf16>
    %108 = arith.truncf %106 : vector<32x8xf32> to vector<32x8xbf16>
    %cst_98 = arith.constant dense<0.000000e+00> : vector<32x8xf32>
    %109 = tpu.matmul %107, %108, %cst_98 {dimension_numbers = #tpu.dot_dimension_numbers<[1], [0], [0], [1], [0, 0, 1, 1], [], []>} : vector<32x32xbf16>, vector<32x8xbf16>, vector<32x8xf32> -> vector<32x8xf32>
    %110 = vector.extract_strided_slice %6 {offsets = [8, 0], sizes = [8, 32], strides = [1, 1]} : vector<32x32xf32> to vector<8x32xf32>
    %111 = arith.truncf %109 : vector<32x8xf32> to vector<32x8xbf16>
    %112 = arith.truncf %110 : vector<8x32xf32> to vector<8x32xbf16>
    %cst_99 = arith.constant dense<0.000000e+00> : vector<32x32xf32>
    %113 = tpu.matmul %111, %112, %cst_99 {dimension_numbers = #tpu.dot_dimension_numbers<[1], [0], [0], [1], [0, 0, 1, 1], [], []>} : vector<32x8xbf16>, vector<8x32xbf16>, vector<32x32xf32> -> vector<32x32xf32>
    %114 = arith.addf %89, %113 : vector<32x32xf32>
    %115 = vector.extract_strided_slice %50 {offsets = [0, 16], sizes = [32, 8], strides = [1, 1]} : vector<32x32xf32> to vector<32x8xf32>
    %116 = vector.extract_strided_slice %61 {offsets = [16, 0], sizes = [8, 32], strides = [1, 1]} : vector<32x32xf32> to vector<8x32xf32>
    %117 = arith.truncf %115 : vector<32x8xf32> to vector<32x8xbf16>
    %118 = arith.truncf %116 : vector<8x32xf32> to vector<8x32xbf16>
    %cst_100 = arith.constant dense<0.000000e+00> : vector<32x32xf32>
    %119 = tpu.matmul %117, %118, %cst_100 {dimension_numbers = #tpu.dot_dimension_numbers<[1], [0], [0], [1], [0, 0, 1, 1], [], []>} : vector<32x8xbf16>, vector<8x32xbf16>, vector<32x32xf32> -> vector<32x32xf32>
    %120 = arith.addf %119, %43 : vector<32x32xf32>
    %cst_101 = arith.constant dense<0xFF800000> : vector<32xf32>
    %121 = vector.multi_reduction <maximumf>, %120, %cst_101 [1] : vector<32x32xf32> to vector<32xf32>
    %122 = vector.shape_cast %121 : vector<32xf32> to vector<32x1xf32>
    %123 = vector.broadcast %122 : vector<32x1xf32> to vector<32x32xf32>
    %124 = arith.subf %120, %123 : vector<32x32xf32>
    %125 = math.exp %124 : vector<32x32xf32>
    %cst_102 = arith.constant dense<0.000000e+00> : vector<32xf32>
    %126 = vector.multi_reduction <add>, %125, %cst_102 [1] : vector<32x32xf32> to vector<32xf32>
    %127 = vector.shape_cast %126 : vector<32xf32> to vector<32x1xf32>
    %128 = tpu.reciprocal %127 {approx = true} : vector<32x1xf32> -> vector<32x1xf32>
    %129 = vector.broadcast %128 : vector<32x1xf32> to vector<32x32xf32>
    %130 = arith.mulf %125, %129 : vector<32x32xf32>
    %131 = vector.extract_strided_slice %60 {offsets = [0, 16], sizes = [32, 8], strides = [1, 1]} : vector<32x32xf32> to vector<32x8xf32>
    %132 = arith.truncf %130 : vector<32x32xf32> to vector<32x32xbf16>
    %133 = arith.truncf %131 : vector<32x8xf32> to vector<32x8xbf16>
    %cst_103 = arith.constant dense<0.000000e+00> : vector<32x8xf32>
    %134 = tpu.matmul %132, %133, %cst_103 {dimension_numbers = #tpu.dot_dimension_numbers<[1], [0], [0], [1], [0, 0, 1, 1], [], []>} : vector<32x32xbf16>, vector<32x8xbf16>, vector<32x8xf32> -> vector<32x8xf32>
    %135 = vector.extract_strided_slice %6 {offsets = [16, 0], sizes = [8, 32], strides = [1, 1]} : vector<32x32xf32> to vector<8x32xf32>
    %136 = arith.truncf %134 : vector<32x8xf32> to vector<32x8xbf16>
    %137 = arith.truncf %135 : vector<8x32xf32> to vector<8x32xbf16>
    %cst_104 = arith.constant dense<0.000000e+00> : vector<32x32xf32>
    %138 = tpu.matmul %136, %137, %cst_104 {dimension_numbers = #tpu.dot_dimension_numbers<[1], [0], [0], [1], [0, 0, 1, 1], [], []>} : vector<32x8xbf16>, vector<8x32xbf16>, vector<32x32xf32> -> vector<32x32xf32>
    %139 = arith.addf %114, %138 : vector<32x32xf32>
    %140 = vector.extract_strided_slice %50 {offsets = [0, 24], sizes = [32, 8], strides = [1, 1]} : vector<32x32xf32> to vector<32x8xf32>
    %141 = vector.extract_strided_slice %61 {offsets = [24, 0], sizes = [8, 32], strides = [1, 1]} : vector<32x32xf32> to vector<8x32xf32>
    %142 = arith.truncf %140 : vector<32x8xf32> to vector<32x8xbf16>
    %143 = arith.truncf %141 : vector<8x32xf32> to vector<8x32xbf16>
    %cst_105 = arith.constant dense<0.000000e+00> : vector<32x32xf32>
    %144 = tpu.matmul %142, %143, %cst_105 {dimension_numbers = #tpu.dot_dimension_numbers<[1], [0], [0], [1], [0, 0, 1, 1], [], []>} : vector<32x8xbf16>, vector<8x32xbf16>, vector<32x32xf32> -> vector<32x32xf32>
    %145 = arith.addf %144, %43 : vector<32x32xf32>
    %cst_106 = arith.constant dense<0xFF800000> : vector<32xf32>
    %146 = vector.multi_reduction <maximumf>, %145, %cst_106 [1] : vector<32x32xf32> to vector<32xf32>
    %147 = vector.shape_cast %146 : vector<32xf32> to vector<32x1xf32>
    %148 = vector.broadcast %147 : vector<32x1xf32> to vector<32x32xf32>
    %149 = arith.subf %145, %148 : vector<32x32xf32>
    %150 = math.exp %149 : vector<32x32xf32>
    %cst_107 = arith.constant dense<0.000000e+00> : vector<32xf32>
    %151 = vector.multi_reduction <add>, %150, %cst_107 [1] : vector<32x32xf32> to vector<32xf32>
    %152 = vector.shape_cast %151 : vector<32xf32> to vector<32x1xf32>
    %153 = tpu.reciprocal %152 {approx = true} : vector<32x1xf32> -> vector<32x1xf32>
    %154 = vector.broadcast %153 : vector<32x1xf32> to vector<32x32xf32>
    %155 = arith.mulf %150, %154 : vector<32x32xf32>
    %156 = vector.extract_strided_slice %60 {offsets = [0, 24], sizes = [32, 8], strides = [1, 1]} : vector<32x32xf32> to vector<32x8xf32>
    %157 = arith.truncf %155 : vector<32x32xf32> to vector<32x32xbf16>
    %158 = arith.truncf %156 : vector<32x8xf32> to vector<32x8xbf16>
    %cst_108 = arith.constant dense<0.000000e+00> : vector<32x8xf32>
    %159 = tpu.matmul %157, %158, %cst_108 {dimension_numbers = #tpu.dot_dimension_numbers<[1], [0], [0], [1], [0, 0, 1, 1], [], []>} : vector<32x32xbf16>, vector<32x8xbf16>, vector<32x8xf32> -> vector<32x8xf32>
    %160 = vector.extract_strided_slice %6 {offsets = [24, 0], sizes = [8, 32], strides = [1, 1]} : vector<32x32xf32> to vector<8x32xf32>
    %161 = arith.truncf %159 : vector<32x8xf32> to vector<32x8xbf16>
    %162 = arith.truncf %160 : vector<8x32xf32> to vector<8x32xbf16>
    %cst_109 = arith.constant dense<0.000000e+00> : vector<32x32xf32>
    %163 = tpu.matmul %161, %162, %cst_109 {dimension_numbers = #tpu.dot_dimension_numbers<[1], [0], [0], [1], [0, 0, 1, 1], [], []>} : vector<32x8xbf16>, vector<8x32xbf16>, vector<32x32xf32> -> vector<32x32xf32>
    %164 = arith.addf %139, %163 : vector<32x32xf32>
    %165 = arith.addf %41, %164 : vector<32x32xf32>
    %cst_110 = arith.constant dense<0.000000e+00> : vector<32xf32>
    %166 = vector.multi_reduction <add>, %165, %cst_110 [1] : vector<32x32xf32> to vector<32xf32>
    %167 = vector.shape_cast %166 : vector<32xf32> to vector<32x1xf32>
    %cst_111 = arith.constant 3.200000e+01 : f32
    %168 = vector.broadcast %cst_111 : f32 to vector<32x1xf32>
    %169 = arith.divf %167, %168 : vector<32x1xf32>
    %170 = vector.broadcast %169 : vector<32x1xf32> to vector<32x32xf32>
    %171 = arith.subf %165, %170 : vector<32x32xf32>
    %172 = arith.mulf %171, %171 : vector<32x32xf32>
    %cst_112 = arith.constant dense<0.000000e+00> : vector<32xf32>
    %173 = vector.multi_reduction <add>, %172, %cst_112 [1] : vector<32x32xf32> to vector<32xf32>
    %174 = vector.shape_cast %173 : vector<32xf32> to vector<32x1xf32>
    %cst_113 = arith.constant 3.200000e+01 : f32
    %175 = vector.broadcast %cst_113 : f32 to vector<32x1xf32>
    %176 = arith.divf %174, %175 : vector<32x1xf32>
    %177 = vector.broadcast %169 : vector<32x1xf32> to vector<32x32xf32>
    %178 = arith.subf %165, %177 : vector<32x32xf32>
    %cst_114 = arith.constant 9.99999974E-6 : f32
    %179 = vector.broadcast %cst_114 : f32 to vector<32x1xf32>
    %180 = arith.addf %176, %179 : vector<32x1xf32>
    %181 = math.rsqrt %180 : vector<32x1xf32>
    %182 = vector.broadcast %181 : vector<32x1xf32> to vector<32x32xf32>
    %183 = arith.mulf %178, %182 : vector<32x32xf32>
    %184 = vector.broadcast %8 : vector<1x32xf32> to vector<32x32xf32>
    %185 = arith.mulf %183, %184 : vector<32x32xf32>
    %186 = vector.broadcast %9 : vector<1x32xf32> to vector<32x32xf32>
    %187 = arith.addf %185, %186 : vector<32x32xf32>
    %188 = arith.truncf %187 : vector<32x32xf32> to vector<32x32xbf16>
    %189 = arith.truncf %10 : vector<32x128xf32> to vector<32x128xbf16>
    %cst_115 = arith.constant dense<0.000000e+00> : vector<32x128xf32>
    %190 = tpu.matmul %188, %189, %cst_115 {dimension_numbers = #tpu.dot_dimension_numbers<[1], [0], [0], [1], [0, 0, 1, 1], [], []>} : vector<32x32xbf16>, vector<32x128xbf16>, vector<32x128xf32> -> vector<32x128xf32>
    %191 = vector.broadcast %11 : vector<1x128xf32> to vector<32x128xf32>
    %192 = arith.addf %190, %191 : vector<32x128xf32>
    %cst_116 = arith.constant 5.000000e-01 : f32
    %193 = vector.broadcast %cst_116 : f32 to vector<32x128xf32>
    %194 = arith.mulf %193, %192 : vector<32x128xf32>
    %cst_117 = arith.constant 4.471500e-02 : f32
    %195 = vector.broadcast %cst_117 : f32 to vector<32x128xf32>
    %196 = arith.mulf %195, %192 : vector<32x128xf32>
    %197 = arith.mulf %196, %192 : vector<32x128xf32>
    %198 = arith.mulf %197, %192 : vector<32x128xf32>
    %199 = arith.addf %192, %198 : vector<32x128xf32>
    %cst_118 = arith.constant 0.797884583 : f32
    %200 = vector.broadcast %cst_118 : f32 to vector<32x128xf32>
    %201 = arith.mulf %200, %199 : vector<32x128xf32>
    %202 = math.tanh %201 : vector<32x128xf32>
    %cst_119 = arith.constant 1.000000e+00 : f32
    %203 = vector.broadcast %cst_119 : f32 to vector<32x128xf32>
    %204 = arith.addf %203, %202 : vector<32x128xf32>
    %205 = arith.mulf %194, %204 : vector<32x128xf32>
    %206 = arith.truncf %205 : vector<32x128xf32> to vector<32x128xbf16>
    %207 = arith.truncf %12 : vector<128x32xf32> to vector<128x32xbf16>
    %cst_120 = arith.constant dense<0.000000e+00> : vector<32x32xf32>
    %208 = tpu.matmul %206, %207, %cst_120 {dimension_numbers = #tpu.dot_dimension_numbers<[1], [0], [0], [1], [0, 0, 1, 1], [], []>} : vector<32x128xbf16>, vector<128x32xbf16>, vector<32x32xf32> -> vector<32x32xf32>
    %209 = vector.broadcast %13 : vector<1x32xf32> to vector<32x32xf32>
    %210 = arith.addf %208, %209 : vector<32x32xf32>
    %211 = arith.addf %187, %210 : vector<32x32xf32>
    %cst_121 = arith.constant dense<0.000000e+00> : vector<32xf32>
    %212 = vector.multi_reduction <add>, %211, %cst_121 [1] : vector<32x32xf32> to vector<32xf32>
    %213 = vector.shape_cast %212 : vector<32xf32> to vector<32x1xf32>
    %cst_122 = arith.constant 3.200000e+01 : f32
    %214 = vector.broadcast %cst_122 : f32 to vector<32x1xf32>
    %215 = arith.divf %213, %214 : vector<32x1xf32>
    %216 = vector.broadcast %215 : vector<32x1xf32> to vector<32x32xf32>
    %217 = arith.subf %211, %216 : vector<32x32xf32>
    %218 = arith.mulf %217, %217 : vector<32x32xf32>
    %cst_123 = arith.constant dense<0.000000e+00> : vector<32xf32>
    %219 = vector.multi_reduction <add>, %218, %cst_123 [1] : vector<32x32xf32> to vector<32xf32>
    %220 = vector.shape_cast %219 : vector<32xf32> to vector<32x1xf32>
    %cst_124 = arith.constant 3.200000e+01 : f32
    %221 = vector.broadcast %cst_124 : f32 to vector<32x1xf32>
    %222 = arith.divf %220, %221 : vector<32x1xf32>
    %223 = vector.broadcast %215 : vector<32x1xf32> to vector<32x32xf32>
    %224 = arith.subf %211, %223 : vector<32x32xf32>
    %cst_125 = arith.constant 9.99999974E-6 : f32
    %225 = vector.broadcast %cst_125 : f32 to vector<32x1xf32>
    %226 = arith.addf %222, %225 : vector<32x1xf32>
    %227 = math.rsqrt %226 : vector<32x1xf32>
    %228 = vector.broadcast %227 : vector<32x1xf32> to vector<32x32xf32>
    %229 = arith.mulf %224, %228 : vector<32x32xf32>
    %230 = vector.broadcast %14 : vector<1x32xf32> to vector<32x32xf32>
    %231 = arith.mulf %229, %230 : vector<32x32xf32>
    %232 = vector.broadcast %15 : vector<1x32xf32> to vector<32x32xf32>
    %233 = arith.addf %231, %232 : vector<32x32xf32>
    %c0_126 = arith.constant 0 : index
    %c0_127 = arith.constant 0 : index
    %234 = vector.load %arg4[%c0_126, %c0_127] : memref<16x32xf32, #tpu.memory_space<vmem>>, vector<16x32xf32>
    %235 = arith.truncf %42 : vector<16x32xf32> to vector<16x32xbf16>
    %236 = arith.truncf %16 : vector<32x32xf32> to vector<32x32xbf16>
    %cst_128 = arith.constant dense<0.000000e+00> : vector<16x32xf32>
    %237 = tpu.matmul %235, %236, %cst_128 {dimension_numbers = #tpu.dot_dimension_numbers<[1], [0], [0], [1], [0, 0, 1, 1], [], []>} : vector<16x32xbf16>, vector<32x32xbf16>, vector<16x32xf32> -> vector<16x32xf32>
    %238 = vector.broadcast %17 : vector<1x32xf32> to vector<16x32xf32>
    %239 = arith.addf %237, %238 : vector<16x32xf32>
    %cst_129 = arith.constant 0.353553385 : f32
    %240 = vector.broadcast %cst_129 : f32 to vector<16x32xf32>
    %241 = arith.mulf %239, %240 : vector<16x32xf32>
    %242 = arith.truncf %233 : vector<32x32xf32> to vector<32x32xbf16>
    %243 = arith.truncf %18 : vector<32x32xf32> to vector<32x32xbf16>
    %cst_130 = arith.constant dense<0.000000e+00> : vector<32x32xf32>
    %244 = tpu.matmul %242, %243, %cst_130 {dimension_numbers = #tpu.dot_dimension_numbers<[1], [0], [0], [1], [0, 0, 1, 1], [], []>} : vector<32x32xbf16>, vector<32x32xbf16>, vector<32x32xf32> -> vector<32x32xf32>
    %245 = vector.broadcast %19 : vector<1x32xf32> to vector<32x32xf32>
    %246 = arith.addf %244, %245 : vector<32x32xf32>
    %247 = arith.truncf %233 : vector<32x32xf32> to vector<32x32xbf16>
    %248 = arith.truncf %20 : vector<32x32xf32> to vector<32x32xbf16>
    %cst_131 = arith.constant dense<0.000000e+00> : vector<32x32xf32>
    %249 = tpu.matmul %247, %248, %cst_131 {dimension_numbers = #tpu.dot_dimension_numbers<[1], [0], [0], [1], [0, 0, 1, 1], [], []>} : vector<32x32xbf16>, vector<32x32xbf16>, vector<32x32xf32> -> vector<32x32xf32>
    %250 = vector.broadcast %21 : vector<1x32xf32> to vector<32x32xf32>
    %251 = arith.addf %249, %250 : vector<32x32xf32>
    %252 = tpu.transpose %246, [1, 0] : vector<32x32xf32> -> vector<32x32xf32>
    %cst_132 = arith.constant 0.000000e+00 : f32
    %253 = vector.broadcast %cst_132 : f32 to vector<16x32xf32>
    %254 = vector.broadcast %23 : vector<1x32xf32> to vector<16x32xf32>
    %255 = arith.addf %253, %254 : vector<16x32xf32>
    %256 = vector.extract_strided_slice %241 {offsets = [0, 0], sizes = [16, 8], strides = [1, 1]} : vector<16x32xf32> to vector<16x8xf32>
    %257 = vector.extract_strided_slice %252 {offsets = [0, 0], sizes = [8, 32], strides = [1, 1]} : vector<32x32xf32> to vector<8x32xf32>
    %258 = arith.truncf %256 : vector<16x8xf32> to vector<16x8xbf16>
    %259 = arith.truncf %257 : vector<8x32xf32> to vector<8x32xbf16>
    %cst_133 = arith.constant dense<0.000000e+00> : vector<16x32xf32>
    %260 = tpu.matmul %258, %259, %cst_133 {dimension_numbers = #tpu.dot_dimension_numbers<[1], [0], [0], [1], [0, 0, 1, 1], [], []>} : vector<16x8xbf16>, vector<8x32xbf16>, vector<16x32xf32> -> vector<16x32xf32>
    %261 = arith.addf %260, %234 : vector<16x32xf32>
    %cst_134 = arith.constant dense<0xFF800000> : vector<16xf32>
    %262 = vector.multi_reduction <maximumf>, %261, %cst_134 [1] : vector<16x32xf32> to vector<16xf32>
    %263 = vector.shape_cast %262 : vector<16xf32> to vector<16x1xf32>
    %264 = vector.broadcast %263 : vector<16x1xf32> to vector<16x32xf32>
    %265 = arith.subf %261, %264 : vector<16x32xf32>
    %266 = math.exp %265 : vector<16x32xf32>
    %cst_135 = arith.constant dense<0.000000e+00> : vector<16xf32>
    %267 = vector.multi_reduction <add>, %266, %cst_135 [1] : vector<16x32xf32> to vector<16xf32>
    %268 = vector.shape_cast %267 : vector<16xf32> to vector<16x1xf32>
    %269 = tpu.reciprocal %268 {approx = true} : vector<16x1xf32> -> vector<16x1xf32>
    %270 = vector.broadcast %269 : vector<16x1xf32> to vector<16x32xf32>
    %271 = arith.mulf %266, %270 : vector<16x32xf32>
    %272 = vector.extract_strided_slice %251 {offsets = [0, 0], sizes = [32, 8], strides = [1, 1]} : vector<32x32xf32> to vector<32x8xf32>
    %273 = arith.truncf %271 : vector<16x32xf32> to vector<16x32xbf16>
    %274 = arith.truncf %272 : vector<32x8xf32> to vector<32x8xbf16>
    %cst_136 = arith.constant dense<0.000000e+00> : vector<16x8xf32>
    %275 = tpu.matmul %273, %274, %cst_136 {dimension_numbers = #tpu.dot_dimension_numbers<[1], [0], [0], [1], [0, 0, 1, 1], [], []>} : vector<16x32xbf16>, vector<32x8xbf16>, vector<16x8xf32> -> vector<16x8xf32>
    %276 = vector.extract_strided_slice %22 {offsets = [0, 0], sizes = [8, 32], strides = [1, 1]} : vector<32x32xf32> to vector<8x32xf32>
    %277 = arith.truncf %275 : vector<16x8xf32> to vector<16x8xbf16>
    %278 = arith.truncf %276 : vector<8x32xf32> to vector<8x32xbf16>
    %cst_137 = arith.constant dense<0.000000e+00> : vector<16x32xf32>
    %279 = tpu.matmul %277, %278, %cst_137 {dimension_numbers = #tpu.dot_dimension_numbers<[1], [0], [0], [1], [0, 0, 1, 1], [], []>} : vector<16x8xbf16>, vector<8x32xbf16>, vector<16x32xf32> -> vector<16x32xf32>
    %280 = arith.addf %255, %279 : vector<16x32xf32>
    %281 = vector.extract_strided_slice %241 {offsets = [0, 8], sizes = [16, 8], strides = [1, 1]} : vector<16x32xf32> to vector<16x8xf32>
    %282 = vector.extract_strided_slice %252 {offsets = [8, 0], sizes = [8, 32], strides = [1, 1]} : vector<32x32xf32> to vector<8x32xf32>
    %283 = arith.truncf %281 : vector<16x8xf32> to vector<16x8xbf16>
    %284 = arith.truncf %282 : vector<8x32xf32> to vector<8x32xbf16>
    %cst_138 = arith.constant dense<0.000000e+00> : vector<16x32xf32>
    %285 = tpu.matmul %283, %284, %cst_138 {dimension_numbers = #tpu.dot_dimension_numbers<[1], [0], [0], [1], [0, 0, 1, 1], [], []>} : vector<16x8xbf16>, vector<8x32xbf16>, vector<16x32xf32> -> vector<16x32xf32>
    %286 = arith.addf %285, %234 : vector<16x32xf32>
    %cst_139 = arith.constant dense<0xFF800000> : vector<16xf32>
    %287 = vector.multi_reduction <maximumf>, %286, %cst_139 [1] : vector<16x32xf32> to vector<16xf32>
    %288 = vector.shape_cast %287 : vector<16xf32> to vector<16x1xf32>
    %289 = vector.broadcast %288 : vector<16x1xf32> to vector<16x32xf32>
    %290 = arith.subf %286, %289 : vector<16x32xf32>
    %291 = math.exp %290 : vector<16x32xf32>
    %cst_140 = arith.constant dense<0.000000e+00> : vector<16xf32>
    %292 = vector.multi_reduction <add>, %291, %cst_140 [1] : vector<16x32xf32> to vector<16xf32>
    %293 = vector.shape_cast %292 : vector<16xf32> to vector<16x1xf32>
    %294 = tpu.reciprocal %293 {approx = true} : vector<16x1xf32> -> vector<16x1xf32>
    %295 = vector.broadcast %294 : vector<16x1xf32> to vector<16x32xf32>
    %296 = arith.mulf %291, %295 : vector<16x32xf32>
    %297 = vector.extract_strided_slice %251 {offsets = [0, 8], sizes = [32, 8], strides = [1, 1]} : vector<32x32xf32> to vector<32x8xf32>
    %298 = arith.truncf %296 : vector<16x32xf32> to vector<16x32xbf16>
    %299 = arith.truncf %297 : vector<32x8xf32> to vector<32x8xbf16>
    %cst_141 = arith.constant dense<0.000000e+00> : vector<16x8xf32>
    %300 = tpu.matmul %298, %299, %cst_141 {dimension_numbers = #tpu.dot_dimension_numbers<[1], [0], [0], [1], [0, 0, 1, 1], [], []>} : vector<16x32xbf16>, vector<32x8xbf16>, vector<16x8xf32> -> vector<16x8xf32>
    %301 = vector.extract_strided_slice %22 {offsets = [8, 0], sizes = [8, 32], strides = [1, 1]} : vector<32x32xf32> to vector<8x32xf32>
    %302 = arith.truncf %300 : vector<16x8xf32> to vector<16x8xbf16>
    %303 = arith.truncf %301 : vector<8x32xf32> to vector<8x32xbf16>
    %cst_142 = arith.constant dense<0.000000e+00> : vector<16x32xf32>
    %304 = tpu.matmul %302, %303, %cst_142 {dimension_numbers = #tpu.dot_dimension_numbers<[1], [0], [0], [1], [0, 0, 1, 1], [], []>} : vector<16x8xbf16>, vector<8x32xbf16>, vector<16x32xf32> -> vector<16x32xf32>
    %305 = arith.addf %280, %304 : vector<16x32xf32>
    %306 = vector.extract_strided_slice %241 {offsets = [0, 16], sizes = [16, 8], strides = [1, 1]} : vector<16x32xf32> to vector<16x8xf32>
    %307 = vector.extract_strided_slice %252 {offsets = [16, 0], sizes = [8, 32], strides = [1, 1]} : vector<32x32xf32> to vector<8x32xf32>
    %308 = arith.truncf %306 : vector<16x8xf32> to vector<16x8xbf16>
    %309 = arith.truncf %307 : vector<8x32xf32> to vector<8x32xbf16>
    %cst_143 = arith.constant dense<0.000000e+00> : vector<16x32xf32>
    %310 = tpu.matmul %308, %309, %cst_143 {dimension_numbers = #tpu.dot_dimension_numbers<[1], [0], [0], [1], [0, 0, 1, 1], [], []>} : vector<16x8xbf16>, vector<8x32xbf16>, vector<16x32xf32> -> vector<16x32xf32>
    %311 = arith.addf %310, %234 : vector<16x32xf32>
    %cst_144 = arith.constant dense<0xFF800000> : vector<16xf32>
    %312 = vector.multi_reduction <maximumf>, %311, %cst_144 [1] : vector<16x32xf32> to vector<16xf32>
    %313 = vector.shape_cast %312 : vector<16xf32> to vector<16x1xf32>
    %314 = vector.broadcast %313 : vector<16x1xf32> to vector<16x32xf32>
    %315 = arith.subf %311, %314 : vector<16x32xf32>
    %316 = math.exp %315 : vector<16x32xf32>
    %cst_145 = arith.constant dense<0.000000e+00> : vector<16xf32>
    %317 = vector.multi_reduction <add>, %316, %cst_145 [1] : vector<16x32xf32> to vector<16xf32>
    %318 = vector.shape_cast %317 : vector<16xf32> to vector<16x1xf32>
    %319 = tpu.reciprocal %318 {approx = true} : vector<16x1xf32> -> vector<16x1xf32>
    %320 = vector.broadcast %319 : vector<16x1xf32> to vector<16x32xf32>
    %321 = arith.mulf %316, %320 : vector<16x32xf32>
    %322 = vector.extract_strided_slice %251 {offsets = [0, 16], sizes = [32, 8], strides = [1, 1]} : vector<32x32xf32> to vector<32x8xf32>
    %323 = arith.truncf %321 : vector<16x32xf32> to vector<16x32xbf16>
    %324 = arith.truncf %322 : vector<32x8xf32> to vector<32x8xbf16>
    %cst_146 = arith.constant dense<0.000000e+00> : vector<16x8xf32>
    %325 = tpu.matmul %323, %324, %cst_146 {dimension_numbers = #tpu.dot_dimension_numbers<[1], [0], [0], [1], [0, 0, 1, 1], [], []>} : vector<16x32xbf16>, vector<32x8xbf16>, vector<16x8xf32> -> vector<16x8xf32>
    %326 = vector.extract_strided_slice %22 {offsets = [16, 0], sizes = [8, 32], strides = [1, 1]} : vector<32x32xf32> to vector<8x32xf32>
    %327 = arith.truncf %325 : vector<16x8xf32> to vector<16x8xbf16>
    %328 = arith.truncf %326 : vector<8x32xf32> to vector<8x32xbf16>
    %cst_147 = arith.constant dense<0.000000e+00> : vector<16x32xf32>
    %329 = tpu.matmul %327, %328, %cst_147 {dimension_numbers = #tpu.dot_dimension_numbers<[1], [0], [0], [1], [0, 0, 1, 1], [], []>} : vector<16x8xbf16>, vector<8x32xbf16>, vector<16x32xf32> -> vector<16x32xf32>
    %330 = arith.addf %305, %329 : vector<16x32xf32>
    %331 = vector.extract_strided_slice %241 {offsets = [0, 24], sizes = [16, 8], strides = [1, 1]} : vector<16x32xf32> to vector<16x8xf32>
    %332 = vector.extract_strided_slice %252 {offsets = [24, 0], sizes = [8, 32], strides = [1, 1]} : vector<32x32xf32> to vector<8x32xf32>
    %333 = arith.truncf %331 : vector<16x8xf32> to vector<16x8xbf16>
    %334 = arith.truncf %332 : vector<8x32xf32> to vector<8x32xbf16>
    %cst_148 = arith.constant dense<0.000000e+00> : vector<16x32xf32>
    %335 = tpu.matmul %333, %334, %cst_148 {dimension_numbers = #tpu.dot_dimension_numbers<[1], [0], [0], [1], [0, 0, 1, 1], [], []>} : vector<16x8xbf16>, vector<8x32xbf16>, vector<16x32xf32> -> vector<16x32xf32>
    %336 = arith.addf %335, %234 : vector<16x32xf32>
    %cst_149 = arith.constant dense<0xFF800000> : vector<16xf32>
    %337 = vector.multi_reduction <maximumf>, %336, %cst_149 [1] : vector<16x32xf32> to vector<16xf32>
    %338 = vector.shape_cast %337 : vector<16xf32> to vector<16x1xf32>
    %339 = vector.broadcast %338 : vector<16x1xf32> to vector<16x32xf32>
    %340 = arith.subf %336, %339 : vector<16x32xf32>
    %341 = math.exp %340 : vector<16x32xf32>
    %cst_150 = arith.constant dense<0.000000e+00> : vector<16xf32>
    %342 = vector.multi_reduction <add>, %341, %cst_150 [1] : vector<16x32xf32> to vector<16xf32>
    %343 = vector.shape_cast %342 : vector<16xf32> to vector<16x1xf32>
    %344 = tpu.reciprocal %343 {approx = true} : vector<16x1xf32> -> vector<16x1xf32>
    %345 = vector.broadcast %344 : vector<16x1xf32> to vector<16x32xf32>
    %346 = arith.mulf %341, %345 : vector<16x32xf32>
    %347 = vector.extract_strided_slice %251 {offsets = [0, 24], sizes = [32, 8], strides = [1, 1]} : vector<32x32xf32> to vector<32x8xf32>
    %348 = arith.truncf %346 : vector<16x32xf32> to vector<16x32xbf16>
    %349 = arith.truncf %347 : vector<32x8xf32> to vector<32x8xbf16>
    %cst_151 = arith.constant dense<0.000000e+00> : vector<16x8xf32>
    %350 = tpu.matmul %348, %349, %cst_151 {dimension_numbers = #tpu.dot_dimension_numbers<[1], [0], [0], [1], [0, 0, 1, 1], [], []>} : vector<16x32xbf16>, vector<32x8xbf16>, vector<16x8xf32> -> vector<16x8xf32>
    %351 = vector.extract_strided_slice %22 {offsets = [24, 0], sizes = [8, 32], strides = [1, 1]} : vector<32x32xf32> to vector<8x32xf32>
    %352 = arith.truncf %350 : vector<16x8xf32> to vector<16x8xbf16>
    %353 = arith.truncf %351 : vector<8x32xf32> to vector<8x32xbf16>
    %cst_152 = arith.constant dense<0.000000e+00> : vector<16x32xf32>
    %354 = tpu.matmul %352, %353, %cst_152 {dimension_numbers = #tpu.dot_dimension_numbers<[1], [0], [0], [1], [0, 0, 1, 1], [], []>} : vector<16x8xbf16>, vector<8x32xbf16>, vector<16x32xf32> -> vector<16x32xf32>
    %355 = arith.addf %330, %354 : vector<16x32xf32>
    %c0_153 = arith.constant 0 : index
    %c0_154 = arith.constant 0 : index
    %356 = vector.load %arg5[%c0_153, %c0_154] : memref<32x16xf32, #tpu.memory_space<vmem>>, vector<32x16xf32>
    %357 = arith.truncf %233 : vector<32x32xf32> to vector<32x32xbf16>
    %358 = arith.truncf %24 : vector<32x32xf32> to vector<32x32xbf16>
    %cst_155 = arith.constant dense<0.000000e+00> : vector<32x32xf32>
    %359 = tpu.matmul %357, %358, %cst_155 {dimension_numbers = #tpu.dot_dimension_numbers<[1], [0], [0], [1], [0, 0, 1, 1], [], []>} : vector<32x32xbf16>, vector<32x32xbf16>, vector<32x32xf32> -> vector<32x32xf32>
    %360 = vector.broadcast %25 : vector<1x32xf32> to vector<32x32xf32>
    %361 = arith.addf %359, %360 : vector<32x32xf32>
    %cst_156 = arith.constant 0.353553385 : f32
    %362 = vector.broadcast %cst_156 : f32 to vector<32x32xf32>
    %363 = arith.mulf %361, %362 : vector<32x32xf32>
    %364 = arith.truncf %355 : vector<16x32xf32> to vector<16x32xbf16>
    %365 = arith.truncf %26 : vector<32x32xf32> to vector<32x32xbf16>
    %cst_157 = arith.constant dense<0.000000e+00> : vector<16x32xf32>
    %366 = tpu.matmul %364, %365, %cst_157 {dimension_numbers = #tpu.dot_dimension_numbers<[1], [0], [0], [1], [0, 0, 1, 1], [], []>} : vector<16x32xbf16>, vector<32x32xbf16>, vector<16x32xf32> -> vector<16x32xf32>
    %367 = vector.broadcast %27 : vector<1x32xf32> to vector<16x32xf32>
    %368 = arith.addf %366, %367 : vector<16x32xf32>
    %369 = arith.truncf %355 : vector<16x32xf32> to vector<16x32xbf16>
    %370 = arith.truncf %28 : vector<32x32xf32> to vector<32x32xbf16>
    %cst_158 = arith.constant dense<0.000000e+00> : vector<16x32xf32>
    %371 = tpu.matmul %369, %370, %cst_158 {dimension_numbers = #tpu.dot_dimension_numbers<[1], [0], [0], [1], [0, 0, 1, 1], [], []>} : vector<16x32xbf16>, vector<32x32xbf16>, vector<16x32xf32> -> vector<16x32xf32>
    %372 = vector.broadcast %29 : vector<1x32xf32> to vector<16x32xf32>
    %373 = arith.addf %371, %372 : vector<16x32xf32>
    %374 = tpu.transpose %368, [1, 0] : vector<16x32xf32> -> vector<32x16xf32>
    %cst_159 = arith.constant 0.000000e+00 : f32
    %375 = vector.broadcast %cst_159 : f32 to vector<32x32xf32>
    %376 = vector.broadcast %31 : vector<1x32xf32> to vector<32x32xf32>
    %377 = arith.addf %375, %376 : vector<32x32xf32>
    %378 = vector.extract_strided_slice %363 {offsets = [0, 0], sizes = [32, 8], strides = [1, 1]} : vector<32x32xf32> to vector<32x8xf32>
    %379 = vector.extract_strided_slice %374 {offsets = [0, 0], sizes = [8, 16], strides = [1, 1]} : vector<32x16xf32> to vector<8x16xf32>
    %380 = arith.truncf %378 : vector<32x8xf32> to vector<32x8xbf16>
    %381 = arith.truncf %379 : vector<8x16xf32> to vector<8x16xbf16>
    %cst_160 = arith.constant dense<0.000000e+00> : vector<32x16xf32>
    %382 = tpu.matmul %380, %381, %cst_160 {dimension_numbers = #tpu.dot_dimension_numbers<[1], [0], [0], [1], [0, 0, 1, 1], [], []>} : vector<32x8xbf16>, vector<8x16xbf16>, vector<32x16xf32> -> vector<32x16xf32>
    %383 = arith.addf %382, %356 : vector<32x16xf32>
    %cst_161 = arith.constant dense<0xFF800000> : vector<32xf32>
    %384 = vector.multi_reduction <maximumf>, %383, %cst_161 [1] : vector<32x16xf32> to vector<32xf32>
    %385 = vector.shape_cast %384 : vector<32xf32> to vector<32x1xf32>
    %386 = vector.broadcast %385 : vector<32x1xf32> to vector<32x16xf32>
    %387 = arith.subf %383, %386 : vector<32x16xf32>
    %388 = math.exp %387 : vector<32x16xf32>
    %cst_162 = arith.constant dense<0.000000e+00> : vector<32xf32>
    %389 = vector.multi_reduction <add>, %388, %cst_162 [1] : vector<32x16xf32> to vector<32xf32>
    %390 = vector.shape_cast %389 : vector<32xf32> to vector<32x1xf32>
    %391 = tpu.reciprocal %390 {approx = true} : vector<32x1xf32> -> vector<32x1xf32>
    %392 = vector.broadcast %391 : vector<32x1xf32> to vector<32x16xf32>
    %393 = arith.mulf %388, %392 : vector<32x16xf32>
    %394 = vector.extract_strided_slice %373 {offsets = [0, 0], sizes = [16, 8], strides = [1, 1]} : vector<16x32xf32> to vector<16x8xf32>
    %395 = arith.truncf %393 : vector<32x16xf32> to vector<32x16xbf16>
    %396 = arith.truncf %394 : vector<16x8xf32> to vector<16x8xbf16>
    %cst_163 = arith.constant dense<0.000000e+00> : vector<32x8xf32>
    %397 = tpu.matmul %395, %396, %cst_163 {dimension_numbers = #tpu.dot_dimension_numbers<[1], [0], [0], [1], [0, 0, 1, 1], [], []>} : vector<32x16xbf16>, vector<16x8xbf16>, vector<32x8xf32> -> vector<32x8xf32>
    %398 = vector.extract_strided_slice %30 {offsets = [0, 0], sizes = [8, 32], strides = [1, 1]} : vector<32x32xf32> to vector<8x32xf32>
    %399 = arith.truncf %397 : vector<32x8xf32> to vector<32x8xbf16>
    %400 = arith.truncf %398 : vector<8x32xf32> to vector<8x32xbf16>
    %cst_164 = arith.constant dense<0.000000e+00> : vector<32x32xf32>
    %401 = tpu.matmul %399, %400, %cst_164 {dimension_numbers = #tpu.dot_dimension_numbers<[1], [0], [0], [1], [0, 0, 1, 1], [], []>} : vector<32x8xbf16>, vector<8x32xbf16>, vector<32x32xf32> -> vector<32x32xf32>
    %402 = arith.addf %377, %401 : vector<32x32xf32>
    %403 = vector.extract_strided_slice %363 {offsets = [0, 8], sizes = [32, 8], strides = [1, 1]} : vector<32x32xf32> to vector<32x8xf32>
    %404 = vector.extract_strided_slice %374 {offsets = [8, 0], sizes = [8, 16], strides = [1, 1]} : vector<32x16xf32> to vector<8x16xf32>
    %405 = arith.truncf %403 : vector<32x8xf32> to vector<32x8xbf16>
    %406 = arith.truncf %404 : vector<8x16xf32> to vector<8x16xbf16>
    %cst_165 = arith.constant dense<0.000000e+00> : vector<32x16xf32>
    %407 = tpu.matmul %405, %406, %cst_165 {dimension_numbers = #tpu.dot_dimension_numbers<[1], [0], [0], [1], [0, 0, 1, 1], [], []>} : vector<32x8xbf16>, vector<8x16xbf16>, vector<32x16xf32> -> vector<32x16xf32>
    %408 = arith.addf %407, %356 : vector<32x16xf32>
    %cst_166 = arith.constant dense<0xFF800000> : vector<32xf32>
    %409 = vector.multi_reduction <maximumf>, %408, %cst_166 [1] : vector<32x16xf32> to vector<32xf32>
    %410 = vector.shape_cast %409 : vector<32xf32> to vector<32x1xf32>
    %411 = vector.broadcast %410 : vector<32x1xf32> to vector<32x16xf32>
    %412 = arith.subf %408, %411 : vector<32x16xf32>
    %413 = math.exp %412 : vector<32x16xf32>
    %cst_167 = arith.constant dense<0.000000e+00> : vector<32xf32>
    %414 = vector.multi_reduction <add>, %413, %cst_167 [1] : vector<32x16xf32> to vector<32xf32>
    %415 = vector.shape_cast %414 : vector<32xf32> to vector<32x1xf32>
    %416 = tpu.reciprocal %415 {approx = true} : vector<32x1xf32> -> vector<32x1xf32>
    %417 = vector.broadcast %416 : vector<32x1xf32> to vector<32x16xf32>
    %418 = arith.mulf %413, %417 : vector<32x16xf32>
    %419 = vector.extract_strided_slice %373 {offsets = [0, 8], sizes = [16, 8], strides = [1, 1]} : vector<16x32xf32> to vector<16x8xf32>
    %420 = arith.truncf %418 : vector<32x16xf32> to vector<32x16xbf16>
    %421 = arith.truncf %419 : vector<16x8xf32> to vector<16x8xbf16>
    %cst_168 = arith.constant dense<0.000000e+00> : vector<32x8xf32>
    %422 = tpu.matmul %420, %421, %cst_168 {dimension_numbers = #tpu.dot_dimension_numbers<[1], [0], [0], [1], [0, 0, 1, 1], [], []>} : vector<32x16xbf16>, vector<16x8xbf16>, vector<32x8xf32> -> vector<32x8xf32>
    %423 = vector.extract_strided_slice %30 {offsets = [8, 0], sizes = [8, 32], strides = [1, 1]} : vector<32x32xf32> to vector<8x32xf32>
    %424 = arith.truncf %422 : vector<32x8xf32> to vector<32x8xbf16>
    %425 = arith.truncf %423 : vector<8x32xf32> to vector<8x32xbf16>
    %cst_169 = arith.constant dense<0.000000e+00> : vector<32x32xf32>
    %426 = tpu.matmul %424, %425, %cst_169 {dimension_numbers = #tpu.dot_dimension_numbers<[1], [0], [0], [1], [0, 0, 1, 1], [], []>} : vector<32x8xbf16>, vector<8x32xbf16>, vector<32x32xf32> -> vector<32x32xf32>
    %427 = arith.addf %402, %426 : vector<32x32xf32>
    %428 = vector.extract_strided_slice %363 {offsets = [0, 16], sizes = [32, 8], strides = [1, 1]} : vector<32x32xf32> to vector<32x8xf32>
    %429 = vector.extract_strided_slice %374 {offsets = [16, 0], sizes = [8, 16], strides = [1, 1]} : vector<32x16xf32> to vector<8x16xf32>
    %430 = arith.truncf %428 : vector<32x8xf32> to vector<32x8xbf16>
    %431 = arith.truncf %429 : vector<8x16xf32> to vector<8x16xbf16>
    %cst_170 = arith.constant dense<0.000000e+00> : vector<32x16xf32>
    %432 = tpu.matmul %430, %431, %cst_170 {dimension_numbers = #tpu.dot_dimension_numbers<[1], [0], [0], [1], [0, 0, 1, 1], [], []>} : vector<32x8xbf16>, vector<8x16xbf16>, vector<32x16xf32> -> vector<32x16xf32>
    %433 = arith.addf %432, %356 : vector<32x16xf32>
    %cst_171 = arith.constant dense<0xFF800000> : vector<32xf32>
    %434 = vector.multi_reduction <maximumf>, %433, %cst_171 [1] : vector<32x16xf32> to vector<32xf32>
    %435 = vector.shape_cast %434 : vector<32xf32> to vector<32x1xf32>
    %436 = vector.broadcast %435 : vector<32x1xf32> to vector<32x16xf32>
    %437 = arith.subf %433, %436 : vector<32x16xf32>
    %438 = math.exp %437 : vector<32x16xf32>
    %cst_172 = arith.constant dense<0.000000e+00> : vector<32xf32>
    %439 = vector.multi_reduction <add>, %438, %cst_172 [1] : vector<32x16xf32> to vector<32xf32>
    %440 = vector.shape_cast %439 : vector<32xf32> to vector<32x1xf32>
    %441 = tpu.reciprocal %440 {approx = true} : vector<32x1xf32> -> vector<32x1xf32>
    %442 = vector.broadcast %441 : vector<32x1xf32> to vector<32x16xf32>
    %443 = arith.mulf %438, %442 : vector<32x16xf32>
    %444 = vector.extract_strided_slice %373 {offsets = [0, 16], sizes = [16, 8], strides = [1, 1]} : vector<16x32xf32> to vector<16x8xf32>
    %445 = arith.truncf %443 : vector<32x16xf32> to vector<32x16xbf16>
    %446 = arith.truncf %444 : vector<16x8xf32> to vector<16x8xbf16>
    %cst_173 = arith.constant dense<0.000000e+00> : vector<32x8xf32>
    %447 = tpu.matmul %445, %446, %cst_173 {dimension_numbers = #tpu.dot_dimension_numbers<[1], [0], [0], [1], [0, 0, 1, 1], [], []>} : vector<32x16xbf16>, vector<16x8xbf16>, vector<32x8xf32> -> vector<32x8xf32>
    %448 = vector.extract_strided_slice %30 {offsets = [16, 0], sizes = [8, 32], strides = [1, 1]} : vector<32x32xf32> to vector<8x32xf32>
    %449 = arith.truncf %447 : vector<32x8xf32> to vector<32x8xbf16>
    %450 = arith.truncf %448 : vector<8x32xf32> to vector<8x32xbf16>
    %cst_174 = arith.constant dense<0.000000e+00> : vector<32x32xf32>
    %451 = tpu.matmul %449, %450, %cst_174 {dimension_numbers = #tpu.dot_dimension_numbers<[1], [0], [0], [1], [0, 0, 1, 1], [], []>} : vector<32x8xbf16>, vector<8x32xbf16>, vector<32x32xf32> -> vector<32x32xf32>
    %452 = arith.addf %427, %451 : vector<32x32xf32>
    %453 = vector.extract_strided_slice %363 {offsets = [0, 24], sizes = [32, 8], strides = [1, 1]} : vector<32x32xf32> to vector<32x8xf32>
    %454 = vector.extract_strided_slice %374 {offsets = [24, 0], sizes = [8, 16], strides = [1, 1]} : vector<32x16xf32> to vector<8x16xf32>
    %455 = arith.truncf %453 : vector<32x8xf32> to vector<32x8xbf16>
    %456 = arith.truncf %454 : vector<8x16xf32> to vector<8x16xbf16>
    %cst_175 = arith.constant dense<0.000000e+00> : vector<32x16xf32>
    %457 = tpu.matmul %455, %456, %cst_175 {dimension_numbers = #tpu.dot_dimension_numbers<[1], [0], [0], [1], [0, 0, 1, 1], [], []>} : vector<32x8xbf16>, vector<8x16xbf16>, vector<32x16xf32> -> vector<32x16xf32>
    %458 = arith.addf %457, %356 : vector<32x16xf32>
    %cst_176 = arith.constant dense<0xFF800000> : vector<32xf32>
    %459 = vector.multi_reduction <maximumf>, %458, %cst_176 [1] : vector<32x16xf32> to vector<32xf32>
    %460 = vector.shape_cast %459 : vector<32xf32> to vector<32x1xf32>
    %461 = vector.broadcast %460 : vector<32x1xf32> to vector<32x16xf32>
    %462 = arith.subf %458, %461 : vector<32x16xf32>
    %463 = math.exp %462 : vector<32x16xf32>
    %cst_177 = arith.constant dense<0.000000e+00> : vector<32xf32>
    %464 = vector.multi_reduction <add>, %463, %cst_177 [1] : vector<32x16xf32> to vector<32xf32>
    %465 = vector.shape_cast %464 : vector<32xf32> to vector<32x1xf32>
    %466 = tpu.reciprocal %465 {approx = true} : vector<32x1xf32> -> vector<32x1xf32>
    %467 = vector.broadcast %466 : vector<32x1xf32> to vector<32x16xf32>
    %468 = arith.mulf %463, %467 : vector<32x16xf32>
    %469 = vector.extract_strided_slice %373 {offsets = [0, 24], sizes = [16, 8], strides = [1, 1]} : vector<16x32xf32> to vector<16x8xf32>
    %470 = arith.truncf %468 : vector<32x16xf32> to vector<32x16xbf16>
    %471 = arith.truncf %469 : vector<16x8xf32> to vector<16x8xbf16>
    %cst_178 = arith.constant dense<0.000000e+00> : vector<32x8xf32>
    %472 = tpu.matmul %470, %471, %cst_178 {dimension_numbers = #tpu.dot_dimension_numbers<[1], [0], [0], [1], [0, 0, 1, 1], [], []>} : vector<32x16xbf16>, vector<16x8xbf16>, vector<32x8xf32> -> vector<32x8xf32>
    %473 = vector.extract_strided_slice %30 {offsets = [24, 0], sizes = [8, 32], strides = [1, 1]} : vector<32x32xf32> to vector<8x32xf32>
    %474 = arith.truncf %472 : vector<32x8xf32> to vector<32x8xbf16>
    %475 = arith.truncf %473 : vector<8x32xf32> to vector<8x32xbf16>
    %cst_179 = arith.constant dense<0.000000e+00> : vector<32x32xf32>
    %476 = tpu.matmul %474, %475, %cst_179 {dimension_numbers = #tpu.dot_dimension_numbers<[1], [0], [0], [1], [0, 0, 1, 1], [], []>} : vector<32x8xbf16>, vector<8x32xbf16>, vector<32x32xf32> -> vector<32x32xf32>
    %477 = arith.addf %452, %476 : vector<32x32xf32>
    %478 = arith.addf %233, %477 : vector<32x32xf32>
    %cst_180 = arith.constant dense<0.000000e+00> : vector<32xf32>
    %479 = vector.multi_reduction <add>, %478, %cst_180 [1] : vector<32x32xf32> to vector<32xf32>
    %480 = vector.shape_cast %479 : vector<32xf32> to vector<32x1xf32>
    %cst_181 = arith.constant 3.200000e+01 : f32
    %481 = vector.broadcast %cst_181 : f32 to vector<32x1xf32>
    %482 = arith.divf %480, %481 : vector<32x1xf32>
    %483 = vector.broadcast %482 : vector<32x1xf32> to vector<32x32xf32>
    %484 = arith.subf %478, %483 : vector<32x32xf32>
    %485 = arith.mulf %484, %484 : vector<32x32xf32>
    %cst_182 = arith.constant dense<0.000000e+00> : vector<32xf32>
    %486 = vector.multi_reduction <add>, %485, %cst_182 [1] : vector<32x32xf32> to vector<32xf32>
    %487 = vector.shape_cast %486 : vector<32xf32> to vector<32x1xf32>
    %cst_183 = arith.constant 3.200000e+01 : f32
    %488 = vector.broadcast %cst_183 : f32 to vector<32x1xf32>
    %489 = arith.divf %487, %488 : vector<32x1xf32>
    %490 = vector.broadcast %482 : vector<32x1xf32> to vector<32x32xf32>
    %491 = arith.subf %478, %490 : vector<32x32xf32>
    %cst_184 = arith.constant 9.99999974E-6 : f32
    %492 = vector.broadcast %cst_184 : f32 to vector<32x1xf32>
    %493 = arith.addf %489, %492 : vector<32x1xf32>
    %494 = math.rsqrt %493 : vector<32x1xf32>
    %495 = vector.broadcast %494 : vector<32x1xf32> to vector<32x32xf32>
    %496 = arith.mulf %491, %495 : vector<32x32xf32>
    %497 = vector.broadcast %32 : vector<1x32xf32> to vector<32x32xf32>
    %498 = arith.mulf %496, %497 : vector<32x32xf32>
    %499 = vector.broadcast %33 : vector<1x32xf32> to vector<32x32xf32>
    %500 = arith.addf %498, %499 : vector<32x32xf32>
    %501 = arith.truncf %500 : vector<32x32xf32> to vector<32x32xbf16>
    %502 = arith.truncf %34 : vector<32x128xf32> to vector<32x128xbf16>
    %cst_185 = arith.constant dense<0.000000e+00> : vector<32x128xf32>
    %503 = tpu.matmul %501, %502, %cst_185 {dimension_numbers = #tpu.dot_dimension_numbers<[1], [0], [0], [1], [0, 0, 1, 1], [], []>} : vector<32x32xbf16>, vector<32x128xbf16>, vector<32x128xf32> -> vector<32x128xf32>
    %504 = vector.broadcast %35 : vector<1x128xf32> to vector<32x128xf32>
    %505 = arith.addf %503, %504 : vector<32x128xf32>
    %cst_186 = arith.constant 5.000000e-01 : f32
    %506 = vector.broadcast %cst_186 : f32 to vector<32x128xf32>
    %507 = arith.mulf %506, %505 : vector<32x128xf32>
    %cst_187 = arith.constant 4.471500e-02 : f32
    %508 = vector.broadcast %cst_187 : f32 to vector<32x128xf32>
    %509 = arith.mulf %508, %505 : vector<32x128xf32>
    %510 = arith.mulf %509, %505 : vector<32x128xf32>
    %511 = arith.mulf %510, %505 : vector<32x128xf32>
    %512 = arith.addf %505, %511 : vector<32x128xf32>
    %cst_188 = arith.constant 0.797884583 : f32
    %513 = vector.broadcast %cst_188 : f32 to vector<32x128xf32>
    %514 = arith.mulf %513, %512 : vector<32x128xf32>
    %515 = math.tanh %514 : vector<32x128xf32>
    %cst_189 = arith.constant 1.000000e+00 : f32
    %516 = vector.broadcast %cst_189 : f32 to vector<32x128xf32>
    %517 = arith.addf %516, %515 : vector<32x128xf32>
    %518 = arith.mulf %507, %517 : vector<32x128xf32>
    %519 = arith.truncf %518 : vector<32x128xf32> to vector<32x128xbf16>
    %520 = arith.truncf %36 : vector<128x32xf32> to vector<128x32xbf16>
    %cst_190 = arith.constant dense<0.000000e+00> : vector<32x32xf32>
    %521 = tpu.matmul %519, %520, %cst_190 {dimension_numbers = #tpu.dot_dimension_numbers<[1], [0], [0], [1], [0, 0, 1, 1], [], []>} : vector<32x128xbf16>, vector<128x32xbf16>, vector<32x32xf32> -> vector<32x32xf32>
    %522 = vector.broadcast %37 : vector<1x32xf32> to vector<32x32xf32>
    %523 = arith.addf %521, %522 : vector<32x32xf32>
    %524 = arith.addf %500, %523 : vector<32x32xf32>
    %cst_191 = arith.constant dense<0.000000e+00> : vector<32xf32>
    %525 = vector.multi_reduction <add>, %524, %cst_191 [1] : vector<32x32xf32> to vector<32xf32>
    %526 = vector.shape_cast %525 : vector<32xf32> to vector<32x1xf32>
    %cst_192 = arith.constant 3.200000e+01 : f32
    %527 = vector.broadcast %cst_192 : f32 to vector<32x1xf32>
    %528 = arith.divf %526, %527 : vector<32x1xf32>
    %529 = vector.broadcast %528 : vector<32x1xf32> to vector<32x32xf32>
    %530 = arith.subf %524, %529 : vector<32x32xf32>
    %531 = arith.mulf %530, %530 : vector<32x32xf32>
    %cst_193 = arith.constant dense<0.000000e+00> : vector<32xf32>
    %532 = vector.multi_reduction <add>, %531, %cst_193 [1] : vector<32x32xf32> to vector<32xf32>
    %533 = vector.shape_cast %532 : vector<32xf32> to vector<32x1xf32>
    %cst_194 = arith.constant 3.200000e+01 : f32
    %534 = vector.broadcast %cst_194 : f32 to vector<32x1xf32>
    %535 = arith.divf %533, %534 : vector<32x1xf32>
    %536 = vector.broadcast %528 : vector<32x1xf32> to vector<32x32xf32>
    %537 = arith.subf %524, %536 : vector<32x32xf32>
    %cst_195 = arith.constant 9.99999974E-6 : f32
    %538 = vector.broadcast %cst_195 : f32 to vector<32x1xf32>
    %539 = arith.addf %535, %538 : vector<32x1xf32>
    %540 = math.rsqrt %539 : vector<32x1xf32>
    %541 = vector.broadcast %540 : vector<32x1xf32> to vector<32x32xf32>
    %542 = arith.mulf %537, %541 : vector<32x32xf32>
    %543 = vector.broadcast %38 : vector<1x32xf32> to vector<32x32xf32>
    %544 = arith.mulf %542, %543 : vector<32x32xf32>
    %545 = vector.broadcast %39 : vector<1x32xf32> to vector<32x32xf32>
    %546 = arith.addf %544, %545 : vector<32x32xf32>
    %c0_196 = arith.constant 0 : index
    %c0_197 = arith.constant 0 : index
    %c0_198 = arith.constant 0 : index
    %547 = vector.load %arg46[%c0_196, %c0_197, %c0_198] : memref<1x32x32xf32, #tpu.memory_space<vmem>>, vector<1x32x32xf32>
    %548 = vector.shape_cast %547 : vector<1x32x32xf32> to vector<32x32xf32>
    %549 = vector.shape_cast %546 : vector<32x32xf32> to vector<1x32x32xf32>
    tpu.vector_store %arg46[%c0_196, %c0_197, %c0_198], %549 {strides = array<i32>} : memref<1x32x32xf32, #tpu.memory_space<vmem>>, vector<1x32x32xf32>,
    return
  }
  func.func @transform_0(%arg0: i32) -> (i32, i32, i32) {
    %c0_i32 = arith.constant 0 : i32
    %c0_i32_0 = arith.constant 0 : i32
    %c0_i32_1 = arith.constant 0 : i32
    return %arg0, %c0_i32, %c0_i32_0 : i32, i32, i32
  }
  func.func @transform_1(%arg0: i32) -> (i32, i32) {
    %c0_i32 = arith.constant 0 : i32
    %c0_i32_0 = arith.constant 0 : i32
    %c0_i32_1 = arith.constant 0 : i32
    return %c0_i32, %c0_i32_0 : i32, i32
  }
  func.func @transform_2(%arg0: i32) -> (i32, i32) {
    %c0_i32 = arith.constant 0 : i32
    %c0_i32_0 = arith.constant 0 : i32
    %c0_i32_1 = arith.constant 0 : i32
    return %c0_i32, %c0_i32_0 : i32, i32
  }
  func.func @transform_3(%arg0: i32) -> (i32, i32) {
    %c0_i32 = arith.constant 0 : i32
    %c0_i32_0 = arith.constant 0 : i32
    %c0_i32_1 = arith.constant 0 : i32
    return %c0_i32, %c0_i32_0 : i32, i32
  }
  func.func @transform_4(%arg0: i32) -> (i32, i32) {
    %c0_i32 = arith.constant 0 : i32
    %c0_i32_0 = arith.constant 0 : i32
    %c0_i32_1 = arith.constant 0 : i32
    return %c0_i32, %c0_i32_0 : i32, i32
  }
  func.func @transform_5(%arg0: i32) -> (i32, i32) {
    %c0_i32 = arith.constant 0 : i32
    %c0_i32_0 = arith.constant 0 : i32
    %c0_i32_1 = arith.constant 0 : i32
    return %c0_i32, %c0_i32_0 : i32, i32
  }
  func.func @transform_6(%arg0: i32) -> (i32, i32) {
    %c0_i32 = arith.constant 0 : i32
    %c0_i32_0 = arith.constant 0 : i32
    %c0_i32_1 = arith.constant 0 : i32
    return %c0_i32, %c0_i32_0 : i32, i32
  }
  func.func @transform_7(%arg0: i32) -> (i32, i32) {
    %c0_i32 = arith.constant 0 : i32
    %c0_i32_0 = arith.constant 0 : i32
    %c0_i32_1 = arith.constant 0 : i32
    return %c0_i32, %c0_i32_0 : i32, i32
  }
  func.func @transform_8(%arg0: i32) -> (i32, i32) {
    %c0_i32 = arith.constant 0 : i32
    %c0_i32_0 = arith.constant 0 : i32
    %c0_i32_1 = arith.constant 0 : i32
    return %c0_i32, %c0_i32_0 : i32, i32
  }
  func.func @transform_9(%arg0: i32) -> (i32, i32) {
    %c0_i32 = arith.constant 0 : i32
    %c0_i32_0 = arith.constant 0 : i32
    %c0_i32_1 = arith.constant 0 : i32
    return %c0_i32, %c0_i32_0 : i32, i32
  }
  func.func @transform_10(%arg0: i32) -> (i32, i32) {
    %c0_i32 = arith.constant 0 : i32
    %c0_i32_0 = arith.constant 0 : i32
    %c0_i32_1 = arith.constant 0 : i32
    return %c0_i32, %c0_i32_0 : i32, i32
  }
  func.func @transform_11(%arg0: i32) -> (i32, i32) {
    %c0_i32 = arith.constant 0 : i32
    %c0_i32_0 = arith.constant 0 : i32
    %c0_i32_1 = arith.constant 0 : i32
    return %c0_i32, %c0_i32_0 : i32, i32
  }
  func.func @transform_12(%arg0: i32) -> (i32, i32) {
    %c0_i32 = arith.constant 0 : i32
    %c0_i32_0 = arith.constant 0 : i32
    %c0_i32_1 = arith.constant 0 : i32
    return %c0_i32, %c0_i32_0 : i32, i32
  }
  func.func @transform_13(%arg0: i32) -> (i32, i32) {
    %c0_i32 = arith.constant 0 : i32
    %c0_i32_0 = arith.constant 0 : i32
    %c0_i32_1 = arith.constant 0 : i32
    return %c0_i32, %c0_i32_0 : i32, i32
  }
  func.func @transform_14(%arg0: i32) -> (i32, i32) {
    %c0_i32 = arith.constant 0 : i32
    %c0_i32_0 = arith.constant 0 : i32
    %c0_i32_1 = arith.constant 0 : i32
    return %c0_i32, %c0_i32_0 : i32, i32
  }
  func.func @transform_15(%arg0: i32) -> (i32, i32) {
    %c0_i32 = arith.constant 0 : i32
    %c0_i32_0 = arith.constant 0 : i32
    %c0_i32_1 = arith.constant 0 : i32
    return %c0_i32, %c0_i32_0 : i32, i32
  }
  func.func @transform_16(%arg0: i32) -> (i32, i32) {
    %c0_i32 = arith.constant 0 : i32
    %c0_i32_0 = arith.constant 0 : i32
    %c0_i32_1 = arith.constant 0 : i32
    return %c0_i32, %c0_i32_0 : i32, i32
  }
  func.func @transform_17(%arg0: i32) -> (i32, i32) {
    %c0_i32 = arith.constant 0 : i32
    %c0_i32_0 = arith.constant 0 : i32
    %c0_i32_1 = arith.constant 0 : i32
    return %c0_i32, %c0_i32_0 : i32, i32
  }
  func.func @transform_18(%arg0: i32) -> (i32, i32) {
    %c0_i32 = arith.constant 0 : i32
    %c0_i32_0 = arith.constant 0 : i32
    %c0_i32_1 = arith.constant 0 : i32
    return %c0_i32, %c0_i32_0 : i32, i32
  }
  func.func @transform_19(%arg0: i32) -> (i32, i32) {
    %c0_i32 = arith.constant 0 : i32
    %c0_i32_0 = arith.constant 0 : i32
    %c0_i32_1 = arith.constant 0 : i32
    return %c0_i32, %c0_i32_0 : i32, i32
  }
  func.func @transform_20(%arg0: i32) -> (i32, i32) {
    %c0_i32 = arith.constant 0 : i32
    %c0_i32_0 = arith.constant 0 : i32
    %c0_i32_1 = arith.constant 0 : i32
    return %c0_i32, %c0_i32_0 : i32, i32
  }
  func.func @transform_21(%arg0: i32) -> (i32, i32) {
    %c0_i32 = arith.constant 0 : i32
    %c0_i32_0 = arith.constant 0 : i32
    %c0_i32_1 = arith.constant 0 : i32
    return %c0_i32, %c0_i32_0 : i32, i32
  }
  func.func @transform_22(%arg0: i32) -> (i32, i32) {
    %c0_i32 = arith.constant 0 : i32
    %c0_i32_0 = arith.constant 0 : i32
    %c0_i32_1 = arith.constant 0 : i32
    return %c0_i32, %c0_i32_0 : i32, i32
  }
  func.func @transform_23(%arg0: i32) -> (i32, i32) {
    %c0_i32 = arith.constant 0 : i32
    %c0_i32_0 = arith.constant 0 : i32
    %c0_i32_1 = arith.constant 0 : i32
    return %c0_i32, %c0_i32_0 : i32, i32
  }
  func.func @transform_24(%arg0: i32) -> (i32, i32) {
    %c0_i32 = arith.constant 0 : i32
    %c0_i32_0 = arith.constant 0 : i32
    %c0_i32_1 = arith.constant 0 : i32
    return %c0_i32, %c0_i32_0 : i32, i32
  }
  func.func @transform_25(%arg0: i32) -> (i32, i32) {
    %c0_i32 = arith.constant 0 : i32
    %c0_i32_0 = arith.constant 0 : i32
    %c0_i32_1 = arith.constant 0 : i32
    return %c0_i32, %c0_i32_0 : i32, i32
  }
  func.func @transform_26(%arg0: i32) -> (i32, i32) {
    %c0_i32 = arith.constant 0 : i32
    %c0_i32_0 = arith.constant 0 : i32
    %c0_i32_1 = arith.constant 0 : i32
    return %c0_i32, %c0_i32_0 : i32, i32
  }
  func.func @transform_27(%arg0: i32) -> (i32, i32) {
    %c0_i32 = arith.constant 0 : i32
    %c0_i32_0 = arith.constant 0 : i32
    %c0_i32_1 = arith.constant 0 : i32
    return %c0_i32, %c0_i32_0 : i32, i32
  }
  func.func @transform_28(%arg0: i32) -> (i32, i32) {
    %c0_i32 = arith.constant 0 : i32
    %c0_i32_0 = arith.constant 0 : i32
    %c0_i32_1 = arith.constant 0 : i32
    return %c0_i32, %c0_i32_0 : i32, i32
  }
  func.func @transform_29(%arg0: i32) -> (i32, i32) {
    %c0_i32 = arith.constant 0 : i32
    %c0_i32_0 = arith.constant 0 : i32
    %c0_i32_1 = arith.constant 0 : i32
    return %c0_i32, %c0_i32_0 : i32, i32
  }
  func.func @transform_30(%arg0: i32) -> (i32, i32) {
    %c0_i32 = arith.constant 0 : i32
    %c0_i32_0 = arith.constant 0 : i32
    %c0_i32_1 = arith.constant 0 : i32
    return %c0_i32, %c0_i32_0 : i32, i32
  }
  func.func @transform_31(%arg0: i32) -> (i32, i32) {
    %c0_i32 = arith.constant 0 : i32
    %c0_i32_0 = arith.constant 0 : i32
    %c0_i32_1 = arith.constant 0 : i32
    return %c0_i32, %c0_i32_0 : i32, i32
  }
  func.func @transform_32(%arg0: i32) -> (i32, i32) {
    %c0_i32 = arith.constant 0 : i32
    %c0_i32_0 = arith.constant 0 : i32
    %c0_i32_1 = arith.constant 0 : i32
    return %c0_i32, %c0_i32_0 : i32, i32
  }
  func.func @transform_33(%arg0: i32) -> (i32, i32) {
    %c0_i32 = arith.constant 0 : i32
    %c0_i32_0 = arith.constant 0 : i32
    %c0_i32_1 = arith.constant 0 : i32
    return %c0_i32, %c0_i32_0 : i32, i32
  }
  func.func @transform_34(%arg0: i32) -> (i32, i32) {
    %c0_i32 = arith.constant 0 : i32
    %c0_i32_0 = arith.constant 0 : i32
    %c0_i32_1 = arith.constant 0 : i32
    return %c0_i32, %c0_i32_0 : i32, i32
  }
  func.func @transform_35(%arg0: i32) -> (i32, i32) {
    %c0_i32 = arith.constant 0 : i32
    %c0_i32_0 = arith.constant 0 : i32
    %c0_i32_1 = arith.constant 0 : i32
    return %c0_i32, %c0_i32_0 : i32, i32
  }
  func.func @transform_36(%arg0: i32) -> (i32, i32) {
    %c0_i32 = arith.constant 0 : i32
    %c0_i32_0 = arith.constant 0 : i32
    %c0_i32_1 = arith.constant 0 : i32
    return %c0_i32, %c0_i32_0 : i32, i32
  }
  func.func @transform_37(%arg0: i32) -> (i32, i32) {
    %c0_i32 = arith.constant 0 : i32
    %c0_i32_0 = arith.constant 0 : i32
    %c0_i32_1 = arith.constant 0 : i32
    return %c0_i32, %c0_i32_0 : i32, i32
  }
  func.func @transform_38(%arg0: i32) -> (i32, i32) {
    %c0_i32 = arith.constant 0 : i32
    %c0_i32_0 = arith.constant 0 : i32
    %c0_i32_1 = arith.constant 0 : i32
    return %c0_i32, %c0_i32_0 : i32, i32
  }
  func.func @transform_39(%arg0: i32) -> (i32, i32) {
    %c0_i32 = arith.constant 0 : i32
    %c0_i32_0 = arith.constant 0 : i32
    %c0_i32_1 = arith.constant 0 : i32
    return %c0_i32, %c0_i32_0 : i32, i32
  }
  func.func @transform_40(%arg0: i32) -> (i32, i32) {
    %c0_i32 = arith.constant 0 : i32
    %c0_i32_0 = arith.constant 0 : i32
    %c0_i32_1 = arith.constant 0 : i32
    return %c0_i32, %c0_i32_0 : i32, i32
  }
  func.func @transform_41(%arg0: i32) -> (i32, i32) {
    %c0_i32 = arith.constant 0 : i32
    %c0_i32_0 = arith.constant 0 : i32
    %c0_i32_1 = arith.constant 0 : i32
    return %c0_i32, %c0_i32_0 : i32, i32
  }
  func.func @transform_42(%arg0: i32) -> (i32, i32) {
    %c0_i32 = arith.constant 0 : i32
    %c0_i32_0 = arith.constant 0 : i32
    %c0_i32_1 = arith.constant 0 : i32
    return %c0_i32, %c0_i32_0 : i32, i32
  }
  func.func @transform_43(%arg0: i32) -> (i32, i32) {
    %c0_i32 = arith.constant 0 : i32
    %c0_i32_0 = arith.constant 0 : i32
    %c0_i32_1 = arith.constant 0 : i32
    return %c0_i32, %c0_i32_0 : i32, i32
  }
  func.func @transform_44(%arg0: i32) -> (i32, i32) {
    %c0_i32 = arith.constant 0 : i32
    %c0_i32_0 = arith.constant 0 : i32
    %c0_i32_1 = arith.constant 0 : i32
    return %c0_i32, %c0_i32_0 : i32, i32
  }
  func.func @transform_45(%arg0: i32) -> (i32, i32, i32) {
    %c0_i32 = arith.constant 0 : i32
    %c0_i32_0 = arith.constant 0 : i32
    %c0_i32_1 = arith.constant 0 : i32
    return %arg0, %c0_i32, %c0_i32_0 : i32, i32, i32
  }
}

</mosaic_0001>

<llo_original>
// kernel: two_stage_attention.1
$region0: #{two_stage_attention.1}
  #allocation0 [shape = 'u32[]', space=smem, size = 0x4, offset = 0x4, fixed_abs, tag = 'smem constant byte address 0x4 - core index']
  #allocation1 [shape = 'u32[144,128]{1,0:T(1,128)}', space=vmem, size = 0x12000, scoped, tag = 'internal scratch']
  %s0 = inlined_call_operand.smem [shape: u32[46], index: -1, kind: input, shape index: {}]
  %s1 = sld [smem:[%s0]]
  %s2 = scalar_lea.smem %s0, 1
  %s3 = sld [smem:[%s2]]
  %s4 = scalar_lea.smem %s0, 2
  %s5 = sld [smem:[%s4]]
  %s6 = scalar_lea.smem %s0, 3
  %s7 = sld [smem:[%s6]]
  %s8 = scalar_lea.smem %s0, 4
  %s9 = sld [smem:[%s8]]
  %s10 = scalar_lea.smem %s0, 5
  %s11 = sld [smem:[%s10]]
  %s12 = scalar_lea.smem %s0, 6
  %s13 = sld [smem:[%s12]]
  %s14 = scalar_lea.smem %s0, 7
  %s15 = sld [smem:[%s14]]
  %s16 = scalar_lea.smem %s0, 8
  %s17 = sld [smem:[%s16]]
  %s18 = scalar_lea.smem %s0, 9
  %s19 = sld [smem:[%s18]]
  %s20 = scalar_lea.smem %s0, 10
  %s21 = sld [smem:[%s20]]
  %s22 = scalar_lea.smem %s0, 11
  %s23 = sld [smem:[%s22]]
  %s24 = scalar_lea.smem %s0, 12
  %s25 = sld [smem:[%s24]]
  %s26 = scalar_lea.smem %s0, 13
  %s27 = sld [smem:[%s26]]
  %s28 = scalar_lea.smem %s0, 14
  %s29 = sld [smem:[%s28]]
  %s30 = scalar_lea.smem %s0, 15
  %s31 = sld [smem:[%s30]]
  %s32 = scalar_lea.smem %s0, 16
  %s33 = sld [smem:[%s32]]
  %s34 = scalar_lea.smem %s0, 17
  %s35 = sld [smem:[%s34]]
  %s36 = scalar_lea.smem %s0, 18
  %s37 = sld [smem:[%s36]]
  %s38 = scalar_lea.smem %s0, 19
  %s39 = sld [smem:[%s38]]
  %s40 = scalar_lea.smem %s0, 20
  %s41 = sld [smem:[%s40]]
  %s42 = scalar_lea.smem %s0, 21
  %s43 = sld [smem:[%s42]]
  %s44 = scalar_lea.smem %s0, 22
  %s45 = sld [smem:[%s44]]
  %s46 = scalar_lea.smem %s0, 23
  %s47 = sld [smem:[%s46]]
  %s48 = scalar_lea.smem %s0, 24
  %s49 = sld [smem:[%s48]]
  %s50 = scalar_lea.smem %s0, 25
  %s51 = sld [smem:[%s50]]
  %s52 = scalar_lea.smem %s0, 26
  %s53 = sld [smem:[%s52]]
  %s54 = scalar_lea.smem %s0, 27
  %s55 = sld [smem:[%s54]]
  %s56 = scalar_lea.smem %s0, 28
  %s57 = sld [smem:[%s56]]
  %s58 = scalar_lea.smem %s0, 29
  %s59 = sld [smem:[%s58]]
  %s60 = scalar_lea.smem %s0, 30
  %s61 = sld [smem:[%s60]]
  %s62 = scalar_lea.smem %s0, 31
  %s63 = sld [smem:[%s62]]
  %s64 = scalar_lea.smem %s0, 32
  %s65 = sld [smem:[%s64]]
  %s66 = scalar_lea.smem %s0, 33
  %s67 = sld [smem:[%s66]]
  %s68 = scalar_lea.smem %s0, 34
  %s69 = sld [smem:[%s68]]
  %s70 = scalar_lea.smem %s0, 35
  %s71 = sld [smem:[%s70]]
  %s72 = scalar_lea.smem %s0, 36
  %s73 = sld [smem:[%s72]]
  %s74 = scalar_lea.smem %s0, 37
  %s75 = sld [smem:[%s74]]
  %s76 = scalar_lea.smem %s0, 38
  %s77 = sld [smem:[%s76]]
  %s78 = scalar_lea.smem %s0, 39
  %s79 = sld [smem:[%s78]]
  %s80 = scalar_lea.smem %s0, 40
  %s81 = sld [smem:[%s80]]
  %s82 = scalar_lea.smem %s0, 41
  %s83 = sld [smem:[%s82]]
  %s84 = scalar_lea.smem %s0, 42
  %s85 = sld [smem:[%s84]]
  %s86 = scalar_lea.smem %s0, 43
  %s87 = sld [smem:[%s86]]
  %s88 = scalar_lea.smem %s0, 44
  %s89 = sld [smem:[%s88]]
  %s90 = scalar_lea.smem %s0, 45
  %s91 = sld [smem:[%s90]]
  %s92 = sld [smem:[#allocation0]]
  $region273: #{two_stage_attention.1} parent=0
    _
  %s94 = ssub.s32 1, %s92
  %s95 = scalar_select 0, %s94, %s92
  $region1: #{two_stage_attention.1} parent=0
    #allocation2 [shape = 'u8[512]{0}', space=vmem, size = 0x400, scoped, tag = 'input window, operand 16, single buffered']
    #allocation3 [shape = 's32[2]{0}', space=sflag, size = 0x8, scoped, tag = 'scoped memory for two_stage_attention.1']
    #allocation4 [shape = 's32[2]{0}', space=sflag, size = 0x8, scoped, tag = 'scoped memory for two_stage_attention.1']
    #allocation5 [shape = 'u8[512]{0}', space=vmem, size = 0x400, scoped, tag = 'input window, operand 18, single buffered']
    #allocation6 [shape = 's32[1]{0}', space=sflag, size = 0x4, scoped, tag = 'scoped memory for two_stage_attention.1']
    #allocation7 [shape = 'u8[512]{0}', space=vmem, size = 0x400, scoped, tag = 'input window, operand 22, single buffered']
    #allocation8 [shape = 'u8[512]{0}', space=vmem, size = 0x400, scoped, tag = 'input window, operand 24, single buffered']
    #allocation9 [shape = 's32[1]{0}', space=sflag, size = 0x4, scoped, tag = 'scoped memory for two_stage_attention.1']
    #allocation10 [shape = 'u8[512]{0}', space=vmem, size = 0x400, scoped, tag = 'input window, operand 26, single buffered']
    #allocation11 [shape = 'u8[512]{0}', space=vmem, size = 0x400, scoped, tag = 'input window, operand 28, single buffered']
    #allocation12 [shape = 's32[1]{0}', space=sflag, size = 0x4, scoped, tag = 'scoped memory for two_stage_attention.1']
    #allocation13 [shape = 'u8[512]{0}', space=vmem, size = 0x400, scoped, tag = 'input window, operand 30, single buffered']
    #allocation14 [shape = 'u8[16384]{0}', space=vmem, size = 0x4000, scoped, tag = 'input window, operand 31, single buffered']
    #allocation15 [shape = 's32[1]{0}', space=sflag, size = 0x4, scoped, tag = 'scoped memory for two_stage_attention.1']
    #allocation16 [shape = 'u8[512]{0}', space=vmem, size = 0x400, scoped, tag = 'input window, operand 32, single buffered']
    #allocation17 [shape = 'u8[16384]{0}', space=vmem, size = 0x4000, scoped, tag = 'input window, operand 33, single buffered']
    #allocation18 [shape = 's32[1]{0}', space=sflag, size = 0x4, scoped, tag = 'scoped memory for two_stage_attention.1']
    #allocation19 [shape = 'u8[512]{0}', space=vmem, size = 0x400, scoped, tag = 'input window, operand 34, single buffered']
    #allocation20 [shape = 'u8[16384]{0}', space=vmem, size = 0x4000, scoped, tag = 'input window, operand 35, single buffered']
    #allocation21 [shape = 's32[1]{0}', space=sflag, size = 0x4, scoped, tag = 'scoped memory for two_stage_attention.1']
    #allocation22 [shape = 'u8[512]{0}', space=vmem, size = 0x400, scoped, tag = 'input window, operand 36, single buffered']
    #allocation23 [shape = 'u8[512]{0}', space=vmem, size = 0x400, scoped, tag = 'input window, operand 40, single buffered']
    #allocation24 [shape = 's32[1]{0}', space=sflag, size = 0x4, scoped, tag = 'scoped memory for two_stage_attention.1']
    #allocation25 [shape = 'u8[512]{0}', space=vmem, size = 0x400, scoped, tag = 'input window, operand 42, single buffered']
    #allocation26 [shape = 'u8[32768]{0}', space=vmem, size = 0x8000, scoped, tag = 'output window, operand 0']
    %96 = vsyncpa [#allocation3], 0
    %97 = vsyncpa [#allocation6], 0
    %98 = vsyncpa [#allocation9], 0
    %99 = vsyncpa [#allocation12], 0
    %100 = vsyncpa [#allocation15], 0
    %101 = vsyncpa [#allocation18], 0
    %102 = vsyncpa [#allocation21], 0
    %103 = vsyncpa [#allocation24], 0
    %104 = vsyncpa [#allocation4], 0
    %s105 = scalar_lea.sflag [#allocation4], 1
    %106 = vsyncpa %s105, 0
    loop: start=0, step=1, limit=4
    $region2: #{two_stage_attention.1} parent=1 // loop_pre_header
      _
    $region3: #{two_stage_attention.1} parent=1 // loop_header
      %s108 = sphi 0, %s112
      %p109 = scmp.ge.s32.totalorder %s108, 4
      %s118 = sphi 0, %s120
      %s121 = sphi 0, %s118
      %s122 = sphi 0, %s121
      %s138 = sphi 0, %s122
      %s142 = sphi 0, %s142
      %s144 = sphi 0, %s142
      %s145 = sphi 0, %s144
      %s159 = sphi 0, %s145
      %s163 = sphi 0, %s163
      %s165 = sphi 0, %s163
      %s166 = sphi 0, %s165
      %s180 = sphi 0, %s166
      %s184 = sphi 0, %s184
      %s186 = sphi 0, %s184
      %s187 = sphi 0, %s186
      %s201 = sphi 0, %s187
      %s205 = sphi 0, %s205
      %s207 = sphi 0, %s205
      %s208 = sphi 0, %s207
      %s222 = sphi 0, %s208
      %s226 = sphi 0, %s226
      %s228 = sphi 0, %s226
      %s229 = sphi 0, %s228
      %s243 = sphi 0, %s229
      %s247 = sphi 0, %s247
      %s249 = sphi 0, %s247
      %s250 = sphi 0, %s249
      %s264 = sphi 0, %s250
      %s268 = sphi 0, %s268
      %s270 = sphi 0, %s268
      %s271 = sphi 0, %s270
      %s285 = sphi 0, %s271
      %s289 = sphi 0, %s289
      %s291 = sphi 0, %s289
      %s292 = sphi 0, %s291
      %s306 = sphi 0, %s292
      %s310 = sphi 0, %s310
      %s312 = sphi 0, %s310
      %s313 = sphi 0, %s312
      %s327 = sphi 0, %s313
      %s331 = sphi 0, %s331
      %s333 = sphi 0, %s331
      %s334 = sphi 0, %s333
      %s348 = sphi 0, %s334
      %s352 = sphi 0, %s352
      %s354 = sphi 0, %s352
      %s355 = sphi 0, %s354
      %s369 = sphi 0, %s355
      %s373 = sphi 0, %s373
      %s375 = sphi 0, %s373
      %s376 = sphi 0, %s375
      %s390 = sphi 0, %s376
      %s394 = sphi 0, %s394
      %s396 = sphi 0, %s394
      %s397 = sphi 0, %s396
      %s411 = sphi 0, %s397
      %s415 = sphi 0, %s415
      %s417 = sphi 0, %s415
      %s418 = sphi 0, %s417
      %s432 = sphi 0, %s418
      %s436 = sphi 0, %s436
      %s438 = sphi 0, %s436
      %s439 = sphi 0, %s438
      %s453 = sphi 0, %s439
      %s457 = sphi 0, %s457
      %s459 = sphi 0, %s457
      %s460 = sphi 0, %s459
      %s474 = sphi 0, %s460
      %s478 = sphi 0, %s478
      %s480 = sphi 0, %s478
      %s481 = sphi 0, %s480
      %s495 = sphi 0, %s481
      %s499 = sphi 0, %s499
      %s501 = sphi 0, %s499
      %s502 = sphi 0, %s501
      %s516 = sphi 0, %s502
      %s520 = sphi 0, %s520
      %s522 = sphi 0, %s520
      %s523 = sphi 0, %s522
      %s537 = sphi 0, %s523
      %s541 = sphi 0, %s541
      %s543 = sphi 0, %s541
      %s544 = sphi 0, %s543
      %s558 = sphi 0, %s544
      %s562 = sphi 0, %s562
      %s564 = sphi 0, %s562
      %s565 = sphi 0, %s564
      %s579 = sphi 0, %s565
      %s583 = sphi 0, %s583
      %s585 = sphi 0, %s583
      %s586 = sphi 0, %s585
      %s600 = sphi 0, %s586
      %s604 = sphi 0, %s604
      %s606 = sphi 0, %s604
      %s607 = sphi 0, %s606
      %s621 = sphi 0, %s607
      %s625 = sphi 0, %s625
      %s627 = sphi 0, %s625
      %s628 = sphi 0, %s627
      %s642 = sphi 0, %s628
      %s646 = sphi 0, %s646
      %s648 = sphi 0, %s646
      %s649 = sphi 0, %s648
      %s663 = sphi 0, %s649
      %s667 = sphi 0, %s667
      %s669 = sphi 0, %s667
      %s670 = sphi 0, %s669
      %s684 = sphi 0, %s670
      %s688 = sphi 0, %s688
      %s690 = sphi 0, %s688
      %s691 = sphi 0, %s690
      %s705 = sphi 0, %s691
      %s709 = sphi 0, %s709
      %s711 = sphi 0, %s709
      %s712 = sphi 0, %s711
      %s726 = sphi 0, %s712
      %s730 = sphi 0, %s730
      %s732 = sphi 0, %s730
      %s733 = sphi 0, %s732
      %s747 = sphi 0, %s733
      %s751 = sphi 0, %s751
      %s753 = sphi 0, %s751
      %s754 = sphi 0, %s753
      %s768 = sphi 0, %s754
      %s772 = sphi 0, %s772
      %s774 = sphi 0, %s772
      %s775 = sphi 0, %s774
      %s789 = sphi 0, %s775
      %s793 = sphi 0, %s793
      %s795 = sphi 0, %s793
      %s796 = sphi 0, %s795
      %s810 = sphi 0, %s796
      %s814 = sphi 0, %s814
      %s816 = sphi 0, %s814
      %s817 = sphi 0, %s816
      %s831 = sphi 0, %s817
      %s835 = sphi 0, %s835
      %s837 = sphi 0, %s835
      %s838 = sphi 0, %s837
      %s852 = sphi 0, %s838
      %s856 = sphi 0, %s856
      %s858 = sphi 0, %s856
      %s859 = sphi 0, %s858
      %s873 = sphi 0, %s859
      %s877 = sphi 0, %s877
      %s879 = sphi 0, %s877
      %s880 = sphi 0, %s879
      %s894 = sphi 0, %s880
      %s898 = sphi 0, %s898
      %s900 = sphi 0, %s898
      %s901 = sphi 0, %s900
      %s915 = sphi 0, %s901
      %s919 = sphi 0, %s919
      %s921 = sphi 0, %s919
      %s922 = sphi 0, %s921
      %s936 = sphi 0, %s922
      %s940 = sphi 0, %s940
      %s942 = sphi 0, %s940
      %s943 = sphi 0, %s942
      %s957 = sphi 0, %s943
      %s961 = sphi 0, %s961
      %s963 = sphi 0, %s961
      %s964 = sphi 0, %s963
      %s978 = sphi 0, %s964
      %s982 = sphi 0, %s982
      %s984 = sphi 0, %s982
      %s985 = sphi 0, %s984
      %s999 = sphi 0, %s985
      %s1003 = sphi 0, %s1003
      %s1005 = sphi 0, %s1003
      %s1006 = sphi 0, %s1005
      %s1020 = sphi 0, %s1006
      %s1024 = sphi 0, %s1024
      %s1026 = sphi 0, %s1024
      %s1027 = sphi 0, %s1026
      %s1041 = sphi 0, %s1027
      %s1045 = sphi 0, %s1045
      %s1047 = sphi 0, %s1045
      %s1048 = sphi 0, %s1047
      %s1062 = sphi 0, %s1048
      %s1068 = sphi 0, %s1070
      %s1071 = sphi 0, %s1068
      %s1072 = sphi 0, %s1071
      %s1088 = sphi 0, %s1072
    $region4: #{two_stage_attention.1} parent=1 // loop_header_branch
      %111 = sbr.rel (%p109) target = $region8
    $region5: #{two_stage_attention.1} parent=1 // loop_body
      %s113 = ssub.s32 %s108, 1
      %s114 = ssub.s32 %s108, 2
      %s115 = sadd.s32 %s108, 1
      %s116 = ssub.s32 %s108, %s115
      %p117 = scmp.eq.s32.totalorder %s116, 0
      %s119 = sadd.s32 %s118, 1
      %s120 = scalar_select %p117, %s118, %s119
      %p123 = pneg %p117
      %p124 = scmp.eq.s32.totalorder %s108, 1
      %p125 = por %p123, %p124
      %p126 = scmp.ne.s32.totalorder %s118, %s121
      %p127 = scmp.eq.s32.totalorder %s108, 0
      %p128 = por %p126, %p127
      %p129 = scmp.ne.s32.totalorder %s118, %s121
      %p130 = scmp.eq.s32.totalorder %s113, 1
      %p131 = por %p129, %p130
      %p132 = scmp.ne.s32.totalorder %s121, %s122
      %p133 = scmp.eq.s32.totalorder %s113, 0
      %p134 = por %p132, %p133
      %p135 = scmp.ne.s32.totalorder %s121, %s122
      %p136 = scmp.eq.s32.totalorder %s114, 1
      %p137 = por %p135, %p136
      %p139 = scmp.ne.s32.totalorder %s122, %s138
      %p140 = scmp.eq.s32.totalorder %s114, 0
      %p141 = por %p139, %p140
      %s143 = sadd.s32 %s142, 1
      %p146 = scmp.eq.s32.totalorder %s108, 1
      %p147 = scmp.ne.s32.totalorder %s142, %s144
      %p148 = scmp.eq.s32.totalorder %s108, 0
      %p149 = por %p147, %p148
      %p150 = scmp.ne.s32.totalorder %s142, %s144
      %p151 = scmp.eq.s32.totalorder %s113, 1
      %p152 = por %p150, %p151
      %p153 = scmp.ne.s32.totalorder %s144, %s145
      %p154 = scmp.eq.s32.totalorder %s113, 0
      %p155 = por %p153, %p154
      %p156 = scmp.ne.s32.totalorder %s144, %s145
      %p157 = scmp.eq.s32.totalorder %s114, 1
      %p158 = por %p156, %p157
      %p160 = scmp.ne.s32.totalorder %s145, %s159
      %p161 = scmp.eq.s32.totalorder %s114, 0
      %p162 = por %p160, %p161
      %s164 = sadd.s32 %s163, 1
      %p167 = scmp.eq.s32.totalorder %s108, 1
      %p168 = scmp.ne.s32.totalorder %s163, %s165
      %p169 = scmp.eq.s32.totalorder %s108, 0
      %p170 = por %p168, %p169
      %p171 = scmp.ne.s32.totalorder %s163, %s165
      %p172 = scmp.eq.s32.totalorder %s113, 1
      %p173 = por %p171, %p172
      %p174 = scmp.ne.s32.totalorder %s165, %s166
      %p175 = scmp.eq.s32.totalorder %s113, 0
      %p176 = por %p174, %p175
      %p177 = scmp.ne.s32.totalorder %s165, %s166
      %p178 = scmp.eq.s32.totalorder %s114, 1
      %p179 = por %p177, %p178
      %p181 = scmp.ne.s32.totalorder %s166, %s180
      %p182 = scmp.eq.s32.totalorder %s114, 0
      %p183 = por %p181, %p182
      %s185 = sadd.s32 %s184, 1
      %p188 = scmp.eq.s32.totalorder %s108, 1
      %p189 = scmp.ne.s32.totalorder %s184, %s186
      %p190 = scmp.eq.s32.totalorder %s108, 0
      %p191 = por %p189, %p190
      %p192 = scmp.ne.s32.totalorder %s184, %s186
      %p193 = scmp.eq.s32.totalorder %s113, 1
      %p194 = por %p192, %p193
      %p195 = scmp.ne.s32.totalorder %s186, %s187
      %p196 = scmp.eq.s32.totalorder %s113, 0
      %p197 = por %p195, %p196
      %p198 = scmp.ne.s32.totalorder %s186, %s187
      %p199 = scmp.eq.s32.totalorder %s114, 1
      %p200 = por %p198, %p199
      %p202 = scmp.ne.s32.totalorder %s187, %s201
      %p203 = scmp.eq.s32.totalorder %s114, 0
      %p204 = por %p202, %p203
      %s206 = sadd.s32 %s205, 1
      %p209 = scmp.eq.s32.totalorder %s108, 1
      %p210 = scmp.ne.s32.totalorder %s205, %s207
      %p211 = scmp.eq.s32.totalorder %s108, 0
      %p212 = por %p210, %p211
      %p213 = scmp.ne.s32.totalorder %s205, %s207
      %p214 = scmp.eq.s32.totalorder %s113, 1
      %p215 = por %p213, %p214
      %p216 = scmp.ne.s32.totalorder %s207, %s208
      %p217 = scmp.eq.s32.totalorder %s113, 0
      %p218 = por %p216, %p217
      %p219 = scmp.ne.s32.totalorder %s207, %s208
      %p220 = scmp.eq.s32.totalorder %s114, 1
      %p221 = por %p219, %p220
      %p223 = scmp.ne.s32.totalorder %s208, %s222
      %p224 = scmp.eq.s32.totalorder %s114, 0
      %p225 = por %p223, %p224
      %s227 = sadd.s32 %s226, 1
      %p230 = scmp.eq.s32.totalorder %s108, 1
      %p231 = scmp.ne.s32.totalorder %s226, %s228
      %p232 = scmp.eq.s32.totalorder %s108, 0
      %p233 = por %p231, %p232
      %p234 = scmp.ne.s32.totalorder %s226, %s228
      %p235 = scmp.eq.s32.totalorder %s113, 1
      %p236 = por %p234, %p235
      %p237 = scmp.ne.s32.totalorder %s228, %s229
      %p238 = scmp.eq.s32.totalorder %s113, 0
      %p239 = por %p237, %p238
      %p240 = scmp.ne.s32.totalorder %s228, %s229
      %p241 = scmp.eq.s32.totalorder %s114, 1
      %p242 = por %p240, %p241
      %p244 = scmp.ne.s32.totalorder %s229, %s243
      %p245 = scmp.eq.s32.totalorder %s114, 0
      %p246 = por %p244, %p245
      %s248 = sadd.s32 %s247, 1
      %p251 = scmp.eq.s32.totalorder %s108, 1
      %p252 = scmp.ne.s32.totalorder %s247, %s249
      %p253 = scmp.eq.s32.totalorder %s108, 0
      %p254 = por %p252, %p253
      %p255 = scmp.ne.s32.totalorder %s247, %s249
      %p256 = scmp.eq.s32.totalorder %s113, 1
      %p257 = por %p255, %p256
      %p258 = scmp.ne.s32.totalorder %s249, %s250
      %p259 = scmp.eq.s32.totalorder %s113, 0
      %p260 = por %p258, %p259
      %p261 = scmp.ne.s32.totalorder %s249, %s250
      %p262 = scmp.eq.s32.totalorder %s114, 1
      %p263 = por %p261, %p262
      %p265 = scmp.ne.s32.totalorder %s250, %s264
      %p266 = scmp.eq.s32.totalorder %s114, 0
      %p267 = por %p265, %p266
      %s269 = sadd.s32 %s268, 1
      %p272 = scmp.eq.s32.totalorder %s108, 1
      %p273 = scmp.ne.s32.totalorder %s268, %s270
      %p274 = scmp.eq.s32.totalorder %s108, 0
      %p275 = por %p273, %p274
      %p276 = scmp.ne.s32.totalorder %s268, %s270
      %p277 = scmp.eq.s32.totalorder %s113, 1
      %p278 = por %p276, %p277
      %p279 = scmp.ne.s32.totalorder %s270, %s271
      %p280 = scmp.eq.s32.totalorder %s113, 0
      %p281 = por %p279, %p280
      %p282 = scmp.ne.s32.totalorder %s270, %s271
      %p283 = scmp.eq.s32.totalorder %s114, 1
      %p284 = por %p282, %p283
      %p286 = scmp.ne.s32.totalorder %s271, %s285
      %p287 = scmp.eq.s32.totalorder %s114, 0
      %p288 = por %p286, %p287
      %s290 = sadd.s32 %s289, 1
      %p293 = scmp.eq.s32.totalorder %s108, 1
      %p294 = scmp.ne.s32.totalorder %s289, %s291
      %p295 = scmp.eq.s32.totalorder %s108, 0
      %p296 = por %p294, %p295
      %p297 = scmp.ne.s32.totalorder %s289, %s291
      %p298 = scmp.eq.s32.totalorder %s113, 1
      %p299 = por %p297, %p298
      %p300 = scmp.ne.s32.totalorder %s291, %s292
      %p301 = scmp.eq.s32.totalorder %s113, 0
      %p302 = por %p300, %p301
      %p303 = scmp.ne.s32.totalorder %s291, %s292
      %p304 = scmp.eq.s32.totalorder %s114, 1
      %p305 = por %p303, %p304
      %p307 = scmp.ne.s32.totalorder %s292, %s306
      %p308 = scmp.eq.s32.totalorder %s114, 0
      %p309 = por %p307, %p308
      %s311 = sadd.s32 %s310, 1
      %p314 = scmp.eq.s32.totalorder %s108, 1
      %p315 = scmp.ne.s32.totalorder %s310, %s312
      %p316 = scmp.eq.s32.totalorder %s108, 0
      %p317 = por %p315, %p316
      %p318 = scmp.ne.s32.totalorder %s310, %s312
      %p319 = scmp.eq.s32.totalorder %s113, 1
      %p320 = por %p318, %p319
      %p321 = scmp.ne.s32.totalorder %s312, %s313
      %p322 = scmp.eq.s32.totalorder %s113, 0
      %p323 = por %p321, %p322
      %p324 = scmp.ne.s32.totalorder %s312, %s313
      %p325 = scmp.eq.s32.totalorder %s114, 1
      %p326 = por %p324, %p325
      %p328 = scmp.ne.s32.totalorder %s313, %s327
      %p329 = scmp.eq.s32.totalorder %s114, 0
      %p330 = por %p328, %p329
      %s332 = sadd.s32 %s331, 1
      %p335 = scmp.eq.s32.totalorder %s108, 1
      %p336 = scmp.ne.s32.totalorder %s331, %s333
      %p337 = scmp.eq.s32.totalorder %s108, 0
      %p338 = por %p336, %p337
      %p339 = scmp.ne.s32.totalorder %s331, %s333
      %p340 = scmp.eq.s32.totalorder %s113, 1
      %p341 = por %p339, %p340
      %p342 = scmp.ne.s32.totalorder %s333, %s334
      %p343 = scmp.eq.s32.totalorder %s113, 0
      %p344 = por %p342, %p343
      %p345 = scmp.ne.s32.totalorder %s333, %s334
      %p346 = scmp.eq.s32.totalorder %s114, 1
      %p347 = por %p345, %p346
      %p349 = scmp.ne.s32.totalorder %s334, %s348
      %p350 = scmp.eq.s32.totalorder %s114, 0
      %p351 = por %p349, %p350
      %s353 = sadd.s32 %s352, 1
      %p356 = scmp.eq.s32.totalorder %s108, 1
      %p357 = scmp.ne.s32.totalorder %s352, %s354
      %p358 = scmp.eq.s32.totalorder %s108, 0
      %p359 = por %p357, %p358
      %p360 = scmp.ne.s32.totalorder %s352, %s354
      %p361 = scmp.eq.s32.totalorder %s113, 1
      %p362 = por %p360, %p361
      %p363 = scmp.ne.s32.totalorder %s354, %s355
      %p364 = scmp.eq.s32.totalorder %s113, 0
      %p365 = por %p363, %p364
      %p366 = scmp.ne.s32.totalorder %s354, %s355
      %p367 = scmp.eq.s32.totalorder %s114, 1
      %p368 = por %p366, %p367
      %p370 = scmp.ne.s32.totalorder %s355, %s369
      %p371 = scmp.eq.s32.totalorder %s114, 0
      %p372 = por %p370, %p371
      %s374 = sadd.s32 %s373, 1
      %p377 = scmp.eq.s32.totalorder %s108, 1
      %p378 = scmp.ne.s32.totalorder %s373, %s375
      %p379 = scmp.eq.s32.totalorder %s108, 0
      %p380 = por %p378, %p379
      %p381 = scmp.ne.s32.totalorder %s373, %s375
      %p382 = scmp.eq.s32.totalorder %s113, 1
      %p383 = por %p381, %p382
      %p384 = scmp.ne.s32.totalorder %s375, %s376
      %p385 = scmp.eq.s32.totalorder %s113, 0
      %p386 = por %p384, %p385
      %p387 = scmp.ne.s32.totalorder %s375, %s376
      %p388 = scmp.eq.s32.totalorder %s114, 1
      %p389 = por %p387, %p388
      %p391 = scmp.ne.s32.totalorder %s376, %s390
      %p392 = scmp.eq.s32.totalorder %s114, 0
      %p393 = por %p391, %p392
      %s395 = sadd.s32 %s394, 1
      %p398 = scmp.eq.s32.totalorder %s108, 1
      %p399 = scmp.ne.s32.totalorder %s394, %s396
      %p400 = scmp.eq.s32.totalorder %s108, 0
      %p401 = por %p399, %p400
      %p402 = scmp.ne.s32.totalorder %s394, %s396
      %p403 = scmp.eq.s32.totalorder %s113, 1
      %p404 = por %p402, %p403
      %p405 = scmp.ne.s32.totalorder %s396, %s397
      %p406 = scmp.eq.s32.totalorder %s113, 0
      %p407 = por %p405, %p406
      %p408 = scmp.ne.s32.totalorder %s396, %s397
      %p409 = scmp.eq.s32.totalorder %s114, 1
      %p410 = por %p408, %p409
      %p412 = scmp.ne.s32.totalorder %s397, %s411
      %p413 = scmp.eq.s32.totalorder %s114, 0
      %p414 = por %p412, %p413
      %s416 = sadd.s32 %s415, 1
      %p419 = scmp.eq.s32.totalorder %s108, 1
      %p420 = scmp.ne.s32.totalorder %s415, %s417
      %p421 = scmp.eq.s32.totalorder %s108, 0
      %p422 = por %p420, %p421
      %p423 = scmp.ne.s32.totalorder %s415, %s417
      %p424 = scmp.eq.s32.totalorder %s113, 1
      %p425 = por %p423, %p424
      %p426 = scmp.ne.s32.totalorder %s417, %s418
      %p427 = scmp.eq.s32.totalorder %s113, 0
      %p428 = por %p426, %p427
      %p429 = scmp.ne.s32.totalorder %s417, %s418
      %p430 = scmp.eq.s32.totalorder %s114, 1
      %p431 = por %p429, %p430
      %p433 = scmp.ne.s32.totalorder %s418, %s432
      %p434 = scmp.eq.s32.totalorder %s114, 0
      %p435 = por %p433, %p434
      %s437 = sadd.s32 %s436, 1
      %p440 = scmp.eq.s32.totalorder %s108, 1
      %p441 = scmp.ne.s32.totalorder %s436, %s438
      %p442 = scmp.eq.s32.totalorder %s108, 0
      %p443 = por %p441, %p442
      %p444 = scmp.ne.s32.totalorder %s436, %s438
      %p445 = scmp.eq.s32.totalorder %s113, 1
      %p446 = por %p444, %p445
      %p447 = scmp.ne.s32.totalorder %s438, %s439
      %p448 = scmp.eq.s32.totalorder %s113, 0
      %p449 = por %p447, %p448
      %p450 = scmp.ne.s32.totalorder %s438, %s439
      %p451 = scmp.eq.s32.totalorder %s114, 1
      %p452 = por %p450, %p451
      %p454 = scmp.ne.s32.totalorder %s439, %s453
      %p455 = scmp.eq.s32.totalorder %s114, 0
      %p456 = por %p454, %p455
      %s458 = sadd.s32 %s457, 1
      %p461 = scmp.eq.s32.totalorder %s108, 1
      %p462 = scmp.ne.s32.totalorder %s457, %s459
      %p463 = scmp.eq.s32.totalorder %s108, 0
      %p464 = por %p462, %p463
      %p465 = scmp.ne.s32.totalorder %s457, %s459
      %p466 = scmp.eq.s32.totalorder %s113, 1
      %p467 = por %p465, %p466
      %p468 = scmp.ne.s32.totalorder %s459, %s460
      %p469 = scmp.eq.s32.totalorder %s113, 0
      %p470 = por %p468, %p469
      %p471 = scmp.ne.s32.totalorder %s459, %s460
      %p472 = scmp.eq.s32.totalorder %s114, 1
      %p473 = por %p471, %p472
      %p475 = scmp.ne.s32.totalorder %s460, %s474
      %p476 = scmp.eq.s32.totalorder %s114, 0
      %p477 = por %p475, %p476
      %s479 = sadd.s32 %s478, 1
      %p482 = scmp.eq.s32.totalorder %s108, 1
      %p483 = scmp.ne.s32.totalorder %s478, %s480
      %p484 = scmp.eq.s32.totalorder %s108, 0
      %p485 = por %p483, %p484
      %p486 = scmp.ne.s32.totalorder %s478, %s480
      %p487 = scmp.eq.s32.totalorder %s113, 1
      %p488 = por %p486, %p487
      %p489 = scmp.ne.s32.totalorder %s480, %s481
      %p490 = scmp.eq.s32.totalorder %s113, 0
      %p491 = por %p489, %p490
      %p492 = scmp.ne.s32.totalorder %s480, %s481
      %p493 = scmp.eq.s32.totalorder %s114, 1
      %p494 = por %p492, %p493
      %p496 = scmp.ne.s32.totalorder %s481, %s495
      %p497 = scmp.eq.s32.totalorder %s114, 0
      %p498 = por %p496, %p497
      %s500 = sadd.s32 %s499, 1
      %p503 = scmp.eq.s32.totalorder %s108, 1
      %p504 = scmp.ne.s32.totalorder %s499, %s501
      %p505 = scmp.eq.s32.totalorder %s108, 0
      %p506 = por %p504, %p505
      %p507 = scmp.ne.s32.totalorder %s499, %s501
      %p508 = scmp.eq.s32.totalorder %s113, 1
      %p509 = por %p507, %p508
      %p510 = scmp.ne.s32.totalorder %s501, %s502
      %p511 = scmp.eq.s32.totalorder %s113, 0
      %p512 = por %p510, %p511
      %p513 = scmp.ne.s32.totalorder %s501, %s502
      %p514 = scmp.eq.s32.totalorder %s114, 1
      %p515 = por %p513, %p514
      %p517 = scmp.ne.s32.totalorder %s502, %s516
      %p518 = scmp.eq.s32.totalorder %s114, 0
      %p519 = por %p517, %p518
      %s521 = sadd.s32 %s520, 1
      %p524 = scmp.eq.s32.totalorder %s108, 1
      %p525 = scmp.ne.s32.totalorder %s520, %s522
      %p526 = scmp.eq.s32.totalorder %s108, 0
      %p527 = por %p525, %p526
      %p528 = scmp.ne.s32.totalorder %s520, %s522
      %p529 = scmp.eq.s32.totalorder %s113, 1
      %p530 = por %p528, %p529
      %p531 = scmp.ne.s32.totalorder %s522, %s523
      %p532 = scmp.eq.s32.totalorder %s113, 0
      %p533 = por %p531, %p532
      %p534 = scmp.ne.s32.totalorder %s522, %s523
      %p535 = scmp.eq.s32.totalorder %s114, 1
      %p536 = por %p534, %p535
      %p538 = scmp.ne.s32.totalorder %s523, %s537
      %p539 = scmp.eq.s32.totalorder %s114, 0
      %p540 = por %p538, %p539
      %s542 = sadd.s32 %s541, 1
      %p545 = scmp.eq.s32.totalorder %s108, 1
      %p546 = scmp.ne.s32.totalorder %s541, %s543
      %p547 = scmp.eq.s32.totalorder %s108, 0
      %p548 = por %p546, %p547
      %p549 = scmp.ne.s32.totalorder %s541, %s543
      %p550 = scmp.eq.s32.totalorder %s113, 1
      %p551 = por %p549, %p550
      %p552 = scmp.ne.s32.totalorder %s543, %s544
      %p553 = scmp.eq.s32.totalorder %s113, 0
      %p554 = por %p552, %p553
      %p555 = scmp.ne.s32.totalorder %s543, %s544
      %p556 = scmp.eq.s32.totalorder %s114, 1
      %p557 = por %p555, %p556
      %p559 = scmp.ne.s32.totalorder %s544, %s558
      %p560 = scmp.eq.s32.totalorder %s114, 0
      %p561 = por %p559, %p560
      %s563 = sadd.s32 %s562, 1
      %p566 = scmp.eq.s32.totalorder %s108, 1
      %p567 = scmp.ne.s32.totalorder %s562, %s564
      %p568 = scmp.eq.s32.totalorder %s108, 0
      %p569 = por %p567, %p568
      %p570 = scmp.ne.s32.totalorder %s562, %s564
      %p571 = scmp.eq.s32.totalorder %s113, 1
      %p572 = por %p570, %p571
      %p573 = scmp.ne.s32.totalorder %s564, %s565
      %p574 = scmp.eq.s32.totalorder %s113, 0
      %p575 = por %p573, %p574
      %p576 = scmp.ne.s32.totalorder %s564, %s565
      %p577 = scmp.eq.s32.totalorder %s114, 1
      %p578 = por %p576, %p577
      %p580 = scmp.ne.s32.totalorder %s565, %s579
      %p581 = scmp.eq.s32.totalorder %s114, 0
      %p582 = por %p580, %p581
      %s584 = sadd.s32 %s583, 1
      %p587 = scmp.eq.s32.totalorder %s108, 1
      %p588 = scmp.ne.s32.totalorder %s583, %s585
      %p589 = scmp.eq.s32.totalorder %s108, 0
      %p590 = por %p588, %p589
      %p591 = scmp.ne.s32.totalorder %s583, %s585
      %p592 = scmp.eq.s32.totalorder %s113, 1
      %p593 = por %p591, %p592
      %p594 = scmp.ne.s32.totalorder %s585, %s586
      %p595 = scmp.eq.s32.totalorder %s113, 0
      %p596 = por %p594, %p595
      %p597 = scmp.ne.s32.totalorder %s585, %s586
      %p598 = scmp.eq.s32.totalorder %s114, 1
      %p599 = por %p597, %p598
      %p601 = scmp.ne.s32.totalorder %s586, %s600
      %p602 = scmp.eq.s32.totalorder %s114, 0
      %p603 = por %p601, %p602
      %s605 = sadd.s32 %s604, 1
      %p608 = scmp.eq.s32.totalorder %s108, 1
      %p609 = scmp.ne.s32.totalorder %s604, %s606
      %p610 = scmp.eq.s32.totalorder %s108, 0
      %p611 = por %p609, %p610
      %p612 = scmp.ne.s32.totalorder %s604, %s606
      %p613 = scmp.eq.s32.totalorder %s113, 1
      %p614 = por %p612, %p613
      %p615 = scmp.ne.s32.totalorder %s606, %s607
      %p616 = scmp.eq.s32.totalorder %s113, 0
      %p617 = por %p615, %p616
      %p618 = scmp.ne.s32.totalorder %s606, %s607
      %p619 = scmp.eq.s32.totalorder %s114, 1
      %p620 = por %p618, %p619
      %p622 = scmp.ne.s32.totalorder %s607, %s621
      %p623 = scmp.eq.s32.totalorder %s114, 0
      %p624 = por %p622, %p623
      %s626 = sadd.s32 %s625, 1
      %p629 = scmp.eq.s32.totalorder %s108, 1
      %p630 = scmp.ne.s32.totalorder %s625, %s627
      %p631 = scmp.eq.s32.totalorder %s108, 0
      %p632 = por %p630, %p631
      %p633 = scmp.ne.s32.totalorder %s625, %s627
      %p634 = scmp.eq.s32.totalorder %s113, 1
      %p635 = por %p633, %p634
      %p636 = scmp.ne.s32.totalorder %s627, %s628
      %p637 = scmp.eq.s32.totalorder %s113, 0
      %p638 = por %p636, %p637
      %p639 = scmp.ne.s32.totalorder %s627, %s628
      %p640 = scmp.eq.s32.totalorder %s114, 1
      %p641 = por %p639, %p640
      %p643 = scmp.ne.s32.totalorder %s628, %s642
      %p644 = scmp.eq.s32.totalorder %s114, 0
      %p645 = por %p643, %p644
      %s647 = sadd.s32 %s646, 1
      %p650 = scmp.eq.s32.totalorder %s108, 1
      %p651 = scmp.ne.s32.totalorder %s646, %s648
      %p652 = scmp.eq.s32.totalorder %s108, 0
      %p653 = por %p651, %p652
      %p654 = scmp.ne.s32.totalorder %s646, %s648
      %p655 = scmp.eq.s32.totalorder %s113, 1
      %p656 = por %p654, %p655
      %p657 = scmp.ne.s32.totalorder %s648, %s649
      %p658 = scmp.eq.s32.totalorder %s113, 0
      %p659 = por %p657, %p658
      %p660 = scmp.ne.s32.totalorder %s648, %s649
      %p661 = scmp.eq.s32.totalorder %s114, 1
      %p662 = por %p660, %p661
      %p664 = scmp.ne.s32.totalorder %s649, %s663
      %p665 = scmp.eq.s32.totalorder %s114, 0
      %p666 = por %p664, %p665
      %s668 = sadd.s32 %s667, 1
      %p671 = scmp.eq.s32.totalorder %s108, 1
      %p672 = scmp.ne.s32.totalorder %s667, %s669
      %p673 = scmp.eq.s32.totalorder %s108, 0
      %p674 = por %p672, %p673
      %p675 = scmp.ne.s32.totalorder %s667, %s669
      %p676 = scmp.eq.s32.totalorder %s113, 1
      %p677 = por %p675, %p676
      %p678 = scmp.ne.s32.totalorder %s669, %s670
      %p679 = scmp.eq.s32.totalorder %s113, 0
      %p680 = por %p678, %p679
      %p681 = scmp.ne.s32.totalorder %s669, %s670
      %p682 = scmp.eq.s32.totalorder %s114, 1
      %p683 = por %p681, %p682
      %p685 = scmp.ne.s32.totalorder %s670, %s684
      %p686 = scmp.eq.s32.totalorder %s114, 0
      %p687 = por %p685, %p686
      %s689 = sadd.s32 %s688, 1
      %p692 = scmp.eq.s32.totalorder %s108, 1
      %p693 = scmp.ne.s32.totalorder %s688, %s690
      %p694 = scmp.eq.s32.totalorder %s108, 0
      %p695 = por %p693, %p694
      %p696 = scmp.ne.s32.totalorder %s688, %s690
      %p697 = scmp.eq.s32.totalorder %s113, 1
      %p698 = por %p696, %p697
      %p699 = scmp.ne.s32.totalorder %s690, %s691
      %p700 = scmp.eq.s32.totalorder %s113, 0
      %p701 = por %p699, %p700
      %p702 = scmp.ne.s32.totalorder %s690, %s691
      %p703 = scmp.eq.s32.totalorder %s114, 1
      %p704 = por %p702, %p703
      %p706 = scmp.ne.s32.totalorder %s691, %s705
      %p707 = scmp.eq.s32.totalorder %s114, 0
      %p708 = por %p706, %p707
      %s710 = sadd.s32 %s709, 1
      %p713 = scmp.eq.s32.totalorder %s108, 1
      %p714 = scmp.ne.s32.totalorder %s709, %s711
      %p715 = scmp.eq.s32.totalorder %s108, 0
      %p716 = por %p714, %p715
      %p717 = scmp.ne.s32.totalorder %s709, %s711
      %p718 = scmp.eq.s32.totalorder %s113, 1
      %p719 = por %p717, %p718
      %p720 = scmp.ne.s32.totalorder %s711, %s712
      %p721 = scmp.eq.s32.totalorder %s113, 0
      %p722 = por %p720, %p721
      %p723 = scmp.ne.s32.totalorder %s711, %s712
      %p724 = scmp.eq.s32.totalorder %s114, 1
      %p725 = por %p723, %p724
      %p727 = scmp.ne.s32.totalorder %s712, %s726
      %p728 = scmp.eq.s32.totalorder %s114, 0
      %p729 = por %p727, %p728
      %s731 = sadd.s32 %s730, 1
      %p734 = scmp.eq.s32.totalorder %s108, 1
      %p735 = scmp.ne.s32.totalorder %s730, %s732
      %p736 = scmp.eq.s32.totalorder %s108, 0
      %p737 = por %p735, %p736
      %p738 = scmp.ne.s32.totalorder %s730, %s732
      %p739 = scmp.eq.s32.totalorder %s113, 1
      %p740 = por %p738, %p739
      %p741 = scmp.ne.s32.totalorder %s732, %s733
      %p742 = scmp.eq.s32.totalorder %s113, 0
      %p743 = por %p741, %p742
      %p744 = scmp.ne.s32.totalorder %s732, %s733
      %p745 = scmp.eq.s32.totalorder %s114, 1
      %p746 = por %p744, %p745
      %p748 = scmp.ne.s32.totalorder %s733, %s747
      %p749 = scmp.eq.s32.totalorder %s114, 0
      %p750 = por %p748, %p749
      %s752 = sadd.s32 %s751, 1
      %p755 = scmp.eq.s32.totalorder %s108, 1
      %p756 = scmp.ne.s32.totalorder %s751, %s753
      %p757 = scmp.eq.s32.totalorder %s108, 0
      %p758 = por %p756, %p757
      %p759 = scmp.ne.s32.totalorder %s751, %s753
      %p760 = scmp.eq.s32.totalorder %s113, 1
      %p761 = por %p759, %p760
      %p762 = scmp.ne.s32.totalorder %s753, %s754
      %p763 = scmp.eq.s32.totalorder %s113, 0
      %p764 = por %p762, %p763
      %p765 = scmp.ne.s32.totalorder %s753, %s754
      %p766 = scmp.eq.s32.totalorder %s114, 1
      %p767 = por %p765, %p766
      %p769 = scmp.ne.s32.totalorder %s754, %s768
      %p770 = scmp.eq.s32.totalorder %s114, 0
      %p771 = por %p769, %p770
      %s773 = sadd.s32 %s772, 1
      %p776 = scmp.eq.s32.totalorder %s108, 1
      %p777 = scmp.ne.s32.totalorder %s772, %s774
      %p778 = scmp.eq.s32.totalorder %s108, 0
      %p779 = por %p777, %p778
      %p780 = scmp.ne.s32.totalorder %s772, %s774
      %p781 = scmp.eq.s32.totalorder %s113, 1
      %p782 = por %p780, %p781
      %p783 = scmp.ne.s32.totalorder %s774, %s775
      %p784 = scmp.eq.s32.totalorder %s113, 0
      %p785 = por %p783, %p784
      %p786 = scmp.ne.s32.totalorder %s774, %s775
      %p787 = scmp.eq.s32.totalorder %s114, 1
      %p788 = por %p786, %p787
      %p790 = scmp.ne.s32.totalorder %s775, %s789
      %p791 = scmp.eq.s32.totalorder %s114, 0
      %p792 = por %p790, %p791
      %s794 = sadd.s32 %s793, 1
      %p797 = scmp.eq.s32.totalorder %s108, 1
      %p798 = scmp.ne.s32.totalorder %s793, %s795
      %p799 = scmp.eq.s32.totalorder %s108, 0
      %p800 = por %p798, %p799
      %p801 = scmp.ne.s32.totalorder %s793, %s795
      %p802 = scmp.eq.s32.totalorder %s113, 1
      %p803 = por %p801, %p802
      %p804 = scmp.ne.s32.totalorder %s795, %s796
      %p805 = scmp.eq.s32.totalorder %s113, 0
      %p806 = por %p804, %p805
      %p807 = scmp.ne.s32.totalorder %s795, %s796
      %p808 = scmp.eq.s32.totalorder %s114, 1
      %p809 = por %p807, %p808
      %p811 = scmp.ne.s32.totalorder %s796, %s810
      %p812 = scmp.eq.s32.totalorder %s114, 0
      %p813 = por %p811, %p812
      %s815 = sadd.s32 %s814, 1
      %p818 = scmp.eq.s32.totalorder %s108, 1
      %p819 = scmp.ne.s32.totalorder %s814, %s816
      %p820 = scmp.eq.s32.totalorder %s108, 0
      %p821 = por %p819, %p820
      %p822 = scmp.ne.s32.totalorder %s814, %s816
      %p823 = scmp.eq.s32.totalorder %s113, 1
      %p824 = por %p822, %p823
      %p825 = scmp.ne.s32.totalorder %s816, %s817
      %p826 = scmp.eq.s32.totalorder %s113, 0
      %p827 = por %p825, %p826
      %p828 = scmp.ne.s32.totalorder %s816, %s817
      %p829 = scmp.eq.s32.totalorder %s114, 1
      %p830 = por %p828, %p829
      %p832 = scmp.ne.s32.totalorder %s817, %s831
      %p833 = scmp.eq.s32.totalorder %s114, 0
      %p834 = por %p832, %p833
      %s836 = sadd.s32 %s835, 1
      %p839 = scmp.eq.s32.totalorder %s108, 1
      %p840 = scmp.ne.s32.totalorder %s835, %s837
      %p841 = scmp.eq.s32.totalorder %s108, 0
      %p842 = por %p840, %p841
      %p843 = scmp.ne.s32.totalorder %s835, %s837
      %p844 = scmp.eq.s32.totalorder %s113, 1
      %p845 = por %p843, %p844
      %p846 = scmp.ne.s32.totalorder %s837, %s838
      %p847 = scmp.eq.s32.totalorder %s113, 0
      %p848 = por %p846, %p847
      %p849 = scmp.ne.s32.totalorder %s837, %s838
      %p850 = scmp.eq.s32.totalorder %s114, 1
      %p851 = por %p849, %p850
      %p853 = scmp.ne.s32.totalorder %s838, %s852
      %p854 = scmp.eq.s32.totalorder %s114, 0
      %p855 = por %p853, %p854
      %s857 = sadd.s32 %s856, 1
      %p860 = scmp.eq.s32.totalorder %s108, 1
      %p861 = scmp.ne.s32.totalorder %s856, %s858
      %p862 = scmp.eq.s32.totalorder %s108, 0
      %p863 = por %p861, %p862
      %p864 = scmp.ne.s32.totalorder %s856, %s858
      %p865 = scmp.eq.s32.totalorder %s113, 1
      %p866 = por %p864, %p865
      %p867 = scmp.ne.s32.totalorder %s858, %s859
      %p868 = scmp.eq.s32.totalorder %s113, 0
      %p869 = por %p867, %p868
      %p870 = scmp.ne.s32.totalorder %s858, %s859
      %p871 = scmp.eq.s32.totalorder %s114, 1
      %p872 = por %p870, %p871
      %p874 = scmp.ne.s32.totalorder %s859, %s873
      %p875 = scmp.eq.s32.totalorder %s114, 0
      %p876 = por %p874, %p875
      %s878 = sadd.s32 %s877, 1
      %p881 = scmp.eq.s32.totalorder %s108, 1
      %p882 = scmp.ne.s32.totalorder %s877, %s879
      %p883 = scmp.eq.s32.totalorder %s108, 0
      %p884 = por %p882, %p883
      %p885 = scmp.ne.s32.totalorder %s877, %s879
      %p886 = scmp.eq.s32.totalorder %s113, 1
      %p887 = por %p885, %p886
      %p888 = scmp.ne.s32.totalorder %s879, %s880
      %p889 = scmp.eq.s32.totalorder %s113, 0
      %p890 = por %p888, %p889
      %p891 = scmp.ne.s32.totalorder %s879, %s880
      %p892 = scmp.eq.s32.totalorder %s114, 1
      %p893 = por %p891, %p892
      %p895 = scmp.ne.s32.totalorder %s880, %s894
      %p896 = scmp.eq.s32.totalorder %s114, 0
      %p897 = por %p895, %p896
      %s899 = sadd.s32 %s898, 1
      %p902 = scmp.eq.s32.totalorder %s108, 1
      %p903 = scmp.ne.s32.totalorder %s898, %s900
      %p904 = scmp.eq.s32.totalorder %s108, 0
      %p905 = por %p903, %p904
      %p906 = scmp.ne.s32.totalorder %s898, %s900
      %p907 = scmp.eq.s32.totalorder %s113, 1
      %p908 = por %p906, %p907
      %p909 = scmp.ne.s32.totalorder %s900, %s901
      %p910 = scmp.eq.s32.totalorder %s113, 0
      %p911 = por %p909, %p910
      %p912 = scmp.ne.s32.totalorder %s900, %s901
      %p913 = scmp.eq.s32.totalorder %s114, 1
      %p914 = por %p912, %p913
      %p916 = scmp.ne.s32.totalorder %s901, %s915
      %p917 = scmp.eq.s32.totalorder %s114, 0
      %p918 = por %p916, %p917
      %s920 = sadd.s32 %s919, 1
      %p923 = scmp.eq.s32.totalorder %s108, 1
      %p924 = scmp.ne.s32.totalorder %s919, %s921
      %p925 = scmp.eq.s32.totalorder %s108, 0
      %p926 = por %p924, %p925
      %p927 = scmp.ne.s32.totalorder %s919, %s921
      %p928 = scmp.eq.s32.totalorder %s113, 1
      %p929 = por %p927, %p928
      %p930 = scmp.ne.s32.totalorder %s921, %s922
      %p931 = scmp.eq.s32.totalorder %s113, 0
      %p932 = por %p930, %p931
      %p933 = scmp.ne.s32.totalorder %s921, %s922
      %p934 = scmp.eq.s32.totalorder %s114, 1
      %p935 = por %p933, %p934
      %p937 = scmp.ne.s32.totalorder %s922, %s936
      %p938 = scmp.eq.s32.totalorder %s114, 0
      %p939 = por %p937, %p938
      %s941 = sadd.s32 %s940, 1
      %p944 = scmp.eq.s32.totalorder %s108, 1
      %p945 = scmp.ne.s32.totalorder %s940, %s942
      %p946 = scmp.eq.s32.totalorder %s108, 0
      %p947 = por %p945, %p946
      %p948 = scmp.ne.s32.totalorder %s940, %s942
      %p949 = scmp.eq.s32.totalorder %s113, 1
      %p950 = por %p948, %p949
      %p951 = scmp.ne.s32.totalorder %s942, %s943
      %p952 = scmp.eq.s32.totalorder %s113, 0
      %p953 = por %p951, %p952
      %p954 = scmp.ne.s32.totalorder %s942, %s943
      %p955 = scmp.eq.s32.totalorder %s114, 1
      %p956 = por %p954, %p955
      %p958 = scmp.ne.s32.totalorder %s943, %s957
      %p959 = scmp.eq.s32.totalorder %s114, 0
      %p960 = por %p958, %p959
      %s962 = sadd.s32 %s961, 1
      %p965 = scmp.eq.s32.totalorder %s108, 1
      %p966 = scmp.ne.s32.totalorder %s961, %s963
      %p967 = scmp.eq.s32.totalorder %s108, 0
      %p968 = por %p966, %p967
      %p969 = scmp.ne.s32.totalorder %s961, %s963
      %p970 = scmp.eq.s32.totalorder %s113, 1
      %p971 = por %p969, %p970
      %p972 = scmp.ne.s32.totalorder %s963, %s964
      %p973 = scmp.eq.s32.totalorder %s113, 0
      %p974 = por %p972, %p973
      %p975 = scmp.ne.s32.totalorder %s963, %s964
      %p976 = scmp.eq.s32.totalorder %s114, 1
      %p977 = por %p975, %p976
      %p979 = scmp.ne.s32.totalorder %s964, %s978
      %p980 = scmp.eq.s32.totalorder %s114, 0
      %p981 = por %p979, %p980
      %s983 = sadd.s32 %s982, 1
      %p986 = scmp.eq.s32.totalorder %s108, 1
      %p987 = scmp.ne.s32.totalorder %s982, %s984
      %p988 = scmp.eq.s32.totalorder %s108, 0
      %p989 = por %p987, %p988
      %p990 = scmp.ne.s32.totalorder %s982, %s984
      %p991 = scmp.eq.s32.totalorder %s113, 1
      %p992 = por %p990, %p991
      %p993 = scmp.ne.s32.totalorder %s984, %s985
      %p994 = scmp.eq.s32.totalorder %s113, 0
      %p995 = por %p993, %p994
      %p996 = scmp.ne.s32.totalorder %s984, %s985
      %p997 = scmp.eq.s32.totalorder %s114, 1
      %p998 = por %p996, %p997
      %p1000 = scmp.ne.s32.totalorder %s985, %s999
      %p1001 = scmp.eq.s32.totalorder %s114, 0
      %p1002 = por %p1000, %p1001
      %s1004 = sadd.s32 %s1003, 1
      %p1007 = scmp.eq.s32.totalorder %s108, 1
      %p1008 = scmp.ne.s32.totalorder %s1003, %s1005
      %p1009 = scmp.eq.s32.totalorder %s108, 0
      %p1010 = por %p1008, %p1009
      %p1011 = scmp.ne.s32.totalorder %s1003, %s1005
      %p1012 = scmp.eq.s32.totalorder %s113, 1
      %p1013 = por %p1011, %p1012
      %p1014 = scmp.ne.s32.totalorder %s1005, %s1006
      %p1015 = scmp.eq.s32.totalorder %s113, 0
      %p1016 = por %p1014, %p1015
      %p1017 = scmp.ne.s32.totalorder %s1005, %s1006
      %p1018 = scmp.eq.s32.totalorder %s114, 1
      %p1019 = por %p1017, %p1018
      %p1021 = scmp.ne.s32.totalorder %s1006, %s1020
      %p1022 = scmp.eq.s32.totalorder %s114, 0
      %p1023 = por %p1021, %p1022
      %s1025 = sadd.s32 %s1024, 1
      %p1028 = scmp.eq.s32.totalorder %s108, 1
      %p1029 = scmp.ne.s32.totalorder %s1024, %s1026
      %p1030 = scmp.eq.s32.totalorder %s108, 0
      %p1031 = por %p1029, %p1030
      %p1032 = scmp.ne.s32.totalorder %s1024, %s1026
      %p1033 = scmp.eq.s32.totalorder %s113, 1
      %p1034 = por %p1032, %p1033
      %p1035 = scmp.ne.s32.totalorder %s1026, %s1027
      %p1036 = scmp.eq.s32.totalorder %s113, 0
      %p1037 = por %p1035, %p1036
      %p1038 = scmp.ne.s32.totalorder %s1026, %s1027
      %p1039 = scmp.eq.s32.totalorder %s114, 1
      %p1040 = por %p1038, %p1039
      %p1042 = scmp.ne.s32.totalorder %s1027, %s1041
      %p1043 = scmp.eq.s32.totalorder %s114, 0
      %p1044 = por %p1042, %p1043
      %s1046 = sadd.s32 %s1045, 1
      %p1049 = scmp.eq.s32.totalorder %s108, 1
      %p1050 = scmp.ne.s32.totalorder %s1045, %s1047
      %p1051 = scmp.eq.s32.totalorder %s108, 0
      %p1052 = por %p1050, %p1051
      %p1053 = scmp.ne.s32.totalorder %s1045, %s1047
      %p1054 = scmp.eq.s32.totalorder %s113, 1
      %p1055 = por %p1053, %p1054
      %p1056 = scmp.ne.s32.totalorder %s1047, %s1048
      %p1057 = scmp.eq.s32.totalorder %s113, 0
      %p1058 = por %p1056, %p1057
      %p1059 = scmp.ne.s32.totalorder %s1047, %s1048
      %p1060 = scmp.eq.s32.totalorder %s114, 1
      %p1061 = por %p1059, %p1060
      %p1063 = scmp.ne.s32.totalorder %s1048, %s1062
      %p1064 = scmp.eq.s32.totalorder %s114, 0
      %p1065 = por %p1063, %p1064
      %s1066 = ssub.s32 %s108, %s115
      %p1067 = scmp.eq.s32.totalorder %s1066, 0
      %s1069 = sadd.s32 %s1068, 1
      %s1070 = scalar_select %p1067, %s1068, %s1069
      %p1073 = pneg %p1067
      %p1074 = scmp.eq.s32.totalorder %s108, 1
      %p1075 = por %p1073, %p1074
      %p1076 = scmp.ne.s32.totalorder %s1068, %s1071
      %p1077 = scmp.eq.s32.totalorder %s108, 0
      %p1078 = por %p1076, %p1077
      %p1079 = scmp.ne.s32.totalorder %s1068, %s1071
      %p1080 = scmp.eq.s32.totalorder %s113, 1
      %p1081 = por %p1079, %p1080
      %p1082 = scmp.ne.s32.totalorder %s1071, %s1072
      %p1083 = scmp.eq.s32.totalorder %s113, 0
      %p1084 = por %p1082, %p1083
      %p1085 = scmp.ne.s32.totalorder %s1071, %s1072
      %p1086 = scmp.eq.s32.totalorder %s114, 1
      %p1087 = por %p1085, %p1086
      %p1089 = scmp.ne.s32.totalorder %s1072, %s1088
      %p1090 = scmp.eq.s32.totalorder %s114, 0
      %p1091 = por %p1089, %p1090
      %p1092 = scmp.le.s32.totalorder 1, %s108
      %p1093 = scmp.lt.s32.totalorder %s108, 3
      %p1094 = pnand %p1092, %p1093
      %p1095 = pneg %p1094
      // Predicated region
      $region9: #{two_stage_attention.1} parent=5 // pred_check
        _
      $region10: #{two_stage_attention.1} parent=5 // pred_check_branch
        %1097 = sbr.rel (%p1094) target = $region12
      $region11: #{two_stage_attention.1} parent=5 // pred_region
        %s1098 = ssub.s32 %s108, 1
        // Predicated region
        $region13: #{two_stage_attention.1} parent=11 // pred_check
          %p1099 = pneg %p155
        $region14: #{two_stage_attention.1} parent=11 // pred_check_branch
          %1101 = sbr.rel (%p1099) target = $region16
        $region15: #{two_stage_attention.1} parent=11 // pred_region
          _
        $region16: #{two_stage_attention.1} parent=11 // pred_fallthru
          _
        // Predicated region
        $region17: #{two_stage_attention.1} parent=11 // pred_check
          %p1102 = pneg %p176
        $region18: #{two_stage_attention.1} parent=11 // pred_check_branch
          %1104 = sbr.rel (%p1102) target = $region20
        $region19: #{two_stage_attention.1} parent=11 // pred_region
          _
        $region20: #{two_stage_attention.1} parent=11 // pred_fallthru
          _
        // Predicated region
        $region21: #{two_stage_attention.1} parent=11 // pred_check
          %p1105 = pneg %p197
        $region22: #{two_stage_attention.1} parent=11 // pred_check_branch
          %1107 = sbr.rel (%p1105) target = $region24
        $region23: #{two_stage_attention.1} parent=11 // pred_region
          _
        $region24: #{two_stage_attention.1} parent=11 // pred_fallthru
          _
        // Predicated region
        $region25: #{two_stage_attention.1} parent=11 // pred_check
          %p1108 = pneg %p218
        $region26: #{two_stage_attention.1} parent=11 // pred_check_branch
          %1110 = sbr.rel (%p1108) target = $region28
        $region27: #{two_stage_attention.1} parent=11 // pred_region
          _
        $region28: #{two_stage_attention.1} parent=11 // pred_fallthru
          _
        // Predicated region
        $region29: #{two_stage_attention.1} parent=11 // pred_check
          %p1111 = pneg %p239
        $region30: #{two_stage_attention.1} parent=11 // pred_check_branch
          %1113 = sbr.rel (%p1111) target = $region32
        $region31: #{two_stage_attention.1} parent=11 // pred_region
          _
        $region32: #{two_stage_attention.1} parent=11 // pred_fallthru
          _
        // Predicated region
        $region33: #{two_stage_attention.1} parent=11 // pred_check
          %p1114 = pneg %p260
        $region34: #{two_stage_attention.1} parent=11 // pred_check_branch
          %1116 = sbr.rel (%p1114) target = $region36
        $region35: #{two_stage_attention.1} parent=11 // pred_region
          _
        $region36: #{two_stage_attention.1} parent=11 // pred_fallthru
          _
        // Predicated region
        $region37: #{two_stage_attention.1} parent=11 // pred_check
          %p1117 = pneg %p281
        $region38: #{two_stage_attention.1} parent=11 // pred_check_branch
          %1119 = sbr.rel (%p1117) target = $region40
        $region39: #{two_stage_attention.1} parent=11 // pred_region
          _
        $region40: #{two_stage_attention.1} parent=11 // pred_fallthru
          _
        // Predicated region
        $region41: #{two_stage_attention.1} parent=11 // pred_check
          %p1120 = pneg %p302
        $region42: #{two_stage_attention.1} parent=11 // pred_check_branch
          %1122 = sbr.rel (%p1120) target = $region44
        $region43: #{two_stage_attention.1} parent=11 // pred_region
          _
        $region44: #{two_stage_attention.1} parent=11 // pred_fallthru
          _
        // Predicated region
        $region45: #{two_stage_attention.1} parent=11 // pred_check
          %p1123 = pneg %p323
        $region46: #{two_stage_attention.1} parent=11 // pred_check_branch
          %1125 = sbr.rel (%p1123) target = $region48
        $region47: #{two_stage_attention.1} parent=11 // pred_region
          _
        $region48: #{two_stage_attention.1} parent=11 // pred_fallthru
          _
        // Predicated region
        $region49: #{two_stage_attention.1} parent=11 // pred_check
          %p1126 = pneg %p344
        $region50: #{two_stage_attention.1} parent=11 // pred_check_branch
          %1128 = sbr.rel (%p1126) target = $region52
        $region51: #{two_stage_attention.1} parent=11 // pred_region
          _
        $region52: #{two_stage_attention.1} parent=11 // pred_fallthru
          _
        // Predicated region
        $region53: #{two_stage_attention.1} parent=11 // pred_check
          %p1129 = pneg %p365
        $region54: #{two_stage_attention.1} parent=11 // pred_check_branch
          %1131 = sbr.rel (%p1129) target = $region56
        $region55: #{two_stage_attention.1} parent=11 // pred_region
          _
        $region56: #{two_stage_attention.1} parent=11 // pred_fallthru
          _
        // Predicated region
        $region57: #{two_stage_attention.1} parent=11 // pred_check
          %p1132 = pneg %p386
        $region58: #{two_stage_attention.1} parent=11 // pred_check_branch
          %1134 = sbr.rel (%p1132) target = $region60
        $region59: #{two_stage_attention.1} parent=11 // pred_region
          _
        $region60: #{two_stage_attention.1} parent=11 // pred_fallthru
          _
        // Predicated region
        $region61: #{two_stage_attention.1} parent=11 // pred_check
          %p1135 = pneg %p407
        $region62: #{two_stage_attention.1} parent=11 // pred_check_branch
          %1137 = sbr.rel (%p1135) target = $region64
        $region63: #{two_stage_attention.1} parent=11 // pred_region
          _
        $region64: #{two_stage_attention.1} parent=11 // pred_fallthru
          _
        // Predicated region
        $region65: #{two_stage_attention.1} parent=11 // pred_check
          %p1138 = pneg %p428
        $region66: #{two_stage_attention.1} parent=11 // pred_check_branch
          %1140 = sbr.rel (%p1138) target = $region68
        $region67: #{two_stage_attention.1} parent=11 // pred_region
          _
        $region68: #{two_stage_attention.1} parent=11 // pred_fallthru
          _
        // Predicated region
        $region69: #{two_stage_attention.1} parent=11 // pred_check
          %p1141 = pneg %p449
        $region70: #{two_stage_attention.1} parent=11 // pred_check_branch
          %1143 = sbr.rel (%p1141) target = $region72
        $region71: #{two_stage_attention.1} parent=11 // pred_region
          _
        $region72: #{two_stage_attention.1} parent=11 // pred_fallthru
          _
        // Predicated region
        $region73: #{two_stage_attention.1} parent=11 // pred_check
          %p1144 = pneg %p470
        $region74: #{two_stage_attention.1} parent=11 // pred_check_branch
          %1146 = sbr.rel (%p1144) target = $region76
        $region75: #{two_stage_attention.1} parent=11 // pred_region
          %s1148 = ssub.s32 16, 16
          %1149 = vsyncadd [#allocation3], %s1148
          %s1151 = sshll.u32 [#allocation2], 4
          %s1152 = int_to_ptr.vmem [resolvable:$true] %s1151
          %1154 = dma.hbm_to_vmem [thread:$0]  %s33, 16, %s1152, [#allocation3]
        $region76: #{two_stage_attention.1} parent=11 // pred_fallthru
          _
        // Predicated region
        $region77: #{two_stage_attention.1} parent=11 // pred_check
          %p1155 = pneg %p491
        $region78: #{two_stage_attention.1} parent=11 // pred_check_branch
          %1157 = sbr.rel (%p1155) target = $region80
        $region79: #{two_stage_attention.1} parent=11 // pred_region
          _
        $region80: #{two_stage_attention.1} parent=11 // pred_fallthru
          _
        // Predicated region
        $region81: #{two_stage_attention.1} parent=11 // pred_check
          %p1158 = pneg %p512
        $region82: #{two_stage_attention.1} parent=11 // pred_check_branch
          %1160 = sbr.rel (%p1158) target = $region84
        $region83: #{two_stage_attention.1} parent=11 // pred_region
          %s1162 = ssub.s32 16, 16
          %1163 = vsyncadd [#allocation6], %s1162
          %s1165 = sshll.u32 [#allocation5], 4
          %s1166 = int_to_ptr.vmem [resolvable:$true] %s1165
          %1168 = dma.hbm_to_vmem [thread:$0]  %s37, 16, %s1166, [#allocation6]
        $region84: #{two_stage_attention.1} parent=11 // pred_fallthru
          _
        // Predicated region
        $region85: #{two_stage_attention.1} parent=11 // pred_check
          %p1169 = pneg %p533
        $region86: #{two_stage_attention.1} parent=11 // pred_check_branch
          %1171 = sbr.rel (%p1169) target = $region88
        $region87: #{two_stage_attention.1} parent=11 // pred_region
          _
        $region88: #{two_stage_attention.1} parent=11 // pred_fallthru
          _
        // Predicated region
        $region89: #{two_stage_attention.1} parent=11 // pred_check
          %p1172 = pneg %p554
        $region90: #{two_stage_attention.1} parent=11 // pred_check_branch
          %1174 = sbr.rel (%p1172) target = $region92
        $region91: #{two_stage_attention.1} parent=11 // pred_region
          _
        $region92: #{two_stage_attention.1} parent=11 // pred_fallthru
          _
        // Predicated region
        $region93: #{two_stage_attention.1} parent=11 // pred_check
          %p1175 = pneg %p575
        $region94: #{two_stage_attention.1} parent=11 // pred_check_branch
          %1177 = sbr.rel (%p1175) target = $region96
        $region95: #{two_stage_attention.1} parent=11 // pred_region
          _
        $region96: #{two_stage_attention.1} parent=11 // pred_fallthru
          _
        // Predicated region
        $region97: #{two_stage_attention.1} parent=11 // pred_check
          %p1178 = pneg %p596
        $region98: #{two_stage_attention.1} parent=11 // pred_check_branch
          %1180 = sbr.rel (%p1178) target = $region100
        $region99: #{two_stage_attention.1} parent=11 // pred_region
          %s1182 = ssub.s32 16, 16
          %1183 = vsyncadd [#allocation6], %s1182
          %s1185 = sshll.u32 [#allocation7], 4
          %s1186 = int_to_ptr.vmem [resolvable:$true] %s1185
          %1188 = dma.hbm_to_vmem [thread:$0]  %s45, 16, %s1186, [#allocation6]
        $region100: #{two_stage_attention.1} parent=11 // pred_fallthru
          _
        // Predicated region
        $region101: #{two_stage_attention.1} parent=11 // pred_check
          %p1189 = pneg %p617
        $region102: #{two_stage_attention.1} parent=11 // pred_check_branch
          %1191 = sbr.rel (%p1189) target = $region104
        $region103: #{two_stage_attention.1} parent=11 // pred_region
          _
        $region104: #{two_stage_attention.1} parent=11 // pred_fallthru
          _
        // Predicated region
        $region105: #{two_stage_attention.1} parent=11 // pred_check
          %p1192 = pneg %p638
        $region106: #{two_stage_attention.1} parent=11 // pred_check_branch
          %1194 = sbr.rel (%p1192) target = $region108
        $region107: #{two_stage_attention.1} parent=11 // pred_region
          %s1196 = ssub.s32 16, 16
          %1197 = vsyncadd [#allocation9], %s1196
          %s1199 = sshll.u32 [#allocation8], 4
          %s1200 = int_to_ptr.vmem [resolvable:$true] %s1199
          %1202 = dma.hbm_to_vmem [thread:$0]  %s49, 16, %s1200, [#allocation9]
        $region108: #{two_stage_attention.1} parent=11 // pred_fallthru
          _
        // Predicated region
        $region109: #{two_stage_attention.1} parent=11 // pred_check
          %p1203 = pneg %p659
        $region110: #{two_stage_attention.1} parent=11 // pred_check_branch
          %1205 = sbr.rel (%p1203) target = $region112
        $region111: #{two_stage_attention.1} parent=11 // pred_region
          _
        $region112: #{two_stage_attention.1} parent=11 // pred_fallthru
          _
        // Predicated region
        $region113: #{two_stage_attention.1} parent=11 // pred_check
          %p1206 = pneg %p680
        $region114: #{two_stage_attention.1} parent=11 // pred_check_branch
          %1208 = sbr.rel (%p1206) target = $region116
        $region115: #{two_stage_attention.1} parent=11 // pred_region
          %s1210 = ssub.s32 16, 16
          %1211 = vsyncadd [#allocation9], %s1210
          %s1213 = sshll.u32 [#allocation10], 4
          %s1214 = int_to_ptr.vmem [resolvable:$true] %s1213
          %1216 = dma.hbm_to_vmem [thread:$0]  %s53, 16, %s1214, [#allocation9]
        $region116: #{two_stage_attention.1} parent=11 // pred_fallthru
          _
        // Predicated region
        $region117: #{two_stage_attention.1} parent=11 // pred_check
          %p1217 = pneg %p701
        $region118: #{two_stage_attention.1} parent=11 // pred_check_branch
          %1219 = sbr.rel (%p1217) target = $region120
        $region119: #{two_stage_attention.1} parent=11 // pred_region
          _
        $region120: #{two_stage_attention.1} parent=11 // pred_fallthru
          _
        // Predicated region
        $region121: #{two_stage_attention.1} parent=11 // pred_check
          %p1220 = pneg %p722
        $region122: #{two_stage_attention.1} parent=11 // pred_check_branch
          %1222 = sbr.rel (%p1220) target = $region124
        $region123: #{two_stage_attention.1} parent=11 // pred_region
          %s1224 = ssub.s32 16, 16
          %1225 = vsyncadd [#allocation12], %s1224
          %s1227 = sshll.u32 [#allocation11], 4
          %s1228 = int_to_ptr.vmem [resolvable:$true] %s1227
          %1230 = dma.hbm_to_vmem [thread:$0]  %s57, 16, %s1228, [#allocation12]
        $region124: #{two_stage_attention.1} parent=11 // pred_fallthru
          _
        // Predicated region
        $region125: #{two_stage_attention.1} parent=11 // pred_check
          %p1231 = pneg %p743
        $region126: #{two_stage_attention.1} parent=11 // pred_check_branch
          %1233 = sbr.rel (%p1231) target = $region128
        $region127: #{two_stage_attention.1} parent=11 // pred_region
          _
        $region128: #{two_stage_attention.1} parent=11 // pred_fallthru
          _
        // Predicated region
        $region129: #{two_stage_attention.1} parent=11 // pred_check
          %p1234 = pneg %p764
        $region130: #{two_stage_attention.1} parent=11 // pred_check_branch
          %1236 = sbr.rel (%p1234) target = $region132
        $region131: #{two_stage_attention.1} parent=11 // pred_region
          %s1238 = ssub.s32 16, 16
          %1239 = vsyncadd [#allocation12], %s1238
          %s1241 = sshll.u32 [#allocation13], 4
          %s1242 = int_to_ptr.vmem [resolvable:$true] %s1241
          %1244 = dma.hbm_to_vmem [thread:$0]  %s61, 16, %s1242, [#allocation12]
        $region132: #{two_stage_attention.1} parent=11 // pred_fallthru
          _
        // Predicated region
        $region133: #{two_stage_attention.1} parent=11 // pred_check
          %p1245 = pneg %p785
        $region134: #{two_stage_attention.1} parent=11 // pred_check_branch
          %1247 = sbr.rel (%p1245) target = $region136
        $region135: #{two_stage_attention.1} parent=11 // pred_region
          %s1249 = ssub.s32 512, 512
          %1250 = vsyncadd [#allocation15], %s1249
          %s1251 = sshll.u32 [#allocation14], 4
          %s1252 = int_to_ptr.vmem [resolvable:$true] %s1251
          %1257 = dma.hbm_to_vmem [thread:$0]  %s63, 512, %s1252, [#allocation15], 128, 128, 8
        $region136: #{two_stage_attention.1} parent=11 // pred_fallthru
          _
        // Predicated region
        $region137: #{two_stage_attention.1} parent=11 // pred_check
          %p1258 = pneg %p806
        $region138: #{two_stage_attention.1} parent=11 // pred_check_branch
          %1260 = sbr.rel (%p1258) target = $region140
        $region139: #{two_stage_attention.1} parent=11 // pred_region
          %s1262 = ssub.s32 16, 16
          %1263 = vsyncadd [#allocation15], %s1262
          %s1265 = sshll.u32 [#allocation16], 4
          %s1266 = int_to_ptr.vmem [resolvable:$true] %s1265
          %1268 = dma.hbm_to_vmem [thread:$0]  %s65, 16, %s1266, [#allocation15]
        $region140: #{two_stage_attention.1} parent=11 // pred_fallthru
          _
        // Predicated region
        $region141: #{two_stage_attention.1} parent=11 // pred_check
          %p1269 = pneg %p827
        $region142: #{two_stage_attention.1} parent=11 // pred_check_branch
          %1271 = sbr.rel (%p1269) target = $region144
        $region143: #{two_stage_attention.1} parent=11 // pred_region
          %s1273 = ssub.s32 512, 512
          %1274 = vsyncadd [#allocation18], %s1273
          %s1275 = sshll.u32 [#allocation17], 4
          %s1276 = int_to_ptr.vmem [resolvable:$true] %s1275
          %1281 = dma.hbm_to_vmem [thread:$0]  %s67, 512, %s1276, [#allocation18], 128, 128, 8
        $region144: #{two_stage_attention.1} parent=11 // pred_fallthru
          _
        // Predicated region
        $region145: #{two_stage_attention.1} parent=11 // pred_check
          %p1282 = pneg %p848
        $region146: #{two_stage_attention.1} parent=11 // pred_check_branch
          %1284 = sbr.rel (%p1282) target = $region148
        $region147: #{two_stage_attention.1} parent=11 // pred_region
          %s1286 = ssub.s32 16, 16
          %1287 = vsyncadd [#allocation18], %s1286
          %s1289 = sshll.u32 [#allocation19], 4
          %s1290 = int_to_ptr.vmem [resolvable:$true] %s1289
          %1292 = dma.hbm_to_vmem [thread:$0]  %s69, 16, %s1290, [#allocation18]
        $region148: #{two_stage_attention.1} parent=11 // pred_fallthru
          _
        // Predicated region
        $region149: #{two_stage_attention.1} parent=11 // pred_check
          %p1293 = pneg %p869
        $region150: #{two_stage_attention.1} parent=11 // pred_check_branch
          %1295 = sbr.rel (%p1293) target = $region152
        $region151: #{two_stage_attention.1} parent=11 // pred_region
          %s1297 = ssub.s32 512, 512
          %1298 = vsyncadd [#allocation21], %s1297
          %s1299 = sshll.u32 [#allocation20], 4
          %s1300 = int_to_ptr.vmem [resolvable:$true] %s1299
          %1305 = dma.hbm_to_vmem [thread:$0]  %s71, 512, %s1300, [#allocation21], 128, 128, 8
        $region152: #{two_stage_attention.1} parent=11 // pred_fallthru
          _
        // Predicated region
        $region153: #{two_stage_attention.1} parent=11 // pred_check
          %p1306 = pneg %p890
        $region154: #{two_stage_attention.1} parent=11 // pred_check_branch
          %1308 = sbr.rel (%p1306) target = $region156
        $region155: #{two_stage_attention.1} parent=11 // pred_region
          %s1310 = ssub.s32 16, 16
          %1311 = vsyncadd [#allocation21], %s1310
          %s1313 = sshll.u32 [#allocation22], 4
          %s1314 = int_to_ptr.vmem [resolvable:$true] %s1313
          %1316 = dma.hbm_to_vmem [thread:$0]  %s73, 16, %s1314, [#allocation21]
        $region156: #{two_stage_attention.1} parent=11 // pred_fallthru
          _
        // Predicated region
        $region157: #{two_stage_attention.1} parent=11 // pred_check
          %p1317 = pneg %p911
        $region158: #{two_stage_attention.1} parent=11 // pred_check_branch
          %1319 = sbr.rel (%p1317) target = $region160
        $region159: #{two_stage_attention.1} parent=11 // pred_region
          _
        $region160: #{two_stage_attention.1} parent=11 // pred_fallthru
          _
        // Predicated region
        $region161: #{two_stage_attention.1} parent=11 // pred_check
          %p1320 = pneg %p932
        $region162: #{two_stage_attention.1} parent=11 // pred_check_branch
          %1322 = sbr.rel (%p1320) target = $region164
        $region163: #{two_stage_attention.1} parent=11 // pred_region
          _
        $region164: #{two_stage_attention.1} parent=11 // pred_fallthru
          _
        // Predicated region
        $region165: #{two_stage_attention.1} parent=11 // pred_check
          %p1323 = pneg %p953
        $region166: #{two_stage_attention.1} parent=11 // pred_check_branch
          %1325 = sbr.rel (%p1323) target = $region168
        $region167: #{two_stage_attention.1} parent=11 // pred_region
          _
        $region168: #{two_stage_attention.1} parent=11 // pred_fallthru
          _
        // Predicated region
        $region169: #{two_stage_attention.1} parent=11 // pred_check
          %p1326 = pneg %p974
        $region170: #{two_stage_attention.1} parent=11 // pred_check_branch
          %1328 = sbr.rel (%p1326) target = $region172
        $region171: #{two_stage_attention.1} parent=11 // pred_region
          %s1330 = ssub.s32 16, 16
          %1331 = vsyncadd [#allocation24], %s1330
          %s1333 = sshll.u32 [#allocation23], 4
          %s1334 = int_to_ptr.vmem [resolvable:$true] %s1333
          %1336 = dma.hbm_to_vmem [thread:$0]  %s81, 16, %s1334, [#allocation24]
        $region172: #{two_stage_attention.1} parent=11 // pred_fallthru
          _
        // Predicated region
        $region173: #{two_stage_attention.1} parent=11 // pred_check
          %p1337 = pneg %p995
        $region174: #{two_stage_attention.1} parent=11 // pred_check_branch
          %1339 = sbr.rel (%p1337) target = $region176
        $region175: #{two_stage_attention.1} parent=11 // pred_region
          _
        $region176: #{two_stage_attention.1} parent=11 // pred_fallthru
          _
        // Predicated region
        $region177: #{two_stage_attention.1} parent=11 // pred_check
          %p1340 = pneg %p1016
        $region178: #{two_stage_attention.1} parent=11 // pred_check_branch
          %1342 = sbr.rel (%p1340) target = $region180
        $region179: #{two_stage_attention.1} parent=11 // pred_region
          %s1344 = ssub.s32 16, 16
          %1345 = vsyncadd [#allocation24], %s1344
          %s1347 = sshll.u32 [#allocation25], 4
          %s1348 = int_to_ptr.vmem [resolvable:$true] %s1347
          %1350 = dma.hbm_to_vmem [thread:$0]  %s85, 16, %s1348, [#allocation24]
        $region180: #{two_stage_attention.1} parent=11 // pred_fallthru
          _
        // Predicated region
        $region181: #{two_stage_attention.1} parent=11 // pred_check
          %p1351 = pneg %p1037
        $region182: #{two_stage_attention.1} parent=11 // pred_check_branch
          %1353 = sbr.rel (%p1351) target = $region184
        $region183: #{two_stage_attention.1} parent=11 // pred_region
          _
        $region184: #{two_stage_attention.1} parent=11 // pred_fallthru
          _
        // Predicated region
        $region185: #{two_stage_attention.1} parent=11 // pred_check
          %p1354 = pneg %p1058
        $region186: #{two_stage_attention.1} parent=11 // pred_check_branch
          %1356 = sbr.rel (%p1354) target = $region188
        $region187: #{two_stage_attention.1} parent=11 // pred_region
          _
        $region188: #{two_stage_attention.1} parent=11 // pred_fallthru
          _
      $region12: #{two_stage_attention.1} parent=5 // pred_fallthru
        _
      %p1357 = scmp.lt.s32.totalorder %s108, 2
      // Predicated region
      $region189: #{two_stage_attention.1} parent=5 // pred_check
        %p1358 = pneg %p1357
      $region190: #{two_stage_attention.1} parent=5 // pred_check_branch
        %1360 = sbr.rel (%p1358) target = $region192
      $region191: #{two_stage_attention.1} parent=5 // pred_region
        // Predicated region
        $region193: #{two_stage_attention.1} parent=191 // pred_check
          %p1361 = pneg %p128
        $region194: #{two_stage_attention.1} parent=191 // pred_check_branch
          %1363 = sbr.rel (%p1361) target = $region196
        $region195: #{two_stage_attention.1} parent=191 // pred_region
          %p1364 = scmp.lt.s32.totalorder %s108, 1
          %s1365 = scalar_select %p1364, %s108, 1
          %s1366 = smul.addr %s1365, 4
          %s1367 = smul.addr %s1366, 8
          %s1368 = scalar_lea.vmem %s1, %s1367
        $region196: #{two_stage_attention.1} parent=191 // pred_fallthru
          _
      $region192: #{two_stage_attention.1} parent=5 // pred_fallthru
        _
      %p1369 = scmp.le.s32.totalorder 1, %s108
      %p1370 = scmp.lt.s32.totalorder %s108, 3
      %p1371 = pnand %p1369, %p1370
      %p1372 = pneg %p1371
      // Predicated region
      $region197: #{two_stage_attention.1} parent=5 // pred_check
        _
      $region198: #{two_stage_attention.1} parent=5 // pred_check_branch
        %1374 = sbr.rel (%p1371) target = $region200
      $region199: #{two_stage_attention.1} parent=5 // pred_region
        %s1375 = ssub.s32 %s108, 1
        // Predicated region
        $region201: #{two_stage_attention.1} parent=199 // pred_check
          %p1376 = pneg %p470
        $region202: #{two_stage_attention.1} parent=199 // pred_check_branch
          %1378 = sbr.rel (%p1376) target = $region204
        $region203: #{two_stage_attention.1} parent=199 // pred_region
          %1379 = dma.done [#allocation3], 16
        $region204: #{two_stage_attention.1} parent=199 // pred_fallthru
          _
        // Predicated region
        $region205: #{two_stage_attention.1} parent=199 // pred_check
          %p1380 = pneg %p512
        $region206: #{two_stage_attention.1} parent=199 // pred_check_branch
          %1382 = sbr.rel (%p1380) target = $region208
        $region207: #{two_stage_attention.1} parent=199 // pred_region
          %1383 = dma.done [#allocation6], 16
        $region208: #{two_stage_attention.1} parent=199 // pred_fallthru
          _
        // Predicated region
        $region209: #{two_stage_attention.1} parent=199 // pred_check
          %p1384 = pneg %p596
        $region210: #{two_stage_attention.1} parent=199 // pred_check_branch
          %1386 = sbr.rel (%p1384) target = $region212
        $region211: #{two_stage_attention.1} parent=199 // pred_region
          %1387 = dma.done [#allocation6], 16
        $region212: #{two_stage_attention.1} parent=199 // pred_fallthru
          _
        // Predicated region
        $region213: #{two_stage_attention.1} parent=199 // pred_check
          %p1388 = pneg %p638
        $region214: #{two_stage_attention.1} parent=199 // pred_check_branch
          %1390 = sbr.rel (%p1388) target = $region216
        $region215: #{two_stage_attention.1} parent=199 // pred_region
          %1391 = dma.done [#allocation9], 16
        $region216: #{two_stage_attention.1} parent=199 // pred_fallthru
          _
        // Predicated region
        $region217: #{two_stage_attention.1} parent=199 // pred_check
          %p1392 = pneg %p680
        $region218: #{two_stage_attention.1} parent=199 // pred_check_branch
          %1394 = sbr.rel (%p1392) target = $region220
        $region219: #{two_stage_attention.1} parent=199 // pred_region
          %1395 = dma.done [#allocation9], 16
        $region220: #{two_stage_attention.1} parent=199 // pred_fallthru
          _
        // Predicated region
        $region221: #{two_stage_attention.1} parent=199 // pred_check
          %p1396 = pneg %p722
        $region222: #{two_stage_attention.1} parent=199 // pred_check_branch
          %1398 = sbr.rel (%p1396) target = $region224
        $region223: #{two_stage_attention.1} parent=199 // pred_region
          %1399 = dma.done [#allocation12], 16
        $region224: #{two_stage_attention.1} parent=199 // pred_fallthru
          _
        // Predicated region
        $region225: #{two_stage_attention.1} parent=199 // pred_check
          %p1400 = pneg %p764
        $region226: #{two_stage_attention.1} parent=199 // pred_check_branch
          %1402 = sbr.rel (%p1400) target = $region228
        $region227: #{two_stage_attention.1} parent=199 // pred_region
          %1403 = dma.done [#allocation12], 16
        $region228: #{two_stage_attention.1} parent=199 // pred_fallthru
          _
        // Predicated region
        $region229: #{two_stage_attention.1} parent=199 // pred_check
          %p1404 = pneg %p785
        $region230: #{two_stage_attention.1} parent=199 // pred_check_branch
          %1406 = sbr.rel (%p1404) target = $region232
        $region231: #{two_stage_attention.1} parent=199 // pred_region
          %1407 = dma.done [#allocation15], 512
        $region232: #{two_stage_attention.1} parent=199 // pred_fallthru
          _
        // Predicated region
        $region233: #{two_stage_attention.1} parent=199 // pred_check
          %p1408 = pneg %p806
        $region234: #{two_stage_attention.1} parent=199 // pred_check_branch
          %1410 = sbr.rel (%p1408) target = $region236
        $region235: #{two_stage_attention.1} parent=199 // pred_region
          %1411 = dma.done [#allocation15], 16
        $region236: #{two_stage_attention.1} parent=199 // pred_fallthru
          _
        // Predicated region
        $region237: #{two_stage_attention.1} parent=199 // pred_check
          %p1412 = pneg %p827
        $region238: #{two_stage_attention.1} parent=199 // pred_check_branch
          %1414 = sbr.rel (%p1412) target = $region240
        $region239: #{two_stage_attention.1} parent=199 // pred_region
          %1415 = dma.done [#allocation18], 512
        $region240: #{two_stage_attention.1} parent=199 // pred_fallthru
          _
        // Predicated region
        $region241: #{two_stage_attention.1} parent=199 // pred_check
          %p1416 = pneg %p848
        $region242: #{two_stage_attention.1} parent=199 // pred_check_branch
          %1418 = sbr.rel (%p1416) target = $region244
        $region243: #{two_stage_attention.1} parent=199 // pred_region
          %1419 = dma.done [#allocation18], 16
        $region244: #{two_stage_attention.1} parent=199 // pred_fallthru
          _
        // Predicated region
        $region245: #{two_stage_attention.1} parent=199 // pred_check
          %p1420 = pneg %p869
        $region246: #{two_stage_attention.1} parent=199 // pred_check_branch
          %1422 = sbr.rel (%p1420) target = $region248
        $region247: #{two_stage_attention.1} parent=199 // pred_region
          %1423 = dma.done [#allocation21], 512
        $region248: #{two_stage_attention.1} parent=199 // pred_fallthru
          _
        // Predicated region
        $region249: #{two_stage_attention.1} parent=199 // pred_check
          %p1424 = pneg %p890
        $region250: #{two_stage_attention.1} parent=199 // pred_check_branch
          %1426 = sbr.rel (%p1424) target = $region252
        $region251: #{two_stage_attention.1} parent=199 // pred_region
          %1427 = dma.done [#allocation21], 16
        $region252: #{two_stage_attention.1} parent=199 // pred_fallthru
          _
        // Predicated region
        $region253: #{two_stage_attention.1} parent=199 // pred_check
          %p1428 = pneg %p974
        $region254: #{two_stage_attention.1} parent=199 // pred_check_branch
          %1430 = sbr.rel (%p1428) target = $region256
        $region255: #{two_stage_attention.1} parent=199 // pred_region
          %1431 = dma.done [#allocation24], 16
        $region256: #{two_stage_attention.1} parent=199 // pred_fallthru
          _
        // Predicated region
        $region257: #{two_stage_attention.1} parent=199 // pred_check
          %p1432 = pneg %p1016
        $region258: #{two_stage_attention.1} parent=199 // pred_check_branch
          %1434 = sbr.rel (%p1432) target = $region260
        $region259: #{two_stage_attention.1} parent=199 // pred_region
          %1435 = dma.done [#allocation24], 16
        $region260: #{two_stage_attention.1} parent=199 // pred_fallthru
          _
        %p1436 = scmp.lt.s32.totalorder %s113, 1
        %s1437 = scalar_select %p1436, %s113, 1
        %s1438 = smul.addr %s1437, 4
        %s1439 = smul.addr %s1438, 8
        %s1440 = scalar_lea.vmem %s1, %s1439
        %p1441 = pneg %p134
        %p1442 = pneg %p131
        %p1443 = pneg %p155
        %p1444 = pneg %p152
        %p1445 = pneg %p176
        %p1446 = pneg %p173
        %p1447 = pneg %p197
        %p1448 = pneg %p194
        %p1449 = pneg %p218
        %p1450 = pneg %p215
        %p1451 = pneg %p239
        %p1452 = pneg %p236
        %p1453 = pneg %p260
        %p1454 = pneg %p257
        %p1455 = pneg %p281
        %p1456 = pneg %p278
        %p1457 = pneg %p302
        %p1458 = pneg %p299
        %p1459 = pneg %p323
        %p1460 = pneg %p320
        %p1461 = pneg %p344
        %p1462 = pneg %p341
        %p1463 = pneg %p365
        %p1464 = pneg %p362
        %p1465 = pneg %p386
        %p1466 = pneg %p383
        %p1467 = pneg %p407
        %p1468 = pneg %p404
        %p1469 = pneg %p428
        %p1470 = pneg %p425
        %p1471 = pneg %p449
        %p1472 = pneg %p446
        %p1473 = pneg %p470
        %p1474 = pneg %p467
        %p1475 = pneg %p491
        %p1476 = pneg %p488
        %p1477 = pneg %p512
        %p1478 = pneg %p509
        %p1479 = pneg %p533
        %p1480 = pneg %p530
        %p1481 = pneg %p554
        %p1482 = pneg %p551
        %p1483 = pneg %p575
        %p1484 = pneg %p572
        %p1485 = pneg %p596
        %p1486 = pneg %p593
        %p1487 = pneg %p617
        %p1488 = pneg %p614
        %p1489 = pneg %p638
        %p1490 = pneg %p635
        %p1491 = pneg %p659
        %p1492 = pneg %p656
        %p1493 = pneg %p680
        %p1494 = pneg %p677
        %p1495 = pneg %p701
        %p1496 = pneg %p698
        %p1497 = pneg %p722
        %p1498 = pneg %p719
        %p1499 = pneg %p743
        %p1500 = pneg %p740
        %p1501 = pneg %p764
        %p1502 = pneg %p761
        %p1503 = pneg %p785
        %p1504 = pneg %p782
        %p1505 = pneg %p806
        %p1506 = pneg %p803
        %p1507 = pneg %p827
        %p1508 = pneg %p824
        %p1509 = pneg %p848
        %p1510 = pneg %p845
        %p1511 = pneg %p869
        %p1512 = pneg %p866
        %p1513 = pneg %p890
        %p1514 = pneg %p887
        %p1515 = pneg %p911
        %p1516 = pneg %p908
        %p1517 = pneg %p932
        %p1518 = pneg %p929
        %p1519 = pneg %p953
        %p1520 = pneg %p950
        %p1521 = pneg %p974
        %p1522 = pneg %p971
        %p1523 = pneg %p995
        %p1524 = pneg %p992
        %p1525 = pneg %p1016
        %p1526 = pneg %p1013
        %p1527 = pneg %p1037
        %p1528 = pneg %p1034
        %p1529 = pneg %p1058
        %p1530 = pneg %p1055
        %p1531 = pneg %p1084
        %p1532 = pneg %p1081
        %s1533 = sand.u32 %s1071, 1
        %s1534 = scalar_lea.sflag [#allocation4], %s1533
        %s1535 = sand.u32 %s1071, 1
        %s1536 = smul.addr %s1535, 32
        %s1537 = scalar_lea.vmem [#allocation26], %s1536
        %p1538 = scmp.lt.s32.totalorder %s113, 1
        %s1539 = scalar_select %p1538, %s113, 1
        %s1540 = smul.addr %s1539, 4
        %s1541 = smul.addr %s1540, 8
        %s1542 = scalar_lea.vmem %s1, %s1541
        %v1544 = vld [vmem:[%s11] sm:$0xff]
        %v1545 = vld [vmem:[%s11 + $0x8] sm:$0xff]
        %v1546 = vld [vmem:[%s11 + $0x10] sm:$0xff]
        %v1547 = vld [vmem:[%s11 + $0x18] sm:$0xff]
        %v1548 = vld [vmem:[%s13] sm:$0x1]
        %v1549 = vld [vmem:[%s15] sm:$0xff]
        %v1550 = vld [vmem:[%s15 + $0x8] sm:$0xff]
        %v1551 = vld [vmem:[%s15 + $0x10] sm:$0xff]
        %v1552 = vld [vmem:[%s15 + $0x18] sm:$0xff]
        %v1553 = vld [vmem:[%s17] sm:$0x1]
        %v1554 = vld [vmem:[%s19] sm:$0xff]
        %v1555 = vld [vmem:[%s19 + $0x8] sm:$0xff]
        %v1556 = vld [vmem:[%s19 + $0x10] sm:$0xff]
        %v1557 = vld [vmem:[%s19 + $0x18] sm:$0xff]
        %v1558 = vld [vmem:[%s21] sm:$0x1]
        %v1559 = vld [vmem:[%s23] sm:$0xff]
        %v1560 = vld [vmem:[%s23 + $0x8] sm:$0xff]
        %v1561 = vld [vmem:[%s23 + $0x10] sm:$0xff]
        %v1562 = vld [vmem:[%s23 + $0x18] sm:$0xff]
        %v1563 = vld [vmem:[%s25] sm:$0x1]
        %v1564 = vld [vmem:[%s27] sm:$0x1]
        %v1565 = vld [vmem:[%s29] sm:$0x1]
        %v1566 = vld [vmem:[%s31] sm:$0xff]
        %v1567 = vld [vmem:[%s31 + $0x8] sm:$0xff]
        %v1568 = vld [vmem:[%s31 + $0x10] sm:$0xff]
        %v1569 = vld [vmem:[%s31 + $0x18] sm:$0xff]
        %v1570 = vld [vmem:[#allocation2] sm:$0x1]
        %v1571 = vld [vmem:[%s35] sm:$0xff]
        %v1572 = vld [vmem:[%s35 + $0x8] sm:$0xff]
        %v1573 = vld [vmem:[%s35 + $0x10] sm:$0xff]
        %v1574 = vld [vmem:[%s35 + $0x18] sm:$0xff]
        %v1575 = vld [vmem:[%s35 + $0x20] sm:$0xff]
        %v1576 = vld [vmem:[%s35 + $0x28] sm:$0xff]
        %v1577 = vld [vmem:[%s35 + $0x30] sm:$0xff]
        %v1578 = vld [vmem:[%s35 + $0x38] sm:$0xff]
        %v1579 = vld [vmem:[%s35 + $0x40] sm:$0xff]
        %v1580 = vld [vmem:[%s35 + $0x48] sm:$0xff]
        %v1581 = vld [vmem:[%s35 + $0x50] sm:$0xff]
        %v1582 = vld [vmem:[%s35 + $0x58] sm:$0xff]
        %v1583 = vld [vmem:[%s35 + $0x60] sm:$0xff]
        %v1584 = vld [vmem:[%s35 + $0x68] sm:$0xff]
        %v1585 = vld [vmem:[%s35 + $0x70] sm:$0xff]
        %v1586 = vld [vmem:[%s35 + $0x78] sm:$0xff]
        %v1587 = vld [vmem:[#allocation5] sm:$0x1]
        %v1588 = vld [vmem:[%s39] sm:$0x1]
        %v1589 = vld [vmem:[%s41] sm:$0x1]
        %v1590 = vld [vmem:[%s43] sm:$0xff]
        %v1591 = vld [vmem:[%s43 + $0x8] sm:$0xff]
        %v1592 = vld [vmem:[%s43 + $0x10] sm:$0xff]
        %v1593 = vld [vmem:[%s43 + $0x18] sm:$0xff]
        %v1594 = vld [vmem:[#allocation7] sm:$0x1]
        %v1595 = vld [vmem:[%s47] sm:$0xff]
        %v1596 = vld [vmem:[%s47 + $0x8] sm:$0xff]
        %v1597 = vld [vmem:[%s47 + $0x10] sm:$0xff]
        %v1598 = vld [vmem:[%s47 + $0x18] sm:$0xff]
        %v1599 = vld [vmem:[#allocation8] sm:$0x1]
        %v1600 = vld [vmem:[%s51] sm:$0xff]
        %v1601 = vld [vmem:[%s51 + $0x8] sm:$0xff]
        %v1602 = vld [vmem:[%s51 + $0x10] sm:$0xff]
        %v1603 = vld [vmem:[%s51 + $0x18] sm:$0xff]
        %v1604 = vld [vmem:[#allocation10] sm:$0x1]
        %v1605 = vld [vmem:[%s55] sm:$0xff]
        %v1606 = vld [vmem:[%s55 + $0x8] sm:$0xff]
        %v1607 = vld [vmem:[%s55 + $0x10] sm:$0xff]
        %v1608 = vld [vmem:[%s55 + $0x18] sm:$0xff]
        %v1609 = vld [vmem:[#allocation11] sm:$0x1]
        %v1610 = vld [vmem:[%s59] sm:$0xff]
        %v1611 = vld [vmem:[%s59 + $0x8] sm:$0xff]
        %v1612 = vld [vmem:[%s59 + $0x10] sm:$0xff]
        %v1613 = vld [vmem:[%s59 + $0x18] sm:$0xff]
        %v1614 = vld [vmem:[#allocation13] sm:$0x1]
        %v1615 = vld [vmem:[#allocation14] sm:$0xff]
        %v1616 = vld [vmem:[#allocation14 + $0x8] sm:$0xff]
        %v1617 = vld [vmem:[#allocation14 + $0x10] sm:$0xff]
        %v1618 = vld [vmem:[#allocation14 + $0x18] sm:$0xff]
        %v1619 = vld [vmem:[#allocation16] sm:$0x1]
        %v1620 = vld [vmem:[#allocation17] sm:$0xff]
        %v1621 = vld [vmem:[#allocation17 + $0x8] sm:$0xff]
        %v1622 = vld [vmem:[#allocation17 + $0x10] sm:$0xff]
        %v1623 = vld [vmem:[#allocation17 + $0x18] sm:$0xff]
        %v1624 = vld [vmem:[#allocation19] sm:$0x1]
        %v1625 = vld [vmem:[#allocation20] sm:$0xff]
        %v1626 = vld [vmem:[#allocation20 + $0x8] sm:$0xff]
        %v1627 = vld [vmem:[#allocation20 + $0x10] sm:$0xff]
        %v1628 = vld [vmem:[#allocation20 + $0x18] sm:$0xff]
        %v1629 = vld [vmem:[#allocation22] sm:$0x1]
        %v1630 = vld [vmem:[%s75] sm:$0x1]
        %v1631 = vld [vmem:[%s77] sm:$0x1]
        %v1632 = vld [vmem:[%s79] sm:$0xff]
        %v1633 = vld [vmem:[%s79 + $0x8] sm:$0xff]
        %v1634 = vld [vmem:[%s79 + $0x10] sm:$0xff]
        %v1635 = vld [vmem:[%s79 + $0x18] sm:$0xff]
        %v1636 = vld [vmem:[#allocation23] sm:$0x1]
        %v1637 = vld [vmem:[%s83] sm:$0xff]
        %v1638 = vld [vmem:[%s83 + $0x8] sm:$0xff]
        %v1639 = vld [vmem:[%s83 + $0x10] sm:$0xff]
        %v1640 = vld [vmem:[%s83 + $0x18] sm:$0xff]
        %v1641 = vld [vmem:[%s83 + $0x20] sm:$0xff]
        %v1642 = vld [vmem:[%s83 + $0x28] sm:$0xff]
        %v1643 = vld [vmem:[%s83 + $0x30] sm:$0xff]
        %v1644 = vld [vmem:[%s83 + $0x38] sm:$0xff]
        %v1645 = vld [vmem:[%s83 + $0x40] sm:$0xff]
        %v1646 = vld [vmem:[%s83 + $0x48] sm:$0xff]
        %v1647 = vld [vmem:[%s83 + $0x50] sm:$0xff]
        %v1648 = vld [vmem:[%s83 + $0x58] sm:$0xff]
        %v1649 = vld [vmem:[%s83 + $0x60] sm:$0xff]
        %v1650 = vld [vmem:[%s83 + $0x68] sm:$0xff]
        %v1651 = vld [vmem:[%s83 + $0x70] sm:$0xff]
        %v1652 = vld [vmem:[%s83 + $0x78] sm:$0xff]
        %v1653 = vld [vmem:[#allocation25] sm:$0x1]
        %v1654 = vld [vmem:[%s87] sm:$0x1]
        %v1655 = vld [vmem:[%s89] sm:$0x1]
        %v1656 = vld [vmem:[%s1542] sm:$0xff]
        %v1657 = vld [vmem:[%s1542 + $0x8] sm:$0xff]
        %v1658 = vld [vmem:[%s1542 + $0x10] sm:$0xff]
        %v1659 = vld [vmem:[%s1542 + $0x18] sm:$0xff]
        %v1660 = vld [vmem:[%s3] sm:$0xff]
        %v1661 = vld [vmem:[%s3 + $0x8] sm:$0xff]
        %v1662 = vld [vmem:[%s5] sm:$0xff]
        %v1663 = vld [vmem:[%s5 + $0x8] sm:$0xff]
        %v1664 = vld [vmem:[%s5 + $0x10] sm:$0xff]
        %v1665 = vld [vmem:[%s5 + $0x18] sm:$0xff]
        %v1666 = vpack.c.bf16 %v1657, %v1656
        %v1667 = vpack.c.bf16 %v1659, %v1658
        %v1668 = vpack.c.bf16 %v1545, %v1544
        %v1669 = vpack.c.bf16 %v1547, %v1546
        %v1671 = vlaneseq
        %v1672 = vshrl.u32 %v1671, 7
        %v1673 = vsub.s32 0, %v1672
        %v1674 = vrot.slane %v1548, %v1673
        %vm1676 = vcmask 261120
        %v1678 = vsel %vm1676, %v1666, 0
        %v1681 = vsel %vm1676, %v1667, 0
        %1683 = vmatprep.subr.bf16.mxu0 0
        %1684 = vmatpush1.bf16.msra.mxu0 %v1668
        %1685 = vmatprep.subr.bf16.mxu0 0
        %1686 = vmatpush1.bf16.msra.mxu0 %v1669
        %1687 = vmatprep.subr.bf16.mxu0 0
        %1688 = vmatpush1.bf16.msra.mxu0 0
        %1689 = vmatprep.subr.bf16.mxu0 0
        %1690 = vmatpush1.bf16.msra.mxu0 0
        %1691 = vmatprep.subr.bf16.mxu0 0
        %1692 = vmatpush1.bf16.msra.mxu0 0
        %1693 = vmatprep.subr.bf16.mxu0 0
        %1694 = vmatpush1.bf16.msra.mxu0 0
        %1695 = vmatprep.subr.bf16.mxu0 0
        %1696 = vmatpush1.bf16.msra.mxu0 0
        %1697 = vmatprep.subr.bf16.mxu0 0
        %1698 = vmatpush1.bf16.msra.mxu0 0
        %1699 = vmatprep.subr.bf16.mxu0 0
        %1700 = vmatpush1.bf16.msra.mxu0 0
        %1701 = vmatprep.subr.bf16.mxu0 0
        %1702 = vmatpush1.bf16.msra.mxu0 0
        %1703 = vmatprep.subr.bf16.mxu0 0
        %1704 = vmatpush1.bf16.msra.mxu0 0
        %1705 = vmatprep.subr.bf16.mxu0 0
        %1706 = vmatpush1.bf16.msra.mxu0 0
        %1707 = vmatprep.subr.bf16.mxu0 0
        %1708 = vmatpush1.bf16.msra.mxu0 0
        %1709 = vmatprep.subr.bf16.mxu0 0
        %1710 = vmatpush1.bf16.msra.mxu0 0
        %1711 = vmatprep.subr.bf16.mxu0 0
        %1712 = vmatpush1.bf16.msra.mxu0 0
        %1713 = vmatprep.subr.bf16.mxu0 0
        %1714 = vmatpush1.bf16.msra.mxu0 0
        %1715 = vmatprep.mubr.bf16.mxu0 0
        %1716 = vmatmul.mubr.bf16.gmra.mrb[0].mxu0 %v1678
        %v1717 = vpop.f32.mrb[0].mxu0
        %v1718 = vadd.f32 %v1674, %v1717
        %v1719 = vpop.f32.mrb[0].mxu0
        %v1720 = vpop.f32.mrb[0].mxu0
        %v1721 = vadd.f32 %v1674, %v1720
        %v1722 = vpop.f32.mrb[0].mxu0
        %1723 = vmatprep.mubr.bf16.mxu0 0
        %1724 = vmatmul.mubr.bf16.gmra.mrb[0].mxu0 %v1681
        %v1725 = vpop.f32.mrb[0].mxu0
        %v1726 = vadd.f32 %v1674, %v1725
        %v1727 = vpop.f32.mrb[0].mxu0
        %v1728 = vpop.f32.mrb[0].mxu0
        %v1729 = vadd.f32 %v1674, %v1728
        %v1730 = vpop.f32.mrb[0].mxu0
        %1731 = vdwg.mxu0
        %v1732 = vmul.f32 %v1718, 0.35355338
        %v1733 = vmul.f32 %v1721, 0.35355338
        %v1734 = vmul.f32 %v1726, 0.35355338
        %v1735 = vmul.f32 %v1729, 0.35355338
        %v1736 = vpack.c.bf16 %v1550, %v1549
        %v1737 = vpack.c.bf16 %v1552, %v1551
        %v1739 = vlaneseq
        %v1740 = vshrl.u32 %v1739, 7
        %v1741 = vsub.s32 0, %v1740
        %v1742 = vrot.slane %v1553, %v1741
        %1744 = vmatprep.subr.bf16.mxu0 0
        %1745 = vmatpush1.bf16.msra.mxu0 %v1736
        %1746 = vmatprep.subr.bf16.mxu0 0
        %1747 = vmatpush1.bf16.msra.mxu0 %v1737
        %1748 = vmatprep.subr.bf16.mxu0 0
        %1749 = vmatpush1.bf16.msra.mxu0 0
        %1750 = vmatprep.subr.bf16.mxu0 0
        %1751 = vmatpush1.bf16.msra.mxu0 0
        %1752 = vmatprep.subr.bf16.mxu0 0
        %1753 = vmatpush1.bf16.msra.mxu0 0
        %1754 = vmatprep.subr.bf16.mxu0 0
        %1755 = vmatpush1.bf16.msra.mxu0 0
        %1756 = vmatprep.subr.bf16.mxu0 0
        %1757 = vmatpush1.bf16.msra.mxu0 0
        %1758 = vmatprep.subr.bf16.mxu0 0
        %1759 = vmatpush1.bf16.msra.mxu0 0
        %1760 = vmatprep.subr.bf16.mxu0 0
        %1761 = vmatpush1.bf16.msra.mxu0 0
        %1762 = vmatprep.subr.bf16.mxu0 0
        %1763 = vmatpush1.bf16.msra.mxu0 0
        %1764 = vmatprep.subr.bf16.mxu0 0
        %1765 = vmatpush1.bf16.msra.mxu0 0
        %1766 = vmatprep.subr.bf16.mxu0 0
        %1767 = vmatpush1.bf16.msra.mxu0 0
        %1768 = vmatprep.subr.bf16.mxu0 0
        %1769 = vmatpush1.bf16.msra.mxu0 0
        %1770 = vmatprep.subr.bf16.mxu0 0
        %1771 = vmatpush1.bf16.msra.mxu0 0
        %1772 = vmatprep.subr.bf16.mxu0 0
        %1773 = vmatpush1.bf16.msra.mxu0 0
        %1774 = vmatprep.subr.bf16.mxu0 0
        %1775 = vmatpush1.bf16.msra.mxu0 0
        %1776 = vmatprep.mubr.bf16.mxu0 0
        %1777 = vmatmul.mubr.bf16.gmra.mrb[0].mxu0 %v1678
        %v1778 = vpop.f32.mrb[0].mxu0
        %v1779 = vadd.f32 %v1742, %v1778
        %v1780 = vpop.f32.mrb[0].mxu0
        %v1781 = vpop.f32.mrb[0].mxu0
        %v1782 = vadd.f32 %v1742, %v1781
        %v1783 = vpop.f32.mrb[0].mxu0
        %1784 = vmatprep.mubr.bf16.mxu0 0
        %1785 = vmatmul.mubr.bf16.gmra.mrb[0].mxu0 %v1681
        %v1786 = vpop.f32.mrb[0].mxu0
        %v1787 = vadd.f32 %v1742, %v1786
        %v1788 = vpop.f32.mrb[0].mxu0
        %v1789 = vpop.f32.mrb[0].mxu0
        %v1790 = vadd.f32 %v1742, %v1789
        %v1791 = vpop.f32.mrb[0].mxu0
        %1792 = vdwg.mxu0
        %v1793 = vpack.c.bf16 %v1555, %v1554
        %v1794 = vpack.c.bf16 %v1557, %v1556
        %v1796 = vlaneseq
        %v1797 = vshrl.u32 %v1796, 7
        %v1798 = vsub.s32 0, %v1797
        %v1799 = vrot.slane %v1558, %v1798
        %1801 = vmatprep.subr.bf16.mxu0 0
        %1802 = vmatpush1.bf16.msra.mxu0 %v1793
        %1803 = vmatprep.subr.bf16.mxu0 0
        %1804 = vmatpush1.bf16.msra.mxu0 %v1794
        %1805 = vmatprep.subr.bf16.mxu0 0
        %1806 = vmatpush1.bf16.msra.mxu0 0
        %1807 = vmatprep.subr.bf16.mxu0 0
        %1808 = vmatpush1.bf16.msra.mxu0 0
        %1809 = vmatprep.subr.bf16.mxu0 0
        %1810 = vmatpush1.bf16.msra.mxu0 0
        %1811 = vmatprep.subr.bf16.mxu0 0
        %1812 = vmatpush1.bf16.msra.mxu0 0
        %1813 = vmatprep.subr.bf16.mxu0 0
        %1814 = vmatpush1.bf16.msra.mxu0 0
        %1815 = vmatprep.subr.bf16.mxu0 0
        %1816 = vmatpush1.bf16.msra.mxu0 0
        %1817 = vmatprep.subr.bf16.mxu0 0
        %1818 = vmatpush1.bf16.msra.mxu0 0
        %1819 = vmatprep.subr.bf16.mxu0 0
        %1820 = vmatpush1.bf16.msra.mxu0 0
        %1821 = vmatprep.subr.bf16.mxu0 0
        %1822 = vmatpush1.bf16.msra.mxu0 0
        %1823 = vmatprep.subr.bf16.mxu0 0
        %1824 = vmatpush1.bf16.msra.mxu0 0
        %1825 = vmatprep.subr.bf16.mxu0 0
        %1826 = vmatpush1.bf16.msra.mxu0 0
        %1827 = vmatprep.subr.bf16.mxu0 0
        %1828 = vmatpush1.bf16.msra.mxu0 0
        %1829 = vmatprep.subr.bf16.mxu0 0
        %1830 = vmatpush1.bf16.msra.mxu0 0
        %1831 = vmatprep.subr.bf16.mxu0 0
        %1832 = vmatpush1.bf16.msra.mxu0 0
        %1833 = vmatprep.mubr.bf16.mxu0 0
        %1834 = vmatmul.mubr.bf16.gmra.mrb[0].mxu0 %v1678
        %v1835 = vpop.f32.mrb[0].mxu0
        %v1836 = vadd.f32 %v1799, %v1835
        %v1837 = vpop.f32.mrb[0].mxu0
        %v1838 = vpop.f32.mrb[0].mxu0
        %v1839 = vadd.f32 %v1799, %v1838
        %v1840 = vpop.f32.mrb[0].mxu0
        %1841 = vmatprep.mubr.bf16.mxu0 0
        %1842 = vmatmul.mubr.bf16.gmra.mrb[0].mxu0 %v1681
        %v1843 = vpop.f32.mrb[0].mxu0
        %v1844 = vadd.f32 %v1799, %v1843
        %v1845 = vpop.f32.mrb[0].mxu0
        %v1846 = vpop.f32.mrb[0].mxu0
        %v1847 = vadd.f32 %v1799, %v1846
        %v1848 = vpop.f32.mrb[0].mxu0
        %1849 = vdwg.mxu0
        %1850 = vxpose.xlu0.b32.start [1/16] %v1779, 128
        %1851 = vxpose.xlu0.b32.cont [2/16] %v1782, 128
        %1852 = vxpose.xlu0.b32.cont [3/16] %v1787, 128
        %1853 = vxpose.xlu0.b32.cont [4/16] %v1790, 128
        %1854 = vxpose.xlu0.b32.cont [5/16] 0.0, 128
        %1855 = vxpose.xlu0.b32.cont [6/16] 0.0, 128
        %1856 = vxpose.xlu0.b32.cont [7/16] 0.0, 128
        %1857 = vxpose.xlu0.b32.cont [8/16] 0.0, 128
        %1858 = vxpose.xlu0.b32.cont [9/16] 0.0, 128
        %1859 = vxpose.xlu0.b32.cont [10/16] 0.0, 128
        %1860 = vxpose.xlu0.b32.cont [11/16] 0.0, 128
        %1861 = vxpose.xlu0.b32.cont [12/16] 0.0, 128
        %1862 = vxpose.xlu0.b32.cont [13/16] 0.0, 128
        %1863 = vxpose.xlu0.b32.cont [14/16] 0.0, 128
        %1864 = vxpose.xlu0.b32.cont [15/16] 0.0, 128
        %1865 = vxpose.xlu0.b32.end [16/16] 0.0, 128
        %v1866 = vpop.trf.xlu0
        %v1867 = vpop.trf.xlu0
        %v1868 = vpop.trf.xlu0
        %v1869 = vpop.trf.xlu0
        %v1870 = vpop.trf.xlu0
        %v1871 = vpop.trf.xlu0
        %v1872 = vpop.trf.xlu0
        %v1873 = vpop.trf.xlu0
        %v1874 = vpop.trf.xlu0
        %v1875 = vpop.trf.xlu0
        %v1876 = vpop.trf.xlu0
        %v1877 = vpop.trf.xlu0
        %v1878 = vpop.trf.xlu0
        %v1879 = vpop.trf.xlu0
        %v1880 = vpop.trf.xlu0
        %v1881 = vpop.trf.xlu0
        %v1883 = vlaneseq
        %v1884 = vshrl.u32 %v1883, 7
        %v1885 = vsub.s32 0, %v1884
        %v1886 = vrot.slane %v1563, %v1885
        %v1888 = vadd.f32 %v1886, 0.0
        %v1889 = vpack.c.bf16 %v1733, %v1732
        %v1890 = vpack.c.bf16 %v1735, %v1734
        %v1891 = vpack.c.bf16 %v1866, %v1866
        %vm1892 = vcmask 64512
        %v1894 = vsel %vm1892, %v1889, 0
        %v1897 = vsel %vm1892, %v1890, 0
        %vm1899 = vcmask 1043456
        %v1901 = vsel %vm1899, %v1891, 0
        %1903 = vmatprep.subr.bf16.mxu0 0
        %1904 = vmatpush1.bf16.msra.mxu0 %v1901
        %1905 = vmatprep.subr.bf16.mxu0 0
        %1906 = vmatpush1.bf16.msra.mxu0 0
        %1907 = vmatprep.subr.bf16.mxu0 0
        %1908 = vmatpush1.bf16.msra.mxu0 0
        %1909 = vmatprep.subr.bf16.mxu0 0
        %1910 = vmatpush1.bf16.msra.mxu0 0
        %1911 = vmatprep.subr.bf16.mxu0 0
        %1912 = vmatpush1.bf16.msra.mxu0 0
        %1913 = vmatprep.subr.bf16.mxu0 0
        %1914 = vmatpush1.bf16.msra.mxu0 0
        %1915 = vmatprep.subr.bf16.mxu0 0
        %1916 = vmatpush1.bf16.msra.mxu0 0
        %1917 = vmatprep.subr.bf16.mxu0 0
        %1918 = vmatpush1.bf16.msra.mxu0 0
        %1919 = vmatprep.subr.bf16.mxu0 0
        %1920 = vmatpush1.bf16.msra.mxu0 0
        %1921 = vmatprep.subr.bf16.mxu0 0
        %1922 = vmatpush1.bf16.msra.mxu0 0
        %1923 = vmatprep.subr.bf16.mxu0 0
        %1924 = vmatpush1.bf16.msra.mxu0 0
        %1925 = vmatprep.subr.bf16.mxu0 0
        %1926 = vmatpush1.bf16.msra.mxu0 0
        %1927 = vmatprep.subr.bf16.mxu0 0
        %1928 = vmatpush1.bf16.msra.mxu0 0
        %1929 = vmatprep.subr.bf16.mxu0 0
        %1930 = vmatpush1.bf16.msra.mxu0 0
        %1931 = vmatprep.subr.bf16.mxu0 0
        %1932 = vmatpush1.bf16.msra.mxu0 0
        %1933 = vmatprep.subr.bf16.mxu0 0
        %1934 = vmatpush1.bf16.msra.mxu0 0
        %1935 = vmatprep.mubr.bf16.mxu0 0
        %1936 = vmatmul.mubr.bf16.gmra.mrb[0].mxu0 %v1894
        %v1937 = vpop.f32.mrb[0].mxu0
        %v1938 = vadd.f32 %v1662, %v1937
        %v1939 = vpop.f32.mrb[0].mxu0
        %v1940 = vpop.f32.mrb[0].mxu0
        %v1941 = vadd.f32 %v1663, %v1940
        %v1942 = vpop.f32.mrb[0].mxu0
        %1943 = vmatprep.mubr.bf16.mxu0 0
        %1944 = vmatmul.mubr.bf16.gmra.mrb[0].mxu0 %v1897
        %v1945 = vpop.f32.mrb[0].mxu0
        %v1946 = vadd.f32 %v1664, %v1945
        %v1947 = vpop.f32.mrb[0].mxu0
        %v1948 = vpop.f32.mrb[0].mxu0
        %v1949 = vadd.f32 %v1665, %v1948
        %v1950 = vpop.f32.mrb[0].mxu0
        %1951 = vdwg.mxu0
        %v1952 = vsel %vm1676, %v1938, -inf
        %1953 = vmax.xlane.f32.xlu0 %v1952
        %v1954 = vpop.xlane.xlu0 %1953
        %v1955 = vsel %vm1676, %v1941, -inf
        %1956 = vmax.xlane.f32.xlu0 %v1955
        %v1957 = vpop.xlane.xlu0 %1956
        %v1958 = vsel %vm1676, %v1946, -inf
        %1959 = vmax.xlane.f32.xlu0 %v1958
        %v1960 = vpop.xlane.xlu0 %1959
        %v1961 = vsel %vm1676, %v1949, -inf
        %1962 = vmax.xlane.f32.xlu0 %v1961
        %v1963 = vpop.xlane.xlu0 %1962
        %v1964 = vsub.f32 %v1938, %v1954
        %v1965 = vsub.f32 %v1941, %v1957
        %v1966 = vsub.f32 %v1946, %v1960
        %v1967 = vsub.f32 %v1949, %v1963
        %v1968 = vmul.f32 %v1964, 1.442695
        %v1969 = vpow.pop %v1968
        %v1970 = vmul.f32 %v1965, 1.442695
        %v1971 = vpow.pop %v1970
        %v1972 = vmul.f32 %v1966, 1.442695
        %v1973 = vpow.pop %v1972
        %v1974 = vmul.f32 %v1967, 1.442695
        %v1975 = vpow.pop %v1974
        %v1976 = vsel %vm1676, %v1969, 0.0
        %1977 = vadd.xlane.f32.xlu0 %v1976
        %v1978 = vpop.xlane.xlu0 %1977
        %v1979 = vsel %vm1676, %v1971, 0.0
        %1980 = vadd.xlane.f32.xlu0 %v1979
        %v1981 = vpop.xlane.xlu0 %1980
        %v1982 = vsel %vm1676, %v1973, 0.0
        %1983 = vadd.xlane.f32.xlu0 %v1982
        %v1984 = vpop.xlane.xlu0 %1983
        %v1985 = vsel %vm1676, %v1975, 0.0
        %1986 = vadd.xlane.f32.xlu0 %v1985
        %v1987 = vpop.xlane.xlu0 %1986
        %v1988 = vrcp.pop %v1978
        %v1989 = vrcp.pop %v1981
        %v1990 = vrcp.pop %v1984
        %v1991 = vrcp.pop %v1987
        %v1992 = vmul.f32 %v1969, %v1988
        %v1993 = vmul.f32 %v1971, %v1989
        %v1994 = vmul.f32 %v1973, %v1990
        %v1995 = vmul.f32 %v1975, %v1991
        %v1996 = vpack.c.bf16 %v1993, %v1992
        %v1997 = vpack.c.bf16 %v1995, %v1994
        %v1998 = vpack.c.bf16 %v1839, %v1836
        %v1999 = vpack.c.bf16 %v1847, %v1844
        %v2001 = vsel %vm1676, %v1996, 0
        %v2004 = vsel %vm1676, %v1997, 0
        %2006 = vmatprep.subr.bf16.mxu0 0
        %2007 = vmatpush1.bf16.msra.mxu0 %v1998
        %2008 = vmatprep.subr.bf16.mxu0 0
        %2009 = vmatpush1.bf16.msra.mxu0 %v1999
        %2010 = vmatprep.subr.bf16.mxu0 0
        %2011 = vmatpush1.bf16.msra.mxu0 0
        %2012 = vmatprep.subr.bf16.mxu0 0
        %2013 = vmatpush1.bf16.msra.mxu0 0
        %2014 = vmatprep.subr.bf16.mxu0 0
        %2015 = vmatpush1.bf16.msra.mxu0 0
        %2016 = vmatprep.subr.bf16.mxu0 0
        %2017 = vmatpush1.bf16.msra.mxu0 0
        %2018 = vmatprep.subr.bf16.mxu0 0
        %2019 = vmatpush1.bf16.msra.mxu0 0
        %2020 = vmatprep.subr.bf16.mxu0 0
        %2021 = vmatpush1.bf16.msra.mxu0 0
        %2022 = vmatprep.subr.bf16.mxu0 0
        %2023 = vmatpush1.bf16.msra.mxu0 0
        %2024 = vmatprep.subr.bf16.mxu0 0
        %2025 = vmatpush1.bf16.msra.mxu0 0
        %2026 = vmatprep.subr.bf16.mxu0 0
        %2027 = vmatpush1.bf16.msra.mxu0 0
        %2028 = vmatprep.subr.bf16.mxu0 0
        %2029 = vmatpush1.bf16.msra.mxu0 0
        %2030 = vmatprep.subr.bf16.mxu0 0
        %2031 = vmatpush1.bf16.msra.mxu0 0
        %2032 = vmatprep.subr.bf16.mxu0 0
        %2033 = vmatpush1.bf16.msra.mxu0 0
        %2034 = vmatprep.subr.bf16.mxu0 0
        %2035 = vmatpush1.bf16.msra.mxu0 0
        %2036 = vmatprep.subr.bf16.mxu0 0
        %2037 = vmatpush1.bf16.msra.mxu0 0
        %2038 = vmatprep.mubr.bf16.mxu0 0
        %2039 = vmatmul.mubr.bf16.gmra.mrb[0].mxu0 %v2001
        %v2040 = vpop.f32.mrb[0].mxu0
        %v2041 = vadd.f32 0.0, %v2040
        %v2042 = vpop.f32.mrb[0].mxu0
        %v2043 = vpop.f32.mrb[0].mxu0
        %v2044 = vadd.f32 0.0, %v2043
        %v2045 = vpop.f32.mrb[0].mxu0
        %2046 = vmatprep.mubr.bf16.mxu0 0
        %2047 = vmatmul.mubr.bf16.gmra.mrb[0].mxu0 %v2004
        %v2048 = vpop.f32.mrb[0].mxu0
        %v2049 = vadd.f32 0.0, %v2048
        %v2050 = vpop.f32.mrb[0].mxu0
        %v2051 = vpop.f32.mrb[0].mxu0
        %v2052 = vadd.f32 0.0, %v2051
        %v2053 = vpop.f32.mrb[0].mxu0
        %2054 = vdwg.mxu0
        %v2055 = vpack.c.bf16 %v2044, %v2041
        %v2056 = vpack.c.bf16 %v2052, %v2049
        %v2057 = vpack.c.bf16 %v1559, %v1559
        %v2059 = vsel %vm1892, %v2055, 0
        %v2062 = vsel %vm1892, %v2056, 0
        %v2065 = vsel %vm1899, %v2057, 0
        %2067 = vmatprep.subr.bf16.mxu0 0
        %2068 = vmatpush1.bf16.msra.mxu0 %v2065
        %2069 = vmatprep.subr.bf16.mxu0 0
        %2070 = vmatpush1.bf16.msra.mxu0 0
        %2071 = vmatprep.subr.bf16.mxu0 0
        %2072 = vmatpush1.bf16.msra.mxu0 0
        %2073 = vmatprep.subr.bf16.mxu0 0
        %2074 = vmatpush1.bf16.msra.mxu0 0
        %2075 = vmatprep.subr.bf16.mxu0 0
        %2076 = vmatpush1.bf16.msra.mxu0 0
        %2077 = vmatprep.subr.bf16.mxu0 0
        %2078 = vmatpush1.bf16.msra.mxu0 0
        %2079 = vmatprep.subr.bf16.mxu0 0
        %2080 = vmatpush1.bf16.msra.mxu0 0
        %2081 = vmatprep.subr.bf16.mxu0 0
        %2082 = vmatpush1.bf16.msra.mxu0 0
        %2083 = vmatprep.subr.bf16.mxu0 0
        %2084 = vmatpush1.bf16.msra.mxu0 0
        %2085 = vmatprep.subr.bf16.mxu0 0
        %2086 = vmatpush1.bf16.msra.mxu0 0
        %2087 = vmatprep.subr.bf16.mxu0 0
        %2088 = vmatpush1.bf16.msra.mxu0 0
        %2089 = vmatprep.subr.bf16.mxu0 0
        %2090 = vmatpush1.bf16.msra.mxu0 0
        %2091 = vmatprep.subr.bf16.mxu0 0
        %2092 = vmatpush1.bf16.msra.mxu0 0
        %2093 = vmatprep.subr.bf16.mxu0 0
        %2094 = vmatpush1.bf16.msra.mxu0 0
        %2095 = vmatprep.subr.bf16.mxu0 0
        %2096 = vmatpush1.bf16.msra.mxu0 0
        %2097 = vmatprep.subr.bf16.mxu0 0
        %2098 = vmatpush1.bf16.msra.mxu0 0
        %2099 = vmatprep.mubr.bf16.mxu0 0
        %2100 = vmatmul.mubr.bf16.gmra.mrb[0].mxu0 %v2059
        %v2101 = vpop.f32.mrb[0].mxu0
        %v2102 = vadd.f32 0.0, %v2101
        %v2103 = vpop.f32.mrb[0].mxu0
        %v2104 = vpop.f32.mrb[0].mxu0
        %v2105 = vadd.f32 0.0, %v2104
        %v2106 = vpop.f32.mrb[0].mxu0
        %2107 = vmatprep.mubr.bf16.mxu0 0
        %2108 = vmatmul.mubr.bf16.gmra.mrb[0].mxu0 %v2062
        %v2109 = vpop.f32.mrb[0].mxu0
        %v2110 = vadd.f32 0.0, %v2109
        %v2111 = vpop.f32.mrb[0].mxu0
        %v2112 = vpop.f32.mrb[0].mxu0
        %v2113 = vadd.f32 0.0, %v2112
        %v2114 = vpop.f32.mrb[0].mxu0
        %2115 = vdwg.mxu0
        %v2116 = vadd.f32 %v1888, %v2102
        %v2117 = vadd.f32 %v1888, %v2105
        %v2118 = vadd.f32 %v1888, %v2110
        %v2119 = vadd.f32 %v1888, %v2113
        %v2120 = vpack.c.bf16 %v1867, %v1867
        %2123 = vrot.lane.b32.xlu0 %v1889, 120
        %v2124 = vpop.permute.xlu0 %2123
        %2125 = vrot.lane.b32.xlu0 %v1890, 120
        %v2126 = vpop.permute.xlu0 %2125
        %v2128 = vsel %vm1892, %v2124, 0
        %v2131 = vsel %vm1892, %v2126, 0
        %v2134 = vsel %vm1899, %v2120, 0
        %2136 = vmatprep.subr.bf16.mxu0 0
        %2137 = vmatpush1.bf16.msra.mxu0 %v2134
        %2138 = vmatprep.subr.bf16.mxu0 0
        %2139 = vmatpush1.bf16.msra.mxu0 0
        %2140 = vmatprep.subr.bf16.mxu0 0
        %2141 = vmatpush1.bf16.msra.mxu0 0
        %2142 = vmatprep.subr.bf16.mxu0 0
        %2143 = vmatpush1.bf16.msra.mxu0 0
        %2144 = vmatprep.subr.bf16.mxu0 0
        %2145 = vmatpush1.bf16.msra.mxu0 0
        %2146 = vmatprep.subr.bf16.mxu0 0
        %2147 = vmatpush1.bf16.msra.mxu0 0
        %2148 = vmatprep.subr.bf16.mxu0 0
        %2149 = vmatpush1.bf16.msra.mxu0 0
        %2150 = vmatprep.subr.bf16.mxu0 0
        %2151 = vmatpush1.bf16.msra.mxu0 0
        %2152 = vmatprep.subr.bf16.mxu0 0
        %2153 = vmatpush1.bf16.msra.mxu0 0
        %2154 = vmatprep.subr.bf16.mxu0 0
        %2155 = vmatpush1.bf16.msra.mxu0 0
        %2156 = vmatprep.subr.bf16.mxu0 0
        %2157 = vmatpush1.bf16.msra.mxu0 0
        %2158 = vmatprep.subr.bf16.mxu0 0
        %2159 = vmatpush1.bf16.msra.mxu0 0
        %2160 = vmatprep.subr.bf16.mxu0 0
        %2161 = vmatpush1.bf16.msra.mxu0 0
        %2162 = vmatprep.subr.bf16.mxu0 0
        %2163 = vmatpush1.bf16.msra.mxu0 0
        %2164 = vmatprep.subr.bf16.mxu0 0
        %2165 = vmatpush1.bf16.msra.mxu0 0
        %2166 = vmatprep.subr.bf16.mxu0 0
        %2167 = vmatpush1.bf16.msra.mxu0 0
        %2168 = vmatprep.mubr.bf16.mxu0 0
        %2169 = vmatmul.mubr.bf16.gmra.mrb[0].mxu0 %v2128
        %v2170 = vpop.f32.mrb[0].mxu0
        %v2171 = vadd.f32 %v1662, %v2170
        %v2172 = vpop.f32.mrb[0].mxu0
        %v2173 = vpop.f32.mrb[0].mxu0
        %v2174 = vadd.f32 %v1663, %v2173
        %v2175 = vpop.f32.mrb[0].mxu0
        %2176 = vmatprep.mubr.bf16.mxu0 0
        %2177 = vmatmul.mubr.bf16.gmra.mrb[0].mxu0 %v2131
        %v2178 = vpop.f32.mrb[0].mxu0
        %v2179 = vadd.f32 %v1664, %v2178
        %v2180 = vpop.f32.mrb[0].mxu0
        %v2181 = vpop.f32.mrb[0].mxu0
        %v2182 = vadd.f32 %v1665, %v2181
        %v2183 = vpop.f32.mrb[0].mxu0
        %2184 = vdwg.mxu0
        %v2185 = vsel %vm1676, %v2171, -inf
        %2186 = vmax.xlane.f32.xlu0 %v2185
        %v2187 = vpop.xlane.xlu0 %2186
        %v2188 = vsel %vm1676, %v2174, -inf
        %2189 = vmax.xlane.f32.xlu0 %v2188
        %v2190 = vpop.xlane.xlu0 %2189
        %v2191 = vsel %vm1676, %v2179, -inf
        %2192 = vmax.xlane.f32.xlu0 %v2191
        %v2193 = vpop.xlane.xlu0 %2192
        %v2194 = vsel %vm1676, %v2182, -inf
        %2195 = vmax.xlane.f32.xlu0 %v2194
        %v2196 = vpop.xlane.xlu0 %2195
        %v2197 = vsub.f32 %v2171, %v2187
        %v2198 = vsub.f32 %v2174, %v2190
        %v2199 = vsub.f32 %v2179, %v2193
        %v2200 = vsub.f32 %v2182, %v2196
        %v2201 = vmul.f32 %v2197, 1.442695
        %v2202 = vpow.pop %v2201
        %v2203 = vmul.f32 %v2198, 1.442695
        %v2204 = vpow.pop %v2203
        %v2205 = vmul.f32 %v2199, 1.442695
        %v2206 = vpow.pop %v2205
        %v2207 = vmul.f32 %v2200, 1.442695
        %v2208 = vpow.pop %v2207
        %v2209 = vsel %vm1676, %v2202, 0.0
        %2210 = vadd.xlane.f32.xlu0 %v2209
        %v2211 = vpop.xlane.xlu0 %2210
        %v2212 = vsel %vm1676, %v2204, 0.0
        %2213 = vadd.xlane.f32.xlu0 %v2212
        %v2214 = vpop.xlane.xlu0 %2213
        %v2215 = vsel %vm1676, %v2206, 0.0
        %2216 = vadd.xlane.f32.xlu0 %v2215
        %v2217 = vpop.xlane.xlu0 %2216
        %v2218 = vsel %vm1676, %v2208, 0.0
        %2219 = vadd.xlane.f32.xlu0 %v2218
        %v2220 = vpop.xlane.xlu0 %2219
        %v2221 = vrcp.pop %v2211
        %v2222 = vrcp.pop %v2214
        %v2223 = vrcp.pop %v2217
        %v2224 = vrcp.pop %v2220
        %v2225 = vmul.f32 %v2202, %v2221
        %v2226 = vmul.f32 %v2204, %v2222
        %v2227 = vmul.f32 %v2206, %v2223
        %v2228 = vmul.f32 %v2208, %v2224
        %v2229 = vpack.c.bf16 %v2226, %v2225
        %v2230 = vpack.c.bf16 %v2228, %v2227
        %2233 = vrot.lane.b32.xlu0 %v1998, 120
        %v2234 = vpop.permute.xlu0 %2233
        %2235 = vrot.lane.b32.xlu0 %v1999, 120
        %v2236 = vpop.permute.xlu0 %2235
        %v2240 = vsel %vm1676, %v2229, 0
        %v2243 = vsel %vm1676, %v2230, 0
        %2245 = vmatprep.subr.bf16.mxu0 0
        %2246 = vmatpush1.bf16.msra.mxu0 %v2234
        %2247 = vmatprep.subr.bf16.mxu0 0
        %2248 = vmatpush1.bf16.msra.mxu0 %v2236
        %2249 = vmatprep.subr.bf16.mxu0 0
        %2250 = vmatpush1.bf16.msra.mxu0 0
        %2251 = vmatprep.subr.bf16.mxu0 0
        %2252 = vmatpush1.bf16.msra.mxu0 0
        %2253 = vmatprep.subr.bf16.mxu0 0
        %2254 = vmatpush1.bf16.msra.mxu0 0
        %2255 = vmatprep.subr.bf16.mxu0 0
        %2256 = vmatpush1.bf16.msra.mxu0 0
        %2257 = vmatprep.subr.bf16.mxu0 0
        %2258 = vmatpush1.bf16.msra.mxu0 0
        %2259 = vmatprep.subr.bf16.mxu0 0
        %2260 = vmatpush1.bf16.msra.mxu0 0
        %2261 = vmatprep.subr.bf16.mxu0 0
        %2262 = vmatpush1.bf16.msra.mxu0 0
        %2263 = vmatprep.subr.bf16.mxu0 0
        %2264 = vmatpush1.bf16.msra.mxu0 0
        %2265 = vmatprep.subr.bf16.mxu0 0
        %2266 = vmatpush1.bf16.msra.mxu0 0
        %2267 = vmatprep.subr.bf16.mxu0 0
        %2268 = vmatpush1.bf16.msra.mxu0 0
        %2269 = vmatprep.subr.bf16.mxu0 0
        %2270 = vmatpush1.bf16.msra.mxu0 0
        %2271 = vmatprep.subr.bf16.mxu0 0
        %2272 = vmatpush1.bf16.msra.mxu0 0
        %2273 = vmatprep.subr.bf16.mxu0 0
        %2274 = vmatpush1.bf16.msra.mxu0 0
        %2275 = vmatprep.subr.bf16.mxu0 0
        %2276 = vmatpush1.bf16.msra.mxu0 0
        %2277 = vmatprep.mubr.bf16.mxu0 0
        %2278 = vmatmul.mubr.bf16.gmra.mrb[0].mxu0 %v2240
        %v2279 = vpop.f32.mrb[0].mxu0
        %v2280 = vadd.f32 0.0, %v2279
        %v2281 = vpop.f32.mrb[0].mxu0
        %v2282 = vpop.f32.mrb[0].mxu0
        %v2283 = vadd.f32 0.0, %v2282
        %v2284 = vpop.f32.mrb[0].mxu0
        %2285 = vmatprep.mubr.bf16.mxu0 0
        %2286 = vmatmul.mubr.bf16.gmra.mrb[0].mxu0 %v2243
        %v2287 = vpop.f32.mrb[0].mxu0
        %v2288 = vadd.f32 0.0, %v2287
        %v2289 = vpop.f32.mrb[0].mxu0
        %v2290 = vpop.f32.mrb[0].mxu0
        %v2291 = vadd.f32 0.0, %v2290
        %v2292 = vpop.f32.mrb[0].mxu0
        %2293 = vdwg.mxu0
        %v2294 = vpack.c.bf16 %v2283, %v2280
        %v2295 = vpack.c.bf16 %v2291, %v2288
        %v2296 = vpack.c.bf16 %v1560, %v1560
        %v2298 = vsel %vm1892, %v2294, 0
        %v2301 = vsel %vm1892, %v2295, 0
        %v2304 = vsel %vm1899, %v2296, 0
        %2306 = vmatprep.subr.bf16.mxu0 0
        %2307 = vmatpush1.bf16.msra.mxu0 %v2304
        %2308 = vmatprep.subr.bf16.mxu0 0
        %2309 = vmatpush1.bf16.msra.mxu0 0
        %2310 = vmatprep.subr.bf16.mxu0 0
        %2311 = vmatpush1.bf16.msra.mxu0 0
        %2312 = vmatprep.subr.bf16.mxu0 0
        %2313 = vmatpush1.bf16.msra.mxu0 0
        %2314 = vmatprep.subr.bf16.mxu0 0
        %2315 = vmatpush1.bf16.msra.mxu0 0
        %2316 = vmatprep.subr.bf16.mxu0 0
        %2317 = vmatpush1.bf16.msra.mxu0 0
        %2318 = vmatprep.subr.bf16.mxu0 0
        %2319 = vmatpush1.bf16.msra.mxu0 0
        %2320 = vmatprep.subr.bf16.mxu0 0
        %2321 = vmatpush1.bf16.msra.mxu0 0
        %2322 = vmatprep.subr.bf16.mxu0 0
        %2323 = vmatpush1.bf16.msra.mxu0 0
        %2324 = vmatprep.subr.bf16.mxu0 0
        %2325 = vmatpush1.bf16.msra.mxu0 0
        %2326 = vmatprep.subr.bf16.mxu0 0
        %2327 = vmatpush1.bf16.msra.mxu0 0
        %2328 = vmatprep.subr.bf16.mxu0 0
        %2329 = vmatpush1.bf16.msra.mxu0 0
        %2330 = vmatprep.subr.bf16.mxu0 0
        %2331 = vmatpush1.bf16.msra.mxu0 0
        %2332 = vmatprep.subr.bf16.mxu0 0
        %2333 = vmatpush1.bf16.msra.mxu0 0
        %2334 = vmatprep.subr.bf16.mxu0 0
        %2335 = vmatpush1.bf16.msra.mxu0 0
        %2336 = vmatprep.subr.bf16.mxu0 0
        %2337 = vmatpush1.bf16.msra.mxu0 0
        %2338 = vmatprep.mubr.bf16.mxu0 0
        %2339 = vmatmul.mubr.bf16.gmra.mrb[0].mxu0 %v2298
        %v2340 = vpop.f32.mrb[0].mxu0
        %v2341 = vadd.f32 0.0, %v2340
        %v2342 = vpop.f32.mrb[0].mxu0
        %v2343 = vpop.f32.mrb[0].mxu0
        %v2344 = vadd.f32 0.0, %v2343
        %v2345 = vpop.f32.mrb[0].mxu0
        %2346 = vmatprep.mubr.bf16.mxu0 0
        %2347 = vmatmul.mubr.bf16.gmra.mrb[0].mxu0 %v2301
        %v2348 = vpop.f32.mrb[0].mxu0
        %v2349 = vadd.f32 0.0, %v2348
        %v2350 = vpop.f32.mrb[0].mxu0
        %v2351 = vpop.f32.mrb[0].mxu0
        %v2352 = vadd.f32 0.0, %v2351
        %v2353 = vpop.f32.mrb[0].mxu0
        %2354 = vdwg.mxu0
        %v2355 = vadd.f32 %v2116, %v2341
        %v2356 = vadd.f32 %v2117, %v2344
        %v2357 = vadd.f32 %v2118, %v2349
        %v2358 = vadd.f32 %v2119, %v2352
        %v2359 = vpack.c.bf16 %v1868, %v1868
        %2360 = vrot.lane.b32.xlu0 %v1889, 112
        %v2361 = vpop.permute.xlu0 %2360
        %2362 = vrot.lane.b32.xlu0 %v1890, 112
        %v2363 = vpop.permute.xlu0 %2362
        %v2365 = vsel %vm1892, %v2361, 0
        %v2368 = vsel %vm1892, %v2363, 0
        %v2371 = vsel %vm1899, %v2359, 0
        %2373 = vmatprep.subr.bf16.mxu0 0
        %2374 = vmatpush1.bf16.msra.mxu0 %v2371
        %2375 = vmatprep.subr.bf16.mxu0 0
        %2376 = vmatpush1.bf16.msra.mxu0 0
        %2377 = vmatprep.subr.bf16.mxu0 0
        %2378 = vmatpush1.bf16.msra.mxu0 0
        %2379 = vmatprep.subr.bf16.mxu0 0
        %2380 = vmatpush1.bf16.msra.mxu0 0
        %2381 = vmatprep.subr.bf16.mxu0 0
        %2382 = vmatpush1.bf16.msra.mxu0 0
        %2383 = vmatprep.subr.bf16.mxu0 0
        %2384 = vmatpush1.bf16.msra.mxu0 0
        %2385 = vmatprep.subr.bf16.mxu0 0
        %2386 = vmatpush1.bf16.msra.mxu0 0
        %2387 = vmatprep.subr.bf16.mxu0 0
        %2388 = vmatpush1.bf16.msra.mxu0 0
        %2389 = vmatprep.subr.bf16.mxu0 0
        %2390 = vmatpush1.bf16.msra.mxu0 0
        %2391 = vmatprep.subr.bf16.mxu0 0
        %2392 = vmatpush1.bf16.msra.mxu0 0
        %2393 = vmatprep.subr.bf16.mxu0 0
        %2394 = vmatpush1.bf16.msra.mxu0 0
        %2395 = vmatprep.subr.bf16.mxu0 0
        %2396 = vmatpush1.bf16.msra.mxu0 0
        %2397 = vmatprep.subr.bf16.mxu0 0
        %2398 = vmatpush1.bf16.msra.mxu0 0
        %2399 = vmatprep.subr.bf16.mxu0 0
        %2400 = vmatpush1.bf16.msra.mxu0 0
        %2401 = vmatprep.subr.bf16.mxu0 0
        %2402 = vmatpush1.bf16.msra.mxu0 0
        %2403 = vmatprep.subr.bf16.mxu0 0
        %2404 = vmatpush1.bf16.msra.mxu0 0
        %2405 = vmatprep.mubr.bf16.mxu0 0
        %2406 = vmatmul.mubr.bf16.gmra.mrb[0].mxu0 %v2365
        %v2407 = vpop.f32.mrb[0].mxu0
        %v2408 = vadd.f32 %v1662, %v2407
        %v2409 = vpop.f32.mrb[0].mxu0
        %v2410 = vpop.f32.mrb[0].mxu0
        %v2411 = vadd.f32 %v1663, %v2410
        %v2412 = vpop.f32.mrb[0].mxu0
        %2413 = vmatprep.mubr.bf16.mxu0 0
        %2414 = vmatmul.mubr.bf16.gmra.mrb[0].mxu0 %v2368
        %v2415 = vpop.f32.mrb[0].mxu0
        %v2416 = vadd.f32 %v1664, %v2415
        %v2417 = vpop.f32.mrb[0].mxu0
        %v2418 = vpop.f32.mrb[0].mxu0
        %v2419 = vadd.f32 %v1665, %v2418
        %v2420 = vpop.f32.mrb[0].mxu0
        %2421 = vdwg.mxu0
        %v2422 = vsel %vm1676, %v2408, -inf
        %2423 = vmax.xlane.f32.xlu0 %v2422
        %v2424 = vpop.xlane.xlu0 %2423
        %v2425 = vsel %vm1676, %v2411, -inf
        %2426 = vmax.xlane.f32.xlu0 %v2425
        %v2427 = vpop.xlane.xlu0 %2426
        %v2428 = vsel %vm1676, %v2416, -inf
        %2429 = vmax.xlane.f32.xlu0 %v2428
        %v2430 = vpop.xlane.xlu0 %2429
        %v2431 = vsel %vm1676, %v2419, -inf
        %2432 = vmax.xlane.f32.xlu0 %v2431
        %v2433 = vpop.xlane.xlu0 %2432
        %v2434 = vsub.f32 %v2408, %v2424
        %v2435 = vsub.f32 %v2411, %v2427
        %v2436 = vsub.f32 %v2416, %v2430
        %v2437 = vsub.f32 %v2419, %v2433
        %v2438 = vmul.f32 %v2434, 1.442695
        %v2439 = vpow.pop %v2438
        %v2440 = vmul.f32 %v2435, 1.442695
        %v2441 = vpow.pop %v2440
        %v2442 = vmul.f32 %v2436, 1.442695
        %v2443 = vpow.pop %v2442
        %v2444 = vmul.f32 %v2437, 1.442695
        %v2445 = vpow.pop %v2444
        %v2446 = vsel %vm1676, %v2439, 0.0
        %2447 = vadd.xlane.f32.xlu0 %v2446
        %v2448 = vpop.xlane.xlu0 %2447
        %v2449 = vsel %vm1676, %v2441, 0.0
        %2450 = vadd.xlane.f32.xlu0 %v2449
        %v2451 = vpop.xlane.xlu0 %2450
        %v2452 = vsel %vm1676, %v2443, 0.0
        %2453 = vadd.xlane.f32.xlu0 %v2452
        %v2454 = vpop.xlane.xlu0 %2453
        %v2455 = vsel %vm1676, %v2445, 0.0
        %2456 = vadd.xlane.f32.xlu0 %v2455
        %v2457 = vpop.xlane.xlu0 %2456
        %v2458 = vrcp.pop %v2448
        %v2459 = vrcp.pop %v2451
        %v2460 = vrcp.pop %v2454
        %v2461 = vrcp.pop %v2457
        %v2462 = vmul.f32 %v2439, %v2458
        %v2463 = vmul.f32 %v2441, %v2459
        %v2464 = vmul.f32 %v2443, %v2460
        %v2465 = vmul.f32 %v2445, %v2461
        %v2466 = vpack.c.bf16 %v2463, %v2462
        %v2467 = vpack.c.bf16 %v2465, %v2464
        %2468 = vrot.lane.b32.xlu0 %v1998, 112
        %v2469 = vpop.permute.xlu0 %2468
        %2470 = vrot.lane.b32.xlu0 %v1999, 112
        %v2471 = vpop.permute.xlu0 %2470
        %v2475 = vsel %vm1676, %v2466, 0
        %v2478 = vsel %vm1676, %v2467, 0
        %2480 = vmatprep.subr.bf16.mxu0 0
        %2481 = vmatpush1.bf16.msra.mxu0 %v2469
        %2482 = vmatprep.subr.bf16.mxu0 0
        %2483 = vmatpush1.bf16.msra.mxu0 %v2471
        %2484 = vmatprep.subr.bf16.mxu0 0
        %2485 = vmatpush1.bf16.msra.mxu0 0
        %2486 = vmatprep.subr.bf16.mxu0 0
        %2487 = vmatpush1.bf16.msra.mxu0 0
        %2488 = vmatprep.subr.bf16.mxu0 0
        %2489 = vmatpush1.bf16.msra.mxu0 0
        %2490 = vmatprep.subr.bf16.mxu0 0
        %2491 = vmatpush1.bf16.msra.mxu0 0
        %2492 = vmatprep.subr.bf16.mxu0 0
        %2493 = vmatpush1.bf16.msra.mxu0 0
        %2494 = vmatprep.subr.bf16.mxu0 0
        %2495 = vmatpush1.bf16.msra.mxu0 0
        %2496 = vmatprep.subr.bf16.mxu0 0
        %2497 = vmatpush1.bf16.msra.mxu0 0
        %2498 = vmatprep.subr.bf16.mxu0 0
        %2499 = vmatpush1.bf16.msra.mxu0 0
        %2500 = vmatprep.subr.bf16.mxu0 0
        %2501 = vmatpush1.bf16.msra.mxu0 0
        %2502 = vmatprep.subr.bf16.mxu0 0
        %2503 = vmatpush1.bf16.msra.mxu0 0
        %2504 = vmatprep.subr.bf16.mxu0 0
        %2505 = vmatpush1.bf16.msra.mxu0 0
        %2506 = vmatprep.subr.bf16.mxu0 0
        %2507 = vmatpush1.bf16.msra.mxu0 0
        %2508 = vmatprep.subr.bf16.mxu0 0
        %2509 = vmatpush1.bf16.msra.mxu0 0
        %2510 = vmatprep.subr.bf16.mxu0 0
        %2511 = vmatpush1.bf16.msra.mxu0 0
        %2512 = vmatprep.mubr.bf16.mxu0 0
        %2513 = vmatmul.mubr.bf16.gmra.mrb[0].mxu0 %v2475
        %v2514 = vpop.f32.mrb[0].mxu0
        %v2515 = vadd.f32 0.0, %v2514
        %v2516 = vpop.f32.mrb[0].mxu0
        %v2517 = vpop.f32.mrb[0].mxu0
        %v2518 = vadd.f32 0.0, %v2517
        %v2519 = vpop.f32.mrb[0].mxu0
        %2520 = vmatprep.mubr.bf16.mxu0 0
        %2521 = vmatmul.mubr.bf16.gmra.mrb[0].mxu0 %v2478
        %v2522 = vpop.f32.mrb[0].mxu0
        %v2523 = vadd.f32 0.0, %v2522
        %v2524 = vpop.f32.mrb[0].mxu0
        %v2525 = vpop.f32.mrb[0].mxu0
        %v2526 = vadd.f32 0.0, %v2525
        %v2527 = vpop.f32.mrb[0].mxu0
        %2528 = vdwg.mxu0
        %v2529 = vpack.c.bf16 %v2518, %v2515
        %v2530 = vpack.c.bf16 %v2526, %v2523
        %v2531 = vpack.c.bf16 %v1561, %v1561
        %v2533 = vsel %vm1892, %v2529, 0
        %v2536 = vsel %vm1892, %v2530, 0
        %v2539 = vsel %vm1899, %v2531, 0
        %2541 = vmatprep.subr.bf16.mxu0 0
        %2542 = vmatpush1.bf16.msra.mxu0 %v2539
        %2543 = vmatprep.subr.bf16.mxu0 0
        %2544 = vmatpush1.bf16.msra.mxu0 0
        %2545 = vmatprep.subr.bf16.mxu0 0
        %2546 = vmatpush1.bf16.msra.mxu0 0
        %2547 = vmatprep.subr.bf16.mxu0 0
        %2548 = vmatpush1.bf16.msra.mxu0 0
        %2549 = vmatprep.subr.bf16.mxu0 0
        %2550 = vmatpush1.bf16.msra.mxu0 0
        %2551 = vmatprep.subr.bf16.mxu0 0
        %2552 = vmatpush1.bf16.msra.mxu0 0
        %2553 = vmatprep.subr.bf16.mxu0 0
        %2554 = vmatpush1.bf16.msra.mxu0 0
        %2555 = vmatprep.subr.bf16.mxu0 0
        %2556 = vmatpush1.bf16.msra.mxu0 0
        %2557 = vmatprep.subr.bf16.mxu0 0
        %2558 = vmatpush1.bf16.msra.mxu0 0
        %2559 = vmatprep.subr.bf16.mxu0 0
        %2560 = vmatpush1.bf16.msra.mxu0 0
        %2561 = vmatprep.subr.bf16.mxu0 0
        %2562 = vmatpush1.bf16.msra.mxu0 0
        %2563 = vmatprep.subr.bf16.mxu0 0
        %2564 = vmatpush1.bf16.msra.mxu0 0
        %2565 = vmatprep.subr.bf16.mxu0 0
        %2566 = vmatpush1.bf16.msra.mxu0 0
        %2567 = vmatprep.subr.bf16.mxu0 0
        %2568 = vmatpush1.bf16.msra.mxu0 0
        %2569 = vmatprep.subr.bf16.mxu0 0
        %2570 = vmatpush1.bf16.msra.mxu0 0
        %2571 = vmatprep.subr.bf16.mxu0 0
        %2572 = vmatpush1.bf16.msra.mxu0 0
        %2573 = vmatprep.mubr.bf16.mxu0 0
        %2574 = vmatmul.mubr.bf16.gmra.mrb[0].mxu0 %v2533
        %v2575 = vpop.f32.mrb[0].mxu0
        %v2576 = vadd.f32 0.0, %v2575
        %v2577 = vpop.f32.mrb[0].mxu0
        %v2578 = vpop.f32.mrb[0].mxu0
        %v2579 = vadd.f32 0.0, %v2578
        %v2580 = vpop.f32.mrb[0].mxu0
        %2581 = vmatprep.mubr.bf16.mxu0 0
        %2582 = vmatmul.mubr.bf16.gmra.mrb[0].mxu0 %v2536
        %v2583 = vpop.f32.mrb[0].mxu0
        %v2584 = vadd.f32 0.0, %v2583
        %v2585 = vpop.f32.mrb[0].mxu0
        %v2586 = vpop.f32.mrb[0].mxu0
        %v2587 = vadd.f32 0.0, %v2586
        %v2588 = vpop.f32.mrb[0].mxu0
        %2589 = vdwg.mxu0
        %v2590 = vadd.f32 %v2355, %v2576
        %v2591 = vadd.f32 %v2356, %v2579
        %v2592 = vadd.f32 %v2357, %v2584
        %v2593 = vadd.f32 %v2358, %v2587
        %v2594 = vpack.c.bf16 %v1869, %v1869
        %2595 = vrot.lane.b32.xlu0 %v1889, 104
        %v2596 = vpop.permute.xlu0 %2595
        %2597 = vrot.lane.b32.xlu0 %v1890, 104
        %v2598 = vpop.permute.xlu0 %2597
        %v2600 = vsel %vm1892, %v2596, 0
        %v2603 = vsel %vm1892, %v2598, 0
        %v2606 = vsel %vm1899, %v2594, 0
        %2608 = vmatprep.subr.bf16.mxu0 0
        %2609 = vmatpush1.bf16.msra.mxu0 %v2606
        %2610 = vmatprep.subr.bf16.mxu0 0
        %2611 = vmatpush1.bf16.msra.mxu0 0
        %2612 = vmatprep.subr.bf16.mxu0 0
        %2613 = vmatpush1.bf16.msra.mxu0 0
        %2614 = vmatprep.subr.bf16.mxu0 0
        %2615 = vmatpush1.bf16.msra.mxu0 0
        %2616 = vmatprep.subr.bf16.mxu0 0
        %2617 = vmatpush1.bf16.msra.mxu0 0
        %2618 = vmatprep.subr.bf16.mxu0 0
        %2619 = vmatpush1.bf16.msra.mxu0 0
        %2620 = vmatprep.subr.bf16.mxu0 0
        %2621 = vmatpush1.bf16.msra.mxu0 0
        %2622 = vmatprep.subr.bf16.mxu0 0
        %2623 = vmatpush1.bf16.msra.mxu0 0
        %2624 = vmatprep.subr.bf16.mxu0 0
        %2625 = vmatpush1.bf16.msra.mxu0 0
        %2626 = vmatprep.subr.bf16.mxu0 0
        %2627 = vmatpush1.bf16.msra.mxu0 0
        %2628 = vmatprep.subr.bf16.mxu0 0
        %2629 = vmatpush1.bf16.msra.mxu0 0
        %2630 = vmatprep.subr.bf16.mxu0 0
        %2631 = vmatpush1.bf16.msra.mxu0 0
        %2632 = vmatprep.subr.bf16.mxu0 0
        %2633 = vmatpush1.bf16.msra.mxu0 0
        %2634 = vmatprep.subr.bf16.mxu0 0
        %2635 = vmatpush1.bf16.msra.mxu0 0
        %2636 = vmatprep.subr.bf16.mxu0 0
        %2637 = vmatpush1.bf16.msra.mxu0 0
        %2638 = vmatprep.subr.bf16.mxu0 0
        %2639 = vmatpush1.bf16.msra.mxu0 0
        %2640 = vmatprep.mubr.bf16.mxu0 0
        %2641 = vmatmul.mubr.bf16.gmra.mrb[0].mxu0 %v2600
        %v2642 = vpop.f32.mrb[0].mxu0
        %v2643 = vadd.f32 %v1662, %v2642
        %v2644 = vpop.f32.mrb[0].mxu0
        %v2645 = vpop.f32.mrb[0].mxu0
        %v2646 = vadd.f32 %v1663, %v2645
        %v2647 = vpop.f32.mrb[0].mxu0
        %2648 = vmatprep.mubr.bf16.mxu0 0
        %2649 = vmatmul.mubr.bf16.gmra.mrb[0].mxu0 %v2603
        %v2650 = vpop.f32.mrb[0].mxu0
        %v2651 = vadd.f32 %v1664, %v2650
        %v2652 = vpop.f32.mrb[0].mxu0
        %v2653 = vpop.f32.mrb[0].mxu0
        %v2654 = vadd.f32 %v1665, %v2653
        %v2655 = vpop.f32.mrb[0].mxu0
        %2656 = vdwg.mxu0
        %v2657 = vsel %vm1676, %v2643, -inf
        %2658 = vmax.xlane.f32.xlu0 %v2657
        %v2659 = vpop.xlane.xlu0 %2658
        %v2660 = vsel %vm1676, %v2646, -inf
        %2661 = vmax.xlane.f32.xlu0 %v2660
        %v2662 = vpop.xlane.xlu0 %2661
        %v2663 = vsel %vm1676, %v2651, -inf
        %2664 = vmax.xlane.f32.xlu0 %v2663
        %v2665 = vpop.xlane.xlu0 %2664
        %v2666 = vsel %vm1676, %v2654, -inf
        %2667 = vmax.xlane.f32.xlu0 %v2666
        %v2668 = vpop.xlane.xlu0 %2667
        %v2669 = vsub.f32 %v2643, %v2659
        %v2670 = vsub.f32 %v2646, %v2662
        %v2671 = vsub.f32 %v2651, %v2665
        %v2672 = vsub.f32 %v2654, %v2668
        %v2673 = vmul.f32 %v2669, 1.442695
        %v2674 = vpow.pop %v2673
        %v2675 = vmul.f32 %v2670, 1.442695
        %v2676 = vpow.pop %v2675
        %v2677 = vmul.f32 %v2671, 1.442695
        %v2678 = vpow.pop %v2677
        %v2679 = vmul.f32 %v2672, 1.442695
        %v2680 = vpow.pop %v2679
        %v2681 = vsel %vm1676, %v2674, 0.0
        %2682 = vadd.xlane.f32.xlu0 %v2681
        %v2683 = vpop.xlane.xlu0 %2682
        %v2684 = vsel %vm1676, %v2676, 0.0
        %2685 = vadd.xlane.f32.xlu0 %v2684
        %v2686 = vpop.xlane.xlu0 %2685
        %v2687 = vsel %vm1676, %v2678, 0.0
        %2688 = vadd.xlane.f32.xlu0 %v2687
        %v2689 = vpop.xlane.xlu0 %2688
        %v2690 = vsel %vm1676, %v2680, 0.0
        %2691 = vadd.xlane.f32.xlu0 %v2690
        %v2692 = vpop.xlane.xlu0 %2691
        %v2693 = vrcp.pop %v2683
        %v2694 = vrcp.pop %v2686
        %v2695 = vrcp.pop %v2689
        %v2696 = vrcp.pop %v2692
        %v2697 = vmul.f32 %v2674, %v2693
        %v2698 = vmul.f32 %v2676, %v2694
        %v2699 = vmul.f32 %v2678, %v2695
        %v2700 = vmul.f32 %v2680, %v2696
        %v2701 = vpack.c.bf16 %v2698, %v2697
        %v2702 = vpack.c.bf16 %v2700, %v2699
        %2703 = vrot.lane.b32.xlu0 %v1998, 104
        %v2704 = vpop.permute.xlu0 %2703
        %2705 = vrot.lane.b32.xlu0 %v1999, 104
        %v2706 = vpop.permute.xlu0 %2705
        %v2710 = vsel %vm1676, %v2701, 0
        %v2713 = vsel %vm1676, %v2702, 0
        %2715 = vmatprep.subr.bf16.mxu0 0
        %2716 = vmatpush1.bf16.msra.mxu0 %v2704
        %2717 = vmatprep.subr.bf16.mxu0 0
        %2718 = vmatpush1.bf16.msra.mxu0 %v2706
        %2719 = vmatprep.subr.bf16.mxu0 0
        %2720 = vmatpush1.bf16.msra.mxu0 0
        %2721 = vmatprep.subr.bf16.mxu0 0
        %2722 = vmatpush1.bf16.msra.mxu0 0
        %2723 = vmatprep.subr.bf16.mxu0 0
        %2724 = vmatpush1.bf16.msra.mxu0 0
        %2725 = vmatprep.subr.bf16.mxu0 0
        %2726 = vmatpush1.bf16.msra.mxu0 0
        %2727 = vmatprep.subr.bf16.mxu0 0
        %2728 = vmatpush1.bf16.msra.mxu0 0
        %2729 = vmatprep.subr.bf16.mxu0 0
        %2730 = vmatpush1.bf16.msra.mxu0 0
        %2731 = vmatprep.subr.bf16.mxu0 0
        %2732 = vmatpush1.bf16.msra.mxu0 0
        %2733 = vmatprep.subr.bf16.mxu0 0
        %2734 = vmatpush1.bf16.msra.mxu0 0
        %2735 = vmatprep.subr.bf16.mxu0 0
        %2736 = vmatpush1.bf16.msra.mxu0 0
        %2737 = vmatprep.subr.bf16.mxu0 0
        %2738 = vmatpush1.bf16.msra.mxu0 0
        %2739 = vmatprep.subr.bf16.mxu0 0
        %2740 = vmatpush1.bf16.msra.mxu0 0
        %2741 = vmatprep.subr.bf16.mxu0 0
        %2742 = vmatpush1.bf16.msra.mxu0 0
        %2743 = vmatprep.subr.bf16.mxu0 0
        %2744 = vmatpush1.bf16.msra.mxu0 0
        %2745 = vmatprep.subr.bf16.mxu0 0
        %2746 = vmatpush1.bf16.msra.mxu0 0
        %2747 = vmatprep.mubr.bf16.mxu0 0
        %2748 = vmatmul.mubr.bf16.gmra.mrb[0].mxu0 %v2710
        %v2749 = vpop.f32.mrb[0].mxu0
        %v2750 = vadd.f32 0.0, %v2749
        %v2751 = vpop.f32.mrb[0].mxu0
        %v2752 = vpop.f32.mrb[0].mxu0
        %v2753 = vadd.f32 0.0, %v2752
        %v2754 = vpop.f32.mrb[0].mxu0
        %2755 = vmatprep.mubr.bf16.mxu0 0
        %2756 = vmatmul.mubr.bf16.gmra.mrb[0].mxu0 %v2713
        %v2757 = vpop.f32.mrb[0].mxu0
        %v2758 = vadd.f32 0.0, %v2757
        %v2759 = vpop.f32.mrb[0].mxu0
        %v2760 = vpop.f32.mrb[0].mxu0
        %v2761 = vadd.f32 0.0, %v2760
        %v2762 = vpop.f32.mrb[0].mxu0
        %2763 = vdwg.mxu0
        %v2764 = vpack.c.bf16 %v2753, %v2750
        %v2765 = vpack.c.bf16 %v2761, %v2758
        %v2766 = vpack.c.bf16 %v1562, %v1562
        %v2768 = vsel %vm1892, %v2764, 0
        %v2771 = vsel %vm1892, %v2765, 0
        %v2774 = vsel %vm1899, %v2766, 0
        %2776 = vmatprep.subr.bf16.mxu0 0
        %2777 = vmatpush1.bf16.msra.mxu0 %v2774
        %2778 = vmatprep.subr.bf16.mxu0 0
        %2779 = vmatpush1.bf16.msra.mxu0 0
        %2780 = vmatprep.subr.bf16.mxu0 0
        %2781 = vmatpush1.bf16.msra.mxu0 0
        %2782 = vmatprep.subr.bf16.mxu0 0
        %2783 = vmatpush1.bf16.msra.mxu0 0
        %2784 = vmatprep.subr.bf16.mxu0 0
        %2785 = vmatpush1.bf16.msra.mxu0 0
        %2786 = vmatprep.subr.bf16.mxu0 0
        %2787 = vmatpush1.bf16.msra.mxu0 0
        %2788 = vmatprep.subr.bf16.mxu0 0
        %2789 = vmatpush1.bf16.msra.mxu0 0
        %2790 = vmatprep.subr.bf16.mxu0 0
        %2791 = vmatpush1.bf16.msra.mxu0 0
        %2792 = vmatprep.subr.bf16.mxu0 0
        %2793 = vmatpush1.bf16.msra.mxu0 0
        %2794 = vmatprep.subr.bf16.mxu0 0
        %2795 = vmatpush1.bf16.msra.mxu0 0
        %2796 = vmatprep.subr.bf16.mxu0 0
        %2797 = vmatpush1.bf16.msra.mxu0 0
        %2798 = vmatprep.subr.bf16.mxu0 0
        %2799 = vmatpush1.bf16.msra.mxu0 0
        %2800 = vmatprep.subr.bf16.mxu0 0
        %2801 = vmatpush1.bf16.msra.mxu0 0
        %2802 = vmatprep.subr.bf16.mxu0 0
        %2803 = vmatpush1.bf16.msra.mxu0 0
        %2804 = vmatprep.subr.bf16.mxu0 0
        %2805 = vmatpush1.bf16.msra.mxu0 0
        %2806 = vmatprep.subr.bf16.mxu0 0
        %2807 = vmatpush1.bf16.msra.mxu0 0
        %2808 = vmatprep.mubr.bf16.mxu0 0
        %2809 = vmatmul.mubr.bf16.gmra.mrb[0].mxu0 %v2768
        %v2810 = vpop.f32.mrb[0].mxu0
        %v2811 = vadd.f32 0.0, %v2810
        %v2812 = vpop.f32.mrb[0].mxu0
        %v2813 = vpop.f32.mrb[0].mxu0
        %v2814 = vadd.f32 0.0, %v2813
        %v2815 = vpop.f32.mrb[0].mxu0
        %2816 = vmatprep.mubr.bf16.mxu0 0
        %2817 = vmatmul.mubr.bf16.gmra.mrb[0].mxu0 %v2771
        %v2818 = vpop.f32.mrb[0].mxu0
        %v2819 = vadd.f32 0.0, %v2818
        %v2820 = vpop.f32.mrb[0].mxu0
        %v2821 = vpop.f32.mrb[0].mxu0
        %v2822 = vadd.f32 0.0, %v2821
        %v2823 = vpop.f32.mrb[0].mxu0
        %2824 = vdwg.mxu0
        %v2825 = vadd.f32 %v2590, %v2811
        %v2826 = vadd.f32 %v2591, %v2814
        %v2827 = vadd.f32 %v2592, %v2819
        %v2828 = vadd.f32 %v2593, %v2822
        %v2829 = vadd.f32 %v1656, %v2825
        %v2830 = vadd.f32 %v1657, %v2826
        %v2831 = vadd.f32 %v1658, %v2827
        %v2832 = vadd.f32 %v1659, %v2828
        %v2833 = vsel %vm1676, %v2829, 0.0
        %2834 = vadd.xlane.f32.xlu0 %v2833
        %v2835 = vpop.xlane.xlu0 %2834
        %v2836 = vsel %vm1676, %v2830, 0.0
        %2837 = vadd.xlane.f32.xlu0 %v2836
        %v2838 = vpop.xlane.xlu0 %2837
        %v2839 = vsel %vm1676, %v2831, 0.0
        %2840 = vadd.xlane.f32.xlu0 %v2839
        %v2841 = vpop.xlane.xlu0 %2840
        %v2842 = vsel %vm1676, %v2832, 0.0
        %2843 = vadd.xlane.f32.xlu0 %v2842
        %v2844 = vpop.xlane.xlu0 %2843
        %v2845 = vrcp.pop 32.0
        %v2846 = vmul.f32 %v2835, %v2845
        %v2847 = vmul.f32 %v2838, %v2845
        %v2848 = vmul.f32 %v2841, %v2845
        %v2849 = vmul.f32 %v2844, %v2845
        %v2850 = vsub.f32 %v2829, %v2846
        %v2851 = vsub.f32 %v2830, %v2847
        %v2852 = vsub.f32 %v2831, %v2848
        %v2853 = vsub.f32 %v2832, %v2849
        %v2854 = vmul.f32 %v2850, %v2850
        %v2855 = vmul.f32 %v2851, %v2851
        %v2856 = vmul.f32 %v2852, %v2852
        %v2857 = vmul.f32 %v2853, %v2853
        %v2858 = vsel %vm1676, %v2854, 0.0
        %2859 = vadd.xlane.f32.xlu0 %v2858
        %v2860 = vpop.xlane.xlu0 %2859
        %v2861 = vsel %vm1676, %v2855, 0.0
        %2862 = vadd.xlane.f32.xlu0 %v2861
        %v2863 = vpop.xlane.xlu0 %2862
        %v2864 = vsel %vm1676, %v2856, 0.0
        %2865 = vadd.xlane.f32.xlu0 %v2864
        %v2866 = vpop.xlane.xlu0 %2865
        %v2867 = vsel %vm1676, %v2857, 0.0
        %2868 = vadd.xlane.f32.xlu0 %v2867
        %v2869 = vpop.xlane.xlu0 %2868
        %v2870 = vmul.f32 %v2860, %v2845
        %v2871 = vmul.f32 %v2863, %v2845
        %v2872 = vmul.f32 %v2866, %v2845
        %v2873 = vmul.f32 %v2869, %v2845
        %v2874 = vadd.f32 %v2870, 1e-05
        %v2875 = vadd.f32 %v2871, 1e-05
        %v2876 = vadd.f32 %v2872, 1e-05
        %v2877 = vadd.f32 %v2873, 1e-05
        %v2878 = vrsqrt.pop %v2874
        %v2879 = vrsqrt.pop %v2875
        %v2880 = vrsqrt.pop %v2876
        %v2881 = vrsqrt.pop %v2877
        %v2882 = vmul.f32 %v2850, %v2878
        %v2883 = vmul.f32 %v2851, %v2879
        %v2884 = vmul.f32 %v2852, %v2880
        %v2885 = vmul.f32 %v2853, %v2881
        %v2887 = vlaneseq
        %v2888 = vshrl.u32 %v2887, 7
        %v2889 = vsub.s32 0, %v2888
        %v2890 = vrot.slane %v1564, %v2889
        %v2892 = vmul.f32 %v2882, %v2890
        %v2893 = vmul.f32 %v2883, %v2890
        %v2894 = vmul.f32 %v2884, %v2890
        %v2895 = vmul.f32 %v2885, %v2890
        %v2897 = vlaneseq
        %v2898 = vshrl.u32 %v2897, 7
        %v2899 = vsub.s32 0, %v2898
        %v2900 = vrot.slane %v1565, %v2899
        %v2902 = vadd.f32 %v2892, %v2900
        %v2903 = vadd.f32 %v2893, %v2900
        %v2904 = vadd.f32 %v2894, %v2900
        %v2905 = vadd.f32 %v2895, %v2900
        %v2906 = vpack.c.bf16 %v2903, %v2902
        %v2907 = vpack.c.bf16 %v2905, %v2904
        %v2908 = vpack.c.bf16 %v1567, %v1566
        %v2909 = vpack.c.bf16 %v1569, %v1568
        %v2911 = vlaneseq
        %v2912 = vshrl.u32 %v2911, 7
        %v2913 = vsub.s32 0, %v2912
        %v2914 = vrot.slane %v1570, %v2913
        %v2917 = vsel %vm1676, %v2906, 0
        %v2920 = vsel %vm1676, %v2907, 0
        %2922 = vmatprep.subr.bf16.mxu0 0
        %2923 = vmatpush1.bf16.msra.mxu0 %v2908
        %2924 = vmatprep.subr.bf16.mxu0 0
        %2925 = vmatpush1.bf16.msra.mxu0 %v2909
        %2926 = vmatprep.subr.bf16.mxu0 0
        %2927 = vmatpush1.bf16.msra.mxu0 0
        %2928 = vmatprep.subr.bf16.mxu0 0
        %2929 = vmatpush1.bf16.msra.mxu0 0
        %2930 = vmatprep.subr.bf16.mxu0 0
        %2931 = vmatpush1.bf16.msra.mxu0 0
        %2932 = vmatprep.subr.bf16.mxu0 0
        %2933 = vmatpush1.bf16.msra.mxu0 0
        %2934 = vmatprep.subr.bf16.mxu0 0
        %2935 = vmatpush1.bf16.msra.mxu0 0
        %2936 = vmatprep.subr.bf16.mxu0 0
        %2937 = vmatpush1.bf16.msra.mxu0 0
        %2938 = vmatprep.subr.bf16.mxu0 0
        %2939 = vmatpush1.bf16.msra.mxu0 0
        %2940 = vmatprep.subr.bf16.mxu0 0
        %2941 = vmatpush1.bf16.msra.mxu0 0
        %2942 = vmatprep.subr.bf16.mxu0 0
        %2943 = vmatpush1.bf16.msra.mxu0 0
        %2944 = vmatprep.subr.bf16.mxu0 0
        %2945 = vmatpush1.bf16.msra.mxu0 0
        %2946 = vmatprep.subr.bf16.mxu0 0
        %2947 = vmatpush1.bf16.msra.mxu0 0
        %2948 = vmatprep.subr.bf16.mxu0 0
        %2949 = vmatpush1.bf16.msra.mxu0 0
        %2950 = vmatprep.subr.bf16.mxu0 0
        %2951 = vmatpush1.bf16.msra.mxu0 0
        %2952 = vmatprep.subr.bf16.mxu0 0
        %2953 = vmatpush1.bf16.msra.mxu0 0
        %2954 = vmatprep.mubr.bf16.mxu0 0
        %2955 = vmatmul.mubr.bf16.gmra.mrb[0].mxu0 %v2917
        %v2956 = vpop.f32.mrb[0].mxu0
        %v2957 = vadd.f32 %v2914, %v2956
        %v2958 = vpop.f32.mrb[0].mxu0
        %v2959 = vpop.f32.mrb[0].mxu0
        %v2960 = vadd.f32 %v2914, %v2959
        %v2961 = vpop.f32.mrb[0].mxu0
        %2962 = vmatprep.mubr.bf16.mxu0 0
        %2963 = vmatmul.mubr.bf16.gmra.mrb[0].mxu0 %v2920
        %v2964 = vpop.f32.mrb[0].mxu0
        %v2965 = vadd.f32 %v2914, %v2964
        %v2966 = vpop.f32.mrb[0].mxu0
        %v2967 = vpop.f32.mrb[0].mxu0
        %v2968 = vadd.f32 %v2914, %v2967
        %v2969 = vpop.f32.mrb[0].mxu0
        %2970 = vdwg.mxu0
        %v2971 = vmul.f32 %v2957, 0.5
        %v2972 = vmul.f32 %v2960, 0.5
        %v2973 = vmul.f32 %v2965, 0.5
        %v2974 = vmul.f32 %v2968, 0.5
        %v2975 = vmul.f32 %v2957, 0.044715
        %v2976 = vmul.f32 %v2960, 0.044715
        %v2977 = vmul.f32 %v2965, 0.044715
        %v2978 = vmul.f32 %v2968, 0.044715
        %v2979 = vmul.f32 %v2975, %v2957
        %v2980 = vmul.f32 %v2976, %v2960
        %v2981 = vmul.f32 %v2977, %v2965
        %v2982 = vmul.f32 %v2978, %v2968
        %v2983 = vmul.f32 %v2979, %v2957
        %v2984 = vmul.f32 %v2980, %v2960
        %v2985 = vmul.f32 %v2981, %v2965
        %v2986 = vmul.f32 %v2982, %v2968
        %v2987 = vadd.f32 %v2957, %v2983
        %v2988 = vadd.f32 %v2960, %v2984
        %v2989 = vadd.f32 %v2965, %v2985
        %v2990 = vadd.f32 %v2968, %v2986
        %v2991 = vmul.f32 %v2987, 0.7978846
        %v2992 = vmul.f32 %v2988, 0.7978846
        %v2993 = vmul.f32 %v2989, 0.7978846
        %v2994 = vmul.f32 %v2990, 0.7978846
        %v2995 = vtanh.pop %v2991
        %v2996 = vtanh.pop %v2992
        %v2997 = vtanh.pop %v2993
        %v2998 = vtanh.pop %v2994
        %v2999 = vadd.f32 %v2995, 1.0
        %v3000 = vadd.f32 %v2996, 1.0
        %v3001 = vadd.f32 %v2997, 1.0
        %v3002 = vadd.f32 %v2998, 1.0
        %v3003 = vmul.f32 %v2971, %v2999
        %v3004 = vmul.f32 %v2972, %v3000
        %v3005 = vmul.f32 %v2973, %v3001
        %v3006 = vmul.f32 %v2974, %v3002
        %v3007 = vpack.c.bf16 %v3004, %v3003
        %v3008 = vpack.c.bf16 %v3006, %v3005
        %v3009 = vpack.c.bf16 %v1572, %v1571
        %v3010 = vpack.c.bf16 %v1574, %v1573
        %v3011 = vpack.c.bf16 %v1576, %v1575
        %v3012 = vpack.c.bf16 %v1578, %v1577
        %v3013 = vpack.c.bf16 %v1580, %v1579
        %v3014 = vpack.c.bf16 %v1582, %v1581
        %v3015 = vpack.c.bf16 %v1584, %v1583
        %v3016 = vpack.c.bf16 %v1586, %v1585
        %v3018 = vlaneseq
        %v3019 = vshrl.u32 %v3018, 7
        %v3020 = vsub.s32 0, %v3019
        %v3021 = vrot.slane %v1587, %v3020
        %3023 = vmatprep.subr.bf16.mxu0 0
        %3024 = vmatpush1.bf16.msra.mxu0 %v3009
        %3025 = vmatprep.subr.bf16.mxu0 0
        %3026 = vmatpush1.bf16.msra.mxu0 %v3010
        %3027 = vmatprep.subr.bf16.mxu0 0
        %3028 = vmatpush1.bf16.msra.mxu0 %v3011
        %3029 = vmatprep.subr.bf16.mxu0 0
        %3030 = vmatpush1.bf16.msra.mxu0 %v3012
        %3031 = vmatprep.subr.bf16.mxu0 0
        %3032 = vmatpush1.bf16.msra.mxu0 %v3013
        %3033 = vmatprep.subr.bf16.mxu0 0
        %3034 = vmatpush1.bf16.msra.mxu0 %v3014
        %3035 = vmatprep.subr.bf16.mxu0 0
        %3036 = vmatpush1.bf16.msra.mxu0 %v3015
        %3037 = vmatprep.subr.bf16.mxu0 0
        %3038 = vmatpush1.bf16.msra.mxu0 %v3016
        %3039 = vmatprep.subr.bf16.mxu0 0
        %3040 = vmatpush1.bf16.msra.mxu0 0
        %3041 = vmatprep.subr.bf16.mxu0 0
        %3042 = vmatpush1.bf16.msra.mxu0 0
        %3043 = vmatprep.subr.bf16.mxu0 0
        %3044 = vmatpush1.bf16.msra.mxu0 0
        %3045 = vmatprep.subr.bf16.mxu0 0
        %3046 = vmatpush1.bf16.msra.mxu0 0
        %3047 = vmatprep.subr.bf16.mxu0 0
        %3048 = vmatpush1.bf16.msra.mxu0 0
        %3049 = vmatprep.subr.bf16.mxu0 0
        %3050 = vmatpush1.bf16.msra.mxu0 0
        %3051 = vmatprep.subr.bf16.mxu0 0
        %3052 = vmatpush1.bf16.msra.mxu0 0
        %3053 = vmatprep.subr.bf16.mxu0 0
        %3054 = vmatpush1.bf16.msra.mxu0 0
        %3055 = vmatprep.mubr.bf16.mxu0 0
        %3056 = vmatmul.mubr.bf16.gmra.mrb[0].mxu0 %v3007
        %v3057 = vpop.f32.mrb[0].mxu0
        %v3058 = vadd.f32 %v3021, %v3057
        %v3059 = vpop.f32.mrb[0].mxu0
        %v3060 = vpop.f32.mrb[0].mxu0
        %v3061 = vadd.f32 %v3021, %v3060
        %v3062 = vpop.f32.mrb[0].mxu0
        %3063 = vmatprep.mubr.bf16.mxu0 0
        %3064 = vmatmul.mubr.bf16.gmra.mrb[0].mxu0 %v3008
        %v3065 = vpop.f32.mrb[0].mxu0
        %v3066 = vadd.f32 %v3021, %v3065
        %v3067 = vpop.f32.mrb[0].mxu0
        %v3068 = vpop.f32.mrb[0].mxu0
        %v3069 = vadd.f32 %v3021, %v3068
        %v3070 = vpop.f32.mrb[0].mxu0
        %3071 = vdwg.mxu0
        %v3072 = vadd.f32 %v2902, %v3058
        %v3073 = vadd.f32 %v2903, %v3061
        %v3074 = vadd.f32 %v2904, %v3066
        %v3075 = vadd.f32 %v2905, %v3069
        %v3076 = vsel %vm1676, %v3072, 0.0
        %3077 = vadd.xlane.f32.xlu0 %v3076
        %v3078 = vpop.xlane.xlu0 %3077
        %v3079 = vsel %vm1676, %v3073, 0.0
        %3080 = vadd.xlane.f32.xlu0 %v3079
        %v3081 = vpop.xlane.xlu0 %3080
        %v3082 = vsel %vm1676, %v3074, 0.0
        %3083 = vadd.xlane.f32.xlu0 %v3082
        %v3084 = vpop.xlane.xlu0 %3083
        %v3085 = vsel %vm1676, %v3075, 0.0
        %3086 = vadd.xlane.f32.xlu0 %v3085
        %v3087 = vpop.xlane.xlu0 %3086
        %v3088 = vmul.f32 %v3078, %v2845
        %v3089 = vmul.f32 %v3081, %v2845
        %v3090 = vmul.f32 %v3084, %v2845
        %v3091 = vmul.f32 %v3087, %v2845
        %v3092 = vsub.f32 %v3072, %v3088
        %v3093 = vsub.f32 %v3073, %v3089
        %v3094 = vsub.f32 %v3074, %v3090
        %v3095 = vsub.f32 %v3075, %v3091
        %v3096 = vmul.f32 %v3092, %v3092
        %v3097 = vmul.f32 %v3093, %v3093
        %v3098 = vmul.f32 %v3094, %v3094
        %v3099 = vmul.f32 %v3095, %v3095
        %v3100 = vsel %vm1676, %v3096, 0.0
        %3101 = vadd.xlane.f32.xlu0 %v3100
        %v3102 = vpop.xlane.xlu0 %3101
        %v3103 = vsel %vm1676, %v3097, 0.0
        %3104 = vadd.xlane.f32.xlu0 %v3103
        %v3105 = vpop.xlane.xlu0 %3104
        %v3106 = vsel %vm1676, %v3098, 0.0
        %3107 = vadd.xlane.f32.xlu0 %v3106
        %v3108 = vpop.xlane.xlu0 %3107
        %v3109 = vsel %vm1676, %v3099, 0.0
        %3110 = vadd.xlane.f32.xlu0 %v3109
        %v3111 = vpop.xlane.xlu0 %3110
        %v3112 = vmul.f32 %v3102, %v2845
        %v3113 = vmul.f32 %v3105, %v2845
        %v3114 = vmul.f32 %v3108, %v2845
        %v3115 = vmul.f32 %v3111, %v2845
        %v3116 = vadd.f32 %v3112, 1e-05
        %v3117 = vadd.f32 %v3113, 1e-05
        %v3118 = vadd.f32 %v3114, 1e-05
        %v3119 = vadd.f32 %v3115, 1e-05
        %v3120 = vrsqrt.pop %v3116
        %v3121 = vrsqrt.pop %v3117
        %v3122 = vrsqrt.pop %v3118
        %v3123 = vrsqrt.pop %v3119
        %v3124 = vmul.f32 %v3092, %v3120
        %v3125 = vmul.f32 %v3093, %v3121
        %v3126 = vmul.f32 %v3094, %v3122
        %v3127 = vmul.f32 %v3095, %v3123
        %v3129 = vlaneseq
        %v3130 = vshrl.u32 %v3129, 7
        %v3131 = vsub.s32 0, %v3130
        %v3132 = vrot.slane %v1588, %v3131
        %v3134 = vmul.f32 %v3124, %v3132
        %v3135 = vmul.f32 %v3125, %v3132
        %v3136 = vmul.f32 %v3126, %v3132
        %v3137 = vmul.f32 %v3127, %v3132
        %v3139 = vlaneseq
        %v3140 = vshrl.u32 %v3139, 7
        %v3141 = vsub.s32 0, %v3140
        %v3142 = vrot.slane %v1589, %v3141
        %v3144 = vadd.f32 %v3134, %v3142
        %v3145 = vadd.f32 %v3135, %v3142
        %v3146 = vadd.f32 %v3136, %v3142
        %v3147 = vadd.f32 %v3137, %v3142
        %v3148 = vld [vmem:[%s7] sm:$0xff]
        %v3149 = vld [vmem:[%s7 + $0x8] sm:$0xff]
        %v3150 = vpack.c.bf16 %v1661, %v1660
        %v3151 = vpack.c.bf16 %v1591, %v1590
        %v3152 = vpack.c.bf16 %v1593, %v1592
        %v3154 = vlaneseq
        %v3155 = vshrl.u32 %v3154, 7
        %v3156 = vsub.s32 0, %v3155
        %v3157 = vrot.slane %v1594, %v3156
        %v3160 = vsel %vm1676, %v3150, 0
        %3162 = vmatprep.subr.bf16.mxu0 0
        %3163 = vmatpush1.bf16.msra.mxu0 %v3151
        %3164 = vmatprep.subr.bf16.mxu0 0
        %3165 = vmatpush1.bf16.msra.mxu0 %v3152
        %3166 = vmatprep.subr.bf16.mxu0 0
        %3167 = vmatpush1.bf16.msra.mxu0 0
        %3168 = vmatprep.subr.bf16.mxu0 0
        %3169 = vmatpush1.bf16.msra.mxu0 0
        %3170 = vmatprep.subr.bf16.mxu0 0
        %3171 = vmatpush1.bf16.msra.mxu0 0
        %3172 = vmatprep.subr.bf16.mxu0 0
        %3173 = vmatpush1.bf16.msra.mxu0 0
        %3174 = vmatprep.subr.bf16.mxu0 0
        %3175 = vmatpush1.bf16.msra.mxu0 0
        %3176 = vmatprep.subr.bf16.mxu0 0
        %3177 = vmatpush1.bf16.msra.mxu0 0
        %3178 = vmatprep.subr.bf16.mxu0 0
        %3179 = vmatpush1.bf16.msra.mxu0 0
        %3180 = vmatprep.subr.bf16.mxu0 0
        %3181 = vmatpush1.bf16.msra.mxu0 0
        %3182 = vmatprep.subr.bf16.mxu0 0
        %3183 = vmatpush1.bf16.msra.mxu0 0
        %3184 = vmatprep.subr.bf16.mxu0 0
        %3185 = vmatpush1.bf16.msra.mxu0 0
        %3186 = vmatprep.subr.bf16.mxu0 0
        %3187 = vmatpush1.bf16.msra.mxu0 0
        %3188 = vmatprep.subr.bf16.mxu0 0
        %3189 = vmatpush1.bf16.msra.mxu0 0
        %3190 = vmatprep.subr.bf16.mxu0 0
        %3191 = vmatpush1.bf16.msra.mxu0 0
        %3192 = vmatprep.subr.bf16.mxu0 0
        %3193 = vmatpush1.bf16.msra.mxu0 0
        %3194 = vmatprep.mubr.bf16.mxu0 0
        %3195 = vmatmul.mubr.bf16.gmra.mrb[0].mxu0 %v3160
        %v3196 = vpop.f32.mrb[0].mxu0
        %v3197 = vadd.f32 %v3157, %v3196
        %v3198 = vpop.f32.mrb[0].mxu0
        %v3199 = vpop.f32.mrb[0].mxu0
        %v3200 = vadd.f32 %v3157, %v3199
        %v3201 = vpop.f32.mrb[0].mxu0
        %3202 = vdwg.mxu0
        %v3203 = vmul.f32 %v3197, 0.35355338
        %v3204 = vmul.f32 %v3200, 0.35355338
        %v3205 = vpack.c.bf16 %v3145, %v3144
        %v3206 = vpack.c.bf16 %v3147, %v3146
        %v3207 = vpack.c.bf16 %v1596, %v1595
        %v3208 = vpack.c.bf16 %v1598, %v1597
        %v3210 = vlaneseq
        %v3211 = vshrl.u32 %v3210, 7
        %v3212 = vsub.s32 0, %v3211
        %v3213 = vrot.slane %v1599, %v3212
        %v3216 = vsel %vm1676, %v3205, 0
        %v3219 = vsel %vm1676, %v3206, 0
        %3221 = vmatprep.subr.bf16.mxu0 0
        %3222 = vmatpush1.bf16.msra.mxu0 %v3207
        %3223 = vmatprep.subr.bf16.mxu0 0
        %3224 = vmatpush1.bf16.msra.mxu0 %v3208
        %3225 = vmatprep.subr.bf16.mxu0 0
        %3226 = vmatpush1.bf16.msra.mxu0 0
        %3227 = vmatprep.subr.bf16.mxu0 0
        %3228 = vmatpush1.bf16.msra.mxu0 0
        %3229 = vmatprep.subr.bf16.mxu0 0
        %3230 = vmatpush1.bf16.msra.mxu0 0
        %3231 = vmatprep.subr.bf16.mxu0 0
        %3232 = vmatpush1.bf16.msra.mxu0 0
        %3233 = vmatprep.subr.bf16.mxu0 0
        %3234 = vmatpush1.bf16.msra.mxu0 0
        %3235 = vmatprep.subr.bf16.mxu0 0
        %3236 = vmatpush1.bf16.msra.mxu0 0
        %3237 = vmatprep.subr.bf16.mxu0 0
        %3238 = vmatpush1.bf16.msra.mxu0 0
        %3239 = vmatprep.subr.bf16.mxu0 0
        %3240 = vmatpush1.bf16.msra.mxu0 0
        %3241 = vmatprep.subr.bf16.mxu0 0
        %3242 = vmatpush1.bf16.msra.mxu0 0
        %3243 = vmatprep.subr.bf16.mxu0 0
        %3244 = vmatpush1.bf16.msra.mxu0 0
        %3245 = vmatprep.subr.bf16.mxu0 0
        %3246 = vmatpush1.bf16.msra.mxu0 0
        %3247 = vmatprep.subr.bf16.mxu0 0
        %3248 = vmatpush1.bf16.msra.mxu0 0
        %3249 = vmatprep.subr.bf16.mxu0 0
        %3250 = vmatpush1.bf16.msra.mxu0 0
        %3251 = vmatprep.subr.bf16.mxu0 0
        %3252 = vmatpush1.bf16.msra.mxu0 0
        %3253 = vmatprep.mubr.bf16.mxu0 0
        %3254 = vmatmul.mubr.bf16.gmra.mrb[0].mxu0 %v3216
        %v3255 = vpop.f32.mrb[0].mxu0
        %v3256 = vadd.f32 %v3213, %v3255
        %v3257 = vpop.f32.mrb[0].mxu0
        %v3258 = vpop.f32.mrb[0].mxu0
        %v3259 = vadd.f32 %v3213, %v3258
        %v3260 = vpop.f32.mrb[0].mxu0
        %3261 = vmatprep.mubr.bf16.mxu0 0
        %3262 = vmatmul.mubr.bf16.gmra.mrb[0].mxu0 %v3219
        %v3263 = vpop.f32.mrb[0].mxu0
        %v3264 = vadd.f32 %v3213, %v3263
        %v3265 = vpop.f32.mrb[0].mxu0
        %v3266 = vpop.f32.mrb[0].mxu0
        %v3267 = vadd.f32 %v3213, %v3266
        %v3268 = vpop.f32.mrb[0].mxu0
        %3269 = vdwg.mxu0
        %v3270 = vpack.c.bf16 %v1601, %v1600
        %v3271 = vpack.c.bf16 %v1603, %v1602
        %v3273 = vlaneseq
        %v3274 = vshrl.u32 %v3273, 7
        %v3275 = vsub.s32 0, %v3274
        %v3276 = vrot.slane %v1604, %v3275
        %3278 = vmatprep.subr.bf16.mxu0 0
        %3279 = vmatpush1.bf16.msra.mxu0 %v3270
        %3280 = vmatprep.subr.bf16.mxu0 0
        %3281 = vmatpush1.bf16.msra.mxu0 %v3271
        %3282 = vmatprep.subr.bf16.mxu0 0
        %3283 = vmatpush1.bf16.msra.mxu0 0
        %3284 = vmatprep.subr.bf16.mxu0 0
        %3285 = vmatpush1.bf16.msra.mxu0 0
        %3286 = vmatprep.subr.bf16.mxu0 0
        %3287 = vmatpush1.bf16.msra.mxu0 0
        %3288 = vmatprep.subr.bf16.mxu0 0
        %3289 = vmatpush1.bf16.msra.mxu0 0
        %3290 = vmatprep.subr.bf16.mxu0 0
        %3291 = vmatpush1.bf16.msra.mxu0 0
        %3292 = vmatprep.subr.bf16.mxu0 0
        %3293 = vmatpush1.bf16.msra.mxu0 0
        %3294 = vmatprep.subr.bf16.mxu0 0
        %3295 = vmatpush1.bf16.msra.mxu0 0
        %3296 = vmatprep.subr.bf16.mxu0 0
        %3297 = vmatpush1.bf16.msra.mxu0 0
        %3298 = vmatprep.subr.bf16.mxu0 0
        %3299 = vmatpush1.bf16.msra.mxu0 0
        %3300 = vmatprep.subr.bf16.mxu0 0
        %3301 = vmatpush1.bf16.msra.mxu0 0
        %3302 = vmatprep.subr.bf16.mxu0 0
        %3303 = vmatpush1.bf16.msra.mxu0 0
        %3304 = vmatprep.subr.bf16.mxu0 0
        %3305 = vmatpush1.bf16.msra.mxu0 0
        %3306 = vmatprep.subr.bf16.mxu0 0
        %3307 = vmatpush1.bf16.msra.mxu0 0
        %3308 = vmatprep.subr.bf16.mxu0 0
        %3309 = vmatpush1.bf16.msra.mxu0 0
        %3310 = vmatprep.mubr.bf16.mxu0 0
        %3311 = vmatmul.mubr.bf16.gmra.mrb[0].mxu0 %v3216
        %v3312 = vpop.f32.mrb[0].mxu0
        %v3313 = vadd.f32 %v3276, %v3312
        %v3314 = vpop.f32.mrb[0].mxu0
        %v3315 = vpop.f32.mrb[0].mxu0
        %v3316 = vadd.f32 %v3276, %v3315
        %v3317 = vpop.f32.mrb[0].mxu0
        %3318 = vmatprep.mubr.bf16.mxu0 0
        %3319 = vmatmul.mubr.bf16.gmra.mrb[0].mxu0 %v3219
        %v3320 = vpop.f32.mrb[0].mxu0
        %v3321 = vadd.f32 %v3276, %v3320
        %v3322 = vpop.f32.mrb[0].mxu0
        %v3323 = vpop.f32.mrb[0].mxu0
        %v3324 = vadd.f32 %v3276, %v3323
        %v3325 = vpop.f32.mrb[0].mxu0
        %3326 = vdwg.mxu0
        %3327 = vxpose.xlu0.b32.start [1/16] %v3256, 128
        %3328 = vxpose.xlu0.b32.cont [2/16] %v3259, 128
        %3329 = vxpose.xlu0.b32.cont [3/16] %v3264, 128
        %3330 = vxpose.xlu0.b32.cont [4/16] %v3267, 128
        %3331 = vxpose.xlu0.b32.cont [5/16] 0.0, 128
        %3332 = vxpose.xlu0.b32.cont [6/16] 0.0, 128
        %3333 = vxpose.xlu0.b32.cont [7/16] 0.0, 128
        %3334 = vxpose.xlu0.b32.cont [8/16] 0.0, 128
        %3335 = vxpose.xlu0.b32.cont [9/16] 0.0, 128
        %3336 = vxpose.xlu0.b32.cont [10/16] 0.0, 128
        %3337 = vxpose.xlu0.b32.cont [11/16] 0.0, 128
        %3338 = vxpose.xlu0.b32.cont [12/16] 0.0, 128
        %3339 = vxpose.xlu0.b32.cont [13/16] 0.0, 128
        %3340 = vxpose.xlu0.b32.cont [14/16] 0.0, 128
        %3341 = vxpose.xlu0.b32.cont [15/16] 0.0, 128
        %3342 = vxpose.xlu0.b32.end [16/16] 0.0, 128
        %v3343 = vpop.trf.xlu0
        %v3344 = vpop.trf.xlu0
        %v3345 = vpop.trf.xlu0
        %v3346 = vpop.trf.xlu0
        %v3347 = vpop.trf.xlu0
        %v3348 = vpop.trf.xlu0
        %v3349 = vpop.trf.xlu0
        %v3350 = vpop.trf.xlu0
        %v3351 = vpop.trf.xlu0
        %v3352 = vpop.trf.xlu0
        %v3353 = vpop.trf.xlu0
        %v3354 = vpop.trf.xlu0
        %v3355 = vpop.trf.xlu0
        %v3356 = vpop.trf.xlu0
        %v3357 = vpop.trf.xlu0
        %v3358 = vpop.trf.xlu0
        %v3360 = vlaneseq
        %v3361 = vshrl.u32 %v3360, 7
        %v3362 = vsub.s32 0, %v3361
        %v3363 = vrot.slane %v1609, %v3362
        %v3365 = vadd.f32 %v3363, 0.0
        %v3366 = vpack.c.bf16 %v3204, %v3203
        %v3367 = vpack.c.bf16 %v3343, %v3343
        %v3369 = vsel %vm1892, %v3366, 0
        %v3372 = vsel %vm1899, %v3367, 0
        %3374 = vmatprep.subr.bf16.mxu0 0
        %3375 = vmatpush1.bf16.msra.mxu0 %v3372
        %3376 = vmatprep.subr.bf16.mxu0 0
        %3377 = vmatpush1.bf16.msra.mxu0 0
        %3378 = vmatprep.subr.bf16.mxu0 0
        %3379 = vmatpush1.bf16.msra.mxu0 0
        %3380 = vmatprep.subr.bf16.mxu0 0
        %3381 = vmatpush1.bf16.msra.mxu0 0
        %3382 = vmatprep.subr.bf16.mxu0 0
        %3383 = vmatpush1.bf16.msra.mxu0 0
        %3384 = vmatprep.subr.bf16.mxu0 0
        %3385 = vmatpush1.bf16.msra.mxu0 0
        %3386 = vmatprep.subr.bf16.mxu0 0
        %3387 = vmatpush1.bf16.msra.mxu0 0
        %3388 = vmatprep.subr.bf16.mxu0 0
        %3389 = vmatpush1.bf16.msra.mxu0 0
        %3390 = vmatprep.subr.bf16.mxu0 0
        %3391 = vmatpush1.bf16.msra.mxu0 0
        %3392 = vmatprep.subr.bf16.mxu0 0
        %3393 = vmatpush1.bf16.msra.mxu0 0
        %3394 = vmatprep.subr.bf16.mxu0 0
        %3395 = vmatpush1.bf16.msra.mxu0 0
        %3396 = vmatprep.subr.bf16.mxu0 0
        %3397 = vmatpush1.bf16.msra.mxu0 0
        %3398 = vmatprep.subr.bf16.mxu0 0
        %3399 = vmatpush1.bf16.msra.mxu0 0
        %3400 = vmatprep.subr.bf16.mxu0 0
        %3401 = vmatpush1.bf16.msra.mxu0 0
        %3402 = vmatprep.subr.bf16.mxu0 0
        %3403 = vmatpush1.bf16.msra.mxu0 0
        %3404 = vmatprep.subr.bf16.mxu0 0
        %3405 = vmatpush1.bf16.msra.mxu0 0
        %3406 = vmatprep.mubr.bf16.mxu0 0
        %3407 = vmatmul.mubr.bf16.gmra.mrb[0].mxu0 %v3369
        %v3408 = vpop.f32.mrb[0].mxu0
        %v3409 = vadd.f32 %v3148, %v3408
        %v3410 = vpop.f32.mrb[0].mxu0
        %v3411 = vpop.f32.mrb[0].mxu0
        %v3412 = vadd.f32 %v3149, %v3411
        %v3413 = vpop.f32.mrb[0].mxu0
        %3414 = vdwg.mxu0
        %v3415 = vsel %vm1676, %v3409, -inf
        %3416 = vmax.xlane.f32.xlu0 %v3415
        %v3417 = vpop.xlane.xlu0 %3416
        %v3418 = vsel %vm1676, %v3412, -inf
        %3419 = vmax.xlane.f32.xlu0 %v3418
        %v3420 = vpop.xlane.xlu0 %3419
        %v3421 = vsub.f32 %v3409, %v3417
        %v3422 = vsub.f32 %v3412, %v3420
        %v3423 = vmul.f32 %v3421, 1.442695
        %v3424 = vpow.pop %v3423
        %v3425 = vmul.f32 %v3422, 1.442695
        %v3426 = vpow.pop %v3425
        %v3427 = vsel %vm1676, %v3424, 0.0
        %3428 = vadd.xlane.f32.xlu0 %v3427
        %v3429 = vpop.xlane.xlu0 %3428
        %v3430 = vsel %vm1676, %v3426, 0.0
        %3431 = vadd.xlane.f32.xlu0 %v3430
        %v3432 = vpop.xlane.xlu0 %3431
        %v3433 = vrcp.pop %v3429
        %v3434 = vrcp.pop %v3432
        %v3435 = vmul.f32 %v3424, %v3433
        %v3436 = vmul.f32 %v3426, %v3434
        %v3437 = vpack.c.bf16 %v3436, %v3435
        %v3438 = vpack.c.bf16 %v3316, %v3313
        %v3439 = vpack.c.bf16 %v3324, %v3321
        %v3441 = vsel %vm1676, %v3437, 0
        %3443 = vmatprep.subr.bf16.mxu0 0
        %3444 = vmatpush1.bf16.msra.mxu0 %v3438
        %3445 = vmatprep.subr.bf16.mxu0 0
        %3446 = vmatpush1.bf16.msra.mxu0 %v3439
        %3447 = vmatprep.subr.bf16.mxu0 0
        %3448 = vmatpush1.bf16.msra.mxu0 0
        %3449 = vmatprep.subr.bf16.mxu0 0
        %3450 = vmatpush1.bf16.msra.mxu0 0
        %3451 = vmatprep.subr.bf16.mxu0 0
        %3452 = vmatpush1.bf16.msra.mxu0 0
        %3453 = vmatprep.subr.bf16.mxu0 0
        %3454 = vmatpush1.bf16.msra.mxu0 0
        %3455 = vmatprep.subr.bf16.mxu0 0
        %3456 = vmatpush1.bf16.msra.mxu0 0
        %3457 = vmatprep.subr.bf16.mxu0 0
        %3458 = vmatpush1.bf16.msra.mxu0 0
        %3459 = vmatprep.subr.bf16.mxu0 0
        %3460 = vmatpush1.bf16.msra.mxu0 0
        %3461 = vmatprep.subr.bf16.mxu0 0
        %3462 = vmatpush1.bf16.msra.mxu0 0
        %3463 = vmatprep.subr.bf16.mxu0 0
        %3464 = vmatpush1.bf16.msra.mxu0 0
        %3465 = vmatprep.subr.bf16.mxu0 0
        %3466 = vmatpush1.bf16.msra.mxu0 0
        %3467 = vmatprep.subr.bf16.mxu0 0
        %3468 = vmatpush1.bf16.msra.mxu0 0
        %3469 = vmatprep.subr.bf16.mxu0 0
        %3470 = vmatpush1.bf16.msra.mxu0 0
        %3471 = vmatprep.subr.bf16.mxu0 0
        %3472 = vmatpush1.bf16.msra.mxu0 0
        %3473 = vmatprep.subr.bf16.mxu0 0
        %3474 = vmatpush1.bf16.msra.mxu0 0
        %3475 = vmatprep.mubr.bf16.mxu0 0
        %3476 = vmatmul.mubr.bf16.gmra.mrb[0].mxu0 %v3441
        %v3477 = vpop.f32.mrb[0].mxu0
        %v3478 = vadd.f32 0.0, %v3477
        %v3479 = vpop.f32.mrb[0].mxu0
        %v3480 = vpop.f32.mrb[0].mxu0
        %v3481 = vadd.f32 0.0, %v3480
        %v3482 = vpop.f32.mrb[0].mxu0
        %3483 = vdwg.mxu0
        %v3484 = vpack.c.bf16 %v3481, %v3478
        %v3485 = vpack.c.bf16 %v1605, %v1605
        %v3487 = vsel %vm1892, %v3484, 0
        %v3490 = vsel %vm1899, %v3485, 0
        %3492 = vmatprep.subr.bf16.mxu0 0
        %3493 = vmatpush1.bf16.msra.mxu0 %v3490
        %3494 = vmatprep.subr.bf16.mxu0 0
        %3495 = vmatpush1.bf16.msra.mxu0 0
        %3496 = vmatprep.subr.bf16.mxu0 0
        %3497 = vmatpush1.bf16.msra.mxu0 0
        %3498 = vmatprep.subr.bf16.mxu0 0
        %3499 = vmatpush1.bf16.msra.mxu0 0
        %3500 = vmatprep.subr.bf16.mxu0 0
        %3501 = vmatpush1.bf16.msra.mxu0 0
        %3502 = vmatprep.subr.bf16.mxu0 0
        %3503 = vmatpush1.bf16.msra.mxu0 0
        %3504 = vmatprep.subr.bf16.mxu0 0
        %3505 = vmatpush1.bf16.msra.mxu0 0
        %3506 = vmatprep.subr.bf16.mxu0 0
        %3507 = vmatpush1.bf16.msra.mxu0 0
        %3508 = vmatprep.subr.bf16.mxu0 0
        %3509 = vmatpush1.bf16.msra.mxu0 0
        %3510 = vmatprep.subr.bf16.mxu0 0
        %3511 = vmatpush1.bf16.msra.mxu0 0
        %3512 = vmatprep.subr.bf16.mxu0 0
        %3513 = vmatpush1.bf16.msra.mxu0 0
        %3514 = vmatprep.subr.bf16.mxu0 0
        %3515 = vmatpush1.bf16.msra.mxu0 0
        %3516 = vmatprep.subr.bf16.mxu0 0
        %3517 = vmatpush1.bf16.msra.mxu0 0
        %3518 = vmatprep.subr.bf16.mxu0 0
        %3519 = vmatpush1.bf16.msra.mxu0 0
        %3520 = vmatprep.subr.bf16.mxu0 0
        %3521 = vmatpush1.bf16.msra.mxu0 0
        %3522 = vmatprep.subr.bf16.mxu0 0
        %3523 = vmatpush1.bf16.msra.mxu0 0
        %3524 = vmatprep.mubr.bf16.mxu0 0
        %3525 = vmatmul.mubr.bf16.gmra.mrb[0].mxu0 %v3487
        %v3526 = vpop.f32.mrb[0].mxu0
        %v3527 = vadd.f32 0.0, %v3526
        %v3528 = vpop.f32.mrb[0].mxu0
        %v3529 = vpop.f32.mrb[0].mxu0
        %v3530 = vadd.f32 0.0, %v3529
        %v3531 = vpop.f32.mrb[0].mxu0
        %3532 = vdwg.mxu0
        %v3533 = vadd.f32 %v3365, %v3527
        %v3534 = vadd.f32 %v3365, %v3530
        %v3535 = vpack.c.bf16 %v3344, %v3344
        %3537 = vrot.lane.b32.xlu0 %v3366, 120
        %v3538 = vpop.permute.xlu0 %3537
        %v3540 = vsel %vm1892, %v3538, 0
        %v3543 = vsel %vm1899, %v3535, 0
        %3545 = vmatprep.subr.bf16.mxu0 0
        %3546 = vmatpush1.bf16.msra.mxu0 %v3543
        %3547 = vmatprep.subr.bf16.mxu0 0
        %3548 = vmatpush1.bf16.msra.mxu0 0
        %3549 = vmatprep.subr.bf16.mxu0 0
        %3550 = vmatpush1.bf16.msra.mxu0 0
        %3551 = vmatprep.subr.bf16.mxu0 0
        %3552 = vmatpush1.bf16.msra.mxu0 0
        %3553 = vmatprep.subr.bf16.mxu0 0
        %3554 = vmatpush1.bf16.msra.mxu0 0
        %3555 = vmatprep.subr.bf16.mxu0 0
        %3556 = vmatpush1.bf16.msra.mxu0 0
        %3557 = vmatprep.subr.bf16.mxu0 0
        %3558 = vmatpush1.bf16.msra.mxu0 0
        %3559 = vmatprep.subr.bf16.mxu0 0
        %3560 = vmatpush1.bf16.msra.mxu0 0
        %3561 = vmatprep.subr.bf16.mxu0 0
        %3562 = vmatpush1.bf16.msra.mxu0 0
        %3563 = vmatprep.subr.bf16.mxu0 0
        %3564 = vmatpush1.bf16.msra.mxu0 0
        %3565 = vmatprep.subr.bf16.mxu0 0
        %3566 = vmatpush1.bf16.msra.mxu0 0
        %3567 = vmatprep.subr.bf16.mxu0 0
        %3568 = vmatpush1.bf16.msra.mxu0 0
        %3569 = vmatprep.subr.bf16.mxu0 0
        %3570 = vmatpush1.bf16.msra.mxu0 0
        %3571 = vmatprep.subr.bf16.mxu0 0
        %3572 = vmatpush1.bf16.msra.mxu0 0
        %3573 = vmatprep.subr.bf16.mxu0 0
        %3574 = vmatpush1.bf16.msra.mxu0 0
        %3575 = vmatprep.subr.bf16.mxu0 0
        %3576 = vmatpush1.bf16.msra.mxu0 0
        %3577 = vmatprep.mubr.bf16.mxu0 0
        %3578 = vmatmul.mubr.bf16.gmra.mrb[0].mxu0 %v3540
        %v3579 = vpop.f32.mrb[0].mxu0
        %v3580 = vadd.f32 %v3148, %v3579
        %v3581 = vpop.f32.mrb[0].mxu0
        %v3582 = vpop.f32.mrb[0].mxu0
        %v3583 = vadd.f32 %v3149, %v3582
        %v3584 = vpop.f32.mrb[0].mxu0
        %3585 = vdwg.mxu0
        %v3586 = vsel %vm1676, %v3580, -inf
        %3587 = vmax.xlane.f32.xlu0 %v3586
        %v3588 = vpop.xlane.xlu0 %3587
        %v3589 = vsel %vm1676, %v3583, -inf
        %3590 = vmax.xlane.f32.xlu0 %v3589
        %v3591 = vpop.xlane.xlu0 %3590
        %v3592 = vsub.f32 %v3580, %v3588
        %v3593 = vsub.f32 %v3583, %v3591
        %v3594 = vmul.f32 %v3592, 1.442695
        %v3595 = vpow.pop %v3594
        %v3596 = vmul.f32 %v3593, 1.442695
        %v3597 = vpow.pop %v3596
        %v3598 = vsel %vm1676, %v3595, 0.0
        %3599 = vadd.xlane.f32.xlu0 %v3598
        %v3600 = vpop.xlane.xlu0 %3599
        %v3601 = vsel %vm1676, %v3597, 0.0
        %3602 = vadd.xlane.f32.xlu0 %v3601
        %v3603 = vpop.xlane.xlu0 %3602
        %v3604 = vrcp.pop %v3600
        %v3605 = vrcp.pop %v3603
        %v3606 = vmul.f32 %v3595, %v3604
        %v3607 = vmul.f32 %v3597, %v3605
        %v3608 = vpack.c.bf16 %v3607, %v3606
        %3611 = vrot.lane.b32.xlu0 %v3438, 120
        %v3612 = vpop.permute.xlu0 %3611
        %3613 = vrot.lane.b32.xlu0 %v3439, 120
        %v3614 = vpop.permute.xlu0 %3613
        %v3618 = vsel %vm1676, %v3608, 0
        %3620 = vmatprep.subr.bf16.mxu0 0
        %3621 = vmatpush1.bf16.msra.mxu0 %v3612
        %3622 = vmatprep.subr.bf16.mxu0 0
        %3623 = vmatpush1.bf16.msra.mxu0 %v3614
        %3624 = vmatprep.subr.bf16.mxu0 0
        %3625 = vmatpush1.bf16.msra.mxu0 0
        %3626 = vmatprep.subr.bf16.mxu0 0
        %3627 = vmatpush1.bf16.msra.mxu0 0
        %3628 = vmatprep.subr.bf16.mxu0 0
        %3629 = vmatpush1.bf16.msra.mxu0 0
        %3630 = vmatprep.subr.bf16.mxu0 0
        %3631 = vmatpush1.bf16.msra.mxu0 0
        %3632 = vmatprep.subr.bf16.mxu0 0
        %3633 = vmatpush1.bf16.msra.mxu0 0
        %3634 = vmatprep.subr.bf16.mxu0 0
        %3635 = vmatpush1.bf16.msra.mxu0 0
        %3636 = vmatprep.subr.bf16.mxu0 0
        %3637 = vmatpush1.bf16.msra.mxu0 0
        %3638 = vmatprep.subr.bf16.mxu0 0
        %3639 = vmatpush1.bf16.msra.mxu0 0
        %3640 = vmatprep.subr.bf16.mxu0 0
        %3641 = vmatpush1.bf16.msra.mxu0 0
        %3642 = vmatprep.subr.bf16.mxu0 0
        %3643 = vmatpush1.bf16.msra.mxu0 0
        %3644 = vmatprep.subr.bf16.mxu0 0
        %3645 = vmatpush1.bf16.msra.mxu0 0
        %3646 = vmatprep.subr.bf16.mxu0 0
        %3647 = vmatpush1.bf16.msra.mxu0 0
        %3648 = vmatprep.subr.bf16.mxu0 0
        %3649 = vmatpush1.bf16.msra.mxu0 0
        %3650 = vmatprep.subr.bf16.mxu0 0
        %3651 = vmatpush1.bf16.msra.mxu0 0
        %3652 = vmatprep.mubr.bf16.mxu0 0
        %3653 = vmatmul.mubr.bf16.gmra.mrb[0].mxu0 %v3618
        %v3654 = vpop.f32.mrb[0].mxu0
        %v3655 = vadd.f32 0.0, %v3654
        %v3656 = vpop.f32.mrb[0].mxu0
        %v3657 = vpop.f32.mrb[0].mxu0
        %v3658 = vadd.f32 0.0, %v3657
        %v3659 = vpop.f32.mrb[0].mxu0
        %3660 = vdwg.mxu0
        %v3661 = vpack.c.bf16 %v3658, %v3655
        %v3662 = vpack.c.bf16 %v1606, %v1606
        %v3664 = vsel %vm1892, %v3661, 0
        %v3667 = vsel %vm1899, %v3662, 0
        %3669 = vmatprep.subr.bf16.mxu0 0
        %3670 = vmatpush1.bf16.msra.mxu0 %v3667
        %3671 = vmatprep.subr.bf16.mxu0 0
        %3672 = vmatpush1.bf16.msra.mxu0 0
        %3673 = vmatprep.subr.bf16.mxu0 0
        %3674 = vmatpush1.bf16.msra.mxu0 0
        %3675 = vmatprep.subr.bf16.mxu0 0
        %3676 = vmatpush1.bf16.msra.mxu0 0
        %3677 = vmatprep.subr.bf16.mxu0 0
        %3678 = vmatpush1.bf16.msra.mxu0 0
        %3679 = vmatprep.subr.bf16.mxu0 0
        %3680 = vmatpush1.bf16.msra.mxu0 0
        %3681 = vmatprep.subr.bf16.mxu0 0
        %3682 = vmatpush1.bf16.msra.mxu0 0
        %3683 = vmatprep.subr.bf16.mxu0 0
        %3684 = vmatpush1.bf16.msra.mxu0 0
        %3685 = vmatprep.subr.bf16.mxu0 0
        %3686 = vmatpush1.bf16.msra.mxu0 0
        %3687 = vmatprep.subr.bf16.mxu0 0
        %3688 = vmatpush1.bf16.msra.mxu0 0
        %3689 = vmatprep.subr.bf16.mxu0 0
        %3690 = vmatpush1.bf16.msra.mxu0 0
        %3691 = vmatprep.subr.bf16.mxu0 0
        %3692 = vmatpush1.bf16.msra.mxu0 0
        %3693 = vmatprep.subr.bf16.mxu0 0
        %3694 = vmatpush1.bf16.msra.mxu0 0
        %3695 = vmatprep.subr.bf16.mxu0 0
        %3696 = vmatpush1.bf16.msra.mxu0 0
        %3697 = vmatprep.subr.bf16.mxu0 0
        %3698 = vmatpush1.bf16.msra.mxu0 0
        %3699 = vmatprep.subr.bf16.mxu0 0
        %3700 = vmatpush1.bf16.msra.mxu0 0
        %3701 = vmatprep.mubr.bf16.mxu0 0
        %3702 = vmatmul.mubr.bf16.gmra.mrb[0].mxu0 %v3664
        %v3703 = vpop.f32.mrb[0].mxu0
        %v3704 = vadd.f32 0.0, %v3703
        %v3705 = vpop.f32.mrb[0].mxu0
        %v3706 = vpop.f32.mrb[0].mxu0
        %v3707 = vadd.f32 0.0, %v3706
        %v3708 = vpop.f32.mrb[0].mxu0
        %3709 = vdwg.mxu0
        %v3710 = vadd.f32 %v3533, %v3704
        %v3711 = vadd.f32 %v3534, %v3707
        %v3712 = vpack.c.bf16 %v3345, %v3345
        %3713 = vrot.lane.b32.xlu0 %v3366, 112
        %v3714 = vpop.permute.xlu0 %3713
        %v3716 = vsel %vm1892, %v3714, 0
        %v3719 = vsel %vm1899, %v3712, 0
        %3721 = vmatprep.subr.bf16.mxu0 0
        %3722 = vmatpush1.bf16.msra.mxu0 %v3719
        %3723 = vmatprep.subr.bf16.mxu0 0
        %3724 = vmatpush1.bf16.msra.mxu0 0
        %3725 = vmatprep.subr.bf16.mxu0 0
        %3726 = vmatpush1.bf16.msra.mxu0 0
        %3727 = vmatprep.subr.bf16.mxu0 0
        %3728 = vmatpush1.bf16.msra.mxu0 0
        %3729 = vmatprep.subr.bf16.mxu0 0
        %3730 = vmatpush1.bf16.msra.mxu0 0
        %3731 = vmatprep.subr.bf16.mxu0 0
        %3732 = vmatpush1.bf16.msra.mxu0 0
        %3733 = vmatprep.subr.bf16.mxu0 0
        %3734 = vmatpush1.bf16.msra.mxu0 0
        %3735 = vmatprep.subr.bf16.mxu0 0
        %3736 = vmatpush1.bf16.msra.mxu0 0
        %3737 = vmatprep.subr.bf16.mxu0 0
        %3738 = vmatpush1.bf16.msra.mxu0 0
        %3739 = vmatprep.subr.bf16.mxu0 0
        %3740 = vmatpush1.bf16.msra.mxu0 0
        %3741 = vmatprep.subr.bf16.mxu0 0
        %3742 = vmatpush1.bf16.msra.mxu0 0
        %3743 = vmatprep.subr.bf16.mxu0 0
        %3744 = vmatpush1.bf16.msra.mxu0 0
        %3745 = vmatprep.subr.bf16.mxu0 0
        %3746 = vmatpush1.bf16.msra.mxu0 0
        %3747 = vmatprep.subr.bf16.mxu0 0
        %3748 = vmatpush1.bf16.msra.mxu0 0
        %3749 = vmatprep.subr.bf16.mxu0 0
        %3750 = vmatpush1.bf16.msra.mxu0 0
        %3751 = vmatprep.subr.bf16.mxu0 0
        %3752 = vmatpush1.bf16.msra.mxu0 0
        %3753 = vmatprep.mubr.bf16.mxu0 0
        %3754 = vmatmul.mubr.bf16.gmra.mrb[0].mxu0 %v3716
        %v3755 = vpop.f32.mrb[0].mxu0
        %v3756 = vadd.f32 %v3148, %v3755
        %v3757 = vpop.f32.mrb[0].mxu0
        %v3758 = vpop.f32.mrb[0].mxu0
        %v3759 = vadd.f32 %v3149, %v3758
        %v3760 = vpop.f32.mrb[0].mxu0
        %3761 = vdwg.mxu0
        %v3762 = vsel %vm1676, %v3756, -inf
        %3763 = vmax.xlane.f32.xlu0 %v3762
        %v3764 = vpop.xlane.xlu0 %3763
        %v3765 = vsel %vm1676, %v3759, -inf
        %3766 = vmax.xlane.f32.xlu0 %v3765
        %v3767 = vpop.xlane.xlu0 %3766
        %v3768 = vsub.f32 %v3756, %v3764
        %v3769 = vsub.f32 %v3759, %v3767
        %v3770 = vmul.f32 %v3768, 1.442695
        %v3771 = vpow.pop %v3770
        %v3772 = vmul.f32 %v3769, 1.442695
        %v3773 = vpow.pop %v3772
        %v3774 = vsel %vm1676, %v3771, 0.0
        %3775 = vadd.xlane.f32.xlu0 %v3774
        %v3776 = vpop.xlane.xlu0 %3775
        %v3777 = vsel %vm1676, %v3773, 0.0
        %3778 = vadd.xlane.f32.xlu0 %v3777
        %v3779 = vpop.xlane.xlu0 %3778
        %v3780 = vrcp.pop %v3776
        %v3781 = vrcp.pop %v3779
        %v3782 = vmul.f32 %v3771, %v3780
        %v3783 = vmul.f32 %v3773, %v3781
        %v3784 = vpack.c.bf16 %v3783, %v3782
        %3785 = vrot.lane.b32.xlu0 %v3438, 112
        %v3786 = vpop.permute.xlu0 %3785
        %3787 = vrot.lane.b32.xlu0 %v3439, 112
        %v3788 = vpop.permute.xlu0 %3787
        %v3792 = vsel %vm1676, %v3784, 0
        %3794 = vmatprep.subr.bf16.mxu0 0
        %3795 = vmatpush1.bf16.msra.mxu0 %v3786
        %3796 = vmatprep.subr.bf16.mxu0 0
        %3797 = vmatpush1.bf16.msra.mxu0 %v3788
        %3798 = vmatprep.subr.bf16.mxu0 0
        %3799 = vmatpush1.bf16.msra.mxu0 0
        %3800 = vmatprep.subr.bf16.mxu0 0
        %3801 = vmatpush1.bf16.msra.mxu0 0
        %3802 = vmatprep.subr.bf16.mxu0 0
        %3803 = vmatpush1.bf16.msra.mxu0 0
        %3804 = vmatprep.subr.bf16.mxu0 0
        %3805 = vmatpush1.bf16.msra.mxu0 0
        %3806 = vmatprep.subr.bf16.mxu0 0
        %3807 = vmatpush1.bf16.msra.mxu0 0
        %3808 = vmatprep.subr.bf16.mxu0 0
        %3809 = vmatpush1.bf16.msra.mxu0 0
        %3810 = vmatprep.subr.bf16.mxu0 0
        %3811 = vmatpush1.bf16.msra.mxu0 0
        %3812 = vmatprep.subr.bf16.mxu0 0
        %3813 = vmatpush1.bf16.msra.mxu0 0
        %3814 = vmatprep.subr.bf16.mxu0 0
        %3815 = vmatpush1.bf16.msra.mxu0 0
        %3816 = vmatprep.subr.bf16.mxu0 0
        %3817 = vmatpush1.bf16.msra.mxu0 0
        %3818 = vmatprep.subr.bf16.mxu0 0
        %3819 = vmatpush1.bf16.msra.mxu0 0
        %3820 = vmatprep.subr.bf16.mxu0 0
        %3821 = vmatpush1.bf16.msra.mxu0 0
        %3822 = vmatprep.subr.bf16.mxu0 0
        %3823 = vmatpush1.bf16.msra.mxu0 0
        %3824 = vmatprep.subr.bf16.mxu0 0
        %3825 = vmatpush1.bf16.msra.mxu0 0
        %3826 = vmatprep.mubr.bf16.mxu0 0
        %3827 = vmatmul.mubr.bf16.gmra.mrb[0].mxu0 %v3792
        %v3828 = vpop.f32.mrb[0].mxu0
        %v3829 = vadd.f32 0.0, %v3828
        %v3830 = vpop.f32.mrb[0].mxu0
        %v3831 = vpop.f32.mrb[0].mxu0
        %v3832 = vadd.f32 0.0, %v3831
        %v3833 = vpop.f32.mrb[0].mxu0
        %3834 = vdwg.mxu0
        %v3835 = vpack.c.bf16 %v3832, %v3829
        %v3836 = vpack.c.bf16 %v1607, %v1607
        %v3838 = vsel %vm1892, %v3835, 0
        %v3841 = vsel %vm1899, %v3836, 0
        %3843 = vmatprep.subr.bf16.mxu0 0
        %3844 = vmatpush1.bf16.msra.mxu0 %v3841
        %3845 = vmatprep.subr.bf16.mxu0 0
        %3846 = vmatpush1.bf16.msra.mxu0 0
        %3847 = vmatprep.subr.bf16.mxu0 0
        %3848 = vmatpush1.bf16.msra.mxu0 0
        %3849 = vmatprep.subr.bf16.mxu0 0
        %3850 = vmatpush1.bf16.msra.mxu0 0
        %3851 = vmatprep.subr.bf16.mxu0 0
        %3852 = vmatpush1.bf16.msra.mxu0 0
        %3853 = vmatprep.subr.bf16.mxu0 0
        %3854 = vmatpush1.bf16.msra.mxu0 0
        %3855 = vmatprep.subr.bf16.mxu0 0
        %3856 = vmatpush1.bf16.msra.mxu0 0
        %3857 = vmatprep.subr.bf16.mxu0 0
        %3858 = vmatpush1.bf16.msra.mxu0 0
        %3859 = vmatprep.subr.bf16.mxu0 0
        %3860 = vmatpush1.bf16.msra.mxu0 0
        %3861 = vmatprep.subr.bf16.mxu0 0
        %3862 = vmatpush1.bf16.msra.mxu0 0
        %3863 = vmatprep.subr.bf16.mxu0 0
        %3864 = vmatpush1.bf16.msra.mxu0 0
        %3865 = vmatprep.subr.bf16.mxu0 0
        %3866 = vmatpush1.bf16.msra.mxu0 0
        %3867 = vmatprep.subr.bf16.mxu0 0
        %3868 = vmatpush1.bf16.msra.mxu0 0
        %3869 = vmatprep.subr.bf16.mxu0 0
        %3870 = vmatpush1.bf16.msra.mxu0 0
        %3871 = vmatprep.subr.bf16.mxu0 0
        %3872 = vmatpush1.bf16.msra.mxu0 0
        %3873 = vmatprep.subr.bf16.mxu0 0
        %3874 = vmatpush1.bf16.msra.mxu0 0
        %3875 = vmatprep.mubr.bf16.mxu0 0
        %3876 = vmatmul.mubr.bf16.gmra.mrb[0].mxu0 %v3838
        %v3877 = vpop.f32.mrb[0].mxu0
        %v3878 = vadd.f32 0.0, %v3877
        %v3879 = vpop.f32.mrb[0].mxu0
        %v3880 = vpop.f32.mrb[0].mxu0
        %v3881 = vadd.f32 0.0, %v3880
        %v3882 = vpop.f32.mrb[0].mxu0
        %3883 = vdwg.mxu0
        %v3884 = vadd.f32 %v3710, %v3878
        %v3885 = vadd.f32 %v3711, %v3881
        %v3886 = vpack.c.bf16 %v3346, %v3346
        %3887 = vrot.lane.b32.xlu0 %v3366, 104
        %v3888 = vpop.permute.xlu0 %3887
        %v3890 = vsel %vm1892, %v3888, 0
        %v3893 = vsel %vm1899, %v3886, 0
        %3895 = vmatprep.subr.bf16.mxu0 0
        %3896 = vmatpush1.bf16.msra.mxu0 %v3893
        %3897 = vmatprep.subr.bf16.mxu0 0
        %3898 = vmatpush1.bf16.msra.mxu0 0
        %3899 = vmatprep.subr.bf16.mxu0 0
        %3900 = vmatpush1.bf16.msra.mxu0 0
        %3901 = vmatprep.subr.bf16.mxu0 0
        %3902 = vmatpush1.bf16.msra.mxu0 0
        %3903 = vmatprep.subr.bf16.mxu0 0
        %3904 = vmatpush1.bf16.msra.mxu0 0
        %3905 = vmatprep.subr.bf16.mxu0 0
        %3906 = vmatpush1.bf16.msra.mxu0 0
        %3907 = vmatprep.subr.bf16.mxu0 0
        %3908 = vmatpush1.bf16.msra.mxu0 0
        %3909 = vmatprep.subr.bf16.mxu0 0
        %3910 = vmatpush1.bf16.msra.mxu0 0
        %3911 = vmatprep.subr.bf16.mxu0 0
        %3912 = vmatpush1.bf16.msra.mxu0 0
        %3913 = vmatprep.subr.bf16.mxu0 0
        %3914 = vmatpush1.bf16.msra.mxu0 0
        %3915 = vmatprep.subr.bf16.mxu0 0
        %3916 = vmatpush1.bf16.msra.mxu0 0
        %3917 = vmatprep.subr.bf16.mxu0 0
        %3918 = vmatpush1.bf16.msra.mxu0 0
        %3919 = vmatprep.subr.bf16.mxu0 0
        %3920 = vmatpush1.bf16.msra.mxu0 0
        %3921 = vmatprep.subr.bf16.mxu0 0
        %3922 = vmatpush1.bf16.msra.mxu0 0
        %3923 = vmatprep.subr.bf16.mxu0 0
        %3924 = vmatpush1.bf16.msra.mxu0 0
        %3925 = vmatprep.subr.bf16.mxu0 0
        %3926 = vmatpush1.bf16.msra.mxu0 0
        %3927 = vmatprep.mubr.bf16.mxu0 0
        %3928 = vmatmul.mubr.bf16.gmra.mrb[0].mxu0 %v3890
        %v3929 = vpop.f32.mrb[0].mxu0
        %v3930 = vadd.f32 %v3148, %v3929
        %v3931 = vpop.f32.mrb[0].mxu0
        %v3932 = vpop.f32.mrb[0].mxu0
        %v3933 = vadd.f32 %v3149, %v3932
        %v3934 = vpop.f32.mrb[0].mxu0
        %3935 = vdwg.mxu0
        %v3936 = vsel %vm1676, %v3930, -inf
        %3937 = vmax.xlane.f32.xlu0 %v3936
        %v3938 = vpop.xlane.xlu0 %3937
        %v3939 = vsel %vm1676, %v3933, -inf
        %3940 = vmax.xlane.f32.xlu0 %v3939
        %v3941 = vpop.xlane.xlu0 %3940
        %v3942 = vsub.f32 %v3930, %v3938
        %v3943 = vsub.f32 %v3933, %v3941
        %v3944 = vmul.f32 %v3942, 1.442695
        %v3945 = vpow.pop %v3944
        %v3946 = vmul.f32 %v3943, 1.442695
        %v3947 = vpow.pop %v3946
        %v3948 = vsel %vm1676, %v3945, 0.0
        %3949 = vadd.xlane.f32.xlu0 %v3948
        %v3950 = vpop.xlane.xlu0 %3949
        %v3951 = vsel %vm1676, %v3947, 0.0
        %3952 = vadd.xlane.f32.xlu0 %v3951
        %v3953 = vpop.xlane.xlu0 %3952
        %v3954 = vrcp.pop %v3950
        %v3955 = vrcp.pop %v3953
        %v3956 = vmul.f32 %v3945, %v3954
        %v3957 = vmul.f32 %v3947, %v3955
        %v3958 = vpack.c.bf16 %v3957, %v3956
        %3959 = vrot.lane.b32.xlu0 %v3438, 104
        %v3960 = vpop.permute.xlu0 %3959
        %3961 = vrot.lane.b32.xlu0 %v3439, 104
        %v3962 = vpop.permute.xlu0 %3961
        %v3966 = vsel %vm1676, %v3958, 0
        %3968 = vmatprep.subr.bf16.mxu0 0
        %3969 = vmatpush1.bf16.msra.mxu0 %v3960
        %3970 = vmatprep.subr.bf16.mxu0 0
        %3971 = vmatpush1.bf16.msra.mxu0 %v3962
        %3972 = vmatprep.subr.bf16.mxu0 0
        %3973 = vmatpush1.bf16.msra.mxu0 0
        %3974 = vmatprep.subr.bf16.mxu0 0
        %3975 = vmatpush1.bf16.msra.mxu0 0
        %3976 = vmatprep.subr.bf16.mxu0 0
        %3977 = vmatpush1.bf16.msra.mxu0 0
        %3978 = vmatprep.subr.bf16.mxu0 0
        %3979 = vmatpush1.bf16.msra.mxu0 0
        %3980 = vmatprep.subr.bf16.mxu0 0
        %3981 = vmatpush1.bf16.msra.mxu0 0
        %3982 = vmatprep.subr.bf16.mxu0 0
        %3983 = vmatpush1.bf16.msra.mxu0 0
        %3984 = vmatprep.subr.bf16.mxu0 0
        %3985 = vmatpush1.bf16.msra.mxu0 0
        %3986 = vmatprep.subr.bf16.mxu0 0
        %3987 = vmatpush1.bf16.msra.mxu0 0
        %3988 = vmatprep.subr.bf16.mxu0 0
        %3989 = vmatpush1.bf16.msra.mxu0 0
        %3990 = vmatprep.subr.bf16.mxu0 0
        %3991 = vmatpush1.bf16.msra.mxu0 0
        %3992 = vmatprep.subr.bf16.mxu0 0
        %3993 = vmatpush1.bf16.msra.mxu0 0
        %3994 = vmatprep.subr.bf16.mxu0 0
        %3995 = vmatpush1.bf16.msra.mxu0 0
        %3996 = vmatprep.subr.bf16.mxu0 0
        %3997 = vmatpush1.bf16.msra.mxu0 0
        %3998 = vmatprep.subr.bf16.mxu0 0
        %3999 = vmatpush1.bf16.msra.mxu0 0
        %4000 = vmatprep.mubr.bf16.mxu0 0
        %4001 = vmatmul.mubr.bf16.gmra.mrb[0].mxu0 %v3966
        %v4002 = vpop.f32.mrb[0].mxu0
        %v4003 = vadd.f32 0.0, %v4002
        %v4004 = vpop.f32.mrb[0].mxu0
        %v4005 = vpop.f32.mrb[0].mxu0
        %v4006 = vadd.f32 0.0, %v4005
        %v4007 = vpop.f32.mrb[0].mxu0
        %4008 = vdwg.mxu0
        %v4009 = vpack.c.bf16 %v4006, %v4003
        %v4010 = vpack.c.bf16 %v1608, %v1608
        %v4012 = vsel %vm1892, %v4009, 0
        %v4015 = vsel %vm1899, %v4010, 0
        %4017 = vmatprep.subr.bf16.mxu0 0
        %4018 = vmatpush1.bf16.msra.mxu0 %v4015
        %4019 = vmatprep.subr.bf16.mxu0 0
        %4020 = vmatpush1.bf16.msra.mxu0 0
        %4021 = vmatprep.subr.bf16.mxu0 0
        %4022 = vmatpush1.bf16.msra.mxu0 0
        %4023 = vmatprep.subr.bf16.mxu0 0
        %4024 = vmatpush1.bf16.msra.mxu0 0
        %4025 = vmatprep.subr.bf16.mxu0 0
        %4026 = vmatpush1.bf16.msra.mxu0 0
        %4027 = vmatprep.subr.bf16.mxu0 0
        %4028 = vmatpush1.bf16.msra.mxu0 0
        %4029 = vmatprep.subr.bf16.mxu0 0
        %4030 = vmatpush1.bf16.msra.mxu0 0
        %4031 = vmatprep.subr.bf16.mxu0 0
        %4032 = vmatpush1.bf16.msra.mxu0 0
        %4033 = vmatprep.subr.bf16.mxu0 0
        %4034 = vmatpush1.bf16.msra.mxu0 0
        %4035 = vmatprep.subr.bf16.mxu0 0
        %4036 = vmatpush1.bf16.msra.mxu0 0
        %4037 = vmatprep.subr.bf16.mxu0 0
        %4038 = vmatpush1.bf16.msra.mxu0 0
        %4039 = vmatprep.subr.bf16.mxu0 0
        %4040 = vmatpush1.bf16.msra.mxu0 0
        %4041 = vmatprep.subr.bf16.mxu0 0
        %4042 = vmatpush1.bf16.msra.mxu0 0
        %4043 = vmatprep.subr.bf16.mxu0 0
        %4044 = vmatpush1.bf16.msra.mxu0 0
        %4045 = vmatprep.subr.bf16.mxu0 0
        %4046 = vmatpush1.bf16.msra.mxu0 0
        %4047 = vmatprep.subr.bf16.mxu0 0
        %4048 = vmatpush1.bf16.msra.mxu0 0
        %4049 = vmatprep.mubr.bf16.mxu0 0
        %4050 = vmatmul.mubr.bf16.gmra.mrb[0].mxu0 %v4012
        %v4051 = vpop.f32.mrb[0].mxu0
        %v4052 = vadd.f32 0.0, %v4051
        %v4053 = vpop.f32.mrb[0].mxu0
        %v4054 = vpop.f32.mrb[0].mxu0
        %v4055 = vadd.f32 0.0, %v4054
        %v4056 = vpop.f32.mrb[0].mxu0
        %4057 = vdwg.mxu0
        %v4058 = vadd.f32 %v3884, %v4052
        %v4059 = vadd.f32 %v3885, %v4055
        %v4060 = vld [vmem:[%s9] sm:$0xff]
        %v4061 = vld [vmem:[%s9 + $0x8] sm:$0xff]
        %v4062 = vld [vmem:[%s9 + $0x10] sm:$0xff]
        %v4063 = vld [vmem:[%s9 + $0x18] sm:$0xff]
        %v4064 = vpack.c.bf16 %v1611, %v1610
        %v4065 = vpack.c.bf16 %v1613, %v1612
        %v4067 = vlaneseq
        %v4068 = vshrl.u32 %v4067, 7
        %v4069 = vsub.s32 0, %v4068
        %v4070 = vrot.slane %v1614, %v4069
        %4072 = vmatprep.subr.bf16.mxu0 0
        %4073 = vmatpush1.bf16.msra.mxu0 %v4064
        %4074 = vmatprep.subr.bf16.mxu0 0
        %4075 = vmatpush1.bf16.msra.mxu0 %v4065
        %4076 = vmatprep.subr.bf16.mxu0 0
        %4077 = vmatpush1.bf16.msra.mxu0 0
        %4078 = vmatprep.subr.bf16.mxu0 0
        %4079 = vmatpush1.bf16.msra.mxu0 0
        %4080 = vmatprep.subr.bf16.mxu0 0
        %4081 = vmatpush1.bf16.msra.mxu0 0
        %4082 = vmatprep.subr.bf16.mxu0 0
        %4083 = vmatpush1.bf16.msra.mxu0 0
        %4084 = vmatprep.subr.bf16.mxu0 0
        %4085 = vmatpush1.bf16.msra.mxu0 0
        %4086 = vmatprep.subr.bf16.mxu0 0
        %4087 = vmatpush1.bf16.msra.mxu0 0
        %4088 = vmatprep.subr.bf16.mxu0 0
        %4089 = vmatpush1.bf16.msra.mxu0 0
        %4090 = vmatprep.subr.bf16.mxu0 0
        %4091 = vmatpush1.bf16.msra.mxu0 0
        %4092 = vmatprep.subr.bf16.mxu0 0
        %4093 = vmatpush1.bf16.msra.mxu0 0
        %4094 = vmatprep.subr.bf16.mxu0 0
        %4095 = vmatpush1.bf16.msra.mxu0 0
        %4096 = vmatprep.subr.bf16.mxu0 0
        %4097 = vmatpush1.bf16.msra.mxu0 0
        %4098 = vmatprep.subr.bf16.mxu0 0
        %4099 = vmatpush1.bf16.msra.mxu0 0
        %4100 = vmatprep.subr.bf16.mxu0 0
        %4101 = vmatpush1.bf16.msra.mxu0 0
        %4102 = vmatprep.subr.bf16.mxu0 0
        %4103 = vmatpush1.bf16.msra.mxu0 0
        %4104 = vmatprep.mubr.bf16.mxu0 0
        %4105 = vmatmul.mubr.bf16.gmra.mrb[0].mxu0 %v3216
        %v4106 = vpop.f32.mrb[0].mxu0
        %v4107 = vadd.f32 %v4070, %v4106
        %v4108 = vpop.f32.mrb[0].mxu0
        %v4109 = vpop.f32.mrb[0].mxu0
        %v4110 = vadd.f32 %v4070, %v4109
        %v4111 = vpop.f32.mrb[0].mxu0
        %4112 = vmatprep.mubr.bf16.mxu0 0
        %4113 = vmatmul.mubr.bf16.gmra.mrb[0].mxu0 %v3219
        %v4114 = vpop.f32.mrb[0].mxu0
        %v4115 = vadd.f32 %v4070, %v4114
        %v4116 = vpop.f32.mrb[0].mxu0
        %v4117 = vpop.f32.mrb[0].mxu0
        %v4118 = vadd.f32 %v4070, %v4117
        %v4119 = vpop.f32.mrb[0].mxu0
        %4120 = vdwg.mxu0
        %v4121 = vmul.f32 %v4107, 0.35355338
        %v4122 = vmul.f32 %v4110, 0.35355338
        %v4123 = vmul.f32 %v4115, 0.35355338
        %v4124 = vmul.f32 %v4118, 0.35355338
        %v4125 = vpack.c.bf16 %v4059, %v4058
        %v4126 = vpack.c.bf16 %v1616, %v1615
        %v4127 = vpack.c.bf16 %v1618, %v1617
        %v4129 = vlaneseq
        %v4130 = vshrl.u32 %v4129, 7
        %v4131 = vsub.s32 0, %v4130
        %v4132 = vrot.slane %v1619, %v4131
        %v4135 = vsel %vm1676, %v4125, 0
        %4137 = vmatprep.subr.bf16.mxu0 0
        %4138 = vmatpush1.bf16.msra.mxu0 %v4126
        %4139 = vmatprep.subr.bf16.mxu0 0
        %4140 = vmatpush1.bf16.msra.mxu0 %v4127
        %4141 = vmatprep.subr.bf16.mxu0 0
        %4142 = vmatpush1.bf16.msra.mxu0 0
        %4143 = vmatprep.subr.bf16.mxu0 0
        %4144 = vmatpush1.bf16.msra.mxu0 0
        %4145 = vmatprep.subr.bf16.mxu0 0
        %4146 = vmatpush1.bf16.msra.mxu0 0
        %4147 = vmatprep.subr.bf16.mxu0 0
        %4148 = vmatpush1.bf16.msra.mxu0 0
        %4149 = vmatprep.subr.bf16.mxu0 0
        %4150 = vmatpush1.bf16.msra.mxu0 0
        %4151 = vmatprep.subr.bf16.mxu0 0
        %4152 = vmatpush1.bf16.msra.mxu0 0
        %4153 = vmatprep.subr.bf16.mxu0 0
        %4154 = vmatpush1.bf16.msra.mxu0 0
        %4155 = vmatprep.subr.bf16.mxu0 0
        %4156 = vmatpush1.bf16.msra.mxu0 0
        %4157 = vmatprep.subr.bf16.mxu0 0
        %4158 = vmatpush1.bf16.msra.mxu0 0
        %4159 = vmatprep.subr.bf16.mxu0 0
        %4160 = vmatpush1.bf16.msra.mxu0 0
        %4161 = vmatprep.subr.bf16.mxu0 0
        %4162 = vmatpush1.bf16.msra.mxu0 0
        %4163 = vmatprep.subr.bf16.mxu0 0
        %4164 = vmatpush1.bf16.msra.mxu0 0
        %4165 = vmatprep.subr.bf16.mxu0 0
        %4166 = vmatpush1.bf16.msra.mxu0 0
        %4167 = vmatprep.subr.bf16.mxu0 0
        %4168 = vmatpush1.bf16.msra.mxu0 0
        %4169 = vmatprep.mubr.bf16.mxu0 0
        %4170 = vmatmul.mubr.bf16.gmra.mrb[0].mxu0 %v4135
        %v4171 = vpop.f32.mrb[0].mxu0
        %v4172 = vadd.f32 %v4132, %v4171
        %v4173 = vpop.f32.mrb[0].mxu0
        %v4174 = vpop.f32.mrb[0].mxu0
        %v4175 = vadd.f32 %v4132, %v4174
        %v4176 = vpop.f32.mrb[0].mxu0
        %4177 = vdwg.mxu0
        %v4178 = vpack.c.bf16 %v1621, %v1620
        %v4179 = vpack.c.bf16 %v1623, %v1622
        %v4181 = vlaneseq
        %v4182 = vshrl.u32 %v4181, 7
        %v4183 = vsub.s32 0, %v4182
        %v4184 = vrot.slane %v1624, %v4183
        %4186 = vmatprep.subr.bf16.mxu0 0
        %4187 = vmatpush1.bf16.msra.mxu0 %v4178
        %4188 = vmatprep.subr.bf16.mxu0 0
        %4189 = vmatpush1.bf16.msra.mxu0 %v4179
        %4190 = vmatprep.subr.bf16.mxu0 0
        %4191 = vmatpush1.bf16.msra.mxu0 0
        %4192 = vmatprep.subr.bf16.mxu0 0
        %4193 = vmatpush1.bf16.msra.mxu0 0
        %4194 = vmatprep.subr.bf16.mxu0 0
        %4195 = vmatpush1.bf16.msra.mxu0 0
        %4196 = vmatprep.subr.bf16.mxu0 0
        %4197 = vmatpush1.bf16.msra.mxu0 0
        %4198 = vmatprep.subr.bf16.mxu0 0
        %4199 = vmatpush1.bf16.msra.mxu0 0
        %4200 = vmatprep.subr.bf16.mxu0 0
        %4201 = vmatpush1.bf16.msra.mxu0 0
        %4202 = vmatprep.subr.bf16.mxu0 0
        %4203 = vmatpush1.bf16.msra.mxu0 0
        %4204 = vmatprep.subr.bf16.mxu0 0
        %4205 = vmatpush1.bf16.msra.mxu0 0
        %4206 = vmatprep.subr.bf16.mxu0 0
        %4207 = vmatpush1.bf16.msra.mxu0 0
        %4208 = vmatprep.subr.bf16.mxu0 0
        %4209 = vmatpush1.bf16.msra.mxu0 0
        %4210 = vmatprep.subr.bf16.mxu0 0
        %4211 = vmatpush1.bf16.msra.mxu0 0
        %4212 = vmatprep.subr.bf16.mxu0 0
        %4213 = vmatpush1.bf16.msra.mxu0 0
        %4214 = vmatprep.subr.bf16.mxu0 0
        %4215 = vmatpush1.bf16.msra.mxu0 0
        %4216 = vmatprep.subr.bf16.mxu0 0
        %4217 = vmatpush1.bf16.msra.mxu0 0
        %4218 = vmatprep.mubr.bf16.mxu0 0
        %4219 = vmatmul.mubr.bf16.gmra.mrb[0].mxu0 %v4135
        %v4220 = vpop.f32.mrb[0].mxu0
        %v4221 = vadd.f32 %v4184, %v4220
        %v4222 = vpop.f32.mrb[0].mxu0
        %v4223 = vpop.f32.mrb[0].mxu0
        %v4224 = vadd.f32 %v4184, %v4223
        %v4225 = vpop.f32.mrb[0].mxu0
        %4226 = vdwg.mxu0
        %4227 = vxpose.xlu0.b32.start [1/16] %v4172, 128
        %4228 = vxpose.xlu0.b32.cont [2/16] %v4175, 128
        %4229 = vxpose.xlu0.b32.cont [3/16] 0.0, 128
        %4230 = vxpose.xlu0.b32.cont [4/16] 0.0, 128
        %4231 = vxpose.xlu0.b32.cont [5/16] 0.0, 128
        %4232 = vxpose.xlu0.b32.cont [6/16] 0.0, 128
        %4233 = vxpose.xlu0.b32.cont [7/16] 0.0, 128
        %4234 = vxpose.xlu0.b32.cont [8/16] 0.0, 128
        %4235 = vxpose.xlu0.b32.cont [9/16] 0.0, 128
        %4236 = vxpose.xlu0.b32.cont [10/16] 0.0, 128
        %4237 = vxpose.xlu0.b32.cont [11/16] 0.0, 128
        %4238 = vxpose.xlu0.b32.cont [12/16] 0.0, 128
        %4239 = vxpose.xlu0.b32.cont [13/16] 0.0, 128
        %4240 = vxpose.xlu0.b32.cont [14/16] 0.0, 128
        %4241 = vxpose.xlu0.b32.cont [15/16] 0.0, 128
        %4242 = vxpose.xlu0.b32.end [16/16] 0.0, 128
        %v4243 = vpop.trf.xlu0
        %v4244 = vpop.trf.xlu0
        %v4245 = vpop.trf.xlu0
        %v4246 = vpop.trf.xlu0
        %v4247 = vpop.trf.xlu0
        %v4248 = vpop.trf.xlu0
        %v4249 = vpop.trf.xlu0
        %v4250 = vpop.trf.xlu0
        %v4251 = vpop.trf.xlu0
        %v4252 = vpop.trf.xlu0
        %v4253 = vpop.trf.xlu0
        %v4254 = vpop.trf.xlu0
        %v4255 = vpop.trf.xlu0
        %v4256 = vpop.trf.xlu0
        %v4257 = vpop.trf.xlu0
        %v4258 = vpop.trf.xlu0
        %v4260 = vlaneseq
        %v4261 = vshrl.u32 %v4260, 7
        %v4262 = vsub.s32 0, %v4261
        %v4263 = vrot.slane %v1629, %v4262
        %v4265 = vadd.f32 %v4263, 0.0
        %v4266 = vpack.c.bf16 %v4122, %v4121
        %v4267 = vpack.c.bf16 %v4124, %v4123
        %v4268 = vpack.c.bf16 %v4243, %v4243
        %v4270 = vsel %vm1892, %v4266, 0
        %v4273 = vsel %vm1892, %v4267, 0
        %v4276 = vsel %vm1899, %v4268, 0
        %4278 = vmatprep.subr.bf16.mxu0 0
        %4279 = vmatpush1.bf16.msra.mxu0 %v4276
        %4280 = vmatprep.subr.bf16.mxu0 0
        %4281 = vmatpush1.bf16.msra.mxu0 0
        %4282 = vmatprep.subr.bf16.mxu0 0
        %4283 = vmatpush1.bf16.msra.mxu0 0
        %4284 = vmatprep.subr.bf16.mxu0 0
        %4285 = vmatpush1.bf16.msra.mxu0 0
        %4286 = vmatprep.subr.bf16.mxu0 0
        %4287 = vmatpush1.bf16.msra.mxu0 0
        %4288 = vmatprep.subr.bf16.mxu0 0
        %4289 = vmatpush1.bf16.msra.mxu0 0
        %4290 = vmatprep.subr.bf16.mxu0 0
        %4291 = vmatpush1.bf16.msra.mxu0 0
        %4292 = vmatprep.subr.bf16.mxu0 0
        %4293 = vmatpush1.bf16.msra.mxu0 0
        %4294 = vmatprep.subr.bf16.mxu0 0
        %4295 = vmatpush1.bf16.msra.mxu0 0
        %4296 = vmatprep.subr.bf16.mxu0 0
        %4297 = vmatpush1.bf16.msra.mxu0 0
        %4298 = vmatprep.subr.bf16.mxu0 0
        %4299 = vmatpush1.bf16.msra.mxu0 0
        %4300 = vmatprep.subr.bf16.mxu0 0
        %4301 = vmatpush1.bf16.msra.mxu0 0
        %4302 = vmatprep.subr.bf16.mxu0 0
        %4303 = vmatpush1.bf16.msra.mxu0 0
        %4304 = vmatprep.subr.bf16.mxu0 0
        %4305 = vmatpush1.bf16.msra.mxu0 0
        %4306 = vmatprep.subr.bf16.mxu0 0
        %4307 = vmatpush1.bf16.msra.mxu0 0
        %4308 = vmatprep.subr.bf16.mxu0 0
        %4309 = vmatpush1.bf16.msra.mxu0 0
        %4310 = vmatprep.mubr.bf16.mxu0 0
        %4311 = vmatmul.mubr.bf16.gmra.mrb[0].mxu0 %v4270
        %v4312 = vpop.f32.mrb[0].mxu0
        %v4313 = vadd.f32 %v4060, %v4312
        %v4314 = vpop.f32.mrb[0].mxu0
        %v4315 = vpop.f32.mrb[0].mxu0
        %v4316 = vadd.f32 %v4061, %v4315
        %v4317 = vpop.f32.mrb[0].mxu0
        %4318 = vmatprep.mubr.bf16.mxu0 0
        %4319 = vmatmul.mubr.bf16.gmra.mrb[0].mxu0 %v4273
        %v4320 = vpop.f32.mrb[0].mxu0
        %v4321 = vadd.f32 %v4062, %v4320
        %v4322 = vpop.f32.mrb[0].mxu0
        %v4323 = vpop.f32.mrb[0].mxu0
        %v4324 = vadd.f32 %v4063, %v4323
        %v4325 = vpop.f32.mrb[0].mxu0
        %4326 = vdwg.mxu0
        %vm4327 = vcmask 130048
        %v4328 = vsel %vm4327, %v4313, -inf
        %4329 = vmax.xlane.f32.xlu0 %v4328
        %v4330 = vpop.xlane.xlu0 %4329
        %v4331 = vsel %vm4327, %v4316, -inf
        %4332 = vmax.xlane.f32.xlu0 %v4331
        %v4333 = vpop.xlane.xlu0 %4332
        %v4334 = vsel %vm4327, %v4321, -inf
        %4335 = vmax.xlane.f32.xlu0 %v4334
        %v4336 = vpop.xlane.xlu0 %4335
        %v4337 = vsel %vm4327, %v4324, -inf
        %4338 = vmax.xlane.f32.xlu0 %v4337
        %v4339 = vpop.xlane.xlu0 %4338
        %v4340 = vsub.f32 %v4313, %v4330
        %v4341 = vsub.f32 %v4316, %v4333
        %v4342 = vsub.f32 %v4321, %v4336
        %v4343 = vsub.f32 %v4324, %v4339
        %v4344 = vmul.f32 %v4340, 1.442695
        %v4345 = vpow.pop %v4344
        %v4346 = vmul.f32 %v4341, 1.442695
        %v4347 = vpow.pop %v4346
        %v4348 = vmul.f32 %v4342, 1.442695
        %v4349 = vpow.pop %v4348
        %v4350 = vmul.f32 %v4343, 1.442695
        %v4351 = vpow.pop %v4350
        %v4352 = vsel %vm4327, %v4345, 0.0
        %4353 = vadd.xlane.f32.xlu0 %v4352
        %v4354 = vpop.xlane.xlu0 %4353
        %v4355 = vsel %vm4327, %v4347, 0.0
        %4356 = vadd.xlane.f32.xlu0 %v4355
        %v4357 = vpop.xlane.xlu0 %4356
        %v4358 = vsel %vm4327, %v4349, 0.0
        %4359 = vadd.xlane.f32.xlu0 %v4358
        %v4360 = vpop.xlane.xlu0 %4359
        %v4361 = vsel %vm4327, %v4351, 0.0
        %4362 = vadd.xlane.f32.xlu0 %v4361
        %v4363 = vpop.xlane.xlu0 %4362
        %v4364 = vrcp.pop %v4354
        %v4365 = vrcp.pop %v4357
        %v4366 = vrcp.pop %v4360
        %v4367 = vrcp.pop %v4363
        %v4368 = vmul.f32 %v4345, %v4364
        %v4369 = vmul.f32 %v4347, %v4365
        %v4370 = vmul.f32 %v4349, %v4366
        %v4371 = vmul.f32 %v4351, %v4367
        %v4372 = vpack.c.bf16 %v4369, %v4368
        %v4373 = vpack.c.bf16 %v4371, %v4370
        %v4374 = vpack.c.bf16 %v4224, %v4221
        %v4376 = vsel %vm4327, %v4372, 0
        %v4379 = vsel %vm4327, %v4373, 0
        %4381 = vmatprep.subr.bf16.mxu0 0
        %4382 = vmatpush1.bf16.msra.mxu0 %v4374
        %4383 = vmatprep.subr.bf16.mxu0 0
        %4384 = vmatpush1.bf16.msra.mxu0 0
        %4385 = vmatprep.subr.bf16.mxu0 0
        %4386 = vmatpush1.bf16.msra.mxu0 0
        %4387 = vmatprep.subr.bf16.mxu0 0
        %4388 = vmatpush1.bf16.msra.mxu0 0
        %4389 = vmatprep.subr.bf16.mxu0 0
        %4390 = vmatpush1.bf16.msra.mxu0 0
        %4391 = vmatprep.subr.bf16.mxu0 0
        %4392 = vmatpush1.bf16.msra.mxu0 0
        %4393 = vmatprep.subr.bf16.mxu0 0
        %4394 = vmatpush1.bf16.msra.mxu0 0
        %4395 = vmatprep.subr.bf16.mxu0 0
        %4396 = vmatpush1.bf16.msra.mxu0 0
        %4397 = vmatprep.subr.bf16.mxu0 0
        %4398 = vmatpush1.bf16.msra.mxu0 0
        %4399 = vmatprep.subr.bf16.mxu0 0
        %4400 = vmatpush1.bf16.msra.mxu0 0
        %4401 = vmatprep.subr.bf16.mxu0 0
        %4402 = vmatpush1.bf16.msra.mxu0 0
        %4403 = vmatprep.subr.bf16.mxu0 0
        %4404 = vmatpush1.bf16.msra.mxu0 0
        %4405 = vmatprep.subr.bf16.mxu0 0
        %4406 = vmatpush1.bf16.msra.mxu0 0
        %4407 = vmatprep.subr.bf16.mxu0 0
        %4408 = vmatpush1.bf16.msra.mxu0 0
        %4409 = vmatprep.subr.bf16.mxu0 0
        %4410 = vmatpush1.bf16.msra.mxu0 0
        %4411 = vmatprep.subr.bf16.mxu0 0
        %4412 = vmatpush1.bf16.msra.mxu0 0
        %4413 = vmatprep.mubr.bf16.mxu0 0
        %4414 = vmatmul.mubr.bf16.gmra.mrb[0].mxu0 %v4376
        %v4415 = vpop.f32.mrb[0].mxu0
        %v4416 = vadd.f32 0.0, %v4415
        %v4417 = vpop.f32.mrb[0].mxu0
        %v4418 = vpop.f32.mrb[0].mxu0
        %v4419 = vadd.f32 0.0, %v4418
        %v4420 = vpop.f32.mrb[0].mxu0
        %4421 = vmatprep.mubr.bf16.mxu0 0
        %4422 = vmatmul.mubr.bf16.gmra.mrb[0].mxu0 %v4379
        %v4423 = vpop.f32.mrb[0].mxu0
        %v4424 = vadd.f32 0.0, %v4423
        %v4425 = vpop.f32.mrb[0].mxu0
        %v4426 = vpop.f32.mrb[0].mxu0
        %v4427 = vadd.f32 0.0, %v4426
        %v4428 = vpop.f32.mrb[0].mxu0
        %4429 = vdwg.mxu0
        %v4430 = vpack.c.bf16 %v4419, %v4416
        %v4431 = vpack.c.bf16 %v4427, %v4424
        %v4432 = vpack.c.bf16 %v1625, %v1625
        %v4434 = vsel %vm1892, %v4430, 0
        %v4437 = vsel %vm1892, %v4431, 0
        %v4440 = vsel %vm1899, %v4432, 0
        %4442 = vmatprep.subr.bf16.mxu0 0
        %4443 = vmatpush1.bf16.msra.mxu0 %v4440
        %4444 = vmatprep.subr.bf16.mxu0 0
        %4445 = vmatpush1.bf16.msra.mxu0 0
        %4446 = vmatprep.subr.bf16.mxu0 0
        %4447 = vmatpush1.bf16.msra.mxu0 0
        %4448 = vmatprep.subr.bf16.mxu0 0
        %4449 = vmatpush1.bf16.msra.mxu0 0
        %4450 = vmatprep.subr.bf16.mxu0 0
        %4451 = vmatpush1.bf16.msra.mxu0 0
        %4452 = vmatprep.subr.bf16.mxu0 0
        %4453 = vmatpush1.bf16.msra.mxu0 0
        %4454 = vmatprep.subr.bf16.mxu0 0
        %4455 = vmatpush1.bf16.msra.mxu0 0
        %4456 = vmatprep.subr.bf16.mxu0 0
        %4457 = vmatpush1.bf16.msra.mxu0 0
        %4458 = vmatprep.subr.bf16.mxu0 0
        %4459 = vmatpush1.bf16.msra.mxu0 0
        %4460 = vmatprep.subr.bf16.mxu0 0
        %4461 = vmatpush1.bf16.msra.mxu0 0
        %4462 = vmatprep.subr.bf16.mxu0 0
        %4463 = vmatpush1.bf16.msra.mxu0 0
        %4464 = vmatprep.subr.bf16.mxu0 0
        %4465 = vmatpush1.bf16.msra.mxu0 0
        %4466 = vmatprep.subr.bf16.mxu0 0
        %4467 = vmatpush1.bf16.msra.mxu0 0
        %4468 = vmatprep.subr.bf16.mxu0 0
        %4469 = vmatpush1.bf16.msra.mxu0 0
        %4470 = vmatprep.subr.bf16.mxu0 0
        %4471 = vmatpush1.bf16.msra.mxu0 0
        %4472 = vmatprep.subr.bf16.mxu0 0
        %4473 = vmatpush1.bf16.msra.mxu0 0
        %4474 = vmatprep.mubr.bf16.mxu0 0
        %4475 = vmatmul.mubr.bf16.gmra.mrb[0].mxu0 %v4434
        %v4476 = vpop.f32.mrb[0].mxu0
        %v4477 = vadd.f32 0.0, %v4476
        %v4478 = vpop.f32.mrb[0].mxu0
        %v4479 = vpop.f32.mrb[0].mxu0
        %v4480 = vadd.f32 0.0, %v4479
        %v4481 = vpop.f32.mrb[0].mxu0
        %4482 = vmatprep.mubr.bf16.mxu0 0
        %4483 = vmatmul.mubr.bf16.gmra.mrb[0].mxu0 %v4437
        %v4484 = vpop.f32.mrb[0].mxu0
        %v4485 = vadd.f32 0.0, %v4484
        %v4486 = vpop.f32.mrb[0].mxu0
        %v4487 = vpop.f32.mrb[0].mxu0
        %v4488 = vadd.f32 0.0, %v4487
        %v4489 = vpop.f32.mrb[0].mxu0
        %4490 = vdwg.mxu0
        %v4491 = vadd.f32 %v4265, %v4477
        %v4492 = vadd.f32 %v4265, %v4480
        %v4493 = vadd.f32 %v4265, %v4485
        %v4494 = vadd.f32 %v4265, %v4488
        %v4495 = vpack.c.bf16 %v4244, %v4244
        %4498 = vrot.lane.b32.xlu0 %v4266, 120
        %v4499 = vpop.permute.xlu0 %4498
        %4500 = vrot.lane.b32.xlu0 %v4267, 120
        %v4501 = vpop.permute.xlu0 %4500
        %v4503 = vsel %vm1892, %v4499, 0
        %v4506 = vsel %vm1892, %v4501, 0
        %v4509 = vsel %vm1899, %v4495, 0
        %4511 = vmatprep.subr.bf16.mxu0 0
        %4512 = vmatpush1.bf16.msra.mxu0 %v4509
        %4513 = vmatprep.subr.bf16.mxu0 0
        %4514 = vmatpush1.bf16.msra.mxu0 0
        %4515 = vmatprep.subr.bf16.mxu0 0
        %4516 = vmatpush1.bf16.msra.mxu0 0
        %4517 = vmatprep.subr.bf16.mxu0 0
        %4518 = vmatpush1.bf16.msra.mxu0 0
        %4519 = vmatprep.subr.bf16.mxu0 0
        %4520 = vmatpush1.bf16.msra.mxu0 0
        %4521 = vmatprep.subr.bf16.mxu0 0
        %4522 = vmatpush1.bf16.msra.mxu0 0
        %4523 = vmatprep.subr.bf16.mxu0 0
        %4524 = vmatpush1.bf16.msra.mxu0 0
        %4525 = vmatprep.subr.bf16.mxu0 0
        %4526 = vmatpush1.bf16.msra.mxu0 0
        %4527 = vmatprep.subr.bf16.mxu0 0
        %4528 = vmatpush1.bf16.msra.mxu0 0
        %4529 = vmatprep.subr.bf16.mxu0 0
        %4530 = vmatpush1.bf16.msra.mxu0 0
        %4531 = vmatprep.subr.bf16.mxu0 0
        %4532 = vmatpush1.bf16.msra.mxu0 0
        %4533 = vmatprep.subr.bf16.mxu0 0
        %4534 = vmatpush1.bf16.msra.mxu0 0
        %4535 = vmatprep.subr.bf16.mxu0 0
        %4536 = vmatpush1.bf16.msra.mxu0 0
        %4537 = vmatprep.subr.bf16.mxu0 0
        %4538 = vmatpush1.bf16.msra.mxu0 0
        %4539 = vmatprep.subr.bf16.mxu0 0
        %4540 = vmatpush1.bf16.msra.mxu0 0
        %4541 = vmatprep.subr.bf16.mxu0 0
        %4542 = vmatpush1.bf16.msra.mxu0 0
        %4543 = vmatprep.mubr.bf16.mxu0 0
        %4544 = vmatmul.mubr.bf16.gmra.mrb[0].mxu0 %v4503
        %v4545 = vpop.f32.mrb[0].mxu0
        %v4546 = vadd.f32 %v4060, %v4545
        %v4547 = vpop.f32.mrb[0].mxu0
        %v4548 = vpop.f32.mrb[0].mxu0
        %v4549 = vadd.f32 %v4061, %v4548
        %v4550 = vpop.f32.mrb[0].mxu0
        %4551 = vmatprep.mubr.bf16.mxu0 0
        %4552 = vmatmul.mubr.bf16.gmra.mrb[0].mxu0 %v4506
        %v4553 = vpop.f32.mrb[0].mxu0
        %v4554 = vadd.f32 %v4062, %v4553
        %v4555 = vpop.f32.mrb[0].mxu0
        %v4556 = vpop.f32.mrb[0].mxu0
        %v4557 = vadd.f32 %v4063, %v4556
        %v4558 = vpop.f32.mrb[0].mxu0
        %4559 = vdwg.mxu0
        %v4560 = vsel %vm4327, %v4546, -inf
        %4561 = vmax.xlane.f32.xlu0 %v4560
        %v4562 = vpop.xlane.xlu0 %4561
        %v4563 = vsel %vm4327, %v4549, -inf
        %4564 = vmax.xlane.f32.xlu0 %v4563
        %v4565 = vpop.xlane.xlu0 %4564
        %v4566 = vsel %vm4327, %v4554, -inf
        %4567 = vmax.xlane.f32.xlu0 %v4566
        %v4568 = vpop.xlane.xlu0 %4567
        %v4569 = vsel %vm4327, %v4557, -inf
        %4570 = vmax.xlane.f32.xlu0 %v4569
        %v4571 = vpop.xlane.xlu0 %4570
        %v4572 = vsub.f32 %v4546, %v4562
        %v4573 = vsub.f32 %v4549, %v4565
        %v4574 = vsub.f32 %v4554, %v4568
        %v4575 = vsub.f32 %v4557, %v4571
        %v4576 = vmul.f32 %v4572, 1.442695
        %v4577 = vpow.pop %v4576
        %v4578 = vmul.f32 %v4573, 1.442695
        %v4579 = vpow.pop %v4578
        %v4580 = vmul.f32 %v4574, 1.442695
        %v4581 = vpow.pop %v4580
        %v4582 = vmul.f32 %v4575, 1.442695
        %v4583 = vpow.pop %v4582
        %v4584 = vsel %vm4327, %v4577, 0.0
        %4585 = vadd.xlane.f32.xlu0 %v4584
        %v4586 = vpop.xlane.xlu0 %4585
        %v4587 = vsel %vm4327, %v4579, 0.0
        %4588 = vadd.xlane.f32.xlu0 %v4587
        %v4589 = vpop.xlane.xlu0 %4588
        %v4590 = vsel %vm4327, %v4581, 0.0
        %4591 = vadd.xlane.f32.xlu0 %v4590
        %v4592 = vpop.xlane.xlu0 %4591
        %v4593 = vsel %vm4327, %v4583, 0.0
        %4594 = vadd.xlane.f32.xlu0 %v4593
        %v4595 = vpop.xlane.xlu0 %4594
        %v4596 = vrcp.pop %v4586
        %v4597 = vrcp.pop %v4589
        %v4598 = vrcp.pop %v4592
        %v4599 = vrcp.pop %v4595
        %v4600 = vmul.f32 %v4577, %v4596
        %v4601 = vmul.f32 %v4579, %v4597
        %v4602 = vmul.f32 %v4581, %v4598
        %v4603 = vmul.f32 %v4583, %v4599
        %v4604 = vpack.c.bf16 %v4601, %v4600
        %v4605 = vpack.c.bf16 %v4603, %v4602
        %4607 = vrot.lane.b32.xlu0 %v4374, 120
        %v4608 = vpop.permute.xlu0 %4607
        %v4611 = vsel %vm4327, %v4604, 0
        %v4614 = vsel %vm4327, %v4605, 0
        %4616 = vmatprep.subr.bf16.mxu0 0
        %4617 = vmatpush1.bf16.msra.mxu0 %v4608
        %4618 = vmatprep.subr.bf16.mxu0 0
        %4619 = vmatpush1.bf16.msra.mxu0 0
        %4620 = vmatprep.subr.bf16.mxu0 0
        %4621 = vmatpush1.bf16.msra.mxu0 0
        %4622 = vmatprep.subr.bf16.mxu0 0
        %4623 = vmatpush1.bf16.msra.mxu0 0
        %4624 = vmatprep.subr.bf16.mxu0 0
        %4625 = vmatpush1.bf16.msra.mxu0 0
        %4626 = vmatprep.subr.bf16.mxu0 0
        %4627 = vmatpush1.bf16.msra.mxu0 0
        %4628 = vmatprep.subr.bf16.mxu0 0
        %4629 = vmatpush1.bf16.msra.mxu0 0
        %4630 = vmatprep.subr.bf16.mxu0 0
        %4631 = vmatpush1.bf16.msra.mxu0 0
        %4632 = vmatprep.subr.bf16.mxu0 0
        %4633 = vmatpush1.bf16.msra.mxu0 0
        %4634 = vmatprep.subr.bf16.mxu0 0
        %4635 = vmatpush1.bf16.msra.mxu0 0
        %4636 = vmatprep.subr.bf16.mxu0 0
        %4637 = vmatpush1.bf16.msra.mxu0 0
        %4638 = vmatprep.subr.bf16.mxu0 0
        %4639 = vmatpush1.bf16.msra.mxu0 0
        %4640 = vmatprep.subr.bf16.mxu0 0
        %4641 = vmatpush1.bf16.msra.mxu0 0
        %4642 = vmatprep.subr.bf16.mxu0 0
        %4643 = vmatpush1.bf16.msra.mxu0 0
        %4644 = vmatprep.subr.bf16.mxu0 0
        %4645 = vmatpush1.bf16.msra.mxu0 0
        %4646 = vmatprep.subr.bf16.mxu0 0
        %4647 = vmatpush1.bf16.msra.mxu0 0
        %4648 = vmatprep.mubr.bf16.mxu0 0
        %4649 = vmatmul.mubr.bf16.gmra.mrb[0].mxu0 %v4611
        %v4650 = vpop.f32.mrb[0].mxu0
        %v4651 = vadd.f32 0.0, %v4650
        %v4652 = vpop.f32.mrb[0].mxu0
        %v4653 = vpop.f32.mrb[0].mxu0
        %v4654 = vadd.f32 0.0, %v4653
        %v4655 = vpop.f32.mrb[0].mxu0
        %4656 = vmatprep.mubr.bf16.mxu0 0
        %4657 = vmatmul.mubr.bf16.gmra.mrb[0].mxu0 %v4614
        %v4658 = vpop.f32.mrb[0].mxu0
        %v4659 = vadd.f32 0.0, %v4658
        %v4660 = vpop.f32.mrb[0].mxu0
        %v4661 = vpop.f32.mrb[0].mxu0
        %v4662 = vadd.f32 0.0, %v4661
        %v4663 = vpop.f32.mrb[0].mxu0
        %4664 = vdwg.mxu0
        %v4665 = vpack.c.bf16 %v4654, %v4651
        %v4666 = vpack.c.bf16 %v4662, %v4659
        %v4667 = vpack.c.bf16 %v1626, %v1626
        %v4669 = vsel %vm1892, %v4665, 0
        %v4672 = vsel %vm1892, %v4666, 0
        %v4675 = vsel %vm1899, %v4667, 0
        %4677 = vmatprep.subr.bf16.mxu0 0
        %4678 = vmatpush1.bf16.msra.mxu0 %v4675
        %4679 = vmatprep.subr.bf16.mxu0 0
        %4680 = vmatpush1.bf16.msra.mxu0 0
        %4681 = vmatprep.subr.bf16.mxu0 0
        %4682 = vmatpush1.bf16.msra.mxu0 0
        %4683 = vmatprep.subr.bf16.mxu0 0
        %4684 = vmatpush1.bf16.msra.mxu0 0
        %4685 = vmatprep.subr.bf16.mxu0 0
        %4686 = vmatpush1.bf16.msra.mxu0 0
        %4687 = vmatprep.subr.bf16.mxu0 0
        %4688 = vmatpush1.bf16.msra.mxu0 0
        %4689 = vmatprep.subr.bf16.mxu0 0
        %4690 = vmatpush1.bf16.msra.mxu0 0
        %4691 = vmatprep.subr.bf16.mxu0 0
        %4692 = vmatpush1.bf16.msra.mxu0 0
        %4693 = vmatprep.subr.bf16.mxu0 0
        %4694 = vmatpush1.bf16.msra.mxu0 0
        %4695 = vmatprep.subr.bf16.mxu0 0
        %4696 = vmatpush1.bf16.msra.mxu0 0
        %4697 = vmatprep.subr.bf16.mxu0 0
        %4698 = vmatpush1.bf16.msra.mxu0 0
        %4699 = vmatprep.subr.bf16.mxu0 0
        %4700 = vmatpush1.bf16.msra.mxu0 0
        %4701 = vmatprep.subr.bf16.mxu0 0
        %4702 = vmatpush1.bf16.msra.mxu0 0
        %4703 = vmatprep.subr.bf16.mxu0 0
        %4704 = vmatpush1.bf16.msra.mxu0 0
        %4705 = vmatprep.subr.bf16.mxu0 0
        %4706 = vmatpush1.bf16.msra.mxu0 0
        %4707 = vmatprep.subr.bf16.mxu0 0
        %4708 = vmatpush1.bf16.msra.mxu0 0
        %4709 = vmatprep.mubr.bf16.mxu0 0
        %4710 = vmatmul.mubr.bf16.gmra.mrb[0].mxu0 %v4669
        %v4711 = vpop.f32.mrb[0].mxu0
        %v4712 = vadd.f32 0.0, %v4711
        %v4713 = vpop.f32.mrb[0].mxu0
        %v4714 = vpop.f32.mrb[0].mxu0
        %v4715 = vadd.f32 0.0, %v4714
        %v4716 = vpop.f32.mrb[0].mxu0
        %4717 = vmatprep.mubr.bf16.mxu0 0
        %4718 = vmatmul.mubr.bf16.gmra.mrb[0].mxu0 %v4672
        %v4719 = vpop.f32.mrb[0].mxu0
        %v4720 = vadd.f32 0.0, %v4719
        %v4721 = vpop.f32.mrb[0].mxu0
        %v4722 = vpop.f32.mrb[0].mxu0
        %v4723 = vadd.f32 0.0, %v4722
        %v4724 = vpop.f32.mrb[0].mxu0
        %4725 = vdwg.mxu0
        %v4726 = vadd.f32 %v4491, %v4712
        %v4727 = vadd.f32 %v4492, %v4715
        %v4728 = vadd.f32 %v4493, %v4720
        %v4729 = vadd.f32 %v4494, %v4723
        %v4730 = vpack.c.bf16 %v4245, %v4245
        %4731 = vrot.lane.b32.xlu0 %v4266, 112
        %v4732 = vpop.permute.xlu0 %4731
        %4733 = vrot.lane.b32.xlu0 %v4267, 112
        %v4734 = vpop.permute.xlu0 %4733
        %v4736 = vsel %vm1892, %v4732, 0
        %v4739 = vsel %vm1892, %v4734, 0
        %v4742 = vsel %vm1899, %v4730, 0
        %4744 = vmatprep.subr.bf16.mxu0 0
        %4745 = vmatpush1.bf16.msra.mxu0 %v4742
        %4746 = vmatprep.subr.bf16.mxu0 0
        %4747 = vmatpush1.bf16.msra.mxu0 0
        %4748 = vmatprep.subr.bf16.mxu0 0
        %4749 = vmatpush1.bf16.msra.mxu0 0
        %4750 = vmatprep.subr.bf16.mxu0 0
        %4751 = vmatpush1.bf16.msra.mxu0 0
        %4752 = vmatprep.subr.bf16.mxu0 0
        %4753 = vmatpush1.bf16.msra.mxu0 0
        %4754 = vmatprep.subr.bf16.mxu0 0
        %4755 = vmatpush1.bf16.msra.mxu0 0
        %4756 = vmatprep.subr.bf16.mxu0 0
        %4757 = vmatpush1.bf16.msra.mxu0 0
        %4758 = vmatprep.subr.bf16.mxu0 0
        %4759 = vmatpush1.bf16.msra.mxu0 0
        %4760 = vmatprep.subr.bf16.mxu0 0
        %4761 = vmatpush1.bf16.msra.mxu0 0
        %4762 = vmatprep.subr.bf16.mxu0 0
        %4763 = vmatpush1.bf16.msra.mxu0 0
        %4764 = vmatprep.subr.bf16.mxu0 0
        %4765 = vmatpush1.bf16.msra.mxu0 0
        %4766 = vmatprep.subr.bf16.mxu0 0
        %4767 = vmatpush1.bf16.msra.mxu0 0
        %4768 = vmatprep.subr.bf16.mxu0 0
        %4769 = vmatpush1.bf16.msra.mxu0 0
        %4770 = vmatprep.subr.bf16.mxu0 0
        %4771 = vmatpush1.bf16.msra.mxu0 0
        %4772 = vmatprep.subr.bf16.mxu0 0
        %4773 = vmatpush1.bf16.msra.mxu0 0
        %4774 = vmatprep.subr.bf16.mxu0 0
        %4775 = vmatpush1.bf16.msra.mxu0 0
        %4776 = vmatprep.mubr.bf16.mxu0 0
        %4777 = vmatmul.mubr.bf16.gmra.mrb[0].mxu0 %v4736
        %v4778 = vpop.f32.mrb[0].mxu0
        %v4779 = vadd.f32 %v4060, %v4778
        %v4780 = vpop.f32.mrb[0].mxu0
        %v4781 = vpop.f32.mrb[0].mxu0
        %v4782 = vadd.f32 %v4061, %v4781
        %v4783 = vpop.f32.mrb[0].mxu0
        %4784 = vmatprep.mubr.bf16.mxu0 0
        %4785 = vmatmul.mubr.bf16.gmra.mrb[0].mxu0 %v4739
        %v4786 = vpop.f32.mrb[0].mxu0
        %v4787 = vadd.f32 %v4062, %v4786
        %v4788 = vpop.f32.mrb[0].mxu0
        %v4789 = vpop.f32.mrb[0].mxu0
        %v4790 = vadd.f32 %v4063, %v4789
        %v4791 = vpop.f32.mrb[0].mxu0
        %4792 = vdwg.mxu0
        %v4793 = vsel %vm4327, %v4779, -inf
        %4794 = vmax.xlane.f32.xlu0 %v4793
        %v4795 = vpop.xlane.xlu0 %4794
        %v4796 = vsel %vm4327, %v4782, -inf
        %4797 = vmax.xlane.f32.xlu0 %v4796
        %v4798 = vpop.xlane.xlu0 %4797
        %v4799 = vsel %vm4327, %v4787, -inf
        %4800 = vmax.xlane.f32.xlu0 %v4799
        %v4801 = vpop.xlane.xlu0 %4800
        %v4802 = vsel %vm4327, %v4790, -inf
        %4803 = vmax.xlane.f32.xlu0 %v4802
        %v4804 = vpop.xlane.xlu0 %4803
        %v4805 = vsub.f32 %v4779, %v4795
        %v4806 = vsub.f32 %v4782, %v4798
        %v4807 = vsub.f32 %v4787, %v4801
        %v4808 = vsub.f32 %v4790, %v4804
        %v4809 = vmul.f32 %v4805, 1.442695
        %v4810 = vpow.pop %v4809
        %v4811 = vmul.f32 %v4806, 1.442695
        %v4812 = vpow.pop %v4811
        %v4813 = vmul.f32 %v4807, 1.442695
        %v4814 = vpow.pop %v4813
        %v4815 = vmul.f32 %v4808, 1.442695
        %v4816 = vpow.pop %v4815
        %v4817 = vsel %vm4327, %v4810, 0.0
        %4818 = vadd.xlane.f32.xlu0 %v4817
        %v4819 = vpop.xlane.xlu0 %4818
        %v4820 = vsel %vm4327, %v4812, 0.0
        %4821 = vadd.xlane.f32.xlu0 %v4820
        %v4822 = vpop.xlane.xlu0 %4821
        %v4823 = vsel %vm4327, %v4814, 0.0
        %4824 = vadd.xlane.f32.xlu0 %v4823
        %v4825 = vpop.xlane.xlu0 %4824
        %v4826 = vsel %vm4327, %v4816, 0.0
        %4827 = vadd.xlane.f32.xlu0 %v4826
        %v4828 = vpop.xlane.xlu0 %4827
        %v4829 = vrcp.pop %v4819
        %v4830 = vrcp.pop %v4822
        %v4831 = vrcp.pop %v4825
        %v4832 = vrcp.pop %v4828
        %v4833 = vmul.f32 %v4810, %v4829
        %v4834 = vmul.f32 %v4812, %v4830
        %v4835 = vmul.f32 %v4814, %v4831
        %v4836 = vmul.f32 %v4816, %v4832
        %v4837 = vpack.c.bf16 %v4834, %v4833
        %v4838 = vpack.c.bf16 %v4836, %v4835
        %4839 = vrot.lane.b32.xlu0 %v4374, 112
        %v4840 = vpop.permute.xlu0 %4839
        %v4843 = vsel %vm4327, %v4837, 0
        %v4846 = vsel %vm4327, %v4838, 0
        %4848 = vmatprep.subr.bf16.mxu0 0
        %4849 = vmatpush1.bf16.msra.mxu0 %v4840
        %4850 = vmatprep.subr.bf16.mxu0 0
        %4851 = vmatpush1.bf16.msra.mxu0 0
        %4852 = vmatprep.subr.bf16.mxu0 0
        %4853 = vmatpush1.bf16.msra.mxu0 0
        %4854 = vmatprep.subr.bf16.mxu0 0
        %4855 = vmatpush1.bf16.msra.mxu0 0
        %4856 = vmatprep.subr.bf16.mxu0 0
        %4857 = vmatpush1.bf16.msra.mxu0 0
        %4858 = vmatprep.subr.bf16.mxu0 0
        %4859 = vmatpush1.bf16.msra.mxu0 0
        %4860 = vmatprep.subr.bf16.mxu0 0
        %4861 = vmatpush1.bf16.msra.mxu0 0
        %4862 = vmatprep.subr.bf16.mxu0 0
        %4863 = vmatpush1.bf16.msra.mxu0 0
        %4864 = vmatprep.subr.bf16.mxu0 0
        %4865 = vmatpush1.bf16.msra.mxu0 0
        %4866 = vmatprep.subr.bf16.mxu0 0
        %4867 = vmatpush1.bf16.msra.mxu0 0
        %4868 = vmatprep.subr.bf16.mxu0 0
        %4869 = vmatpush1.bf16.msra.mxu0 0
        %4870 = vmatprep.subr.bf16.mxu0 0
        %4871 = vmatpush1.bf16.msra.mxu0 0
        %4872 = vmatprep.subr.bf16.mxu0 0
        %4873 = vmatpush1.bf16.msra.mxu0 0
        %4874 = vmatprep.subr.bf16.mxu0 0
        %4875 = vmatpush1.bf16.msra.mxu0 0
        %4876 = vmatprep.subr.bf16.mxu0 0
        %4877 = vmatpush1.bf16.msra.mxu0 0
        %4878 = vmatprep.subr.bf16.mxu0 0
        %4879 = vmatpush1.bf16.msra.mxu0 0
        %4880 = vmatprep.mubr.bf16.mxu0 0
        %4881 = vmatmul.mubr.bf16.gmra.mrb[0].mxu0 %v4843
        %v4882 = vpop.f32.mrb[0].mxu0
        %v4883 = vadd.f32 0.0, %v4882
        %v4884 = vpop.f32.mrb[0].mxu0
        %v4885 = vpop.f32.mrb[0].mxu0
        %v4886 = vadd.f32 0.0, %v4885
        %v4887 = vpop.f32.mrb[0].mxu0
        %4888 = vmatprep.mubr.bf16.mxu0 0
        %4889 = vmatmul.mubr.bf16.gmra.mrb[0].mxu0 %v4846
        %v4890 = vpop.f32.mrb[0].mxu0
        %v4891 = vadd.f32 0.0, %v4890
        %v4892 = vpop.f32.mrb[0].mxu0
        %v4893 = vpop.f32.mrb[0].mxu0
        %v4894 = vadd.f32 0.0, %v4893
        %v4895 = vpop.f32.mrb[0].mxu0
        %4896 = vdwg.mxu0
        %v4897 = vpack.c.bf16 %v4886, %v4883
        %v4898 = vpack.c.bf16 %v4894, %v4891
        %v4899 = vpack.c.bf16 %v1627, %v1627
        %v4901 = vsel %vm1892, %v4897, 0
        %v4904 = vsel %vm1892, %v4898, 0
        %v4907 = vsel %vm1899, %v4899, 0
        %4909 = vmatprep.subr.bf16.mxu0 0
        %4910 = vmatpush1.bf16.msra.mxu0 %v4907
        %4911 = vmatprep.subr.bf16.mxu0 0
        %4912 = vmatpush1.bf16.msra.mxu0 0
        %4913 = vmatprep.subr.bf16.mxu0 0
        %4914 = vmatpush1.bf16.msra.mxu0 0
        %4915 = vmatprep.subr.bf16.mxu0 0
        %4916 = vmatpush1.bf16.msra.mxu0 0
        %4917 = vmatprep.subr.bf16.mxu0 0
        %4918 = vmatpush1.bf16.msra.mxu0 0
        %4919 = vmatprep.subr.bf16.mxu0 0
        %4920 = vmatpush1.bf16.msra.mxu0 0
        %4921 = vmatprep.subr.bf16.mxu0 0
        %4922 = vmatpush1.bf16.msra.mxu0 0
        %4923 = vmatprep.subr.bf16.mxu0 0
        %4924 = vmatpush1.bf16.msra.mxu0 0
        %4925 = vmatprep.subr.bf16.mxu0 0
        %4926 = vmatpush1.bf16.msra.mxu0 0
        %4927 = vmatprep.subr.bf16.mxu0 0
        %4928 = vmatpush1.bf16.msra.mxu0 0
        %4929 = vmatprep.subr.bf16.mxu0 0
        %4930 = vmatpush1.bf16.msra.mxu0 0
        %4931 = vmatprep.subr.bf16.mxu0 0
        %4932 = vmatpush1.bf16.msra.mxu0 0
        %4933 = vmatprep.subr.bf16.mxu0 0
        %4934 = vmatpush1.bf16.msra.mxu0 0
        %4935 = vmatprep.subr.bf16.mxu0 0
        %4936 = vmatpush1.bf16.msra.mxu0 0
        %4937 = vmatprep.subr.bf16.mxu0 0
        %4938 = vmatpush1.bf16.msra.mxu0 0
        %4939 = vmatprep.subr.bf16.mxu0 0
        %4940 = vmatpush1.bf16.msra.mxu0 0
        %4941 = vmatprep.mubr.bf16.mxu0 0
        %4942 = vmatmul.mubr.bf16.gmra.mrb[0].mxu0 %v4901
        %v4943 = vpop.f32.mrb[0].mxu0
        %v4944 = vadd.f32 0.0, %v4943
        %v4945 = vpop.f32.mrb[0].mxu0
        %v4946 = vpop.f32.mrb[0].mxu0
        %v4947 = vadd.f32 0.0, %v4946
        %v4948 = vpop.f32.mrb[0].mxu0
        %4949 = vmatprep.mubr.bf16.mxu0 0
        %4950 = vmatmul.mubr.bf16.gmra.mrb[0].mxu0 %v4904
        %v4951 = vpop.f32.mrb[0].mxu0
        %v4952 = vadd.f32 0.0, %v4951
        %v4953 = vpop.f32.mrb[0].mxu0
        %v4954 = vpop.f32.mrb[0].mxu0
        %v4955 = vadd.f32 0.0, %v4954
        %v4956 = vpop.f32.mrb[0].mxu0
        %4957 = vdwg.mxu0
        %v4958 = vadd.f32 %v4726, %v4944
        %v4959 = vadd.f32 %v4727, %v4947
        %v4960 = vadd.f32 %v4728, %v4952
        %v4961 = vadd.f32 %v4729, %v4955
        %v4962 = vpack.c.bf16 %v4246, %v4246
        %4963 = vrot.lane.b32.xlu0 %v4266, 104
        %v4964 = vpop.permute.xlu0 %4963
        %4965 = vrot.lane.b32.xlu0 %v4267, 104
        %v4966 = vpop.permute.xlu0 %4965
        %v4968 = vsel %vm1892, %v4964, 0
        %v4971 = vsel %vm1892, %v4966, 0
        %v4974 = vsel %vm1899, %v4962, 0
        %4976 = vmatprep.subr.bf16.mxu0 0
        %4977 = vmatpush1.bf16.msra.mxu0 %v4974
        %4978 = vmatprep.subr.bf16.mxu0 0
        %4979 = vmatpush1.bf16.msra.mxu0 0
        %4980 = vmatprep.subr.bf16.mxu0 0
        %4981 = vmatpush1.bf16.msra.mxu0 0
        %4982 = vmatprep.subr.bf16.mxu0 0
        %4983 = vmatpush1.bf16.msra.mxu0 0
        %4984 = vmatprep.subr.bf16.mxu0 0
        %4985 = vmatpush1.bf16.msra.mxu0 0
        %4986 = vmatprep.subr.bf16.mxu0 0
        %4987 = vmatpush1.bf16.msra.mxu0 0
        %4988 = vmatprep.subr.bf16.mxu0 0
        %4989 = vmatpush1.bf16.msra.mxu0 0
        %4990 = vmatprep.subr.bf16.mxu0 0
        %4991 = vmatpush1.bf16.msra.mxu0 0
        %4992 = vmatprep.subr.bf16.mxu0 0
        %4993 = vmatpush1.bf16.msra.mxu0 0
        %4994 = vmatprep.subr.bf16.mxu0 0
        %4995 = vmatpush1.bf16.msra.mxu0 0
        %4996 = vmatprep.subr.bf16.mxu0 0
        %4997 = vmatpush1.bf16.msra.mxu0 0
        %4998 = vmatprep.subr.bf16.mxu0 0
        %4999 = vmatpush1.bf16.msra.mxu0 0
        %5000 = vmatprep.subr.bf16.mxu0 0
        %5001 = vmatpush1.bf16.msra.mxu0 0
        %5002 = vmatprep.subr.bf16.mxu0 0
        %5003 = vmatpush1.bf16.msra.mxu0 0
        %5004 = vmatprep.subr.bf16.mxu0 0
        %5005 = vmatpush1.bf16.msra.mxu0 0
        %5006 = vmatprep.subr.bf16.mxu0 0
        %5007 = vmatpush1.bf16.msra.mxu0 0
        %5008 = vmatprep.mubr.bf16.mxu0 0
        %5009 = vmatmul.mubr.bf16.gmra.mrb[0].mxu0 %v4968
        %v5010 = vpop.f32.mrb[0].mxu0
        %v5011 = vadd.f32 %v4060, %v5010
        %v5012 = vpop.f32.mrb[0].mxu0
        %v5013 = vpop.f32.mrb[0].mxu0
        %v5014 = vadd.f32 %v4061, %v5013
        %v5015 = vpop.f32.mrb[0].mxu0
        %5016 = vmatprep.mubr.bf16.mxu0 0
        %5017 = vmatmul.mubr.bf16.gmra.mrb[0].mxu0 %v4971
        %v5018 = vpop.f32.mrb[0].mxu0
        %v5019 = vadd.f32 %v4062, %v5018
        %v5020 = vpop.f32.mrb[0].mxu0
        %v5021 = vpop.f32.mrb[0].mxu0
        %v5022 = vadd.f32 %v4063, %v5021
        %v5023 = vpop.f32.mrb[0].mxu0
        %5024 = vdwg.mxu0
        %v5025 = vsel %vm4327, %v5011, -inf
        %5026 = vmax.xlane.f32.xlu0 %v5025
        %v5027 = vpop.xlane.xlu0 %5026
        %v5028 = vsel %vm4327, %v5014, -inf
        %5029 = vmax.xlane.f32.xlu0 %v5028
        %v5030 = vpop.xlane.xlu0 %5029
        %v5031 = vsel %vm4327, %v5019, -inf
        %5032 = vmax.xlane.f32.xlu0 %v5031
        %v5033 = vpop.xlane.xlu0 %5032
        %v5034 = vsel %vm4327, %v5022, -inf
        %5035 = vmax.xlane.f32.xlu0 %v5034
        %v5036 = vpop.xlane.xlu0 %5035
        %v5037 = vsub.f32 %v5011, %v5027
        %v5038 = vsub.f32 %v5014, %v5030
        %v5039 = vsub.f32 %v5019, %v5033
        %v5040 = vsub.f32 %v5022, %v5036
        %v5041 = vmul.f32 %v5037, 1.442695
        %v5042 = vpow.pop %v5041
        %v5043 = vmul.f32 %v5038, 1.442695
        %v5044 = vpow.pop %v5043
        %v5045 = vmul.f32 %v5039, 1.442695
        %v5046 = vpow.pop %v5045
        %v5047 = vmul.f32 %v5040, 1.442695
        %v5048 = vpow.pop %v5047
        %v5049 = vsel %vm4327, %v5042, 0.0
        %5050 = vadd.xlane.f32.xlu0 %v5049
        %v5051 = vpop.xlane.xlu0 %5050
        %v5052 = vsel %vm4327, %v5044, 0.0
        %5053 = vadd.xlane.f32.xlu0 %v5052
        %v5054 = vpop.xlane.xlu0 %5053
        %v5055 = vsel %vm4327, %v5046, 0.0
        %5056 = vadd.xlane.f32.xlu0 %v5055
        %v5057 = vpop.xlane.xlu0 %5056
        %v5058 = vsel %vm4327, %v5048, 0.0
        %5059 = vadd.xlane.f32.xlu0 %v5058
        %v5060 = vpop.xlane.xlu0 %5059
        %v5061 = vrcp.pop %v5051
        %v5062 = vrcp.pop %v5054
        %v5063 = vrcp.pop %v5057
        %v5064 = vrcp.pop %v5060
        %v5065 = vmul.f32 %v5042, %v5061
        %v5066 = vmul.f32 %v5044, %v5062
        %v5067 = vmul.f32 %v5046, %v5063
        %v5068 = vmul.f32 %v5048, %v5064
        %v5069 = vpack.c.bf16 %v5066, %v5065
        %v5070 = vpack.c.bf16 %v5068, %v5067
        %5071 = vrot.lane.b32.xlu0 %v4374, 104
        %v5072 = vpop.permute.xlu0 %5071
        %v5075 = vsel %vm4327, %v5069, 0
        %v5078 = vsel %vm4327, %v5070, 0
        %5080 = vmatprep.subr.bf16.mxu0 0
        %5081 = vmatpush1.bf16.msra.mxu0 %v5072
        %5082 = vmatprep.subr.bf16.mxu0 0
        %5083 = vmatpush1.bf16.msra.mxu0 0
        %5084 = vmatprep.subr.bf16.mxu0 0
        %5085 = vmatpush1.bf16.msra.mxu0 0
        %5086 = vmatprep.subr.bf16.mxu0 0
        %5087 = vmatpush1.bf16.msra.mxu0 0
        %5088 = vmatprep.subr.bf16.mxu0 0
        %5089 = vmatpush1.bf16.msra.mxu0 0
        %5090 = vmatprep.subr.bf16.mxu0 0
        %5091 = vmatpush1.bf16.msra.mxu0 0
        %5092 = vmatprep.subr.bf16.mxu0 0
        %5093 = vmatpush1.bf16.msra.mxu0 0
        %5094 = vmatprep.subr.bf16.mxu0 0
        %5095 = vmatpush1.bf16.msra.mxu0 0
        %5096 = vmatprep.subr.bf16.mxu0 0
        %5097 = vmatpush1.bf16.msra.mxu0 0
        %5098 = vmatprep.subr.bf16.mxu0 0
        %5099 = vmatpush1.bf16.msra.mxu0 0
        %5100 = vmatprep.subr.bf16.mxu0 0
        %5101 = vmatpush1.bf16.msra.mxu0 0
        %5102 = vmatprep.subr.bf16.mxu0 0
        %5103 = vmatpush1.bf16.msra.mxu0 0
        %5104 = vmatprep.subr.bf16.mxu0 0
        %5105 = vmatpush1.bf16.msra.mxu0 0
        %5106 = vmatprep.subr.bf16.mxu0 0
        %5107 = vmatpush1.bf16.msra.mxu0 0
        %5108 = vmatprep.subr.bf16.mxu0 0
        %5109 = vmatpush1.bf16.msra.mxu0 0
        %5110 = vmatprep.subr.bf16.mxu0 0
        %5111 = vmatpush1.bf16.msra.mxu0 0
        %5112 = vmatprep.mubr.bf16.mxu0 0
        %5113 = vmatmul.mubr.bf16.gmra.mrb[0].mxu0 %v5075
        %v5114 = vpop.f32.mrb[0].mxu0
        %v5115 = vadd.f32 0.0, %v5114
        %v5116 = vpop.f32.mrb[0].mxu0
        %v5117 = vpop.f32.mrb[0].mxu0
        %v5118 = vadd.f32 0.0, %v5117
        %v5119 = vpop.f32.mrb[0].mxu0
        %5120 = vmatprep.mubr.bf16.mxu0 0
        %5121 = vmatmul.mubr.bf16.gmra.mrb[0].mxu0 %v5078
        %v5122 = vpop.f32.mrb[0].mxu0
        %v5123 = vadd.f32 0.0, %v5122
        %v5124 = vpop.f32.mrb[0].mxu0
        %v5125 = vpop.f32.mrb[0].mxu0
        %v5126 = vadd.f32 0.0, %v5125
        %v5127 = vpop.f32.mrb[0].mxu0
        %5128 = vdwg.mxu0
        %v5129 = vpack.c.bf16 %v5118, %v5115
        %v5130 = vpack.c.bf16 %v5126, %v5123
        %v5131 = vpack.c.bf16 %v1628, %v1628
        %v5133 = vsel %vm1892, %v5129, 0
        %v5136 = vsel %vm1892, %v5130, 0
        %v5139 = vsel %vm1899, %v5131, 0
        %5141 = vmatprep.subr.bf16.mxu0 0
        %5142 = vmatpush1.bf16.msra.mxu0 %v5139
        %5143 = vmatprep.subr.bf16.mxu0 0
        %5144 = vmatpush1.bf16.msra.mxu0 0
        %5145 = vmatprep.subr.bf16.mxu0 0
        %5146 = vmatpush1.bf16.msra.mxu0 0
        %5147 = vmatprep.subr.bf16.mxu0 0
        %5148 = vmatpush1.bf16.msra.mxu0 0
        %5149 = vmatprep.subr.bf16.mxu0 0
        %5150 = vmatpush1.bf16.msra.mxu0 0
        %5151 = vmatprep.subr.bf16.mxu0 0
        %5152 = vmatpush1.bf16.msra.mxu0 0
        %5153 = vmatprep.subr.bf16.mxu0 0
        %5154 = vmatpush1.bf16.msra.mxu0 0
        %5155 = vmatprep.subr.bf16.mxu0 0
        %5156 = vmatpush1.bf16.msra.mxu0 0
        %5157 = vmatprep.subr.bf16.mxu0 0
        %5158 = vmatpush1.bf16.msra.mxu0 0
        %5159 = vmatprep.subr.bf16.mxu0 0
        %5160 = vmatpush1.bf16.msra.mxu0 0
        %5161 = vmatprep.subr.bf16.mxu0 0
        %5162 = vmatpush1.bf16.msra.mxu0 0
        %5163 = vmatprep.subr.bf16.mxu0 0
        %5164 = vmatpush1.bf16.msra.mxu0 0
        %5165 = vmatprep.subr.bf16.mxu0 0
        %5166 = vmatpush1.bf16.msra.mxu0 0
        %5167 = vmatprep.subr.bf16.mxu0 0
        %5168 = vmatpush1.bf16.msra.mxu0 0
        %5169 = vmatprep.subr.bf16.mxu0 0
        %5170 = vmatpush1.bf16.msra.mxu0 0
        %5171 = vmatprep.subr.bf16.mxu0 0
        %5172 = vmatpush1.bf16.msra.mxu0 0
        %5173 = vmatprep.mubr.bf16.mxu0 0
        %5174 = vmatmul.mubr.bf16.gmra.mrb[0].mxu0 %v5133
        %v5175 = vpop.f32.mrb[0].mxu0
        %v5176 = vadd.f32 0.0, %v5175
        %v5177 = vpop.f32.mrb[0].mxu0
        %v5178 = vpop.f32.mrb[0].mxu0
        %v5179 = vadd.f32 0.0, %v5178
        %v5180 = vpop.f32.mrb[0].mxu0
        %5181 = vmatprep.mubr.bf16.mxu0 0
        %5182 = vmatmul.mubr.bf16.gmra.mrb[0].mxu0 %v5136
        %v5183 = vpop.f32.mrb[0].mxu0
        %v5184 = vadd.f32 0.0, %v5183
        %v5185 = vpop.f32.mrb[0].mxu0
        %v5186 = vpop.f32.mrb[0].mxu0
        %v5187 = vadd.f32 0.0, %v5186
        %v5188 = vpop.f32.mrb[0].mxu0
        %5189 = vdwg.mxu0
        %v5190 = vadd.f32 %v4958, %v5176
        %v5191 = vadd.f32 %v4959, %v5179
        %v5192 = vadd.f32 %v4960, %v5184
        %v5193 = vadd.f32 %v4961, %v5187
        %v5194 = vadd.f32 %v3144, %v5190
        %v5195 = vadd.f32 %v3145, %v5191
        %v5196 = vadd.f32 %v3146, %v5192
        %v5197 = vadd.f32 %v3147, %v5193
        %v5198 = vsel %vm1676, %v5194, 0.0
        %5199 = vadd.xlane.f32.xlu0 %v5198
        %v5200 = vpop.xlane.xlu0 %5199
        %v5201 = vsel %vm1676, %v5195, 0.0
        %5202 = vadd.xlane.f32.xlu0 %v5201
        %v5203 = vpop.xlane.xlu0 %5202
        %v5204 = vsel %vm1676, %v5196, 0.0
        %5205 = vadd.xlane.f32.xlu0 %v5204
        %v5206 = vpop.xlane.xlu0 %5205
        %v5207 = vsel %vm1676, %v5197, 0.0
        %5208 = vadd.xlane.f32.xlu0 %v5207
        %v5209 = vpop.xlane.xlu0 %5208
        %v5210 = vmul.f32 %v5200, %v2845
        %v5211 = vmul.f32 %v5203, %v2845
        %v5212 = vmul.f32 %v5206, %v2845
        %v5213 = vmul.f32 %v5209, %v2845
        %v5214 = vsub.f32 %v5194, %v5210
        %v5215 = vsub.f32 %v5195, %v5211
        %v5216 = vsub.f32 %v5196, %v5212
        %v5217 = vsub.f32 %v5197, %v5213
        %v5218 = vmul.f32 %v5214, %v5214
        %v5219 = vmul.f32 %v5215, %v5215
        %v5220 = vmul.f32 %v5216, %v5216
        %v5221 = vmul.f32 %v5217, %v5217
        %v5222 = vsel %vm1676, %v5218, 0.0
        %5223 = vadd.xlane.f32.xlu0 %v5222
        %v5224 = vpop.xlane.xlu0 %5223
        %v5225 = vsel %vm1676, %v5219, 0.0
        %5226 = vadd.xlane.f32.xlu0 %v5225
        %v5227 = vpop.xlane.xlu0 %5226
        %v5228 = vsel %vm1676, %v5220, 0.0
        %5229 = vadd.xlane.f32.xlu0 %v5228
        %v5230 = vpop.xlane.xlu0 %5229
        %v5231 = vsel %vm1676, %v5221, 0.0
        %5232 = vadd.xlane.f32.xlu0 %v5231
        %v5233 = vpop.xlane.xlu0 %5232
        %v5234 = vmul.f32 %v5224, %v2845
        %v5235 = vmul.f32 %v5227, %v2845
        %v5236 = vmul.f32 %v5230, %v2845
        %v5237 = vmul.f32 %v5233, %v2845
        %v5238 = vadd.f32 %v5234, 1e-05
        %v5239 = vadd.f32 %v5235, 1e-05
        %v5240 = vadd.f32 %v5236, 1e-05
        %v5241 = vadd.f32 %v5237, 1e-05
        %v5242 = vrsqrt.pop %v5238
        %v5243 = vrsqrt.pop %v5239
        %v5244 = vrsqrt.pop %v5240
        %v5245 = vrsqrt.pop %v5241
        %v5246 = vmul.f32 %v5214, %v5242
        %v5247 = vmul.f32 %v5215, %v5243
        %v5248 = vmul.f32 %v5216, %v5244
        %v5249 = vmul.f32 %v5217, %v5245
        %v5251 = vlaneseq
        %v5252 = vshrl.u32 %v5251, 7
        %v5253 = vsub.s32 0, %v5252
        %v5254 = vrot.slane %v1630, %v5253
        %v5256 = vmul.f32 %v5246, %v5254
        %v5257 = vmul.f32 %v5247, %v5254
        %v5258 = vmul.f32 %v5248, %v5254
        %v5259 = vmul.f32 %v5249, %v5254
        %v5261 = vlaneseq
        %v5262 = vshrl.u32 %v5261, 7
        %v5263 = vsub.s32 0, %v5262
        %v5264 = vrot.slane %v1631, %v5263
        %v5266 = vadd.f32 %v5256, %v5264
        %v5267 = vadd.f32 %v5257, %v5264
        %v5268 = vadd.f32 %v5258, %v5264
        %v5269 = vadd.f32 %v5259, %v5264
        %v5270 = vpack.c.bf16 %v5267, %v5266
        %v5271 = vpack.c.bf16 %v5269, %v5268
        %v5272 = vpack.c.bf16 %v1633, %v1632
        %v5273 = vpack.c.bf16 %v1635, %v1634
        %v5275 = vlaneseq
        %v5276 = vshrl.u32 %v5275, 7
        %v5277 = vsub.s32 0, %v5276
        %v5278 = vrot.slane %v1636, %v5277
        %v5281 = vsel %vm1676, %v5270, 0
        %v5284 = vsel %vm1676, %v5271, 0
        %5286 = vmatprep.subr.bf16.mxu0 0
        %5287 = vmatpush1.bf16.msra.mxu0 %v5272
        %5288 = vmatprep.subr.bf16.mxu0 0
        %5289 = vmatpush1.bf16.msra.mxu0 %v5273
        %5290 = vmatprep.subr.bf16.mxu0 0
        %5291 = vmatpush1.bf16.msra.mxu0 0
        %5292 = vmatprep.subr.bf16.mxu0 0
        %5293 = vmatpush1.bf16.msra.mxu0 0
        %5294 = vmatprep.subr.bf16.mxu0 0
        %5295 = vmatpush1.bf16.msra.mxu0 0
        %5296 = vmatprep.subr.bf16.mxu0 0
        %5297 = vmatpush1.bf16.msra.mxu0 0
        %5298 = vmatprep.subr.bf16.mxu0 0
        %5299 = vmatpush1.bf16.msra.mxu0 0
        %5300 = vmatprep.subr.bf16.mxu0 0
        %5301 = vmatpush1.bf16.msra.mxu0 0
        %5302 = vmatprep.subr.bf16.mxu0 0
        %5303 = vmatpush1.bf16.msra.mxu0 0
        %5304 = vmatprep.subr.bf16.mxu0 0
        %5305 = vmatpush1.bf16.msra.mxu0 0
        %5306 = vmatprep.subr.bf16.mxu0 0
        %5307 = vmatpush1.bf16.msra.mxu0 0
        %5308 = vmatprep.subr.bf16.mxu0 0
        %5309 = vmatpush1.bf16.msra.mxu0 0
        %5310 = vmatprep.subr.bf16.mxu0 0
        %5311 = vmatpush1.bf16.msra.mxu0 0
        %5312 = vmatprep.subr.bf16.mxu0 0
        %5313 = vmatpush1.bf16.msra.mxu0 0
        %5314 = vmatprep.subr.bf16.mxu0 0
        %5315 = vmatpush1.bf16.msra.mxu0 0
        %5316 = vmatprep.subr.bf16.mxu0 0
        %5317 = vmatpush1.bf16.msra.mxu0 0
        %5318 = vmatprep.mubr.bf16.mxu0 0
        %5319 = vmatmul.mubr.bf16.gmra.mrb[0].mxu0 %v5281
        %v5320 = vpop.f32.mrb[0].mxu0
        %v5321 = vadd.f32 %v5278, %v5320
        %v5322 = vpop.f32.mrb[0].mxu0
        %v5323 = vpop.f32.mrb[0].mxu0
        %v5324 = vadd.f32 %v5278, %v5323
        %v5325 = vpop.f32.mrb[0].mxu0
        %5326 = vmatprep.mubr.bf16.mxu0 0
        %5327 = vmatmul.mubr.bf16.gmra.mrb[0].mxu0 %v5284
        %v5328 = vpop.f32.mrb[0].mxu0
        %v5329 = vadd.f32 %v5278, %v5328
        %v5330 = vpop.f32.mrb[0].mxu0
        %v5331 = vpop.f32.mrb[0].mxu0
        %v5332 = vadd.f32 %v5278, %v5331
        %v5333 = vpop.f32.mrb[0].mxu0
        %5334 = vdwg.mxu0
        %v5335 = vmul.f32 %v5321, 0.5
        %v5336 = vmul.f32 %v5324, 0.5
        %v5337 = vmul.f32 %v5329, 0.5
        %v5338 = vmul.f32 %v5332, 0.5
        %v5339 = vmul.f32 %v5321, 0.044715
        %v5340 = vmul.f32 %v5324, 0.044715
        %v5341 = vmul.f32 %v5329, 0.044715
        %v5342 = vmul.f32 %v5332, 0.044715
        %v5343 = vmul.f32 %v5339, %v5321
        %v5344 = vmul.f32 %v5340, %v5324
        %v5345 = vmul.f32 %v5341, %v5329
        %v5346 = vmul.f32 %v5342, %v5332
        %v5347 = vmul.f32 %v5343, %v5321
        %v5348 = vmul.f32 %v5344, %v5324
        %v5349 = vmul.f32 %v5345, %v5329
        %v5350 = vmul.f32 %v5346, %v5332
        %v5351 = vadd.f32 %v5321, %v5347
        %v5352 = vadd.f32 %v5324, %v5348
        %v5353 = vadd.f32 %v5329, %v5349
        %v5354 = vadd.f32 %v5332, %v5350
        %v5355 = vmul.f32 %v5351, 0.7978846
        %v5356 = vmul.f32 %v5352, 0.7978846
        %v5357 = vmul.f32 %v5353, 0.7978846
        %v5358 = vmul.f32 %v5354, 0.7978846
        %v5359 = vtanh.pop %v5355
        %v5360 = vtanh.pop %v5356
        %v5361 = vtanh.pop %v5357
        %v5362 = vtanh.pop %v5358
        %v5363 = vadd.f32 %v5359, 1.0
        %v5364 = vadd.f32 %v5360, 1.0
        %v5365 = vadd.f32 %v5361, 1.0
        %v5366 = vadd.f32 %v5362, 1.0
        %v5367 = vmul.f32 %v5335, %v5363
        %v5368 = vmul.f32 %v5336, %v5364
        %v5369 = vmul.f32 %v5337, %v5365
        %v5370 = vmul.f32 %v5338, %v5366
        %v5371 = vpack.c.bf16 %v5368, %v5367
        %v5372 = vpack.c.bf16 %v5370, %v5369
        %v5373 = vpack.c.bf16 %v1638, %v1637
        %v5374 = vpack.c.bf16 %v1640, %v1639
        %v5375 = vpack.c.bf16 %v1642, %v1641
        %v5376 = vpack.c.bf16 %v1644, %v1643
        %v5377 = vpack.c.bf16 %v1646, %v1645
        %v5378 = vpack.c.bf16 %v1648, %v1647
        %v5379 = vpack.c.bf16 %v1650, %v1649
        %v5380 = vpack.c.bf16 %v1652, %v1651
        %v5382 = vlaneseq
        %v5383 = vshrl.u32 %v5382, 7
        %v5384 = vsub.s32 0, %v5383
        %v5385 = vrot.slane %v1653, %v5384
        %5387 = vmatprep.subr.bf16.mxu0 0
        %5388 = vmatpush1.bf16.msra.mxu0 %v5373
        %5389 = vmatprep.subr.bf16.mxu0 0
        %5390 = vmatpush1.bf16.msra.mxu0 %v5374
        %5391 = vmatprep.subr.bf16.mxu0 0
        %5392 = vmatpush1.bf16.msra.mxu0 %v5375
        %5393 = vmatprep.subr.bf16.mxu0 0
        %5394 = vmatpush1.bf16.msra.mxu0 %v5376
        %5395 = vmatprep.subr.bf16.mxu0 0
        %5396 = vmatpush1.bf16.msra.mxu0 %v5377
        %5397 = vmatprep.subr.bf16.mxu0 0
        %5398 = vmatpush1.bf16.msra.mxu0 %v5378
        %5399 = vmatprep.subr.bf16.mxu0 0
        %5400 = vmatpush1.bf16.msra.mxu0 %v5379
        %5401 = vmatprep.subr.bf16.mxu0 0
        %5402 = vmatpush1.bf16.msra.mxu0 %v5380
        %5403 = vmatprep.subr.bf16.mxu0 0
        %5404 = vmatpush1.bf16.msra.mxu0 0
        %5405 = vmatprep.subr.bf16.mxu0 0
        %5406 = vmatpush1.bf16.msra.mxu0 0
        %5407 = vmatprep.subr.bf16.mxu0 0
        %5408 = vmatpush1.bf16.msra.mxu0 0
        %5409 = vmatprep.subr.bf16.mxu0 0
        %5410 = vmatpush1.bf16.msra.mxu0 0
        %5411 = vmatprep.subr.bf16.mxu0 0
        %5412 = vmatpush1.bf16.msra.mxu0 0
        %5413 = vmatprep.subr.bf16.mxu0 0
        %5414 = vmatpush1.bf16.msra.mxu0 0
        %5415 = vmatprep.subr.bf16.mxu0 0
        %5416 = vmatpush1.bf16.msra.mxu0 0
        %5417 = vmatprep.subr.bf16.mxu0 0
        %5418 = vmatpush1.bf16.msra.mxu0 0
        %5419 = vmatprep.mubr.bf16.mxu0 0
        %5420 = vmatmul.mubr.bf16.gmra.mrb[0].mxu0 %v5371
        %v5421 = vpop.f32.mrb[0].mxu0
        %v5422 = vadd.f32 %v5385, %v5421
        %v5423 = vpop.f32.mrb[0].mxu0
        %v5424 = vpop.f32.mrb[0].mxu0
        %v5425 = vadd.f32 %v5385, %v5424
        %v5426 = vpop.f32.mrb[0].mxu0
        %5427 = vmatprep.mubr.bf16.mxu0 0
        %5428 = vmatmul.mubr.bf16.gmra.mrb[0].mxu0 %v5372
        %v5429 = vpop.f32.mrb[0].mxu0
        %v5430 = vadd.f32 %v5385, %v5429
        %v5431 = vpop.f32.mrb[0].mxu0
        %v5432 = vpop.f32.mrb[0].mxu0
        %v5433 = vadd.f32 %v5385, %v5432
        %v5434 = vpop.f32.mrb[0].mxu0
        %5435 = vdwg.mxu0
        %v5436 = vadd.f32 %v5266, %v5422
        %v5437 = vadd.f32 %v5267, %v5425
        %v5438 = vadd.f32 %v5268, %v5430
        %v5439 = vadd.f32 %v5269, %v5433
        %v5440 = vsel %vm1676, %v5436, 0.0
        %5441 = vadd.xlane.f32.xlu0 %v5440
        %v5442 = vpop.xlane.xlu0 %5441
        %v5443 = vsel %vm1676, %v5437, 0.0
        %5444 = vadd.xlane.f32.xlu0 %v5443
        %v5445 = vpop.xlane.xlu0 %5444
        %v5446 = vsel %vm1676, %v5438, 0.0
        %5447 = vadd.xlane.f32.xlu0 %v5446
        %v5448 = vpop.xlane.xlu0 %5447
        %v5449 = vsel %vm1676, %v5439, 0.0
        %5450 = vadd.xlane.f32.xlu0 %v5449
        %v5451 = vpop.xlane.xlu0 %5450
        %v5452 = vmul.f32 %v5442, %v2845
        %v5453 = vmul.f32 %v5445, %v2845
        %v5454 = vmul.f32 %v5448, %v2845
        %v5455 = vmul.f32 %v5451, %v2845
        %v5456 = vsub.f32 %v5436, %v5452
        %v5457 = vsub.f32 %v5437, %v5453
        %v5458 = vsub.f32 %v5438, %v5454
        %v5459 = vsub.f32 %v5439, %v5455
        %v5460 = vmul.f32 %v5456, %v5456
        %v5461 = vmul.f32 %v5457, %v5457
        %v5462 = vmul.f32 %v5458, %v5458
        %v5463 = vmul.f32 %v5459, %v5459
        %v5464 = vsel %vm1676, %v5460, 0.0
        %5465 = vadd.xlane.f32.xlu0 %v5464
        %v5466 = vpop.xlane.xlu0 %5465
        %v5467 = vsel %vm1676, %v5461, 0.0
        %5468 = vadd.xlane.f32.xlu0 %v5467
        %v5469 = vpop.xlane.xlu0 %5468
        %v5470 = vsel %vm1676, %v5462, 0.0
        %5471 = vadd.xlane.f32.xlu0 %v5470
        %v5472 = vpop.xlane.xlu0 %5471
        %v5473 = vsel %vm1676, %v5463, 0.0
        %5474 = vadd.xlane.f32.xlu0 %v5473
        %v5475 = vpop.xlane.xlu0 %5474
        %v5476 = vmul.f32 %v5466, %v2845
        %v5477 = vmul.f32 %v5469, %v2845
        %v5478 = vmul.f32 %v5472, %v2845
        %v5479 = vmul.f32 %v5475, %v2845
        %v5480 = vadd.f32 %v5476, 1e-05
        %v5481 = vadd.f32 %v5477, 1e-05
        %v5482 = vadd.f32 %v5478, 1e-05
        %v5483 = vadd.f32 %v5479, 1e-05
        %v5484 = vrsqrt.pop %v5480
        %v5485 = vrsqrt.pop %v5481
        %v5486 = vrsqrt.pop %v5482
        %v5487 = vrsqrt.pop %v5483
        %v5488 = vmul.f32 %v5456, %v5484
        %v5489 = vmul.f32 %v5457, %v5485
        %v5490 = vmul.f32 %v5458, %v5486
        %v5491 = vmul.f32 %v5459, %v5487
        %v5493 = vlaneseq
        %v5494 = vshrl.u32 %v5493, 7
        %v5495 = vsub.s32 0, %v5494
        %v5496 = vrot.slane %v1654, %v5495
        %v5498 = vmul.f32 %v5488, %v5496
        %v5499 = vmul.f32 %v5489, %v5496
        %v5500 = vmul.f32 %v5490, %v5496
        %v5501 = vmul.f32 %v5491, %v5496
        %v5503 = vlaneseq
        %v5504 = vshrl.u32 %v5503, 7
        %v5505 = vsub.s32 0, %v5504
        %v5506 = vrot.slane %v1655, %v5505
        %v5508 = vadd.f32 %v5498, %v5506
        %v5509 = vadd.f32 %v5499, %v5506
        %v5510 = vadd.f32 %v5500, %v5506
        %v5511 = vadd.f32 %v5501, %v5506
        %5512 = vst.msk [vmem:[%s1537] sm:$0xff] %vm1676, %v5508
        %5513 = vst.msk [vmem:[%s1537 + $0x8] sm:$0xff] %vm1676, %v5509
        %5514 = vst.msk [vmem:[%s1537 + $0x10] sm:$0xff] %vm1676, %v5510
        %5515 = vst.msk [vmem:[%s1537 + $0x18] sm:$0xff] %vm1676, %v5511
        %s5516 = sand.u32 %s1071, 1
        %s5517 = scalar_lea.sflag [#allocation4], %s5516
        %s5518 = sand.u32 %s1071, 1
        %s5519 = smul.addr %s5518, 32
        %s5520 = scalar_lea.vmem [#allocation26], %s5519
        // Predicated region
        $region261: #{two_stage_attention.1} parent=199 // pred_check
          %p5521 = pneg %p1081
        $region262: #{two_stage_attention.1} parent=199 // pred_check_branch
          %5523 = sbr.rel (%p5521) target = $region264
        $region263: #{two_stage_attention.1} parent=199 // pred_region
          %s5525 = ssub.s32 512, 512
          %5526 = vsyncadd %s5517, %s5525
          %s5527 = smul.addr %s113, 4
          %s5528 = smul.addr %s5527, 128
          %s5529 = scalar_lea.hbm %s91, %s5528
          %s5530 = sshll.u32 %s5520, 4
          %s5531 = int_to_ptr.vmem [resolvable:$true] %s5530
          %5536 = dma.vmem_to_hbm [thread:$0]  %s5531, 512, %s5529, %s5517, 128, 128, 8
        $region264: #{two_stage_attention.1} parent=199 // pred_fallthru
          _
      $region200: #{two_stage_attention.1} parent=5 // pred_fallthru
        _
      %p5537 = scmp.le.s32.totalorder 2, %s108
      // Predicated region
      $region265: #{two_stage_attention.1} parent=5 // pred_check
        %p5538 = pneg %p5537
      $region266: #{two_stage_attention.1} parent=5 // pred_check_branch
        %5540 = sbr.rel (%p5538) target = $region268
      $region267: #{two_stage_attention.1} parent=5 // pred_region
        %s5541 = ssub.s32 %s108, 2
        // Predicated region
        $region269: #{two_stage_attention.1} parent=267 // pred_check
          %p5542 = pneg %p1087
        $region270: #{two_stage_attention.1} parent=267 // pred_check_branch
          %5544 = sbr.rel (%p5542) target = $region272
        $region271: #{two_stage_attention.1} parent=267 // pred_region
          %s5545 = sand.u32 %s1072, 1
          %s5546 = scalar_lea.sflag [#allocation4], %s5545
          %s5547 = sand.u32 %s1072, 1
          %s5548 = smul.addr %s5547, 32
          %s5549 = scalar_lea.vmem [#allocation26], %s5548
          %5550 = dma.done %s5546, 512
        $region272: #{two_stage_attention.1} parent=267 // pred_fallthru
          _
      $region268: #{two_stage_attention.1} parent=5 // pred_fallthru
        _
    $region6: #{two_stage_attention.1} parent=1 // loop_footer
      %s112 = sadd.s32 1, %s108
    $region7: #{two_stage_attention.1} parent=1 // loop_footer_branch
      %107 = sbr.rel target = $region3
    $region8: #{two_stage_attention.1} parent=1 // loop_exit
      _
    %5551 = vsyncpa [#allocation3], 1
    %s5552 = scalar_lea.sflag [#allocation3], 1
    %5553 = vsyncpa %s5552, 1
    %5554 = vsyncpa [#allocation6], 1
    %5555 = vsyncpa [#allocation9], 1
    %5556 = vsyncpa [#allocation12], 1
    %5557 = vsyncpa [#allocation15], 1
    %5558 = vsyncpa [#allocation18], 1
    %5559 = vsyncpa [#allocation21], 1
    %5560 = vsyncpa [#allocation24], 1
    %5561 = vsyncpa [#allocation4], 1
    %s5562 = scalar_lea.sflag [#allocation4], 1
    %5563 = vsyncpa %s5562, 1

</llo_original>
